<compile_context>
chip_gen: v6e
topology: v6e:2x2x1
jax: 0.10.0
libtpu: 0.0.40
codegen_flags: <defaults>
</compile_context>

<pallas_src>
import functools

import jax
import jax.numpy as jnp
from jax.experimental import pallas as pl
from jax.experimental.pallas import tpu as pltpu


def satformer_kernel(x_ref, w_ref, band_ref, rep_ref, out_ref, *, hidden, seq_len):
    """Processes one batch tile of independent examples per grid step."""
    bt = x_ref.shape[0]
    nf = 2 * hidden + 2                                       # [Q | K | mean_d(V) | ones]

    # Weight slab: rows 0..H-1 = fused weight, row H = fused bias.
    wmat = w_ref[:hidden, :]                                   # (H, F)
    bias = w_ref[hidden:hidden + 1, :]                         # (1, F)

    # One big MXU push for the whole tile: (BT*S, H) @ (H, F).
    x2 = x_ref[...].reshape(bt * seq_len, hidden)
    fused = jnp.dot(x2, wmat, preferred_element_type=jnp.float32) + bias
    fused = fused.reshape(bt, seq_len, nf)

    q = fused[..., :hidden]                                    # already * scaling
    k = fused[..., hidden:2 * hidden]
    va = fused[..., 2 * hidden:]                               # (BT, S, 2): [mean_d V | 1]

    # Per-example scores (batched matmul), multiplicative band mask, online max.
    scores = jnp.einsum('bqd,bkd->bqk', q, k,
                        preferred_element_type=jnp.float32)    # (BT, S, S)
    masked = scores * band_ref[...]                            # (S, S) broadcast over batch

    m = jnp.max(masked, axis=-1, keepdims=True)
    e = jnp.exp(masked - m)

    # One small matmul gives both sum_k e*mean_d(V) and sum_k e (the ones column).
    pv = jnp.einsum('bqk,bkx->bqx', e, va,
                    preferred_element_type=jnp.float32)        # (BT, S, 2)
    pooled = pv[..., 0] * pl.reciprocal(pv[..., 1], approx=True)   # (BT, S)

    # width 16 -> 128 exact repeat-by-8 (+ head mean = no-op): lane-dense output.
    out_ref[...] = jnp.dot(pooled, rep_ref[...],
                           preferred_element_type=jnp.float32)     # (BT, 128)


def _fused_constants(params, hidden, heads, seq_len, out_width):
    """Host-side grid-invariant constants: weight slab, band mask, replication."""
    head_dim = hidden // heads
    scaling = head_dim ** (-0.5)

    # Columns: [scaling*Wq.T | Wk.T | mean-over-out-dim(Wv) | zeros(ones via bias)]
    w_cols = jnp.concatenate(
        [params["wq"].T * scaling,
         params["wk"].T,
         params["wv"].mean(axis=0)[:, None],
         jnp.zeros((hidden, 1), jnp.float32)], axis=1)               # (H, 2H+2)
    b_row = jnp.concatenate(
        [params["bq"] * scaling,
         params["bk"],
         params["bv"].mean(keepdims=True),
         jnp.ones((1,), jnp.float32)])[None, :]                      # (1, 2H+2)
    w_slab = jnp.concatenate([w_cols, b_row], axis=0)                # (H+1, 2H+2)

    idx = jnp.arange(seq_len)
    band = (jnp.abs(idx[:, None] - idx[None, :]) <= 1).astype(jnp.float32)   # (S, S)

    rep = (jnp.arange(out_width)[None, :] // (out_width // seq_len)
           == jnp.arange(seq_len)[:, None]).astype(jnp.float32)              # (S, 128)
    return w_slab, band, rep


def satformer_block_batched(xs, params, heads, *, batch_tile=32):
    """xs: (B, S, H) batch of independent examples -> (B, 128)."""
    B, S, H = xs.shape
    assert H == 16, "hidden_size must be 16 (forced by .view(heads, seq_len, 16))"
    assert S == 16, "in-kernel pooling assumes seq_len == 16 (view/pool constraint)"
    assert H % heads == 0
    OUT_W = 128
    F = 2 * H + 2

    w_slab, band, rep = _fused_constants(params, H, heads, S, OUT_W)

    BT = batch_tile
    pad = (-B) % BT
    if pad:
        xs = jnp.concatenate([xs, jnp.zeros((pad, S, H), xs.dtype)], axis=0)
    Bp = B + pad
    grid = (Bp // BT,)

    flops_per_ex = 2 * S * H * F + 2 * S * S * H + 2 * S * S * 2 + 2 * S * OUT_W
    cost = pl.CostEstimate(
        flops=Bp * flops_per_ex,
        transcendentals=Bp * (S * S + S),
        bytes_accessed=4 * (Bp * S * H + Bp * OUT_W + (H + 1) * F + S * S + S * OUT_W),
    )

    out = pl.pallas_call(
        functools.partial(satformer_kernel, hidden=H, seq_len=S),
        out_shape=jax.ShapeDtypeStruct((Bp, OUT_W), jnp.float32),
        grid=grid,
        in_specs=[
            pl.BlockSpec((BT, S, H), lambda i: (i, 0, 0)),     # per-step batch tile
            pl.BlockSpec((H + 1, F), lambda i: (0, 0)),        # resident constants
            pl.BlockSpec((S, S), lambda i: (0, 0)),
            pl.BlockSpec((S, OUT_W), lambda i: (0, 0)),
        ],
        out_specs=pl.BlockSpec((BT, OUT_W), lambda i: (i, 0)),
        compiler_params=pltpu.CompilerParams(
            dimension_semantics=("parallel",)),                # megacore on v7x
        cost_estimate=cost,
    )(xs.astype(jnp.float32), w_slab, band, rep)
    return out[:B]


def satformer_block(x, params, heads):
    """Single-example forward, identical semantics to the PyTorch module."""
    return satformer_block_batched(x[None], params, heads, batch_tile=8)[0]


def reference_single(x, params, heads):
    """Pure-JAX transliteration of the PyTorch forward, for validation."""
    S, H = x.shape
    head_dim = H // heads
    q = x @ params["wq"].T + params["bq"]
    k = x @ params["wk"].T + params["bk"]
    v = x @ params["wv"].T + params["bv"]
    scores = (q @ k.T) * head_dim ** (-0.5)
    idx = jnp.arange(S)
    mask = (jnp.abs(idx[:, None] - idx[None, :]) <= 1).astype(jnp.float32)
    mask = jnp.broadcast_to(mask, (heads, S, S))
    masked = scores[None] * mask
    probs = jax.nn.softmax(masked, axis=-1)
    attn = jnp.einsum("hqk,kd->hqd", probs, v)                 # (heads, S, H)
    b = jnp.transpose(attn, (0, 2, 1)).reshape(heads, S, 16)
    y = b.mean(axis=1)                                         # pool height 16 -> 1
    y = jnp.repeat(y, 128 // 16, axis=-1)                      # pool width 16 -> 128
    return y.mean(axis=0)                                      # (128,)


def init_params(key, hidden_size):
    ks = jax.random.split(key, 6)
    bound = (6.0 / (hidden_size + hidden_size)) ** 0.5         # xavier uniform
    u = lambda k: jax.random.uniform(k, (hidden_size, hidden_size),
                                     jnp.float32, -bound, bound)
    params = {
        "wq": u(ks[0]), "bq": jnp.zeros((hidden_size,), jnp.float32),
        "wk": u(ks[1]), "bk": jnp.zeros((hidden_size,), jnp.float32),
        "wv": u(ks[2]), "bv": jnp.zeros((hidden_size,), jnp.float32),
        # Present in __init__ but unused by forward():
        "sparse_weights": u(ks[3]),
        "w_out": u(ks[4]), "b_out": jnp.zeros((hidden_size,), jnp.float32),
    }
    return params


if __name__ == "__main__":
    hidden_size = 16      # forced by .view(heads, seq_len, 16) in forward
    heads = 4
    seq_len = 16
    batch = 128           # many independent examples per call (32 per grid step)

    key = jax.random.PRNGKey(0)
    kx, kp = jax.random.split(key)
    xs = jax.random.normal(kx, (batch, seq_len, hidden_size), jnp.float32)
    params = init_params(kp, hidden_size)

    out = jax.block_until_ready(satformer_block_batched(xs, params, heads))
    ref = jax.block_until_ready(
        jax.vmap(lambda x: reference_single(x, params, heads))(xs))

    assert out.shape == (batch, 128)
    assert jnp.allclose(out, ref, rtol=1e-2, atol=1e-2)

    # Single-example path (exact module signature) also matches.
    out1 = jax.block_until_ready(satformer_block(xs[0], params, heads))
    assert out1.shape == (128,)
    assert jnp.allclose(out1, ref[0], rtol=1e-2, atol=1e-2)

    print("KERNEL_OK")
</pallas_src>

<mosaic_0001>
module attributes {stable_mosaic.version = 11 : i64} {
  func.func @satformer_kernel(%arg0: i32, %arg1: memref<32x16x16xf32, #tpu.memory_space<vmem>>, %arg2: memref<17x34xf32, #tpu.memory_space<vmem>>, %arg3: memref<16x16xf32, #tpu.memory_space<vmem>>, %arg4: memref<16x128xf32, #tpu.memory_space<vmem>>, %arg5: memref<32x128xf32, #tpu.memory_space<vmem>>) attributes {dimension_semantics = [#tpu.dimension_semantics<parallel>], iteration_bounds = array<i64: 4>, scalar_prefetch = 0 : i64, scratch_operands = 0 : i64, tpu.core_type = #tpu.core_type<tc>, window_params = [{transform_indices = @transform_0, window_bounds = array<i64: 32, 16, 16>}, {pipeline_mode = #tpu.pipeline_mode<synchronous>, transform_indices = @transform_1, window_bounds = array<i64: 17, 34>}, {pipeline_mode = #tpu.pipeline_mode<synchronous>, transform_indices = @transform_2, window_bounds = array<i64: 16, 16>}, {pipeline_mode = #tpu.pipeline_mode<synchronous>, transform_indices = @transform_3, window_bounds = array<i64: 16, 128>}, {transform_indices = @transform_4, window_bounds = array<i64: 32, 128>}]} {
    %c0 = arith.constant 0 : index
    %c0_0 = arith.constant 0 : index
    %0 = vector.load %arg2[%c0, %c0_0] : memref<17x34xf32, #tpu.memory_space<vmem>>, vector<16x34xf32>
    %c16 = arith.constant 16 : index
    %c0_1 = arith.constant 0 : index
    %1 = vector.load %arg2[%c16, %c0_1] : memref<17x34xf32, #tpu.memory_space<vmem>>, vector<1x34xf32>
    %c0_2 = arith.constant 0 : index
    %c0_3 = arith.constant 0 : index
    %c0_4 = arith.constant 0 : index
    %2 = vector.load %arg1[%c0_2, %c0_3, %c0_4] : memref<32x16x16xf32, #tpu.memory_space<vmem>>, vector<32x16x16xf32>
    %3 = vector.shape_cast %2 : vector<32x16x16xf32> to vector<512x16xf32>
    %cst = arith.constant dense<0.000000e+00> : vector<512x34xf32>
    %4 = tpu.matmul %3, %0, %cst {dimension_numbers = #tpu.dot_dimension_numbers<[1], [0], [0], [1], [0, 0, 1, 1], [], []>} : vector<512x16xf32>, vector<16x34xf32>, vector<512x34xf32> -> vector<512x34xf32>
    %5 = vector.broadcast %1 : vector<1x34xf32> to vector<512x34xf32>
    %6 = arith.addf %4, %5 : vector<512x34xf32>
    %7 = vector.shape_cast %6 : vector<512x34xf32> to vector<32x16x34xf32>
    %8 = vector.extract_strided_slice %7 {offsets = [0, 0, 0], sizes = [32, 16, 16], strides = [1, 1, 1]} : vector<32x16x34xf32> to vector<32x16x16xf32>
    %9 = vector.extract_strided_slice %7 {offsets = [0, 0, 16], sizes = [32, 16, 16], strides = [1, 1, 1]} : vector<32x16x34xf32> to vector<32x16x16xf32>
    %10 = vector.extract_strided_slice %7 {offsets = [0, 0, 32], sizes = [32, 16, 2], strides = [1, 1, 1]} : vector<32x16x34xf32> to vector<32x16x2xf32>
    "tpu.trace_start"() <{level = 10 : i32, message = "bqd,bkd->bqk"}> : () -> ()
    %cst_5 = arith.constant dense<0.000000e+00> : vector<32x16x16xf32>
    %11 = tpu.matmul %8, %9, %cst_5 {dimension_numbers = #tpu.dot_dimension_numbers<[2], [2], [1], [1], [0, 0, 0, 1, 1, 1], [0], [0]>} : vector<32x16x16xf32>, vector<32x16x16xf32>, vector<32x16x16xf32> -> vector<32x16x16xf32>
    "tpu.trace_stop"() : () -> ()
    %c0_6 = arith.constant 0 : index
    %c0_7 = arith.constant 0 : index
    %12 = vector.load %arg3[%c0_6, %c0_7] : memref<16x16xf32, #tpu.memory_space<vmem>>, vector<16x16xf32>
    %13 = vector.shape_cast %12 : vector<16x16xf32> to vector<1x16x16xf32>
    %14 = vector.broadcast %13 : vector<1x16x16xf32> to vector<32x16x16xf32>
    %15 = arith.mulf %11, %14 : vector<32x16x16xf32>
    %cst_8 = arith.constant dense<0xFF800000> : vector<32x16xf32>
    %16 = vector.multi_reduction <maximumf>, %15, %cst_8 [2] : vector<32x16x16xf32> to vector<32x16xf32>
    %17 = vector.shape_cast %16 : vector<32x16xf32> to vector<32x16x1xf32>
    %18 = vector.broadcast %17 : vector<32x16x1xf32> to vector<32x16x16xf32>
    %19 = arith.subf %15, %18 : vector<32x16x16xf32>
    %20 = math.exp %19 : vector<32x16x16xf32>
    "tpu.trace_start"() <{level = 10 : i32, message = "bqk,bkx->bqx"}> : () -> ()
    %cst_9 = arith.constant dense<0.000000e+00> : vector<32x16x2xf32>
    %21 = tpu.matmul %20, %10, %cst_9 {dimension_numbers = #tpu.dot_dimension_numbers<[2], [1], [1], [2], [0, 0, 0, 1, 1, 2], [0], [0]>} : vector<32x16x16xf32>, vector<32x16x2xf32>, vector<32x16x2xf32> -> vector<32x16x2xf32>
    "tpu.trace_stop"() : () -> ()
    %22 = vector.extract_strided_slice %21 {offsets = [0, 0, 0], sizes = [32, 16, 1], strides = [1, 1, 1]} : vector<32x16x2xf32> to vector<32x16x1xf32>
    %23 = vector.shape_cast %22 : vector<32x16x1xf32> to vector<32x16xf32>
    %24 = vector.extract_strided_slice %21 {offsets = [0, 0, 1], sizes = [32, 16, 1], strides = [1, 1, 1]} : vector<32x16x2xf32> to vector<32x16x1xf32>
    %25 = vector.shape_cast %24 : vector<32x16x1xf32> to vector<32x16xf32>
    %26 = tpu.reciprocal %25 {approx = true} : vector<32x16xf32> -> vector<32x16xf32>
    %27 = arith.mulf %23, %26 : vector<32x16xf32>
    %c0_10 = arith.constant 0 : index
    %c0_11 = arith.constant 0 : index
    %28 = vector.load %arg4[%c0_10, %c0_11] : memref<16x128xf32, #tpu.memory_space<vmem>>, vector<16x128xf32>
    %cst_12 = arith.constant dense<0.000000e+00> : vector<32x128xf32>
    %29 = tpu.matmul %27, %28, %cst_12 {dimension_numbers = #tpu.dot_dimension_numbers<[1], [0], [0], [1], [0, 0, 1, 1], [], []>} : vector<32x16xf32>, vector<16x128xf32>, vector<32x128xf32> -> vector<32x128xf32>
    %c0_13 = arith.constant 0 : index
    %c0_14 = arith.constant 0 : index
    %30 = vector.load %arg5[%c0_13, %c0_14] : memref<32x128xf32, #tpu.memory_space<vmem>>, vector<32x128xf32>
    tpu.vector_store %arg5[%c0_13, %c0_14], %29 {strides = array<i32>} : memref<32x128xf32, #tpu.memory_space<vmem>>, vector<32x128xf32>,
    return
  }
  func.func @transform_0(%arg0: i32) -> (i32, i32, i32) {
    %c0_i32 = arith.constant 0 : i32
    %c0_i32_0 = arith.constant 0 : i32
    %c0_i32_1 = arith.constant 0 : i32
    return %arg0, %c0_i32, %c0_i32_0 : i32, i32, i32
  }
  func.func @transform_1(%arg0: i32) -> (i32, i32) {
    %c0_i32 = arith.constant 0 : i32
    %c0_i32_0 = arith.constant 0 : i32
    %c0_i32_1 = arith.constant 0 : i32
    return %c0_i32, %c0_i32_0 : i32, i32
  }
  func.func @transform_2(%arg0: i32) -> (i32, i32) {
    %c0_i32 = arith.constant 0 : i32
    %c0_i32_0 = arith.constant 0 : i32
    %c0_i32_1 = arith.constant 0 : i32
    return %c0_i32, %c0_i32_0 : i32, i32
  }
  func.func @transform_3(%arg0: i32) -> (i32, i32) {
    %c0_i32 = arith.constant 0 : i32
    %c0_i32_0 = arith.constant 0 : i32
    %c0_i32_1 = arith.constant 0 : i32
    return %c0_i32, %c0_i32_0 : i32, i32
  }
  func.func @transform_4(%arg0: i32) -> (i32, i32) {
    %c0_i32 = arith.constant 0 : i32
    %c0_i32_0 = arith.constant 0 : i32
    return %arg0, %c0_i32 : i32, i32
  }
}

</mosaic_0001>

<llo_original>
// kernel: tpu_custom_call.1
$region0: #{tpu_custom_call.1}
  #allocation0 [shape = 'u32[]', space=smem, size = 0x4, offset = 0x4, fixed_abs, tag = 'smem constant byte address 0x4 - core index']
  #allocation1 [shape = 'u32[144,128]{1,0:T(1,128)}', space=vmem, size = 0x12000, scoped, tag = 'internal scratch']
  %s0 = inlined_call_operand.vmem [shape: f32[128,16,16], index: 0, kind: input, shape index: {}]
  %s1 = inlined_call_operand.vmem [shape: f32[17,34], index: 1, kind: input, shape index: {}]
  %s2 = inlined_call_operand.vmem [shape: f32[16,16], index: 2, kind: input, shape index: {}]
  %s3 = inlined_call_operand.vmem [shape: f32[16,128], index: 3, kind: input, shape index: {}]
  %s4 = inlined_call_operand.hbm [shape: f32[128,128], index: 4, kind: output, shape index: {}]
  %s5 = sld [smem:[#allocation0]]
  $region49: #{tpu_custom_call.1} parent=0
    _
  %s7 = ssub.s32 1, %s5
  %s8 = scalar_select 0, %s7, %s5
  $region1: #{tpu_custom_call.1} parent=0
    #allocation2 [shape = 'u8[32768]{0}', space=vmem, size = 0x8000, scoped, tag = 'output window, operand 0']
    #allocation3 [shape = 's32[2]{0}', space=sflag, size = 0x8, scoped, tag = 'scoped memory for tpu_custom_call.1']
    %9 = vsyncpa [#allocation3], 0
    %s10 = scalar_lea.sflag [#allocation3], 1
    %11 = vsyncpa %s10, 0
    loop: start=0, step=1, limit=6
    $region2: #{tpu_custom_call.1} parent=1 // loop_pre_header
      _
    $region3: #{tpu_custom_call.1} parent=1 // loop_header
      %s13 = sphi 0, %s17
      %p14 = scmp.ge.s32.totalorder %s13, 6
      %s23 = sphi 0, %s25
      %s26 = sphi 0, %s23
      %s27 = sphi 0, %s26
      %s43 = sphi 0, %s27
      %s47 = sphi 0, %s47
      %s49 = sphi 0, %s47
      %s50 = sphi 0, %s49
      %s64 = sphi 0, %s50
      %s68 = sphi 0, %s68
      %s70 = sphi 0, %s68
      %s71 = sphi 0, %s70
      %s85 = sphi 0, %s71
      %s89 = sphi 0, %s89
      %s91 = sphi 0, %s89
      %s92 = sphi 0, %s91
      %s106 = sphi 0, %s92
      %s112 = sphi 0, %s114
      %s115 = sphi 0, %s112
      %s116 = sphi 0, %s115
      %s132 = sphi 0, %s116
    $region4: #{tpu_custom_call.1} parent=1 // loop_header_branch
      %16 = sbr.rel (%p14) target = $region8
    $region5: #{tpu_custom_call.1} parent=1 // loop_body
      %s18 = ssub.s32 %s13, 1
      %s19 = ssub.s32 %s13, 2
      %s20 = sadd.s32 %s13, 1
      %s21 = ssub.s32 %s13, %s20
      %p22 = scmp.eq.s32.totalorder %s21, 0
      %s24 = sadd.s32 %s23, 1
      %s25 = scalar_select %p22, %s23, %s24
      %p28 = pneg %p22
      %p29 = scmp.eq.s32.totalorder %s13, 3
      %p30 = por %p28, %p29
      %p31 = scmp.ne.s32.totalorder %s23, %s26
      %p32 = scmp.eq.s32.totalorder %s13, 0
      %p33 = por %p31, %p32
      %p34 = scmp.ne.s32.totalorder %s23, %s26
      %p35 = scmp.eq.s32.totalorder %s18, 3
      %p36 = por %p34, %p35
      %p37 = scmp.ne.s32.totalorder %s26, %s27
      %p38 = scmp.eq.s32.totalorder %s18, 0
      %p39 = por %p37, %p38
      %p40 = scmp.ne.s32.totalorder %s26, %s27
      %p41 = scmp.eq.s32.totalorder %s19, 3
      %p42 = por %p40, %p41
      %p44 = scmp.ne.s32.totalorder %s27, %s43
      %p45 = scmp.eq.s32.totalorder %s19, 0
      %p46 = por %p44, %p45
      %s48 = sadd.s32 %s47, 1
      %p51 = scmp.eq.s32.totalorder %s13, 3
      %p52 = scmp.ne.s32.totalorder %s47, %s49
      %p53 = scmp.eq.s32.totalorder %s13, 0
      %p54 = por %p52, %p53
      %p55 = scmp.ne.s32.totalorder %s47, %s49
      %p56 = scmp.eq.s32.totalorder %s18, 3
      %p57 = por %p55, %p56
      %p58 = scmp.ne.s32.totalorder %s49, %s50
      %p59 = scmp.eq.s32.totalorder %s18, 0
      %p60 = por %p58, %p59
      %p61 = scmp.ne.s32.totalorder %s49, %s50
      %p62 = scmp.eq.s32.totalorder %s19, 3
      %p63 = por %p61, %p62
      %p65 = scmp.ne.s32.totalorder %s50, %s64
      %p66 = scmp.eq.s32.totalorder %s19, 0
      %p67 = por %p65, %p66
      %s69 = sadd.s32 %s68, 1
      %p72 = scmp.eq.s32.totalorder %s13, 3
      %p73 = scmp.ne.s32.totalorder %s68, %s70
      %p74 = scmp.eq.s32.totalorder %s13, 0
      %p75 = por %p73, %p74
      %p76 = scmp.ne.s32.totalorder %s68, %s70
      %p77 = scmp.eq.s32.totalorder %s18, 3
      %p78 = por %p76, %p77
      %p79 = scmp.ne.s32.totalorder %s70, %s71
      %p80 = scmp.eq.s32.totalorder %s18, 0
      %p81 = por %p79, %p80
      %p82 = scmp.ne.s32.totalorder %s70, %s71
      %p83 = scmp.eq.s32.totalorder %s19, 3
      %p84 = por %p82, %p83
      %p86 = scmp.ne.s32.totalorder %s71, %s85
      %p87 = scmp.eq.s32.totalorder %s19, 0
      %p88 = por %p86, %p87
      %s90 = sadd.s32 %s89, 1
      %p93 = scmp.eq.s32.totalorder %s13, 3
      %p94 = scmp.ne.s32.totalorder %s89, %s91
      %p95 = scmp.eq.s32.totalorder %s13, 0
      %p96 = por %p94, %p95
      %p97 = scmp.ne.s32.totalorder %s89, %s91
      %p98 = scmp.eq.s32.totalorder %s18, 3
      %p99 = por %p97, %p98
      %p100 = scmp.ne.s32.totalorder %s91, %s92
      %p101 = scmp.eq.s32.totalorder %s18, 0
      %p102 = por %p100, %p101
      %p103 = scmp.ne.s32.totalorder %s91, %s92
      %p104 = scmp.eq.s32.totalorder %s19, 3
      %p105 = por %p103, %p104
      %p107 = scmp.ne.s32.totalorder %s92, %s106
      %p108 = scmp.eq.s32.totalorder %s19, 0
      %p109 = por %p107, %p108
      %s110 = ssub.s32 %s13, %s20
      %p111 = scmp.eq.s32.totalorder %s110, 0
      %s113 = sadd.s32 %s112, 1
      %s114 = scalar_select %p111, %s112, %s113
      %p117 = pneg %p111
      %p118 = scmp.eq.s32.totalorder %s13, 3
      %p119 = por %p117, %p118
      %p120 = scmp.ne.s32.totalorder %s112, %s115
      %p121 = scmp.eq.s32.totalorder %s13, 0
      %p122 = por %p120, %p121
      %p123 = scmp.ne.s32.totalorder %s112, %s115
      %p124 = scmp.eq.s32.totalorder %s18, 3
      %p125 = por %p123, %p124
      %p126 = scmp.ne.s32.totalorder %s115, %s116
      %p127 = scmp.eq.s32.totalorder %s18, 0
      %p128 = por %p126, %p127
      %p129 = scmp.ne.s32.totalorder %s115, %s116
      %p130 = scmp.eq.s32.totalorder %s19, 3
      %p131 = por %p129, %p130
      %p133 = scmp.ne.s32.totalorder %s116, %s132
      %p134 = scmp.eq.s32.totalorder %s19, 0
      %p135 = por %p133, %p134
      %p136 = scmp.le.s32.totalorder 1, %s13
      %p137 = scmp.lt.s32.totalorder %s13, 5
      %p138 = pnand %p136, %p137
      %p139 = pneg %p138
      // Predicated region
      $region9: #{tpu_custom_call.1} parent=5 // pred_check
        _
      $region10: #{tpu_custom_call.1} parent=5 // pred_check_branch
        %141 = sbr.rel (%p138) target = $region12
      $region11: #{tpu_custom_call.1} parent=5 // pred_region
        %s142 = ssub.s32 %s13, 1
        // Predicated region
        $region13: #{tpu_custom_call.1} parent=11 // pred_check
          %p143 = pneg %p60
        $region14: #{tpu_custom_call.1} parent=11 // pred_check_branch
          %145 = sbr.rel (%p143) target = $region16
        $region15: #{tpu_custom_call.1} parent=11 // pred_region
          _
        $region16: #{tpu_custom_call.1} parent=11 // pred_fallthru
          _
        // Predicated region
        $region17: #{tpu_custom_call.1} parent=11 // pred_check
          %p146 = pneg %p81
        $region18: #{tpu_custom_call.1} parent=11 // pred_check_branch
          %148 = sbr.rel (%p146) target = $region20
        $region19: #{tpu_custom_call.1} parent=11 // pred_region
          _
        $region20: #{tpu_custom_call.1} parent=11 // pred_fallthru
          _
        // Predicated region
        $region21: #{tpu_custom_call.1} parent=11 // pred_check
          %p149 = pneg %p102
        $region22: #{tpu_custom_call.1} parent=11 // pred_check_branch
          %151 = sbr.rel (%p149) target = $region24
        $region23: #{tpu_custom_call.1} parent=11 // pred_region
          _
        $region24: #{tpu_custom_call.1} parent=11 // pred_fallthru
          _
      $region12: #{tpu_custom_call.1} parent=5 // pred_fallthru
        _
      %p152 = scmp.lt.s32.totalorder %s13, 4
      // Predicated region
      $region25: #{tpu_custom_call.1} parent=5 // pred_check
        %p153 = pneg %p152
      $region26: #{tpu_custom_call.1} parent=5 // pred_check_branch
        %155 = sbr.rel (%p153) target = $region28
      $region27: #{tpu_custom_call.1} parent=5 // pred_region
        // Predicated region
        $region29: #{tpu_custom_call.1} parent=27 // pred_check
          %p156 = pneg %p33
        $region30: #{tpu_custom_call.1} parent=27 // pred_check_branch
          %158 = sbr.rel (%p156) target = $region32
        $region31: #{tpu_custom_call.1} parent=27 // pred_region
          %s159 = smul.u32 32, %s13
          %p160 = scmp.lt.s32.totalorder %s159, 127
          %s161 = scalar_select %p160, %s159, 127
          %s162 = smul.addr %s161, 2
          %s163 = smul.addr %s162, 8
          %s164 = scalar_lea.vmem %s0, %s163
          %s165 = smul.u32 32, %s13
        $region32: #{tpu_custom_call.1} parent=27 // pred_fallthru
          _
      $region28: #{tpu_custom_call.1} parent=5 // pred_fallthru
        _
      %p166 = scmp.le.s32.totalorder 1, %s13
      %p167 = scmp.lt.s32.totalorder %s13, 5
      %p168 = pnand %p166, %p167
      %p169 = pneg %p168
      // Predicated region
      $region33: #{tpu_custom_call.1} parent=5 // pred_check
        _
      $region34: #{tpu_custom_call.1} parent=5 // pred_check_branch
        %171 = sbr.rel (%p168) target = $region36
      $region35: #{tpu_custom_call.1} parent=5 // pred_region
        %s172 = ssub.s32 %s13, 1
        %s173 = smul.u32 32, %s18
        %p174 = scmp.lt.s32.totalorder %s173, 127
        %s175 = scalar_select %p174, %s173, 127
        %s176 = smul.addr %s175, 2
        %s177 = smul.addr %s176, 8
        %s178 = scalar_lea.vmem %s0, %s177
        %p179 = pneg %p39
        %p180 = pneg %p36
        %p181 = pneg %p60
        %p182 = pneg %p57
        %p183 = pneg %p81
        %p184 = pneg %p78
        %p185 = pneg %p102
        %p186 = pneg %p99
        %p187 = pneg %p128
        %p188 = pneg %p125
        %s189 = sand.u32 %s115, 1
        %s190 = scalar_lea.sflag [#allocation3], %s189
        %s191 = sand.u32 %s115, 1
        %s192 = smul.addr %s191, 32
        %s193 = scalar_lea.vmem [#allocation2], %s192
        %s194 = smul.u32 32, %s18
        %p195 = scmp.lt.s32.totalorder %s194, 127
        %s196 = scalar_select %p195, %s194, 127
        %s197 = smul.addr %s196, 2
        %s198 = smul.addr %s197, 8
        %s199 = scalar_lea.vmem %s0, %s198
        %s200 = smul.u32 32, %s18
        %s201 = smul.u32 4, %s18
        %v202 = vld [vmem:[%s1] sm:$0xff]
        %v203 = vld [vmem:[%s1 + $0x8] sm:$0xff]
        %v204 = vld [vmem:[%s1 + $0x10] sm:$0x1]
        %v205 = vld [vmem:[%s199] sm:$0xff]
        %v206 = vld [vmem:[%s199 + $0x8] sm:$0xff]
        %v207 = vld [vmem:[%s199 + $0x10] sm:$0xff]
        %v208 = vld [vmem:[%s199 + $0x18] sm:$0xff]
        %v209 = vld [vmem:[%s199 + $0x20] sm:$0xff]
        %v210 = vld [vmem:[%s199 + $0x28] sm:$0xff]
        %v211 = vld [vmem:[%s199 + $0x30] sm:$0xff]
        %v212 = vld [vmem:[%s199 + $0x38] sm:$0xff]
        %v213 = vld [vmem:[%s199 + $0x40] sm:$0xff]
        %v214 = vld [vmem:[%s199 + $0x48] sm:$0xff]
        %v215 = vld [vmem:[%s199 + $0x50] sm:$0xff]
        %v216 = vld [vmem:[%s199 + $0x58] sm:$0xff]
        %v217 = vld [vmem:[%s199 + $0x60] sm:$0xff]
        %v218 = vld [vmem:[%s199 + $0x68] sm:$0xff]
        %v219 = vld [vmem:[%s199 + $0x70] sm:$0xff]
        %v220 = vld [vmem:[%s199 + $0x78] sm:$0xff]
        %v221 = vld [vmem:[%s199 + $0x80] sm:$0xff]
        %v222 = vld [vmem:[%s199 + $0x88] sm:$0xff]
        %v223 = vld [vmem:[%s199 + $0x90] sm:$0xff]
        %v224 = vld [vmem:[%s199 + $0x98] sm:$0xff]
        %v225 = vld [vmem:[%s199 + $0xa0] sm:$0xff]
        %v226 = vld [vmem:[%s199 + $0xa8] sm:$0xff]
        %v227 = vld [vmem:[%s199 + $0xb0] sm:$0xff]
        %v228 = vld [vmem:[%s199 + $0xb8] sm:$0xff]
        %v229 = vld [vmem:[%s199 + $0xc0] sm:$0xff]
        %v230 = vld [vmem:[%s199 + $0xc8] sm:$0xff]
        %v231 = vld [vmem:[%s199 + $0xd0] sm:$0xff]
        %v232 = vld [vmem:[%s199 + $0xd8] sm:$0xff]
        %v233 = vld [vmem:[%s199 + $0xe0] sm:$0xff]
        %v234 = vld [vmem:[%s199 + $0xe8] sm:$0xff]
        %v235 = vld [vmem:[%s199 + $0xf0] sm:$0xff]
        %v236 = vld [vmem:[%s199 + $0xf8] sm:$0xff]
        %v237 = vld [vmem:[%s199 + $0x100] sm:$0xff]
        %v238 = vld [vmem:[%s199 + $0x108] sm:$0xff]
        %v239 = vld [vmem:[%s199 + $0x110] sm:$0xff]
        %v240 = vld [vmem:[%s199 + $0x118] sm:$0xff]
        %v241 = vld [vmem:[%s199 + $0x120] sm:$0xff]
        %v242 = vld [vmem:[%s199 + $0x128] sm:$0xff]
        %v243 = vld [vmem:[%s199 + $0x130] sm:$0xff]
        %v244 = vld [vmem:[%s199 + $0x138] sm:$0xff]
        %v245 = vld [vmem:[%s199 + $0x140] sm:$0xff]
        %v246 = vld [vmem:[%s199 + $0x148] sm:$0xff]
        %v247 = vld [vmem:[%s199 + $0x150] sm:$0xff]
        %v248 = vld [vmem:[%s199 + $0x158] sm:$0xff]
        %v249 = vld [vmem:[%s199 + $0x160] sm:$0xff]
        %v250 = vld [vmem:[%s199 + $0x168] sm:$0xff]
        %v251 = vld [vmem:[%s199 + $0x170] sm:$0xff]
        %v252 = vld [vmem:[%s199 + $0x178] sm:$0xff]
        %v253 = vld [vmem:[%s199 + $0x180] sm:$0xff]
        %v254 = vld [vmem:[%s199 + $0x188] sm:$0xff]
        %v255 = vld [vmem:[%s199 + $0x190] sm:$0xff]
        %v256 = vld [vmem:[%s199 + $0x198] sm:$0xff]
        %v257 = vld [vmem:[%s199 + $0x1a0] sm:$0xff]
        %v258 = vld [vmem:[%s199 + $0x1a8] sm:$0xff]
        %v259 = vld [vmem:[%s199 + $0x1b0] sm:$0xff]
        %v260 = vld [vmem:[%s199 + $0x1b8] sm:$0xff]
        %v261 = vld [vmem:[%s199 + $0x1c0] sm:$0xff]
        %v262 = vld [vmem:[%s199 + $0x1c8] sm:$0xff]
        %v263 = vld [vmem:[%s199 + $0x1d0] sm:$0xff]
        %v264 = vld [vmem:[%s199 + $0x1d8] sm:$0xff]
        %v265 = vld [vmem:[%s199 + $0x1e0] sm:$0xff]
        %v266 = vld [vmem:[%s199 + $0x1e8] sm:$0xff]
        %v267 = vld [vmem:[%s199 + $0x1f0] sm:$0xff]
        %v268 = vld [vmem:[%s199 + $0x1f8] sm:$0xff]
        %v269 = vlaneseq
        %v270 = vshrl.u32 %v269, 7
        %v271 = vsub.s32 0, %v270
        %v272 = vrot.slane %v204, %v271
        %vm273 = vcmask 130048
        %v275 = vsel %vm273, %v205, 0
        %v278 = vsel %vm273, %v206, 0
        %v281 = vsel %vm273, %v207, 0
        %v284 = vsel %vm273, %v208, 0
        %v287 = vsel %vm273, %v209, 0
        %v290 = vsel %vm273, %v210, 0
        %v293 = vsel %vm273, %v211, 0
        %v296 = vsel %vm273, %v212, 0
        %v299 = vsel %vm273, %v213, 0
        %v302 = vsel %vm273, %v214, 0
        %v305 = vsel %vm273, %v215, 0
        %v308 = vsel %vm273, %v216, 0
        %v311 = vsel %vm273, %v217, 0
        %v314 = vsel %vm273, %v218, 0
        %v317 = vsel %vm273, %v219, 0
        %v320 = vsel %vm273, %v220, 0
        %v323 = vsel %vm273, %v221, 0
        %v326 = vsel %vm273, %v222, 0
        %v329 = vsel %vm273, %v223, 0
        %v332 = vsel %vm273, %v224, 0
        %v335 = vsel %vm273, %v225, 0
        %v338 = vsel %vm273, %v226, 0
        %v341 = vsel %vm273, %v227, 0
        %v344 = vsel %vm273, %v228, 0
        %v347 = vsel %vm273, %v229, 0
        %v350 = vsel %vm273, %v230, 0
        %v353 = vsel %vm273, %v231, 0
        %v356 = vsel %vm273, %v232, 0
        %v359 = vsel %vm273, %v233, 0
        %v362 = vsel %vm273, %v234, 0
        %v365 = vsel %vm273, %v235, 0
        %v368 = vsel %vm273, %v236, 0
        %v371 = vsel %vm273, %v237, 0
        %v374 = vsel %vm273, %v238, 0
        %v377 = vsel %vm273, %v239, 0
        %v380 = vsel %vm273, %v240, 0
        %v383 = vsel %vm273, %v241, 0
        %v386 = vsel %vm273, %v242, 0
        %v389 = vsel %vm273, %v243, 0
        %v392 = vsel %vm273, %v244, 0
        %v395 = vsel %vm273, %v245, 0
        %v398 = vsel %vm273, %v246, 0
        %v401 = vsel %vm273, %v247, 0
        %v404 = vsel %vm273, %v248, 0
        %v407 = vsel %vm273, %v249, 0
        %v410 = vsel %vm273, %v250, 0
        %v413 = vsel %vm273, %v251, 0
        %v416 = vsel %vm273, %v252, 0
        %v419 = vsel %vm273, %v253, 0
        %v422 = vsel %vm273, %v254, 0
        %v425 = vsel %vm273, %v255, 0
        %v428 = vsel %vm273, %v256, 0
        %v431 = vsel %vm273, %v257, 0
        %v434 = vsel %vm273, %v258, 0
        %v437 = vsel %vm273, %v259, 0
        %v440 = vsel %vm273, %v260, 0
        %v443 = vsel %vm273, %v261, 0
        %v446 = vsel %vm273, %v262, 0
        %v449 = vsel %vm273, %v263, 0
        %v452 = vsel %vm273, %v264, 0
        %v455 = vsel %vm273, %v265, 0
        %v458 = vsel %vm273, %v266, 0
        %v461 = vsel %vm273, %v267, 0
        %v464 = vsel %vm273, %v268, 0
        %466 = vmatprep.subr.mxu0 0.0
        %467 = vmatpush1.msra.mxu0 0.0
        %468 = vmatprep.subr.mxu0 0.0
        %469 = vmatpush1.msra.mxu0 0.0
        %470 = vmatprep.subr.mxu0 0.0
        %471 = vmatpush1.msra.mxu0 0.0
        %472 = vmatprep.subr.mxu0 0.0
        %473 = vmatpush1.msra.mxu0 0.0
        %474 = vmatprep.subr.mxu0 0.0
        %475 = vmatpush1.msra.mxu0 0.0
        %476 = vmatprep.subr.mxu0 0.0
        %477 = vmatpush1.msra.mxu0 0.0
        %478 = vmatprep.subr.mxu0 0.0
        %479 = vmatpush1.msra.mxu0 0.0
        %480 = vmatprep.subr.mxu0 0.0
        %481 = vmatpush1.msra.mxu0 0.0
        %482 = vmatprep.subr.mxu0 0.0
        %483 = vmatpush1.msra.mxu0 0.0
        %484 = vmatprep.subr.mxu0 0.0
        %485 = vmatpush1.msra.mxu0 0.0
        %486 = vmatprep.subr.mxu0 0.0
        %487 = vmatpush1.msra.mxu0 0.0
        %488 = vmatprep.subr.mxu0 0.0
        %489 = vmatpush1.msra.mxu0 0.0
        %490 = vmatprep.subr.mxu0 0.0
        %491 = vmatpush1.msra.mxu0 0.0
        %492 = vmatprep.subr.mxu0 0.0
        %493 = vmatpush1.msra.mxu0 0.0
        %494 = vmatprep.subr.mxu0 0.0
        %495 = vmatpush1.msra.mxu0 %v203
        %496 = vmatprep.subr.mxu0 0.0
        %497 = vmatpush1.msra.mxu0 %v202
        %498 = vmatprep.subr.mxu0 0.0
        %499 = vmatpush2.msra.mxu0 0.0
        %500 = vmatprep.subr.mxu0 0.0
        %501 = vmatpush2.msra.mxu0 0.0
        %502 = vmatprep.subr.mxu0 0.0
        %503 = vmatpush2.msra.mxu0 0.0
        %504 = vmatprep.subr.mxu0 0.0
        %505 = vmatpush2.msra.mxu0 0.0
        %506 = vmatprep.subr.mxu0 0.0
        %507 = vmatpush2.msra.mxu0 0.0
        %508 = vmatprep.subr.mxu0 0.0
        %509 = vmatpush2.msra.mxu0 0.0
        %510 = vmatprep.subr.mxu0 0.0
        %511 = vmatpush2.msra.mxu0 0.0
        %512 = vmatprep.subr.mxu0 0.0
        %513 = vmatpush2.msra.mxu0 0.0
        %514 = vmatprep.subr.mxu0 0.0
        %515 = vmatpush2.msra.mxu0 0.0
        %516 = vmatprep.subr.mxu0 0.0
        %517 = vmatpush2.msra.mxu0 0.0
        %518 = vmatprep.subr.mxu0 0.0
        %519 = vmatpush2.msra.mxu0 0.0
        %520 = vmatprep.subr.mxu0 0.0
        %521 = vmatpush2.msra.mxu0 0.0
        %522 = vmatprep.subr.mxu0 0.0
        %523 = vmatpush2.msra.mxu0 0.0
        %524 = vmatprep.subr.mxu0 0.0
        %525 = vmatpush2.msra.mxu0 0.0
        %526 = vmatprep.subr.mxu0 0.0
        %527 = vmatpush2.msra.mxu0 0.0
        %528 = vmatprep.subr.mxu0 0.0
        %529 = vmatpush2.msra.mxu0 0.0
        %530 = vmatprep.mubr.f32.mxu0 0.0
        %531 = vmatmul.mubr.f32.gmra.mxu0 %v275
        %v532 = vpop.f32.mrf.mxu0
        %v533 = vadd.f32 %v272, %v532
        %v534 = vpop.f32.mrf.mxu0
        %535 = vmatprep.mubr.f32.mxu0 0.0
        %536 = vmatmul.mubr.f32.gmra.mxu0 %v278
        %v537 = vpop.f32.mrf.mxu0
        %v538 = vadd.f32 %v272, %v537
        %v539 = vpop.f32.mrf.mxu0
        %540 = vmatprep.mubr.f32.mxu0 0.0
        %541 = vmatmul.mubr.f32.gmra.mxu0 %v281
        %v542 = vpop.f32.mrf.mxu0
        %v543 = vadd.f32 %v272, %v542
        %v544 = vpop.f32.mrf.mxu0
        %545 = vmatprep.mubr.f32.mxu0 0.0
        %546 = vmatmul.mubr.f32.gmra.mxu0 %v284
        %v547 = vpop.f32.mrf.mxu0
        %v548 = vadd.f32 %v272, %v547
        %v549 = vpop.f32.mrf.mxu0
        %550 = vmatprep.mubr.f32.mxu0 0.0
        %551 = vmatmul.mubr.f32.gmra.mxu0 %v287
        %v552 = vpop.f32.mrf.mxu0
        %v553 = vadd.f32 %v272, %v552
        %v554 = vpop.f32.mrf.mxu0
        %555 = vmatprep.mubr.f32.mxu0 0.0
        %556 = vmatmul.mubr.f32.gmra.mxu0 %v290
        %v557 = vpop.f32.mrf.mxu0
        %v558 = vadd.f32 %v272, %v557
        %v559 = vpop.f32.mrf.mxu0
        %560 = vmatprep.mubr.f32.mxu0 0.0
        %561 = vmatmul.mubr.f32.gmra.mxu0 %v293
        %v562 = vpop.f32.mrf.mxu0
        %v563 = vadd.f32 %v272, %v562
        %v564 = vpop.f32.mrf.mxu0
        %565 = vmatprep.mubr.f32.mxu0 0.0
        %566 = vmatmul.mubr.f32.gmra.mxu0 %v296
        %v567 = vpop.f32.mrf.mxu0
        %v568 = vadd.f32 %v272, %v567
        %v569 = vpop.f32.mrf.mxu0
        %570 = vmatprep.mubr.f32.mxu0 0.0
        %571 = vmatmul.mubr.f32.gmra.mxu0 %v299
        %v572 = vpop.f32.mrf.mxu0
        %v573 = vadd.f32 %v272, %v572
        %v574 = vpop.f32.mrf.mxu0
        %575 = vmatprep.mubr.f32.mxu0 0.0
        %576 = vmatmul.mubr.f32.gmra.mxu0 %v302
        %v577 = vpop.f32.mrf.mxu0
        %v578 = vadd.f32 %v272, %v577
        %v579 = vpop.f32.mrf.mxu0
        %580 = vmatprep.mubr.f32.mxu0 0.0
        %581 = vmatmul.mubr.f32.gmra.mxu0 %v305
        %v582 = vpop.f32.mrf.mxu0
        %v583 = vadd.f32 %v272, %v582
        %v584 = vpop.f32.mrf.mxu0
        %585 = vmatprep.mubr.f32.mxu0 0.0
        %586 = vmatmul.mubr.f32.gmra.mxu0 %v308
        %v587 = vpop.f32.mrf.mxu0
        %v588 = vadd.f32 %v272, %v587
        %v589 = vpop.f32.mrf.mxu0
        %590 = vmatprep.mubr.f32.mxu0 0.0
        %591 = vmatmul.mubr.f32.gmra.mxu0 %v311
        %v592 = vpop.f32.mrf.mxu0
        %v593 = vadd.f32 %v272, %v592
        %v594 = vpop.f32.mrf.mxu0
        %595 = vmatprep.mubr.f32.mxu0 0.0
        %596 = vmatmul.mubr.f32.gmra.mxu0 %v314
        %v597 = vpop.f32.mrf.mxu0
        %v598 = vadd.f32 %v272, %v597
        %v599 = vpop.f32.mrf.mxu0
        %600 = vmatprep.mubr.f32.mxu0 0.0
        %601 = vmatmul.mubr.f32.gmra.mxu0 %v317
        %v602 = vpop.f32.mrf.mxu0
        %v603 = vadd.f32 %v272, %v602
        %v604 = vpop.f32.mrf.mxu0
        %605 = vmatprep.mubr.f32.mxu0 0.0
        %606 = vmatmul.mubr.f32.gmra.mxu0 %v320
        %v607 = vpop.f32.mrf.mxu0
        %v608 = vadd.f32 %v272, %v607
        %v609 = vpop.f32.mrf.mxu0
        %610 = vmatprep.mubr.f32.mxu0 0.0
        %611 = vmatmul.mubr.f32.gmra.mxu0 %v323
        %v612 = vpop.f32.mrf.mxu0
        %v613 = vadd.f32 %v272, %v612
        %v614 = vpop.f32.mrf.mxu0
        %615 = vmatprep.mubr.f32.mxu0 0.0
        %616 = vmatmul.mubr.f32.gmra.mxu0 %v326
        %v617 = vpop.f32.mrf.mxu0
        %v618 = vadd.f32 %v272, %v617
        %v619 = vpop.f32.mrf.mxu0
        %620 = vmatprep.mubr.f32.mxu0 0.0
        %621 = vmatmul.mubr.f32.gmra.mxu0 %v329
        %v622 = vpop.f32.mrf.mxu0
        %v623 = vadd.f32 %v272, %v622
        %v624 = vpop.f32.mrf.mxu0
        %625 = vmatprep.mubr.f32.mxu0 0.0
        %626 = vmatmul.mubr.f32.gmra.mxu0 %v332
        %v627 = vpop.f32.mrf.mxu0
        %v628 = vadd.f32 %v272, %v627
        %v629 = vpop.f32.mrf.mxu0
        %630 = vmatprep.mubr.f32.mxu0 0.0
        %631 = vmatmul.mubr.f32.gmra.mxu0 %v335
        %v632 = vpop.f32.mrf.mxu0
        %v633 = vadd.f32 %v272, %v632
        %v634 = vpop.f32.mrf.mxu0
        %635 = vmatprep.mubr.f32.mxu0 0.0
        %636 = vmatmul.mubr.f32.gmra.mxu0 %v338
        %v637 = vpop.f32.mrf.mxu0
        %v638 = vadd.f32 %v272, %v637
        %v639 = vpop.f32.mrf.mxu0
        %640 = vmatprep.mubr.f32.mxu0 0.0
        %641 = vmatmul.mubr.f32.gmra.mxu0 %v341
        %v642 = vpop.f32.mrf.mxu0
        %v643 = vadd.f32 %v272, %v642
        %v644 = vpop.f32.mrf.mxu0
        %645 = vmatprep.mubr.f32.mxu0 0.0
        %646 = vmatmul.mubr.f32.gmra.mxu0 %v344
        %v647 = vpop.f32.mrf.mxu0
        %v648 = vadd.f32 %v272, %v647
        %v649 = vpop.f32.mrf.mxu0
        %650 = vmatprep.mubr.f32.mxu0 0.0
        %651 = vmatmul.mubr.f32.gmra.mxu0 %v347
        %v652 = vpop.f32.mrf.mxu0
        %v653 = vadd.f32 %v272, %v652
        %v654 = vpop.f32.mrf.mxu0
        %655 = vmatprep.mubr.f32.mxu0 0.0
        %656 = vmatmul.mubr.f32.gmra.mxu0 %v350
        %v657 = vpop.f32.mrf.mxu0
        %v658 = vadd.f32 %v272, %v657
        %v659 = vpop.f32.mrf.mxu0
        %660 = vmatprep.mubr.f32.mxu0 0.0
        %661 = vmatmul.mubr.f32.gmra.mxu0 %v353
        %v662 = vpop.f32.mrf.mxu0
        %v663 = vadd.f32 %v272, %v662
        %v664 = vpop.f32.mrf.mxu0
        %665 = vmatprep.mubr.f32.mxu0 0.0
        %666 = vmatmul.mubr.f32.gmra.mxu0 %v356
        %v667 = vpop.f32.mrf.mxu0
        %v668 = vadd.f32 %v272, %v667
        %v669 = vpop.f32.mrf.mxu0
        %670 = vmatprep.mubr.f32.mxu0 0.0
        %671 = vmatmul.mubr.f32.gmra.mxu0 %v359
        %v672 = vpop.f32.mrf.mxu0
        %v673 = vadd.f32 %v272, %v672
        %v674 = vpop.f32.mrf.mxu0
        %675 = vmatprep.mubr.f32.mxu0 0.0
        %676 = vmatmul.mubr.f32.gmra.mxu0 %v362
        %v677 = vpop.f32.mrf.mxu0
        %v678 = vadd.f32 %v272, %v677
        %v679 = vpop.f32.mrf.mxu0
        %680 = vmatprep.mubr.f32.mxu0 0.0
        %681 = vmatmul.mubr.f32.gmra.mxu0 %v365
        %v682 = vpop.f32.mrf.mxu0
        %v683 = vadd.f32 %v272, %v682
        %v684 = vpop.f32.mrf.mxu0
        %685 = vmatprep.mubr.f32.mxu0 0.0
        %686 = vmatmul.mubr.f32.gmra.mxu0 %v368
        %v687 = vpop.f32.mrf.mxu0
        %v688 = vadd.f32 %v272, %v687
        %v689 = vpop.f32.mrf.mxu0
        %690 = vmatprep.mubr.f32.mxu0 0.0
        %691 = vmatmul.mubr.f32.gmra.mxu0 %v371
        %v692 = vpop.f32.mrf.mxu0
        %v693 = vadd.f32 %v272, %v692
        %v694 = vpop.f32.mrf.mxu0
        %695 = vmatprep.mubr.f32.mxu0 0.0
        %696 = vmatmul.mubr.f32.gmra.mxu0 %v374
        %v697 = vpop.f32.mrf.mxu0
        %v698 = vadd.f32 %v272, %v697
        %v699 = vpop.f32.mrf.mxu0
        %700 = vmatprep.mubr.f32.mxu0 0.0
        %701 = vmatmul.mubr.f32.gmra.mxu0 %v377
        %v702 = vpop.f32.mrf.mxu0
        %v703 = vadd.f32 %v272, %v702
        %v704 = vpop.f32.mrf.mxu0
        %705 = vmatprep.mubr.f32.mxu0 0.0
        %706 = vmatmul.mubr.f32.gmra.mxu0 %v380
        %v707 = vpop.f32.mrf.mxu0
        %v708 = vadd.f32 %v272, %v707
        %v709 = vpop.f32.mrf.mxu0
        %710 = vmatprep.mubr.f32.mxu0 0.0
        %711 = vmatmul.mubr.f32.gmra.mxu0 %v383
        %v712 = vpop.f32.mrf.mxu0
        %v713 = vadd.f32 %v272, %v712
        %v714 = vpop.f32.mrf.mxu0
        %715 = vmatprep.mubr.f32.mxu0 0.0
        %716 = vmatmul.mubr.f32.gmra.mxu0 %v386
        %v717 = vpop.f32.mrf.mxu0
        %v718 = vadd.f32 %v272, %v717
        %v719 = vpop.f32.mrf.mxu0
        %720 = vmatprep.mubr.f32.mxu0 0.0
        %721 = vmatmul.mubr.f32.gmra.mxu0 %v389
        %v722 = vpop.f32.mrf.mxu0
        %v723 = vadd.f32 %v272, %v722
        %v724 = vpop.f32.mrf.mxu0
        %725 = vmatprep.mubr.f32.mxu0 0.0
        %726 = vmatmul.mubr.f32.gmra.mxu0 %v392
        %v727 = vpop.f32.mrf.mxu0
        %v728 = vadd.f32 %v272, %v727
        %v729 = vpop.f32.mrf.mxu0
        %730 = vmatprep.mubr.f32.mxu0 0.0
        %731 = vmatmul.mubr.f32.gmra.mxu0 %v395
        %v732 = vpop.f32.mrf.mxu0
        %v733 = vadd.f32 %v272, %v732
        %v734 = vpop.f32.mrf.mxu0
        %735 = vmatprep.mubr.f32.mxu0 0.0
        %736 = vmatmul.mubr.f32.gmra.mxu0 %v398
        %v737 = vpop.f32.mrf.mxu0
        %v738 = vadd.f32 %v272, %v737
        %v739 = vpop.f32.mrf.mxu0
        %740 = vmatprep.mubr.f32.mxu0 0.0
        %741 = vmatmul.mubr.f32.gmra.mxu0 %v401
        %v742 = vpop.f32.mrf.mxu0
        %v743 = vadd.f32 %v272, %v742
        %v744 = vpop.f32.mrf.mxu0
        %745 = vmatprep.mubr.f32.mxu0 0.0
        %746 = vmatmul.mubr.f32.gmra.mxu0 %v404
        %v747 = vpop.f32.mrf.mxu0
        %v748 = vadd.f32 %v272, %v747
        %v749 = vpop.f32.mrf.mxu0
        %750 = vmatprep.mubr.f32.mxu0 0.0
        %751 = vmatmul.mubr.f32.gmra.mxu0 %v407
        %v752 = vpop.f32.mrf.mxu0
        %v753 = vadd.f32 %v272, %v752
        %v754 = vpop.f32.mrf.mxu0
        %755 = vmatprep.mubr.f32.mxu0 0.0
        %756 = vmatmul.mubr.f32.gmra.mxu0 %v410
        %v757 = vpop.f32.mrf.mxu0
        %v758 = vadd.f32 %v272, %v757
        %v759 = vpop.f32.mrf.mxu0
        %760 = vmatprep.mubr.f32.mxu0 0.0
        %761 = vmatmul.mubr.f32.gmra.mxu0 %v413
        %v762 = vpop.f32.mrf.mxu0
        %v763 = vadd.f32 %v272, %v762
        %v764 = vpop.f32.mrf.mxu0
        %765 = vmatprep.mubr.f32.mxu0 0.0
        %766 = vmatmul.mubr.f32.gmra.mxu0 %v416
        %v767 = vpop.f32.mrf.mxu0
        %v768 = vadd.f32 %v272, %v767
        %v769 = vpop.f32.mrf.mxu0
        %770 = vmatprep.mubr.f32.mxu0 0.0
        %771 = vmatmul.mubr.f32.gmra.mxu0 %v419
        %v772 = vpop.f32.mrf.mxu0
        %v773 = vadd.f32 %v272, %v772
        %v774 = vpop.f32.mrf.mxu0
        %775 = vmatprep.mubr.f32.mxu0 0.0
        %776 = vmatmul.mubr.f32.gmra.mxu0 %v422
        %v777 = vpop.f32.mrf.mxu0
        %v778 = vadd.f32 %v272, %v777
        %v779 = vpop.f32.mrf.mxu0
        %780 = vmatprep.mubr.f32.mxu0 0.0
        %781 = vmatmul.mubr.f32.gmra.mxu0 %v425
        %v782 = vpop.f32.mrf.mxu0
        %v783 = vadd.f32 %v272, %v782
        %v784 = vpop.f32.mrf.mxu0
        %785 = vmatprep.mubr.f32.mxu0 0.0
        %786 = vmatmul.mubr.f32.gmra.mxu0 %v428
        %v787 = vpop.f32.mrf.mxu0
        %v788 = vadd.f32 %v272, %v787
        %v789 = vpop.f32.mrf.mxu0
        %790 = vmatprep.mubr.f32.mxu0 0.0
        %791 = vmatmul.mubr.f32.gmra.mxu0 %v431
        %v792 = vpop.f32.mrf.mxu0
        %v793 = vadd.f32 %v272, %v792
        %v794 = vpop.f32.mrf.mxu0
        %795 = vmatprep.mubr.f32.mxu0 0.0
        %796 = vmatmul.mubr.f32.gmra.mxu0 %v434
        %v797 = vpop.f32.mrf.mxu0
        %v798 = vadd.f32 %v272, %v797
        %v799 = vpop.f32.mrf.mxu0
        %800 = vmatprep.mubr.f32.mxu0 0.0
        %801 = vmatmul.mubr.f32.gmra.mxu0 %v437
        %v802 = vpop.f32.mrf.mxu0
        %v803 = vadd.f32 %v272, %v802
        %v804 = vpop.f32.mrf.mxu0
        %805 = vmatprep.mubr.f32.mxu0 0.0
        %806 = vmatmul.mubr.f32.gmra.mxu0 %v440
        %v807 = vpop.f32.mrf.mxu0
        %v808 = vadd.f32 %v272, %v807
        %v809 = vpop.f32.mrf.mxu0
        %810 = vmatprep.mubr.f32.mxu0 0.0
        %811 = vmatmul.mubr.f32.gmra.mxu0 %v443
        %v812 = vpop.f32.mrf.mxu0
        %v813 = vadd.f32 %v272, %v812
        %v814 = vpop.f32.mrf.mxu0
        %815 = vmatprep.mubr.f32.mxu0 0.0
        %816 = vmatmul.mubr.f32.gmra.mxu0 %v446
        %v817 = vpop.f32.mrf.mxu0
        %v818 = vadd.f32 %v272, %v817
        %v819 = vpop.f32.mrf.mxu0
        %820 = vmatprep.mubr.f32.mxu0 0.0
        %821 = vmatmul.mubr.f32.gmra.mxu0 %v449
        %v822 = vpop.f32.mrf.mxu0
        %v823 = vadd.f32 %v272, %v822
        %v824 = vpop.f32.mrf.mxu0
        %825 = vmatprep.mubr.f32.mxu0 0.0
        %826 = vmatmul.mubr.f32.gmra.mxu0 %v452
        %v827 = vpop.f32.mrf.mxu0
        %v828 = vadd.f32 %v272, %v827
        %v829 = vpop.f32.mrf.mxu0
        %830 = vmatprep.mubr.f32.mxu0 0.0
        %831 = vmatmul.mubr.f32.gmra.mxu0 %v455
        %v832 = vpop.f32.mrf.mxu0
        %v833 = vadd.f32 %v272, %v832
        %v834 = vpop.f32.mrf.mxu0
        %835 = vmatprep.mubr.f32.mxu0 0.0
        %836 = vmatmul.mubr.f32.gmra.mxu0 %v458
        %v837 = vpop.f32.mrf.mxu0
        %v838 = vadd.f32 %v272, %v837
        %v839 = vpop.f32.mrf.mxu0
        %840 = vmatprep.mubr.f32.mxu0 0.0
        %841 = vmatmul.mubr.f32.gmra.mxu0 %v461
        %v842 = vpop.f32.mrf.mxu0
        %v843 = vadd.f32 %v272, %v842
        %v844 = vpop.f32.mrf.mxu0
        %845 = vmatprep.mubr.f32.mxu0 0.0
        %846 = vmatmul.mubr.f32.gmra.mxu0 %v464
        %v847 = vpop.f32.mrf.mxu0
        %v848 = vadd.f32 %v272, %v847
        %v849 = vpop.f32.mrf.mxu0
        %850 = vdwg.mxu0
        %853 = vrot.lane.b32.xlu0 %v533, 112
        %v854 = vpop.permute.xlu0 %853
        %855 = vrot.lane.b32.xlu0 %v538, 112
        %v856 = vpop.permute.xlu0 %855
        %v857 = vsel %vm273, %v533, 0
        %v859 = vsel %vm273, %v538, 0
        %v861 = vsel %vm273, %v854, 0
        %v863 = vsel %vm273, %v856, 0
        %865 = vmatprep.subr.mxu0 0.0
        %866 = vmatpush1.xpose.msra.mxu0 0.0
        %867 = vmatprep.subr.mxu0 0.0
        %868 = vmatpush1.xpose.msra.mxu0 0.0
        %869 = vmatprep.subr.mxu0 0.0
        %870 = vmatpush1.xpose.msra.mxu0 0.0
        %871 = vmatprep.subr.mxu0 0.0
        %872 = vmatpush1.xpose.msra.mxu0 0.0
        %873 = vmatprep.subr.mxu0 0.0
        %874 = vmatpush1.xpose.msra.mxu0 0.0
        %875 = vmatprep.subr.mxu0 0.0
        %876 = vmatpush1.xpose.msra.mxu0 0.0
        %877 = vmatprep.subr.mxu0 0.0
        %878 = vmatpush1.xpose.msra.mxu0 0.0
        %879 = vmatprep.subr.mxu0 0.0
        %880 = vmatpush1.xpose.msra.mxu0 0.0
        %881 = vmatprep.subr.mxu0 0.0
        %882 = vmatpush1.xpose.msra.mxu0 0.0
        %883 = vmatprep.subr.mxu0 0.0
        %884 = vmatpush1.xpose.msra.mxu0 0.0
        %885 = vmatprep.subr.mxu0 0.0
        %886 = vmatpush1.xpose.msra.mxu0 0.0
        %887 = vmatprep.subr.mxu0 0.0
        %888 = vmatpush1.xpose.msra.mxu0 0.0
        %889 = vmatprep.subr.mxu0 0.0
        %890 = vmatpush1.xpose.msra.mxu0 0.0
        %891 = vmatprep.subr.mxu0 0.0
        %892 = vmatpush1.xpose.msra.mxu0 0.0
        %893 = vmatprep.subr.mxu0 0.0
        %894 = vmatpush1.xpose.msra.mxu0 %v863
        %895 = vmatprep.subr.mxu0 0.0
        %896 = vmatpush1.xpose.msra.mxu0 %v861
        %897 = vmatprep.subr.mxu0 0.0
        %898 = vmatpush2.xpose.msra.mxu0 0.0
        %899 = vmatprep.subr.mxu0 0.0
        %900 = vmatpush2.xpose.msra.mxu0 0.0
        %901 = vmatprep.subr.mxu0 0.0
        %902 = vmatpush2.xpose.msra.mxu0 0.0
        %903 = vmatprep.subr.mxu0 0.0
        %904 = vmatpush2.xpose.msra.mxu0 0.0
        %905 = vmatprep.subr.mxu0 0.0
        %906 = vmatpush2.xpose.msra.mxu0 0.0
        %907 = vmatprep.subr.mxu0 0.0
        %908 = vmatpush2.xpose.msra.mxu0 0.0
        %909 = vmatprep.subr.mxu0 0.0
        %910 = vmatpush2.xpose.msra.mxu0 0.0
        %911 = vmatprep.subr.mxu0 0.0
        %912 = vmatpush2.xpose.msra.mxu0 0.0
        %913 = vmatprep.subr.mxu0 0.0
        %914 = vmatpush2.xpose.msra.mxu0 0.0
        %915 = vmatprep.subr.mxu0 0.0
        %916 = vmatpush2.xpose.msra.mxu0 0.0
        %917 = vmatprep.subr.mxu0 0.0
        %918 = vmatpush2.xpose.msra.mxu0 0.0
        %919 = vmatprep.subr.mxu0 0.0
        %920 = vmatpush2.xpose.msra.mxu0 0.0
        %921 = vmatprep.subr.mxu0 0.0
        %922 = vmatpush2.xpose.msra.mxu0 0.0
        %923 = vmatprep.subr.mxu0 0.0
        %924 = vmatpush2.xpose.msra.mxu0 0.0
        %925 = vmatprep.subr.mxu0 0.0
        %926 = vmatpush2.xpose.msra.mxu0 0.0
        %927 = vmatprep.subr.mxu0 0.0
        %928 = vmatpush2.xpose.msra.mxu0 0.0
        %929 = vmatprep.mubr.f32.mxu0 0.0
        %930 = vmatmul.mubr.f32.gmra.mxu0 %v857
        %v931 = vpop.f32.mrf.mxu0
        %v932 = vadd.f32 0.0, %v931
        %v933 = vpop.f32.mrf.mxu0
        %934 = vmatprep.mubr.f32.mxu0 0.0
        %935 = vmatmul.mubr.f32.gmra.mxu0 %v859
        %v936 = vpop.f32.mrf.mxu0
        %v937 = vadd.f32 0.0, %v936
        %v938 = vpop.f32.mrf.mxu0
        %939 = vdwg.mxu0
        %942 = vrot.lane.b32.xlu0 %v543, 112
        %v943 = vpop.permute.xlu0 %942
        %944 = vrot.lane.b32.xlu0 %v548, 112
        %v945 = vpop.permute.xlu0 %944
        %v946 = vsel %vm273, %v543, 0
        %v948 = vsel %vm273, %v548, 0
        %v950 = vsel %vm273, %v943, 0
        %v952 = vsel %vm273, %v945, 0
        %954 = vmatprep.subr.mxu0 0.0
        %955 = vmatpush1.xpose.msra.mxu0 0.0
        %956 = vmatprep.subr.mxu0 0.0
        %957 = vmatpush1.xpose.msra.mxu0 0.0
        %958 = vmatprep.subr.mxu0 0.0
        %959 = vmatpush1.xpose.msra.mxu0 0.0
        %960 = vmatprep.subr.mxu0 0.0
        %961 = vmatpush1.xpose.msra.mxu0 0.0
        %962 = vmatprep.subr.mxu0 0.0
        %963 = vmatpush1.xpose.msra.mxu0 0.0
        %964 = vmatprep.subr.mxu0 0.0
        %965 = vmatpush1.xpose.msra.mxu0 0.0
        %966 = vmatprep.subr.mxu0 0.0
        %967 = vmatpush1.xpose.msra.mxu0 0.0
        %968 = vmatprep.subr.mxu0 0.0
        %969 = vmatpush1.xpose.msra.mxu0 0.0
        %970 = vmatprep.subr.mxu0 0.0
        %971 = vmatpush1.xpose.msra.mxu0 0.0
        %972 = vmatprep.subr.mxu0 0.0
        %973 = vmatpush1.xpose.msra.mxu0 0.0
        %974 = vmatprep.subr.mxu0 0.0
        %975 = vmatpush1.xpose.msra.mxu0 0.0
        %976 = vmatprep.subr.mxu0 0.0
        %977 = vmatpush1.xpose.msra.mxu0 0.0
        %978 = vmatprep.subr.mxu0 0.0
        %979 = vmatpush1.xpose.msra.mxu0 0.0
        %980 = vmatprep.subr.mxu0 0.0
        %981 = vmatpush1.xpose.msra.mxu0 0.0
        %982 = vmatprep.subr.mxu0 0.0
        %983 = vmatpush1.xpose.msra.mxu0 %v952
        %984 = vmatprep.subr.mxu0 0.0
        %985 = vmatpush1.xpose.msra.mxu0 %v950
        %986 = vmatprep.subr.mxu0 0.0
        %987 = vmatpush2.xpose.msra.mxu0 0.0
        %988 = vmatprep.subr.mxu0 0.0
        %989 = vmatpush2.xpose.msra.mxu0 0.0
        %990 = vmatprep.subr.mxu0 0.0
        %991 = vmatpush2.xpose.msra.mxu0 0.0
        %992 = vmatprep.subr.mxu0 0.0
        %993 = vmatpush2.xpose.msra.mxu0 0.0
        %994 = vmatprep.subr.mxu0 0.0
        %995 = vmatpush2.xpose.msra.mxu0 0.0
        %996 = vmatprep.subr.mxu0 0.0
        %997 = vmatpush2.xpose.msra.mxu0 0.0
        %998 = vmatprep.subr.mxu0 0.0
        %999 = vmatpush2.xpose.msra.mxu0 0.0
        %1000 = vmatprep.subr.mxu0 0.0
        %1001 = vmatpush2.xpose.msra.mxu0 0.0
        %1002 = vmatprep.subr.mxu0 0.0
        %1003 = vmatpush2.xpose.msra.mxu0 0.0
        %1004 = vmatprep.subr.mxu0 0.0
        %1005 = vmatpush2.xpose.msra.mxu0 0.0
        %1006 = vmatprep.subr.mxu0 0.0
        %1007 = vmatpush2.xpose.msra.mxu0 0.0
        %1008 = vmatprep.subr.mxu0 0.0
        %1009 = vmatpush2.xpose.msra.mxu0 0.0
        %1010 = vmatprep.subr.mxu0 0.0
        %1011 = vmatpush2.xpose.msra.mxu0 0.0
        %1012 = vmatprep.subr.mxu0 0.0
        %1013 = vmatpush2.xpose.msra.mxu0 0.0
        %1014 = vmatprep.subr.mxu0 0.0
        %1015 = vmatpush2.xpose.msra.mxu0 0.0
        %1016 = vmatprep.subr.mxu0 0.0
        %1017 = vmatpush2.xpose.msra.mxu0 0.0
        %1018 = vmatprep.mubr.f32.mxu0 0.0
        %1019 = vmatmul.mubr.f32.gmra.mxu0 %v946
        %v1020 = vpop.f32.mrf.mxu0
        %v1021 = vadd.f32 0.0, %v1020
        %v1022 = vpop.f32.mrf.mxu0
        %1023 = vmatprep.mubr.f32.mxu0 0.0
        %1024 = vmatmul.mubr.f32.gmra.mxu0 %v948
        %v1025 = vpop.f32.mrf.mxu0
        %v1026 = vadd.f32 0.0, %v1025
        %v1027 = vpop.f32.mrf.mxu0
        %1028 = vdwg.mxu0
        %1031 = vrot.lane.b32.xlu0 %v553, 112
        %v1032 = vpop.permute.xlu0 %1031
        %1033 = vrot.lane.b32.xlu0 %v558, 112
        %v1034 = vpop.permute.xlu0 %1033
        %v1035 = vsel %vm273, %v553, 0
        %v1037 = vsel %vm273, %v558, 0
        %v1039 = vsel %vm273, %v1032, 0
        %v1041 = vsel %vm273, %v1034, 0
        %1043 = vmatprep.subr.mxu0 0.0
        %1044 = vmatpush1.xpose.msra.mxu0 0.0
        %1045 = vmatprep.subr.mxu0 0.0
        %1046 = vmatpush1.xpose.msra.mxu0 0.0
        %1047 = vmatprep.subr.mxu0 0.0
        %1048 = vmatpush1.xpose.msra.mxu0 0.0
        %1049 = vmatprep.subr.mxu0 0.0
        %1050 = vmatpush1.xpose.msra.mxu0 0.0
        %1051 = vmatprep.subr.mxu0 0.0
        %1052 = vmatpush1.xpose.msra.mxu0 0.0
        %1053 = vmatprep.subr.mxu0 0.0
        %1054 = vmatpush1.xpose.msra.mxu0 0.0
        %1055 = vmatprep.subr.mxu0 0.0
        %1056 = vmatpush1.xpose.msra.mxu0 0.0
        %1057 = vmatprep.subr.mxu0 0.0
        %1058 = vmatpush1.xpose.msra.mxu0 0.0
        %1059 = vmatprep.subr.mxu0 0.0
        %1060 = vmatpush1.xpose.msra.mxu0 0.0
        %1061 = vmatprep.subr.mxu0 0.0
        %1062 = vmatpush1.xpose.msra.mxu0 0.0
        %1063 = vmatprep.subr.mxu0 0.0
        %1064 = vmatpush1.xpose.msra.mxu0 0.0
        %1065 = vmatprep.subr.mxu0 0.0
        %1066 = vmatpush1.xpose.msra.mxu0 0.0
        %1067 = vmatprep.subr.mxu0 0.0
        %1068 = vmatpush1.xpose.msra.mxu0 0.0
        %1069 = vmatprep.subr.mxu0 0.0
        %1070 = vmatpush1.xpose.msra.mxu0 0.0
        %1071 = vmatprep.subr.mxu0 0.0
        %1072 = vmatpush1.xpose.msra.mxu0 %v1041
        %1073 = vmatprep.subr.mxu0 0.0
        %1074 = vmatpush1.xpose.msra.mxu0 %v1039
        %1075 = vmatprep.subr.mxu0 0.0
        %1076 = vmatpush2.xpose.msra.mxu0 0.0
        %1077 = vmatprep.subr.mxu0 0.0
        %1078 = vmatpush2.xpose.msra.mxu0 0.0
        %1079 = vmatprep.subr.mxu0 0.0
        %1080 = vmatpush2.xpose.msra.mxu0 0.0
        %1081 = vmatprep.subr.mxu0 0.0
        %1082 = vmatpush2.xpose.msra.mxu0 0.0
        %1083 = vmatprep.subr.mxu0 0.0
        %1084 = vmatpush2.xpose.msra.mxu0 0.0
        %1085 = vmatprep.subr.mxu0 0.0
        %1086 = vmatpush2.xpose.msra.mxu0 0.0
        %1087 = vmatprep.subr.mxu0 0.0
        %1088 = vmatpush2.xpose.msra.mxu0 0.0
        %1089 = vmatprep.subr.mxu0 0.0
        %1090 = vmatpush2.xpose.msra.mxu0 0.0
        %1091 = vmatprep.subr.mxu0 0.0
        %1092 = vmatpush2.xpose.msra.mxu0 0.0
        %1093 = vmatprep.subr.mxu0 0.0
        %1094 = vmatpush2.xpose.msra.mxu0 0.0
        %1095 = vmatprep.subr.mxu0 0.0
        %1096 = vmatpush2.xpose.msra.mxu0 0.0
        %1097 = vmatprep.subr.mxu0 0.0
        %1098 = vmatpush2.xpose.msra.mxu0 0.0
        %1099 = vmatprep.subr.mxu0 0.0
        %1100 = vmatpush2.xpose.msra.mxu0 0.0
        %1101 = vmatprep.subr.mxu0 0.0
        %1102 = vmatpush2.xpose.msra.mxu0 0.0
        %1103 = vmatprep.subr.mxu0 0.0
        %1104 = vmatpush2.xpose.msra.mxu0 0.0
        %1105 = vmatprep.subr.mxu0 0.0
        %1106 = vmatpush2.xpose.msra.mxu0 0.0
        %1107 = vmatprep.mubr.f32.mxu0 0.0
        %1108 = vmatmul.mubr.f32.gmra.mxu0 %v1035
        %v1109 = vpop.f32.mrf.mxu0
        %v1110 = vadd.f32 0.0, %v1109
        %v1111 = vpop.f32.mrf.mxu0
        %1112 = vmatprep.mubr.f32.mxu0 0.0
        %1113 = vmatmul.mubr.f32.gmra.mxu0 %v1037
        %v1114 = vpop.f32.mrf.mxu0
        %v1115 = vadd.f32 0.0, %v1114
        %v1116 = vpop.f32.mrf.mxu0
        %1117 = vdwg.mxu0
        %1120 = vrot.lane.b32.xlu0 %v563, 112
        %v1121 = vpop.permute.xlu0 %1120
        %1122 = vrot.lane.b32.xlu0 %v568, 112
        %v1123 = vpop.permute.xlu0 %1122
        %v1124 = vsel %vm273, %v563, 0
        %v1126 = vsel %vm273, %v568, 0
        %v1128 = vsel %vm273, %v1121, 0
        %v1130 = vsel %vm273, %v1123, 0
        %1132 = vmatprep.subr.mxu0 0.0
        %1133 = vmatpush1.xpose.msra.mxu0 0.0
        %1134 = vmatprep.subr.mxu0 0.0
        %1135 = vmatpush1.xpose.msra.mxu0 0.0
        %1136 = vmatprep.subr.mxu0 0.0
        %1137 = vmatpush1.xpose.msra.mxu0 0.0
        %1138 = vmatprep.subr.mxu0 0.0
        %1139 = vmatpush1.xpose.msra.mxu0 0.0
        %1140 = vmatprep.subr.mxu0 0.0
        %1141 = vmatpush1.xpose.msra.mxu0 0.0
        %1142 = vmatprep.subr.mxu0 0.0
        %1143 = vmatpush1.xpose.msra.mxu0 0.0
        %1144 = vmatprep.subr.mxu0 0.0
        %1145 = vmatpush1.xpose.msra.mxu0 0.0
        %1146 = vmatprep.subr.mxu0 0.0
        %1147 = vmatpush1.xpose.msra.mxu0 0.0
        %1148 = vmatprep.subr.mxu0 0.0
        %1149 = vmatpush1.xpose.msra.mxu0 0.0
        %1150 = vmatprep.subr.mxu0 0.0
        %1151 = vmatpush1.xpose.msra.mxu0 0.0
        %1152 = vmatprep.subr.mxu0 0.0
        %1153 = vmatpush1.xpose.msra.mxu0 0.0
        %1154 = vmatprep.subr.mxu0 0.0
        %1155 = vmatpush1.xpose.msra.mxu0 0.0
        %1156 = vmatprep.subr.mxu0 0.0
        %1157 = vmatpush1.xpose.msra.mxu0 0.0
        %1158 = vmatprep.subr.mxu0 0.0
        %1159 = vmatpush1.xpose.msra.mxu0 0.0
        %1160 = vmatprep.subr.mxu0 0.0
        %1161 = vmatpush1.xpose.msra.mxu0 %v1130
        %1162 = vmatprep.subr.mxu0 0.0
        %1163 = vmatpush1.xpose.msra.mxu0 %v1128
        %1164 = vmatprep.subr.mxu0 0.0
        %1165 = vmatpush2.xpose.msra.mxu0 0.0
        %1166 = vmatprep.subr.mxu0 0.0
        %1167 = vmatpush2.xpose.msra.mxu0 0.0
        %1168 = vmatprep.subr.mxu0 0.0
        %1169 = vmatpush2.xpose.msra.mxu0 0.0
        %1170 = vmatprep.subr.mxu0 0.0
        %1171 = vmatpush2.xpose.msra.mxu0 0.0
        %1172 = vmatprep.subr.mxu0 0.0
        %1173 = vmatpush2.xpose.msra.mxu0 0.0
        %1174 = vmatprep.subr.mxu0 0.0
        %1175 = vmatpush2.xpose.msra.mxu0 0.0
        %1176 = vmatprep.subr.mxu0 0.0
        %1177 = vmatpush2.xpose.msra.mxu0 0.0
        %1178 = vmatprep.subr.mxu0 0.0
        %1179 = vmatpush2.xpose.msra.mxu0 0.0
        %1180 = vmatprep.subr.mxu0 0.0
        %1181 = vmatpush2.xpose.msra.mxu0 0.0
        %1182 = vmatprep.subr.mxu0 0.0
        %1183 = vmatpush2.xpose.msra.mxu0 0.0
        %1184 = vmatprep.subr.mxu0 0.0
        %1185 = vmatpush2.xpose.msra.mxu0 0.0
        %1186 = vmatprep.subr.mxu0 0.0
        %1187 = vmatpush2.xpose.msra.mxu0 0.0
        %1188 = vmatprep.subr.mxu0 0.0
        %1189 = vmatpush2.xpose.msra.mxu0 0.0
        %1190 = vmatprep.subr.mxu0 0.0
        %1191 = vmatpush2.xpose.msra.mxu0 0.0
        %1192 = vmatprep.subr.mxu0 0.0
        %1193 = vmatpush2.xpose.msra.mxu0 0.0
        %1194 = vmatprep.subr.mxu0 0.0
        %1195 = vmatpush2.xpose.msra.mxu0 0.0
        %1196 = vmatprep.mubr.f32.mxu0 0.0
        %1197 = vmatmul.mubr.f32.gmra.mxu0 %v1124
        %v1198 = vpop.f32.mrf.mxu0
        %v1199 = vadd.f32 0.0, %v1198
        %v1200 = vpop.f32.mrf.mxu0
        %1201 = vmatprep.mubr.f32.mxu0 0.0
        %1202 = vmatmul.mubr.f32.gmra.mxu0 %v1126
        %v1203 = vpop.f32.mrf.mxu0
        %v1204 = vadd.f32 0.0, %v1203
        %v1205 = vpop.f32.mrf.mxu0
        %1206 = vdwg.mxu0
        %1209 = vrot.lane.b32.xlu0 %v573, 112
        %v1210 = vpop.permute.xlu0 %1209
        %1211 = vrot.lane.b32.xlu0 %v578, 112
        %v1212 = vpop.permute.xlu0 %1211
        %v1213 = vsel %vm273, %v573, 0
        %v1215 = vsel %vm273, %v578, 0
        %v1217 = vsel %vm273, %v1210, 0
        %v1219 = vsel %vm273, %v1212, 0
        %1221 = vmatprep.subr.mxu0 0.0
        %1222 = vmatpush1.xpose.msra.mxu0 0.0
        %1223 = vmatprep.subr.mxu0 0.0
        %1224 = vmatpush1.xpose.msra.mxu0 0.0
        %1225 = vmatprep.subr.mxu0 0.0
        %1226 = vmatpush1.xpose.msra.mxu0 0.0
        %1227 = vmatprep.subr.mxu0 0.0
        %1228 = vmatpush1.xpose.msra.mxu0 0.0
        %1229 = vmatprep.subr.mxu0 0.0
        %1230 = vmatpush1.xpose.msra.mxu0 0.0
        %1231 = vmatprep.subr.mxu0 0.0
        %1232 = vmatpush1.xpose.msra.mxu0 0.0
        %1233 = vmatprep.subr.mxu0 0.0
        %1234 = vmatpush1.xpose.msra.mxu0 0.0
        %1235 = vmatprep.subr.mxu0 0.0
        %1236 = vmatpush1.xpose.msra.mxu0 0.0
        %1237 = vmatprep.subr.mxu0 0.0
        %1238 = vmatpush1.xpose.msra.mxu0 0.0
        %1239 = vmatprep.subr.mxu0 0.0
        %1240 = vmatpush1.xpose.msra.mxu0 0.0
        %1241 = vmatprep.subr.mxu0 0.0
        %1242 = vmatpush1.xpose.msra.mxu0 0.0
        %1243 = vmatprep.subr.mxu0 0.0
        %1244 = vmatpush1.xpose.msra.mxu0 0.0
        %1245 = vmatprep.subr.mxu0 0.0
        %1246 = vmatpush1.xpose.msra.mxu0 0.0
        %1247 = vmatprep.subr.mxu0 0.0
        %1248 = vmatpush1.xpose.msra.mxu0 0.0
        %1249 = vmatprep.subr.mxu0 0.0
        %1250 = vmatpush1.xpose.msra.mxu0 %v1219
        %1251 = vmatprep.subr.mxu0 0.0
        %1252 = vmatpush1.xpose.msra.mxu0 %v1217
        %1253 = vmatprep.subr.mxu0 0.0
        %1254 = vmatpush2.xpose.msra.mxu0 0.0
        %1255 = vmatprep.subr.mxu0 0.0
        %1256 = vmatpush2.xpose.msra.mxu0 0.0
        %1257 = vmatprep.subr.mxu0 0.0
        %1258 = vmatpush2.xpose.msra.mxu0 0.0
        %1259 = vmatprep.subr.mxu0 0.0
        %1260 = vmatpush2.xpose.msra.mxu0 0.0
        %1261 = vmatprep.subr.mxu0 0.0
        %1262 = vmatpush2.xpose.msra.mxu0 0.0
        %1263 = vmatprep.subr.mxu0 0.0
        %1264 = vmatpush2.xpose.msra.mxu0 0.0
        %1265 = vmatprep.subr.mxu0 0.0
        %1266 = vmatpush2.xpose.msra.mxu0 0.0
        %1267 = vmatprep.subr.mxu0 0.0
        %1268 = vmatpush2.xpose.msra.mxu0 0.0
        %1269 = vmatprep.subr.mxu0 0.0
        %1270 = vmatpush2.xpose.msra.mxu0 0.0
        %1271 = vmatprep.subr.mxu0 0.0
        %1272 = vmatpush2.xpose.msra.mxu0 0.0
        %1273 = vmatprep.subr.mxu0 0.0
        %1274 = vmatpush2.xpose.msra.mxu0 0.0
        %1275 = vmatprep.subr.mxu0 0.0
        %1276 = vmatpush2.xpose.msra.mxu0 0.0
        %1277 = vmatprep.subr.mxu0 0.0
        %1278 = vmatpush2.xpose.msra.mxu0 0.0
        %1279 = vmatprep.subr.mxu0 0.0
        %1280 = vmatpush2.xpose.msra.mxu0 0.0
        %1281 = vmatprep.subr.mxu0 0.0
        %1282 = vmatpush2.xpose.msra.mxu0 0.0
        %1283 = vmatprep.subr.mxu0 0.0
        %1284 = vmatpush2.xpose.msra.mxu0 0.0
        %1285 = vmatprep.mubr.f32.mxu0 0.0
        %1286 = vmatmul.mubr.f32.gmra.mxu0 %v1213
        %v1287 = vpop.f32.mrf.mxu0
        %v1288 = vadd.f32 0.0, %v1287
        %v1289 = vpop.f32.mrf.mxu0
        %1290 = vmatprep.mubr.f32.mxu0 0.0
        %1291 = vmatmul.mubr.f32.gmra.mxu0 %v1215
        %v1292 = vpop.f32.mrf.mxu0
        %v1293 = vadd.f32 0.0, %v1292
        %v1294 = vpop.f32.mrf.mxu0
        %1295 = vdwg.mxu0
        %1298 = vrot.lane.b32.xlu0 %v583, 112
        %v1299 = vpop.permute.xlu0 %1298
        %1300 = vrot.lane.b32.xlu0 %v588, 112
        %v1301 = vpop.permute.xlu0 %1300
        %v1302 = vsel %vm273, %v583, 0
        %v1304 = vsel %vm273, %v588, 0
        %v1306 = vsel %vm273, %v1299, 0
        %v1308 = vsel %vm273, %v1301, 0
        %1310 = vmatprep.subr.mxu0 0.0
        %1311 = vmatpush1.xpose.msra.mxu0 0.0
        %1312 = vmatprep.subr.mxu0 0.0
        %1313 = vmatpush1.xpose.msra.mxu0 0.0
        %1314 = vmatprep.subr.mxu0 0.0
        %1315 = vmatpush1.xpose.msra.mxu0 0.0
        %1316 = vmatprep.subr.mxu0 0.0
        %1317 = vmatpush1.xpose.msra.mxu0 0.0
        %1318 = vmatprep.subr.mxu0 0.0
        %1319 = vmatpush1.xpose.msra.mxu0 0.0
        %1320 = vmatprep.subr.mxu0 0.0
        %1321 = vmatpush1.xpose.msra.mxu0 0.0
        %1322 = vmatprep.subr.mxu0 0.0
        %1323 = vmatpush1.xpose.msra.mxu0 0.0
        %1324 = vmatprep.subr.mxu0 0.0
        %1325 = vmatpush1.xpose.msra.mxu0 0.0
        %1326 = vmatprep.subr.mxu0 0.0
        %1327 = vmatpush1.xpose.msra.mxu0 0.0
        %1328 = vmatprep.subr.mxu0 0.0
        %1329 = vmatpush1.xpose.msra.mxu0 0.0
        %1330 = vmatprep.subr.mxu0 0.0
        %1331 = vmatpush1.xpose.msra.mxu0 0.0
        %1332 = vmatprep.subr.mxu0 0.0
        %1333 = vmatpush1.xpose.msra.mxu0 0.0
        %1334 = vmatprep.subr.mxu0 0.0
        %1335 = vmatpush1.xpose.msra.mxu0 0.0
        %1336 = vmatprep.subr.mxu0 0.0
        %1337 = vmatpush1.xpose.msra.mxu0 0.0
        %1338 = vmatprep.subr.mxu0 0.0
        %1339 = vmatpush1.xpose.msra.mxu0 %v1308
        %1340 = vmatprep.subr.mxu0 0.0
        %1341 = vmatpush1.xpose.msra.mxu0 %v1306
        %1342 = vmatprep.subr.mxu0 0.0
        %1343 = vmatpush2.xpose.msra.mxu0 0.0
        %1344 = vmatprep.subr.mxu0 0.0
        %1345 = vmatpush2.xpose.msra.mxu0 0.0
        %1346 = vmatprep.subr.mxu0 0.0
        %1347 = vmatpush2.xpose.msra.mxu0 0.0
        %1348 = vmatprep.subr.mxu0 0.0
        %1349 = vmatpush2.xpose.msra.mxu0 0.0
        %1350 = vmatprep.subr.mxu0 0.0
        %1351 = vmatpush2.xpose.msra.mxu0 0.0
        %1352 = vmatprep.subr.mxu0 0.0
        %1353 = vmatpush2.xpose.msra.mxu0 0.0
        %1354 = vmatprep.subr.mxu0 0.0
        %1355 = vmatpush2.xpose.msra.mxu0 0.0
        %1356 = vmatprep.subr.mxu0 0.0
        %1357 = vmatpush2.xpose.msra.mxu0 0.0
        %1358 = vmatprep.subr.mxu0 0.0
        %1359 = vmatpush2.xpose.msra.mxu0 0.0
        %1360 = vmatprep.subr.mxu0 0.0
        %1361 = vmatpush2.xpose.msra.mxu0 0.0
        %1362 = vmatprep.subr.mxu0 0.0
        %1363 = vmatpush2.xpose.msra.mxu0 0.0
        %1364 = vmatprep.subr.mxu0 0.0
        %1365 = vmatpush2.xpose.msra.mxu0 0.0
        %1366 = vmatprep.subr.mxu0 0.0
        %1367 = vmatpush2.xpose.msra.mxu0 0.0
        %1368 = vmatprep.subr.mxu0 0.0
        %1369 = vmatpush2.xpose.msra.mxu0 0.0
        %1370 = vmatprep.subr.mxu0 0.0
        %1371 = vmatpush2.xpose.msra.mxu0 0.0
        %1372 = vmatprep.subr.mxu0 0.0
        %1373 = vmatpush2.xpose.msra.mxu0 0.0
        %1374 = vmatprep.mubr.f32.mxu0 0.0
        %1375 = vmatmul.mubr.f32.gmra.mxu0 %v1302
        %v1376 = vpop.f32.mrf.mxu0
        %v1377 = vadd.f32 0.0, %v1376
        %v1378 = vpop.f32.mrf.mxu0
        %1379 = vmatprep.mubr.f32.mxu0 0.0
        %1380 = vmatmul.mubr.f32.gmra.mxu0 %v1304
        %v1381 = vpop.f32.mrf.mxu0
        %v1382 = vadd.f32 0.0, %v1381
        %v1383 = vpop.f32.mrf.mxu0
        %1384 = vdwg.mxu0
        %1387 = vrot.lane.b32.xlu0 %v593, 112
        %v1388 = vpop.permute.xlu0 %1387
        %1389 = vrot.lane.b32.xlu0 %v598, 112
        %v1390 = vpop.permute.xlu0 %1389
        %v1391 = vsel %vm273, %v593, 0
        %v1393 = vsel %vm273, %v598, 0
        %v1395 = vsel %vm273, %v1388, 0
        %v1397 = vsel %vm273, %v1390, 0
        %1399 = vmatprep.subr.mxu0 0.0
        %1400 = vmatpush1.xpose.msra.mxu0 0.0
        %1401 = vmatprep.subr.mxu0 0.0
        %1402 = vmatpush1.xpose.msra.mxu0 0.0
        %1403 = vmatprep.subr.mxu0 0.0
        %1404 = vmatpush1.xpose.msra.mxu0 0.0
        %1405 = vmatprep.subr.mxu0 0.0
        %1406 = vmatpush1.xpose.msra.mxu0 0.0
        %1407 = vmatprep.subr.mxu0 0.0
        %1408 = vmatpush1.xpose.msra.mxu0 0.0
        %1409 = vmatprep.subr.mxu0 0.0
        %1410 = vmatpush1.xpose.msra.mxu0 0.0
        %1411 = vmatprep.subr.mxu0 0.0
        %1412 = vmatpush1.xpose.msra.mxu0 0.0
        %1413 = vmatprep.subr.mxu0 0.0
        %1414 = vmatpush1.xpose.msra.mxu0 0.0
        %1415 = vmatprep.subr.mxu0 0.0
        %1416 = vmatpush1.xpose.msra.mxu0 0.0
        %1417 = vmatprep.subr.mxu0 0.0
        %1418 = vmatpush1.xpose.msra.mxu0 0.0
        %1419 = vmatprep.subr.mxu0 0.0
        %1420 = vmatpush1.xpose.msra.mxu0 0.0
        %1421 = vmatprep.subr.mxu0 0.0
        %1422 = vmatpush1.xpose.msra.mxu0 0.0
        %1423 = vmatprep.subr.mxu0 0.0
        %1424 = vmatpush1.xpose.msra.mxu0 0.0
        %1425 = vmatprep.subr.mxu0 0.0
        %1426 = vmatpush1.xpose.msra.mxu0 0.0
        %1427 = vmatprep.subr.mxu0 0.0
        %1428 = vmatpush1.xpose.msra.mxu0 %v1397
        %1429 = vmatprep.subr.mxu0 0.0
        %1430 = vmatpush1.xpose.msra.mxu0 %v1395
        %1431 = vmatprep.subr.mxu0 0.0
        %1432 = vmatpush2.xpose.msra.mxu0 0.0
        %1433 = vmatprep.subr.mxu0 0.0
        %1434 = vmatpush2.xpose.msra.mxu0 0.0
        %1435 = vmatprep.subr.mxu0 0.0
        %1436 = vmatpush2.xpose.msra.mxu0 0.0
        %1437 = vmatprep.subr.mxu0 0.0
        %1438 = vmatpush2.xpose.msra.mxu0 0.0
        %1439 = vmatprep.subr.mxu0 0.0
        %1440 = vmatpush2.xpose.msra.mxu0 0.0
        %1441 = vmatprep.subr.mxu0 0.0
        %1442 = vmatpush2.xpose.msra.mxu0 0.0
        %1443 = vmatprep.subr.mxu0 0.0
        %1444 = vmatpush2.xpose.msra.mxu0 0.0
        %1445 = vmatprep.subr.mxu0 0.0
        %1446 = vmatpush2.xpose.msra.mxu0 0.0
        %1447 = vmatprep.subr.mxu0 0.0
        %1448 = vmatpush2.xpose.msra.mxu0 0.0
        %1449 = vmatprep.subr.mxu0 0.0
        %1450 = vmatpush2.xpose.msra.mxu0 0.0
        %1451 = vmatprep.subr.mxu0 0.0
        %1452 = vmatpush2.xpose.msra.mxu0 0.0
        %1453 = vmatprep.subr.mxu0 0.0
        %1454 = vmatpush2.xpose.msra.mxu0 0.0
        %1455 = vmatprep.subr.mxu0 0.0
        %1456 = vmatpush2.xpose.msra.mxu0 0.0
        %1457 = vmatprep.subr.mxu0 0.0
        %1458 = vmatpush2.xpose.msra.mxu0 0.0
        %1459 = vmatprep.subr.mxu0 0.0
        %1460 = vmatpush2.xpose.msra.mxu0 0.0
        %1461 = vmatprep.subr.mxu0 0.0
        %1462 = vmatpush2.xpose.msra.mxu0 0.0
        %1463 = vmatprep.mubr.f32.mxu0 0.0
        %1464 = vmatmul.mubr.f32.gmra.mxu0 %v1391
        %v1465 = vpop.f32.mrf.mxu0
        %v1466 = vadd.f32 0.0, %v1465
        %v1467 = vpop.f32.mrf.mxu0
        %1468 = vmatprep.mubr.f32.mxu0 0.0
        %1469 = vmatmul.mubr.f32.gmra.mxu0 %v1393
        %v1470 = vpop.f32.mrf.mxu0
        %v1471 = vadd.f32 0.0, %v1470
        %v1472 = vpop.f32.mrf.mxu0
        %1473 = vdwg.mxu0
        %1476 = vrot.lane.b32.xlu0 %v603, 112
        %v1477 = vpop.permute.xlu0 %1476
        %1478 = vrot.lane.b32.xlu0 %v608, 112
        %v1479 = vpop.permute.xlu0 %1478
        %v1480 = vsel %vm273, %v603, 0
        %v1482 = vsel %vm273, %v608, 0
        %v1484 = vsel %vm273, %v1477, 0
        %v1486 = vsel %vm273, %v1479, 0
        %1488 = vmatprep.subr.mxu0 0.0
        %1489 = vmatpush1.xpose.msra.mxu0 0.0
        %1490 = vmatprep.subr.mxu0 0.0
        %1491 = vmatpush1.xpose.msra.mxu0 0.0
        %1492 = vmatprep.subr.mxu0 0.0
        %1493 = vmatpush1.xpose.msra.mxu0 0.0
        %1494 = vmatprep.subr.mxu0 0.0
        %1495 = vmatpush1.xpose.msra.mxu0 0.0
        %1496 = vmatprep.subr.mxu0 0.0
        %1497 = vmatpush1.xpose.msra.mxu0 0.0
        %1498 = vmatprep.subr.mxu0 0.0
        %1499 = vmatpush1.xpose.msra.mxu0 0.0
        %1500 = vmatprep.subr.mxu0 0.0
        %1501 = vmatpush1.xpose.msra.mxu0 0.0
        %1502 = vmatprep.subr.mxu0 0.0
        %1503 = vmatpush1.xpose.msra.mxu0 0.0
        %1504 = vmatprep.subr.mxu0 0.0
        %1505 = vmatpush1.xpose.msra.mxu0 0.0
        %1506 = vmatprep.subr.mxu0 0.0
        %1507 = vmatpush1.xpose.msra.mxu0 0.0
        %1508 = vmatprep.subr.mxu0 0.0
        %1509 = vmatpush1.xpose.msra.mxu0 0.0
        %1510 = vmatprep.subr.mxu0 0.0
        %1511 = vmatpush1.xpose.msra.mxu0 0.0
        %1512 = vmatprep.subr.mxu0 0.0
        %1513 = vmatpush1.xpose.msra.mxu0 0.0
        %1514 = vmatprep.subr.mxu0 0.0
        %1515 = vmatpush1.xpose.msra.mxu0 0.0
        %1516 = vmatprep.subr.mxu0 0.0
        %1517 = vmatpush1.xpose.msra.mxu0 %v1486
        %1518 = vmatprep.subr.mxu0 0.0
        %1519 = vmatpush1.xpose.msra.mxu0 %v1484
        %1520 = vmatprep.subr.mxu0 0.0
        %1521 = vmatpush2.xpose.msra.mxu0 0.0
        %1522 = vmatprep.subr.mxu0 0.0
        %1523 = vmatpush2.xpose.msra.mxu0 0.0
        %1524 = vmatprep.subr.mxu0 0.0
        %1525 = vmatpush2.xpose.msra.mxu0 0.0
        %1526 = vmatprep.subr.mxu0 0.0
        %1527 = vmatpush2.xpose.msra.mxu0 0.0
        %1528 = vmatprep.subr.mxu0 0.0
        %1529 = vmatpush2.xpose.msra.mxu0 0.0
        %1530 = vmatprep.subr.mxu0 0.0
        %1531 = vmatpush2.xpose.msra.mxu0 0.0
        %1532 = vmatprep.subr.mxu0 0.0
        %1533 = vmatpush2.xpose.msra.mxu0 0.0
        %1534 = vmatprep.subr.mxu0 0.0
        %1535 = vmatpush2.xpose.msra.mxu0 0.0
        %1536 = vmatprep.subr.mxu0 0.0
        %1537 = vmatpush2.xpose.msra.mxu0 0.0
        %1538 = vmatprep.subr.mxu0 0.0
        %1539 = vmatpush2.xpose.msra.mxu0 0.0
        %1540 = vmatprep.subr.mxu0 0.0
        %1541 = vmatpush2.xpose.msra.mxu0 0.0
        %1542 = vmatprep.subr.mxu0 0.0
        %1543 = vmatpush2.xpose.msra.mxu0 0.0
        %1544 = vmatprep.subr.mxu0 0.0
        %1545 = vmatpush2.xpose.msra.mxu0 0.0
        %1546 = vmatprep.subr.mxu0 0.0
        %1547 = vmatpush2.xpose.msra.mxu0 0.0
        %1548 = vmatprep.subr.mxu0 0.0
        %1549 = vmatpush2.xpose.msra.mxu0 0.0
        %1550 = vmatprep.subr.mxu0 0.0
        %1551 = vmatpush2.xpose.msra.mxu0 0.0
        %1552 = vmatprep.mubr.f32.mxu0 0.0
        %1553 = vmatmul.mubr.f32.gmra.mxu0 %v1480
        %v1554 = vpop.f32.mrf.mxu0
        %v1555 = vadd.f32 0.0, %v1554
        %v1556 = vpop.f32.mrf.mxu0
        %1557 = vmatprep.mubr.f32.mxu0 0.0
        %1558 = vmatmul.mubr.f32.gmra.mxu0 %v1482
        %v1559 = vpop.f32.mrf.mxu0
        %v1560 = vadd.f32 0.0, %v1559
        %v1561 = vpop.f32.mrf.mxu0
        %1562 = vdwg.mxu0
        %1565 = vrot.lane.b32.xlu0 %v613, 112
        %v1566 = vpop.permute.xlu0 %1565
        %1567 = vrot.lane.b32.xlu0 %v618, 112
        %v1568 = vpop.permute.xlu0 %1567
        %v1569 = vsel %vm273, %v613, 0
        %v1571 = vsel %vm273, %v618, 0
        %v1573 = vsel %vm273, %v1566, 0
        %v1575 = vsel %vm273, %v1568, 0
        %1577 = vmatprep.subr.mxu0 0.0
        %1578 = vmatpush1.xpose.msra.mxu0 0.0
        %1579 = vmatprep.subr.mxu0 0.0
        %1580 = vmatpush1.xpose.msra.mxu0 0.0
        %1581 = vmatprep.subr.mxu0 0.0
        %1582 = vmatpush1.xpose.msra.mxu0 0.0
        %1583 = vmatprep.subr.mxu0 0.0
        %1584 = vmatpush1.xpose.msra.mxu0 0.0
        %1585 = vmatprep.subr.mxu0 0.0
        %1586 = vmatpush1.xpose.msra.mxu0 0.0
        %1587 = vmatprep.subr.mxu0 0.0
        %1588 = vmatpush1.xpose.msra.mxu0 0.0
        %1589 = vmatprep.subr.mxu0 0.0
        %1590 = vmatpush1.xpose.msra.mxu0 0.0
        %1591 = vmatprep.subr.mxu0 0.0
        %1592 = vmatpush1.xpose.msra.mxu0 0.0
        %1593 = vmatprep.subr.mxu0 0.0
        %1594 = vmatpush1.xpose.msra.mxu0 0.0
        %1595 = vmatprep.subr.mxu0 0.0
        %1596 = vmatpush1.xpose.msra.mxu0 0.0
        %1597 = vmatprep.subr.mxu0 0.0
        %1598 = vmatpush1.xpose.msra.mxu0 0.0
        %1599 = vmatprep.subr.mxu0 0.0
        %1600 = vmatpush1.xpose.msra.mxu0 0.0
        %1601 = vmatprep.subr.mxu0 0.0
        %1602 = vmatpush1.xpose.msra.mxu0 0.0
        %1603 = vmatprep.subr.mxu0 0.0
        %1604 = vmatpush1.xpose.msra.mxu0 0.0
        %1605 = vmatprep.subr.mxu0 0.0
        %1606 = vmatpush1.xpose.msra.mxu0 %v1575
        %1607 = vmatprep.subr.mxu0 0.0
        %1608 = vmatpush1.xpose.msra.mxu0 %v1573
        %1609 = vmatprep.subr.mxu0 0.0
        %1610 = vmatpush2.xpose.msra.mxu0 0.0
        %1611 = vmatprep.subr.mxu0 0.0
        %1612 = vmatpush2.xpose.msra.mxu0 0.0
        %1613 = vmatprep.subr.mxu0 0.0
        %1614 = vmatpush2.xpose.msra.mxu0 0.0
        %1615 = vmatprep.subr.mxu0 0.0
        %1616 = vmatpush2.xpose.msra.mxu0 0.0
        %1617 = vmatprep.subr.mxu0 0.0
        %1618 = vmatpush2.xpose.msra.mxu0 0.0
        %1619 = vmatprep.subr.mxu0 0.0
        %1620 = vmatpush2.xpose.msra.mxu0 0.0
        %1621 = vmatprep.subr.mxu0 0.0
        %1622 = vmatpush2.xpose.msra.mxu0 0.0
        %1623 = vmatprep.subr.mxu0 0.0
        %1624 = vmatpush2.xpose.msra.mxu0 0.0
        %1625 = vmatprep.subr.mxu0 0.0
        %1626 = vmatpush2.xpose.msra.mxu0 0.0
        %1627 = vmatprep.subr.mxu0 0.0
        %1628 = vmatpush2.xpose.msra.mxu0 0.0
        %1629 = vmatprep.subr.mxu0 0.0
        %1630 = vmatpush2.xpose.msra.mxu0 0.0
        %1631 = vmatprep.subr.mxu0 0.0
        %1632 = vmatpush2.xpose.msra.mxu0 0.0
        %1633 = vmatprep.subr.mxu0 0.0
        %1634 = vmatpush2.xpose.msra.mxu0 0.0
        %1635 = vmatprep.subr.mxu0 0.0
        %1636 = vmatpush2.xpose.msra.mxu0 0.0
        %1637 = vmatprep.subr.mxu0 0.0
        %1638 = vmatpush2.xpose.msra.mxu0 0.0
        %1639 = vmatprep.subr.mxu0 0.0
        %1640 = vmatpush2.xpose.msra.mxu0 0.0
        %1641 = vmatprep.mubr.f32.mxu0 0.0
        %1642 = vmatmul.mubr.f32.gmra.mxu0 %v1569
        %v1643 = vpop.f32.mrf.mxu0
        %v1644 = vadd.f32 0.0, %v1643
        %v1645 = vpop.f32.mrf.mxu0
        %1646 = vmatprep.mubr.f32.mxu0 0.0
        %1647 = vmatmul.mubr.f32.gmra.mxu0 %v1571
        %v1648 = vpop.f32.mrf.mxu0
        %v1649 = vadd.f32 0.0, %v1648
        %v1650 = vpop.f32.mrf.mxu0
        %1651 = vdwg.mxu0
        %1654 = vrot.lane.b32.xlu0 %v623, 112
        %v1655 = vpop.permute.xlu0 %1654
        %1656 = vrot.lane.b32.xlu0 %v628, 112
        %v1657 = vpop.permute.xlu0 %1656
        %v1658 = vsel %vm273, %v623, 0
        %v1660 = vsel %vm273, %v628, 0
        %v1662 = vsel %vm273, %v1655, 0
        %v1664 = vsel %vm273, %v1657, 0
        %1666 = vmatprep.subr.mxu0 0.0
        %1667 = vmatpush1.xpose.msra.mxu0 0.0
        %1668 = vmatprep.subr.mxu0 0.0
        %1669 = vmatpush1.xpose.msra.mxu0 0.0
        %1670 = vmatprep.subr.mxu0 0.0
        %1671 = vmatpush1.xpose.msra.mxu0 0.0
        %1672 = vmatprep.subr.mxu0 0.0
        %1673 = vmatpush1.xpose.msra.mxu0 0.0
        %1674 = vmatprep.subr.mxu0 0.0
        %1675 = vmatpush1.xpose.msra.mxu0 0.0
        %1676 = vmatprep.subr.mxu0 0.0
        %1677 = vmatpush1.xpose.msra.mxu0 0.0
        %1678 = vmatprep.subr.mxu0 0.0
        %1679 = vmatpush1.xpose.msra.mxu0 0.0
        %1680 = vmatprep.subr.mxu0 0.0
        %1681 = vmatpush1.xpose.msra.mxu0 0.0
        %1682 = vmatprep.subr.mxu0 0.0
        %1683 = vmatpush1.xpose.msra.mxu0 0.0
        %1684 = vmatprep.subr.mxu0 0.0
        %1685 = vmatpush1.xpose.msra.mxu0 0.0
        %1686 = vmatprep.subr.mxu0 0.0
        %1687 = vmatpush1.xpose.msra.mxu0 0.0
        %1688 = vmatprep.subr.mxu0 0.0
        %1689 = vmatpush1.xpose.msra.mxu0 0.0
        %1690 = vmatprep.subr.mxu0 0.0
        %1691 = vmatpush1.xpose.msra.mxu0 0.0
        %1692 = vmatprep.subr.mxu0 0.0
        %1693 = vmatpush1.xpose.msra.mxu0 0.0
        %1694 = vmatprep.subr.mxu0 0.0
        %1695 = vmatpush1.xpose.msra.mxu0 %v1664
        %1696 = vmatprep.subr.mxu0 0.0
        %1697 = vmatpush1.xpose.msra.mxu0 %v1662
        %1698 = vmatprep.subr.mxu0 0.0
        %1699 = vmatpush2.xpose.msra.mxu0 0.0
        %1700 = vmatprep.subr.mxu0 0.0
        %1701 = vmatpush2.xpose.msra.mxu0 0.0
        %1702 = vmatprep.subr.mxu0 0.0
        %1703 = vmatpush2.xpose.msra.mxu0 0.0
        %1704 = vmatprep.subr.mxu0 0.0
        %1705 = vmatpush2.xpose.msra.mxu0 0.0
        %1706 = vmatprep.subr.mxu0 0.0
        %1707 = vmatpush2.xpose.msra.mxu0 0.0
        %1708 = vmatprep.subr.mxu0 0.0
        %1709 = vmatpush2.xpose.msra.mxu0 0.0
        %1710 = vmatprep.subr.mxu0 0.0
        %1711 = vmatpush2.xpose.msra.mxu0 0.0
        %1712 = vmatprep.subr.mxu0 0.0
        %1713 = vmatpush2.xpose.msra.mxu0 0.0
        %1714 = vmatprep.subr.mxu0 0.0
        %1715 = vmatpush2.xpose.msra.mxu0 0.0
        %1716 = vmatprep.subr.mxu0 0.0
        %1717 = vmatpush2.xpose.msra.mxu0 0.0
        %1718 = vmatprep.subr.mxu0 0.0
        %1719 = vmatpush2.xpose.msra.mxu0 0.0
        %1720 = vmatprep.subr.mxu0 0.0
        %1721 = vmatpush2.xpose.msra.mxu0 0.0
        %1722 = vmatprep.subr.mxu0 0.0
        %1723 = vmatpush2.xpose.msra.mxu0 0.0
        %1724 = vmatprep.subr.mxu0 0.0
        %1725 = vmatpush2.xpose.msra.mxu0 0.0
        %1726 = vmatprep.subr.mxu0 0.0
        %1727 = vmatpush2.xpose.msra.mxu0 0.0
        %1728 = vmatprep.subr.mxu0 0.0
        %1729 = vmatpush2.xpose.msra.mxu0 0.0
        %1730 = vmatprep.mubr.f32.mxu0 0.0
        %1731 = vmatmul.mubr.f32.gmra.mxu0 %v1658
        %v1732 = vpop.f32.mrf.mxu0
        %v1733 = vadd.f32 0.0, %v1732
        %v1734 = vpop.f32.mrf.mxu0
        %1735 = vmatprep.mubr.f32.mxu0 0.0
        %1736 = vmatmul.mubr.f32.gmra.mxu0 %v1660
        %v1737 = vpop.f32.mrf.mxu0
        %v1738 = vadd.f32 0.0, %v1737
        %v1739 = vpop.f32.mrf.mxu0
        %1740 = vdwg.mxu0
        %1743 = vrot.lane.b32.xlu0 %v633, 112
        %v1744 = vpop.permute.xlu0 %1743
        %1745 = vrot.lane.b32.xlu0 %v638, 112
        %v1746 = vpop.permute.xlu0 %1745
        %v1747 = vsel %vm273, %v633, 0
        %v1749 = vsel %vm273, %v638, 0
        %v1751 = vsel %vm273, %v1744, 0
        %v1753 = vsel %vm273, %v1746, 0
        %1755 = vmatprep.subr.mxu0 0.0
        %1756 = vmatpush1.xpose.msra.mxu0 0.0
        %1757 = vmatprep.subr.mxu0 0.0
        %1758 = vmatpush1.xpose.msra.mxu0 0.0
        %1759 = vmatprep.subr.mxu0 0.0
        %1760 = vmatpush1.xpose.msra.mxu0 0.0
        %1761 = vmatprep.subr.mxu0 0.0
        %1762 = vmatpush1.xpose.msra.mxu0 0.0
        %1763 = vmatprep.subr.mxu0 0.0
        %1764 = vmatpush1.xpose.msra.mxu0 0.0
        %1765 = vmatprep.subr.mxu0 0.0
        %1766 = vmatpush1.xpose.msra.mxu0 0.0
        %1767 = vmatprep.subr.mxu0 0.0
        %1768 = vmatpush1.xpose.msra.mxu0 0.0
        %1769 = vmatprep.subr.mxu0 0.0
        %1770 = vmatpush1.xpose.msra.mxu0 0.0
        %1771 = vmatprep.subr.mxu0 0.0
        %1772 = vmatpush1.xpose.msra.mxu0 0.0
        %1773 = vmatprep.subr.mxu0 0.0
        %1774 = vmatpush1.xpose.msra.mxu0 0.0
        %1775 = vmatprep.subr.mxu0 0.0
        %1776 = vmatpush1.xpose.msra.mxu0 0.0
        %1777 = vmatprep.subr.mxu0 0.0
        %1778 = vmatpush1.xpose.msra.mxu0 0.0
        %1779 = vmatprep.subr.mxu0 0.0
        %1780 = vmatpush1.xpose.msra.mxu0 0.0
        %1781 = vmatprep.subr.mxu0 0.0
        %1782 = vmatpush1.xpose.msra.mxu0 0.0
        %1783 = vmatprep.subr.mxu0 0.0
        %1784 = vmatpush1.xpose.msra.mxu0 %v1753
        %1785 = vmatprep.subr.mxu0 0.0
        %1786 = vmatpush1.xpose.msra.mxu0 %v1751
        %1787 = vmatprep.subr.mxu0 0.0
        %1788 = vmatpush2.xpose.msra.mxu0 0.0
        %1789 = vmatprep.subr.mxu0 0.0
        %1790 = vmatpush2.xpose.msra.mxu0 0.0
        %1791 = vmatprep.subr.mxu0 0.0
        %1792 = vmatpush2.xpose.msra.mxu0 0.0
        %1793 = vmatprep.subr.mxu0 0.0
        %1794 = vmatpush2.xpose.msra.mxu0 0.0
        %1795 = vmatprep.subr.mxu0 0.0
        %1796 = vmatpush2.xpose.msra.mxu0 0.0
        %1797 = vmatprep.subr.mxu0 0.0
        %1798 = vmatpush2.xpose.msra.mxu0 0.0
        %1799 = vmatprep.subr.mxu0 0.0
        %1800 = vmatpush2.xpose.msra.mxu0 0.0
        %1801 = vmatprep.subr.mxu0 0.0
        %1802 = vmatpush2.xpose.msra.mxu0 0.0
        %1803 = vmatprep.subr.mxu0 0.0
        %1804 = vmatpush2.xpose.msra.mxu0 0.0
        %1805 = vmatprep.subr.mxu0 0.0
        %1806 = vmatpush2.xpose.msra.mxu0 0.0
        %1807 = vmatprep.subr.mxu0 0.0
        %1808 = vmatpush2.xpose.msra.mxu0 0.0
        %1809 = vmatprep.subr.mxu0 0.0
        %1810 = vmatpush2.xpose.msra.mxu0 0.0
        %1811 = vmatprep.subr.mxu0 0.0
        %1812 = vmatpush2.xpose.msra.mxu0 0.0
        %1813 = vmatprep.subr.mxu0 0.0
        %1814 = vmatpush2.xpose.msra.mxu0 0.0
        %1815 = vmatprep.subr.mxu0 0.0
        %1816 = vmatpush2.xpose.msra.mxu0 0.0
        %1817 = vmatprep.subr.mxu0 0.0
        %1818 = vmatpush2.xpose.msra.mxu0 0.0
        %1819 = vmatprep.mubr.f32.mxu0 0.0
        %1820 = vmatmul.mubr.f32.gmra.mxu0 %v1747
        %v1821 = vpop.f32.mrf.mxu0
        %v1822 = vadd.f32 0.0, %v1821
        %v1823 = vpop.f32.mrf.mxu0
        %1824 = vmatprep.mubr.f32.mxu0 0.0
        %1825 = vmatmul.mubr.f32.gmra.mxu0 %v1749
        %v1826 = vpop.f32.mrf.mxu0
        %v1827 = vadd.f32 0.0, %v1826
        %v1828 = vpop.f32.mrf.mxu0
        %1829 = vdwg.mxu0
        %1832 = vrot.lane.b32.xlu0 %v643, 112
        %v1833 = vpop.permute.xlu0 %1832
        %1834 = vrot.lane.b32.xlu0 %v648, 112
        %v1835 = vpop.permute.xlu0 %1834
        %v1836 = vsel %vm273, %v643, 0
        %v1838 = vsel %vm273, %v648, 0
        %v1840 = vsel %vm273, %v1833, 0
        %v1842 = vsel %vm273, %v1835, 0
        %1844 = vmatprep.subr.mxu0 0.0
        %1845 = vmatpush1.xpose.msra.mxu0 0.0
        %1846 = vmatprep.subr.mxu0 0.0
        %1847 = vmatpush1.xpose.msra.mxu0 0.0
        %1848 = vmatprep.subr.mxu0 0.0
        %1849 = vmatpush1.xpose.msra.mxu0 0.0
        %1850 = vmatprep.subr.mxu0 0.0
        %1851 = vmatpush1.xpose.msra.mxu0 0.0
        %1852 = vmatprep.subr.mxu0 0.0
        %1853 = vmatpush1.xpose.msra.mxu0 0.0
        %1854 = vmatprep.subr.mxu0 0.0
        %1855 = vmatpush1.xpose.msra.mxu0 0.0
        %1856 = vmatprep.subr.mxu0 0.0
        %1857 = vmatpush1.xpose.msra.mxu0 0.0
        %1858 = vmatprep.subr.mxu0 0.0
        %1859 = vmatpush1.xpose.msra.mxu0 0.0
        %1860 = vmatprep.subr.mxu0 0.0
        %1861 = vmatpush1.xpose.msra.mxu0 0.0
        %1862 = vmatprep.subr.mxu0 0.0
        %1863 = vmatpush1.xpose.msra.mxu0 0.0
        %1864 = vmatprep.subr.mxu0 0.0
        %1865 = vmatpush1.xpose.msra.mxu0 0.0
        %1866 = vmatprep.subr.mxu0 0.0
        %1867 = vmatpush1.xpose.msra.mxu0 0.0
        %1868 = vmatprep.subr.mxu0 0.0
        %1869 = vmatpush1.xpose.msra.mxu0 0.0
        %1870 = vmatprep.subr.mxu0 0.0
        %1871 = vmatpush1.xpose.msra.mxu0 0.0
        %1872 = vmatprep.subr.mxu0 0.0
        %1873 = vmatpush1.xpose.msra.mxu0 %v1842
        %1874 = vmatprep.subr.mxu0 0.0
        %1875 = vmatpush1.xpose.msra.mxu0 %v1840
        %1876 = vmatprep.subr.mxu0 0.0
        %1877 = vmatpush2.xpose.msra.mxu0 0.0
        %1878 = vmatprep.subr.mxu0 0.0
        %1879 = vmatpush2.xpose.msra.mxu0 0.0
        %1880 = vmatprep.subr.mxu0 0.0
        %1881 = vmatpush2.xpose.msra.mxu0 0.0
        %1882 = vmatprep.subr.mxu0 0.0
        %1883 = vmatpush2.xpose.msra.mxu0 0.0
        %1884 = vmatprep.subr.mxu0 0.0
        %1885 = vmatpush2.xpose.msra.mxu0 0.0
        %1886 = vmatprep.subr.mxu0 0.0
        %1887 = vmatpush2.xpose.msra.mxu0 0.0
        %1888 = vmatprep.subr.mxu0 0.0
        %1889 = vmatpush2.xpose.msra.mxu0 0.0
        %1890 = vmatprep.subr.mxu0 0.0
        %1891 = vmatpush2.xpose.msra.mxu0 0.0
        %1892 = vmatprep.subr.mxu0 0.0
        %1893 = vmatpush2.xpose.msra.mxu0 0.0
        %1894 = vmatprep.subr.mxu0 0.0
        %1895 = vmatpush2.xpose.msra.mxu0 0.0
        %1896 = vmatprep.subr.mxu0 0.0
        %1897 = vmatpush2.xpose.msra.mxu0 0.0
        %1898 = vmatprep.subr.mxu0 0.0
        %1899 = vmatpush2.xpose.msra.mxu0 0.0
        %1900 = vmatprep.subr.mxu0 0.0
        %1901 = vmatpush2.xpose.msra.mxu0 0.0
        %1902 = vmatprep.subr.mxu0 0.0
        %1903 = vmatpush2.xpose.msra.mxu0 0.0
        %1904 = vmatprep.subr.mxu0 0.0
        %1905 = vmatpush2.xpose.msra.mxu0 0.0
        %1906 = vmatprep.subr.mxu0 0.0
        %1907 = vmatpush2.xpose.msra.mxu0 0.0
        %1908 = vmatprep.mubr.f32.mxu0 0.0
        %1909 = vmatmul.mubr.f32.gmra.mxu0 %v1836
        %v1910 = vpop.f32.mrf.mxu0
        %v1911 = vadd.f32 0.0, %v1910
        %v1912 = vpop.f32.mrf.mxu0
        %1913 = vmatprep.mubr.f32.mxu0 0.0
        %1914 = vmatmul.mubr.f32.gmra.mxu0 %v1838
        %v1915 = vpop.f32.mrf.mxu0
        %v1916 = vadd.f32 0.0, %v1915
        %v1917 = vpop.f32.mrf.mxu0
        %1918 = vdwg.mxu0
        %1921 = vrot.lane.b32.xlu0 %v653, 112
        %v1922 = vpop.permute.xlu0 %1921
        %1923 = vrot.lane.b32.xlu0 %v658, 112
        %v1924 = vpop.permute.xlu0 %1923
        %v1925 = vsel %vm273, %v653, 0
        %v1927 = vsel %vm273, %v658, 0
        %v1929 = vsel %vm273, %v1922, 0
        %v1931 = vsel %vm273, %v1924, 0
        %1933 = vmatprep.subr.mxu0 0.0
        %1934 = vmatpush1.xpose.msra.mxu0 0.0
        %1935 = vmatprep.subr.mxu0 0.0
        %1936 = vmatpush1.xpose.msra.mxu0 0.0
        %1937 = vmatprep.subr.mxu0 0.0
        %1938 = vmatpush1.xpose.msra.mxu0 0.0
        %1939 = vmatprep.subr.mxu0 0.0
        %1940 = vmatpush1.xpose.msra.mxu0 0.0
        %1941 = vmatprep.subr.mxu0 0.0
        %1942 = vmatpush1.xpose.msra.mxu0 0.0
        %1943 = vmatprep.subr.mxu0 0.0
        %1944 = vmatpush1.xpose.msra.mxu0 0.0
        %1945 = vmatprep.subr.mxu0 0.0
        %1946 = vmatpush1.xpose.msra.mxu0 0.0
        %1947 = vmatprep.subr.mxu0 0.0
        %1948 = vmatpush1.xpose.msra.mxu0 0.0
        %1949 = vmatprep.subr.mxu0 0.0
        %1950 = vmatpush1.xpose.msra.mxu0 0.0
        %1951 = vmatprep.subr.mxu0 0.0
        %1952 = vmatpush1.xpose.msra.mxu0 0.0
        %1953 = vmatprep.subr.mxu0 0.0
        %1954 = vmatpush1.xpose.msra.mxu0 0.0
        %1955 = vmatprep.subr.mxu0 0.0
        %1956 = vmatpush1.xpose.msra.mxu0 0.0
        %1957 = vmatprep.subr.mxu0 0.0
        %1958 = vmatpush1.xpose.msra.mxu0 0.0
        %1959 = vmatprep.subr.mxu0 0.0
        %1960 = vmatpush1.xpose.msra.mxu0 0.0
        %1961 = vmatprep.subr.mxu0 0.0
        %1962 = vmatpush1.xpose.msra.mxu0 %v1931
        %1963 = vmatprep.subr.mxu0 0.0
        %1964 = vmatpush1.xpose.msra.mxu0 %v1929
        %1965 = vmatprep.subr.mxu0 0.0
        %1966 = vmatpush2.xpose.msra.mxu0 0.0
        %1967 = vmatprep.subr.mxu0 0.0
        %1968 = vmatpush2.xpose.msra.mxu0 0.0
        %1969 = vmatprep.subr.mxu0 0.0
        %1970 = vmatpush2.xpose.msra.mxu0 0.0
        %1971 = vmatprep.subr.mxu0 0.0
        %1972 = vmatpush2.xpose.msra.mxu0 0.0
        %1973 = vmatprep.subr.mxu0 0.0
        %1974 = vmatpush2.xpose.msra.mxu0 0.0
        %1975 = vmatprep.subr.mxu0 0.0
        %1976 = vmatpush2.xpose.msra.mxu0 0.0
        %1977 = vmatprep.subr.mxu0 0.0
        %1978 = vmatpush2.xpose.msra.mxu0 0.0
        %1979 = vmatprep.subr.mxu0 0.0
        %1980 = vmatpush2.xpose.msra.mxu0 0.0
        %1981 = vmatprep.subr.mxu0 0.0
        %1982 = vmatpush2.xpose.msra.mxu0 0.0
        %1983 = vmatprep.subr.mxu0 0.0
        %1984 = vmatpush2.xpose.msra.mxu0 0.0
        %1985 = vmatprep.subr.mxu0 0.0
        %1986 = vmatpush2.xpose.msra.mxu0 0.0
        %1987 = vmatprep.subr.mxu0 0.0
        %1988 = vmatpush2.xpose.msra.mxu0 0.0
        %1989 = vmatprep.subr.mxu0 0.0
        %1990 = vmatpush2.xpose.msra.mxu0 0.0
        %1991 = vmatprep.subr.mxu0 0.0
        %1992 = vmatpush2.xpose.msra.mxu0 0.0
        %1993 = vmatprep.subr.mxu0 0.0
        %1994 = vmatpush2.xpose.msra.mxu0 0.0
        %1995 = vmatprep.subr.mxu0 0.0
        %1996 = vmatpush2.xpose.msra.mxu0 0.0
        %1997 = vmatprep.mubr.f32.mxu0 0.0
        %1998 = vmatmul.mubr.f32.gmra.mxu0 %v1925
        %v1999 = vpop.f32.mrf.mxu0
        %v2000 = vadd.f32 0.0, %v1999
        %v2001 = vpop.f32.mrf.mxu0
        %2002 = vmatprep.mubr.f32.mxu0 0.0
        %2003 = vmatmul.mubr.f32.gmra.mxu0 %v1927
        %v2004 = vpop.f32.mrf.mxu0
        %v2005 = vadd.f32 0.0, %v2004
        %v2006 = vpop.f32.mrf.mxu0
        %2007 = vdwg.mxu0
        %2010 = vrot.lane.b32.xlu0 %v663, 112
        %v2011 = vpop.permute.xlu0 %2010
        %2012 = vrot.lane.b32.xlu0 %v668, 112
        %v2013 = vpop.permute.xlu0 %2012
        %v2014 = vsel %vm273, %v663, 0
        %v2016 = vsel %vm273, %v668, 0
        %v2018 = vsel %vm273, %v2011, 0
        %v2020 = vsel %vm273, %v2013, 0
        %2022 = vmatprep.subr.mxu0 0.0
        %2023 = vmatpush1.xpose.msra.mxu0 0.0
        %2024 = vmatprep.subr.mxu0 0.0
        %2025 = vmatpush1.xpose.msra.mxu0 0.0
        %2026 = vmatprep.subr.mxu0 0.0
        %2027 = vmatpush1.xpose.msra.mxu0 0.0
        %2028 = vmatprep.subr.mxu0 0.0
        %2029 = vmatpush1.xpose.msra.mxu0 0.0
        %2030 = vmatprep.subr.mxu0 0.0
        %2031 = vmatpush1.xpose.msra.mxu0 0.0
        %2032 = vmatprep.subr.mxu0 0.0
        %2033 = vmatpush1.xpose.msra.mxu0 0.0
        %2034 = vmatprep.subr.mxu0 0.0
        %2035 = vmatpush1.xpose.msra.mxu0 0.0
        %2036 = vmatprep.subr.mxu0 0.0
        %2037 = vmatpush1.xpose.msra.mxu0 0.0
        %2038 = vmatprep.subr.mxu0 0.0
        %2039 = vmatpush1.xpose.msra.mxu0 0.0
        %2040 = vmatprep.subr.mxu0 0.0
        %2041 = vmatpush1.xpose.msra.mxu0 0.0
        %2042 = vmatprep.subr.mxu0 0.0
        %2043 = vmatpush1.xpose.msra.mxu0 0.0
        %2044 = vmatprep.subr.mxu0 0.0
        %2045 = vmatpush1.xpose.msra.mxu0 0.0
        %2046 = vmatprep.subr.mxu0 0.0
        %2047 = vmatpush1.xpose.msra.mxu0 0.0
        %2048 = vmatprep.subr.mxu0 0.0
        %2049 = vmatpush1.xpose.msra.mxu0 0.0
        %2050 = vmatprep.subr.mxu0 0.0
        %2051 = vmatpush1.xpose.msra.mxu0 %v2020
        %2052 = vmatprep.subr.mxu0 0.0
        %2053 = vmatpush1.xpose.msra.mxu0 %v2018
        %2054 = vmatprep.subr.mxu0 0.0
        %2055 = vmatpush2.xpose.msra.mxu0 0.0
        %2056 = vmatprep.subr.mxu0 0.0
        %2057 = vmatpush2.xpose.msra.mxu0 0.0
        %2058 = vmatprep.subr.mxu0 0.0
        %2059 = vmatpush2.xpose.msra.mxu0 0.0
        %2060 = vmatprep.subr.mxu0 0.0
        %2061 = vmatpush2.xpose.msra.mxu0 0.0
        %2062 = vmatprep.subr.mxu0 0.0
        %2063 = vmatpush2.xpose.msra.mxu0 0.0
        %2064 = vmatprep.subr.mxu0 0.0
        %2065 = vmatpush2.xpose.msra.mxu0 0.0
        %2066 = vmatprep.subr.mxu0 0.0
        %2067 = vmatpush2.xpose.msra.mxu0 0.0
        %2068 = vmatprep.subr.mxu0 0.0
        %2069 = vmatpush2.xpose.msra.mxu0 0.0
        %2070 = vmatprep.subr.mxu0 0.0
        %2071 = vmatpush2.xpose.msra.mxu0 0.0
        %2072 = vmatprep.subr.mxu0 0.0
        %2073 = vmatpush2.xpose.msra.mxu0 0.0
        %2074 = vmatprep.subr.mxu0 0.0
        %2075 = vmatpush2.xpose.msra.mxu0 0.0
        %2076 = vmatprep.subr.mxu0 0.0
        %2077 = vmatpush2.xpose.msra.mxu0 0.0
        %2078 = vmatprep.subr.mxu0 0.0
        %2079 = vmatpush2.xpose.msra.mxu0 0.0
        %2080 = vmatprep.subr.mxu0 0.0
        %2081 = vmatpush2.xpose.msra.mxu0 0.0
        %2082 = vmatprep.subr.mxu0 0.0
        %2083 = vmatpush2.xpose.msra.mxu0 0.0
        %2084 = vmatprep.subr.mxu0 0.0
        %2085 = vmatpush2.xpose.msra.mxu0 0.0
        %2086 = vmatprep.mubr.f32.mxu0 0.0
        %2087 = vmatmul.mubr.f32.gmra.mxu0 %v2014
        %v2088 = vpop.f32.mrf.mxu0
        %v2089 = vadd.f32 0.0, %v2088
        %v2090 = vpop.f32.mrf.mxu0
        %2091 = vmatprep.mubr.f32.mxu0 0.0
        %2092 = vmatmul.mubr.f32.gmra.mxu0 %v2016
        %v2093 = vpop.f32.mrf.mxu0
        %v2094 = vadd.f32 0.0, %v2093
        %v2095 = vpop.f32.mrf.mxu0
        %2096 = vdwg.mxu0
        %2099 = vrot.lane.b32.xlu0 %v673, 112
        %v2100 = vpop.permute.xlu0 %2099
        %2101 = vrot.lane.b32.xlu0 %v678, 112
        %v2102 = vpop.permute.xlu0 %2101
        %v2103 = vsel %vm273, %v673, 0
        %v2105 = vsel %vm273, %v678, 0
        %v2107 = vsel %vm273, %v2100, 0
        %v2109 = vsel %vm273, %v2102, 0
        %2111 = vmatprep.subr.mxu0 0.0
        %2112 = vmatpush1.xpose.msra.mxu0 0.0
        %2113 = vmatprep.subr.mxu0 0.0
        %2114 = vmatpush1.xpose.msra.mxu0 0.0
        %2115 = vmatprep.subr.mxu0 0.0
        %2116 = vmatpush1.xpose.msra.mxu0 0.0
        %2117 = vmatprep.subr.mxu0 0.0
        %2118 = vmatpush1.xpose.msra.mxu0 0.0
        %2119 = vmatprep.subr.mxu0 0.0
        %2120 = vmatpush1.xpose.msra.mxu0 0.0
        %2121 = vmatprep.subr.mxu0 0.0
        %2122 = vmatpush1.xpose.msra.mxu0 0.0
        %2123 = vmatprep.subr.mxu0 0.0
        %2124 = vmatpush1.xpose.msra.mxu0 0.0
        %2125 = vmatprep.subr.mxu0 0.0
        %2126 = vmatpush1.xpose.msra.mxu0 0.0
        %2127 = vmatprep.subr.mxu0 0.0
        %2128 = vmatpush1.xpose.msra.mxu0 0.0
        %2129 = vmatprep.subr.mxu0 0.0
        %2130 = vmatpush1.xpose.msra.mxu0 0.0
        %2131 = vmatprep.subr.mxu0 0.0
        %2132 = vmatpush1.xpose.msra.mxu0 0.0
        %2133 = vmatprep.subr.mxu0 0.0
        %2134 = vmatpush1.xpose.msra.mxu0 0.0
        %2135 = vmatprep.subr.mxu0 0.0
        %2136 = vmatpush1.xpose.msra.mxu0 0.0
        %2137 = vmatprep.subr.mxu0 0.0
        %2138 = vmatpush1.xpose.msra.mxu0 0.0
        %2139 = vmatprep.subr.mxu0 0.0
        %2140 = vmatpush1.xpose.msra.mxu0 %v2109
        %2141 = vmatprep.subr.mxu0 0.0
        %2142 = vmatpush1.xpose.msra.mxu0 %v2107
        %2143 = vmatprep.subr.mxu0 0.0
        %2144 = vmatpush2.xpose.msra.mxu0 0.0
        %2145 = vmatprep.subr.mxu0 0.0
        %2146 = vmatpush2.xpose.msra.mxu0 0.0
        %2147 = vmatprep.subr.mxu0 0.0
        %2148 = vmatpush2.xpose.msra.mxu0 0.0
        %2149 = vmatprep.subr.mxu0 0.0
        %2150 = vmatpush2.xpose.msra.mxu0 0.0
        %2151 = vmatprep.subr.mxu0 0.0
        %2152 = vmatpush2.xpose.msra.mxu0 0.0
        %2153 = vmatprep.subr.mxu0 0.0
        %2154 = vmatpush2.xpose.msra.mxu0 0.0
        %2155 = vmatprep.subr.mxu0 0.0
        %2156 = vmatpush2.xpose.msra.mxu0 0.0
        %2157 = vmatprep.subr.mxu0 0.0
        %2158 = vmatpush2.xpose.msra.mxu0 0.0
        %2159 = vmatprep.subr.mxu0 0.0
        %2160 = vmatpush2.xpose.msra.mxu0 0.0
        %2161 = vmatprep.subr.mxu0 0.0
        %2162 = vmatpush2.xpose.msra.mxu0 0.0
        %2163 = vmatprep.subr.mxu0 0.0
        %2164 = vmatpush2.xpose.msra.mxu0 0.0
        %2165 = vmatprep.subr.mxu0 0.0
        %2166 = vmatpush2.xpose.msra.mxu0 0.0
        %2167 = vmatprep.subr.mxu0 0.0
        %2168 = vmatpush2.xpose.msra.mxu0 0.0
        %2169 = vmatprep.subr.mxu0 0.0
        %2170 = vmatpush2.xpose.msra.mxu0 0.0
        %2171 = vmatprep.subr.mxu0 0.0
        %2172 = vmatpush2.xpose.msra.mxu0 0.0
        %2173 = vmatprep.subr.mxu0 0.0
        %2174 = vmatpush2.xpose.msra.mxu0 0.0
        %2175 = vmatprep.mubr.f32.mxu0 0.0
        %2176 = vmatmul.mubr.f32.gmra.mxu0 %v2103
        %v2177 = vpop.f32.mrf.mxu0
        %v2178 = vadd.f32 0.0, %v2177
        %v2179 = vpop.f32.mrf.mxu0
        %2180 = vmatprep.mubr.f32.mxu0 0.0
        %2181 = vmatmul.mubr.f32.gmra.mxu0 %v2105
        %v2182 = vpop.f32.mrf.mxu0
        %v2183 = vadd.f32 0.0, %v2182
        %v2184 = vpop.f32.mrf.mxu0
        %2185 = vdwg.mxu0
        %2188 = vrot.lane.b32.xlu0 %v683, 112
        %v2189 = vpop.permute.xlu0 %2188
        %2190 = vrot.lane.b32.xlu0 %v688, 112
        %v2191 = vpop.permute.xlu0 %2190
        %v2192 = vsel %vm273, %v683, 0
        %v2194 = vsel %vm273, %v688, 0
        %v2196 = vsel %vm273, %v2189, 0
        %v2198 = vsel %vm273, %v2191, 0
        %2200 = vmatprep.subr.mxu0 0.0
        %2201 = vmatpush1.xpose.msra.mxu0 0.0
        %2202 = vmatprep.subr.mxu0 0.0
        %2203 = vmatpush1.xpose.msra.mxu0 0.0
        %2204 = vmatprep.subr.mxu0 0.0
        %2205 = vmatpush1.xpose.msra.mxu0 0.0
        %2206 = vmatprep.subr.mxu0 0.0
        %2207 = vmatpush1.xpose.msra.mxu0 0.0
        %2208 = vmatprep.subr.mxu0 0.0
        %2209 = vmatpush1.xpose.msra.mxu0 0.0
        %2210 = vmatprep.subr.mxu0 0.0
        %2211 = vmatpush1.xpose.msra.mxu0 0.0
        %2212 = vmatprep.subr.mxu0 0.0
        %2213 = vmatpush1.xpose.msra.mxu0 0.0
        %2214 = vmatprep.subr.mxu0 0.0
        %2215 = vmatpush1.xpose.msra.mxu0 0.0
        %2216 = vmatprep.subr.mxu0 0.0
        %2217 = vmatpush1.xpose.msra.mxu0 0.0
        %2218 = vmatprep.subr.mxu0 0.0
        %2219 = vmatpush1.xpose.msra.mxu0 0.0
        %2220 = vmatprep.subr.mxu0 0.0
        %2221 = vmatpush1.xpose.msra.mxu0 0.0
        %2222 = vmatprep.subr.mxu0 0.0
        %2223 = vmatpush1.xpose.msra.mxu0 0.0
        %2224 = vmatprep.subr.mxu0 0.0
        %2225 = vmatpush1.xpose.msra.mxu0 0.0
        %2226 = vmatprep.subr.mxu0 0.0
        %2227 = vmatpush1.xpose.msra.mxu0 0.0
        %2228 = vmatprep.subr.mxu0 0.0
        %2229 = vmatpush1.xpose.msra.mxu0 %v2198
        %2230 = vmatprep.subr.mxu0 0.0
        %2231 = vmatpush1.xpose.msra.mxu0 %v2196
        %2232 = vmatprep.subr.mxu0 0.0
        %2233 = vmatpush2.xpose.msra.mxu0 0.0
        %2234 = vmatprep.subr.mxu0 0.0
        %2235 = vmatpush2.xpose.msra.mxu0 0.0
        %2236 = vmatprep.subr.mxu0 0.0
        %2237 = vmatpush2.xpose.msra.mxu0 0.0
        %2238 = vmatprep.subr.mxu0 0.0
        %2239 = vmatpush2.xpose.msra.mxu0 0.0
        %2240 = vmatprep.subr.mxu0 0.0
        %2241 = vmatpush2.xpose.msra.mxu0 0.0
        %2242 = vmatprep.subr.mxu0 0.0
        %2243 = vmatpush2.xpose.msra.mxu0 0.0
        %2244 = vmatprep.subr.mxu0 0.0
        %2245 = vmatpush2.xpose.msra.mxu0 0.0
        %2246 = vmatprep.subr.mxu0 0.0
        %2247 = vmatpush2.xpose.msra.mxu0 0.0
        %2248 = vmatprep.subr.mxu0 0.0
        %2249 = vmatpush2.xpose.msra.mxu0 0.0
        %2250 = vmatprep.subr.mxu0 0.0
        %2251 = vmatpush2.xpose.msra.mxu0 0.0
        %2252 = vmatprep.subr.mxu0 0.0
        %2253 = vmatpush2.xpose.msra.mxu0 0.0
        %2254 = vmatprep.subr.mxu0 0.0
        %2255 = vmatpush2.xpose.msra.mxu0 0.0
        %2256 = vmatprep.subr.mxu0 0.0
        %2257 = vmatpush2.xpose.msra.mxu0 0.0
        %2258 = vmatprep.subr.mxu0 0.0
        %2259 = vmatpush2.xpose.msra.mxu0 0.0
        %2260 = vmatprep.subr.mxu0 0.0
        %2261 = vmatpush2.xpose.msra.mxu0 0.0
        %2262 = vmatprep.subr.mxu0 0.0
        %2263 = vmatpush2.xpose.msra.mxu0 0.0
        %2264 = vmatprep.mubr.f32.mxu0 0.0
        %2265 = vmatmul.mubr.f32.gmra.mxu0 %v2192
        %v2266 = vpop.f32.mrf.mxu0
        %v2267 = vadd.f32 0.0, %v2266
        %v2268 = vpop.f32.mrf.mxu0
        %2269 = vmatprep.mubr.f32.mxu0 0.0
        %2270 = vmatmul.mubr.f32.gmra.mxu0 %v2194
        %v2271 = vpop.f32.mrf.mxu0
        %v2272 = vadd.f32 0.0, %v2271
        %v2273 = vpop.f32.mrf.mxu0
        %2274 = vdwg.mxu0
        %2277 = vrot.lane.b32.xlu0 %v693, 112
        %v2278 = vpop.permute.xlu0 %2277
        %2279 = vrot.lane.b32.xlu0 %v698, 112
        %v2280 = vpop.permute.xlu0 %2279
        %v2281 = vsel %vm273, %v693, 0
        %v2283 = vsel %vm273, %v698, 0
        %v2285 = vsel %vm273, %v2278, 0
        %v2287 = vsel %vm273, %v2280, 0
        %2289 = vmatprep.subr.mxu0 0.0
        %2290 = vmatpush1.xpose.msra.mxu0 0.0
        %2291 = vmatprep.subr.mxu0 0.0
        %2292 = vmatpush1.xpose.msra.mxu0 0.0
        %2293 = vmatprep.subr.mxu0 0.0
        %2294 = vmatpush1.xpose.msra.mxu0 0.0
        %2295 = vmatprep.subr.mxu0 0.0
        %2296 = vmatpush1.xpose.msra.mxu0 0.0
        %2297 = vmatprep.subr.mxu0 0.0
        %2298 = vmatpush1.xpose.msra.mxu0 0.0
        %2299 = vmatprep.subr.mxu0 0.0
        %2300 = vmatpush1.xpose.msra.mxu0 0.0
        %2301 = vmatprep.subr.mxu0 0.0
        %2302 = vmatpush1.xpose.msra.mxu0 0.0
        %2303 = vmatprep.subr.mxu0 0.0
        %2304 = vmatpush1.xpose.msra.mxu0 0.0
        %2305 = vmatprep.subr.mxu0 0.0
        %2306 = vmatpush1.xpose.msra.mxu0 0.0
        %2307 = vmatprep.subr.mxu0 0.0
        %2308 = vmatpush1.xpose.msra.mxu0 0.0
        %2309 = vmatprep.subr.mxu0 0.0
        %2310 = vmatpush1.xpose.msra.mxu0 0.0
        %2311 = vmatprep.subr.mxu0 0.0
        %2312 = vmatpush1.xpose.msra.mxu0 0.0
        %2313 = vmatprep.subr.mxu0 0.0
        %2314 = vmatpush1.xpose.msra.mxu0 0.0
        %2315 = vmatprep.subr.mxu0 0.0
        %2316 = vmatpush1.xpose.msra.mxu0 0.0
        %2317 = vmatprep.subr.mxu0 0.0
        %2318 = vmatpush1.xpose.msra.mxu0 %v2287
        %2319 = vmatprep.subr.mxu0 0.0
        %2320 = vmatpush1.xpose.msra.mxu0 %v2285
        %2321 = vmatprep.subr.mxu0 0.0
        %2322 = vmatpush2.xpose.msra.mxu0 0.0
        %2323 = vmatprep.subr.mxu0 0.0
        %2324 = vmatpush2.xpose.msra.mxu0 0.0
        %2325 = vmatprep.subr.mxu0 0.0
        %2326 = vmatpush2.xpose.msra.mxu0 0.0
        %2327 = vmatprep.subr.mxu0 0.0
        %2328 = vmatpush2.xpose.msra.mxu0 0.0
        %2329 = vmatprep.subr.mxu0 0.0
        %2330 = vmatpush2.xpose.msra.mxu0 0.0
        %2331 = vmatprep.subr.mxu0 0.0
        %2332 = vmatpush2.xpose.msra.mxu0 0.0
        %2333 = vmatprep.subr.mxu0 0.0
        %2334 = vmatpush2.xpose.msra.mxu0 0.0
        %2335 = vmatprep.subr.mxu0 0.0
        %2336 = vmatpush2.xpose.msra.mxu0 0.0
        %2337 = vmatprep.subr.mxu0 0.0
        %2338 = vmatpush2.xpose.msra.mxu0 0.0
        %2339 = vmatprep.subr.mxu0 0.0
        %2340 = vmatpush2.xpose.msra.mxu0 0.0
        %2341 = vmatprep.subr.mxu0 0.0
        %2342 = vmatpush2.xpose.msra.mxu0 0.0
        %2343 = vmatprep.subr.mxu0 0.0
        %2344 = vmatpush2.xpose.msra.mxu0 0.0
        %2345 = vmatprep.subr.mxu0 0.0
        %2346 = vmatpush2.xpose.msra.mxu0 0.0
        %2347 = vmatprep.subr.mxu0 0.0
        %2348 = vmatpush2.xpose.msra.mxu0 0.0
        %2349 = vmatprep.subr.mxu0 0.0
        %2350 = vmatpush2.xpose.msra.mxu0 0.0
        %2351 = vmatprep.subr.mxu0 0.0
        %2352 = vmatpush2.xpose.msra.mxu0 0.0
        %2353 = vmatprep.mubr.f32.mxu0 0.0
        %2354 = vmatmul.mubr.f32.gmra.mxu0 %v2281
        %v2355 = vpop.f32.mrf.mxu0
        %v2356 = vadd.f32 0.0, %v2355
        %v2357 = vpop.f32.mrf.mxu0
        %2358 = vmatprep.mubr.f32.mxu0 0.0
        %2359 = vmatmul.mubr.f32.gmra.mxu0 %v2283
        %v2360 = vpop.f32.mrf.mxu0
        %v2361 = vadd.f32 0.0, %v2360
        %v2362 = vpop.f32.mrf.mxu0
        %2363 = vdwg.mxu0
        %2366 = vrot.lane.b32.xlu0 %v703, 112
        %v2367 = vpop.permute.xlu0 %2366
        %2368 = vrot.lane.b32.xlu0 %v708, 112
        %v2369 = vpop.permute.xlu0 %2368
        %v2370 = vsel %vm273, %v703, 0
        %v2372 = vsel %vm273, %v708, 0
        %v2374 = vsel %vm273, %v2367, 0
        %v2376 = vsel %vm273, %v2369, 0
        %2378 = vmatprep.subr.mxu0 0.0
        %2379 = vmatpush1.xpose.msra.mxu0 0.0
        %2380 = vmatprep.subr.mxu0 0.0
        %2381 = vmatpush1.xpose.msra.mxu0 0.0
        %2382 = vmatprep.subr.mxu0 0.0
        %2383 = vmatpush1.xpose.msra.mxu0 0.0
        %2384 = vmatprep.subr.mxu0 0.0
        %2385 = vmatpush1.xpose.msra.mxu0 0.0
        %2386 = vmatprep.subr.mxu0 0.0
        %2387 = vmatpush1.xpose.msra.mxu0 0.0
        %2388 = vmatprep.subr.mxu0 0.0
        %2389 = vmatpush1.xpose.msra.mxu0 0.0
        %2390 = vmatprep.subr.mxu0 0.0
        %2391 = vmatpush1.xpose.msra.mxu0 0.0
        %2392 = vmatprep.subr.mxu0 0.0
        %2393 = vmatpush1.xpose.msra.mxu0 0.0
        %2394 = vmatprep.subr.mxu0 0.0
        %2395 = vmatpush1.xpose.msra.mxu0 0.0
        %2396 = vmatprep.subr.mxu0 0.0
        %2397 = vmatpush1.xpose.msra.mxu0 0.0
        %2398 = vmatprep.subr.mxu0 0.0
        %2399 = vmatpush1.xpose.msra.mxu0 0.0
        %2400 = vmatprep.subr.mxu0 0.0
        %2401 = vmatpush1.xpose.msra.mxu0 0.0
        %2402 = vmatprep.subr.mxu0 0.0
        %2403 = vmatpush1.xpose.msra.mxu0 0.0
        %2404 = vmatprep.subr.mxu0 0.0
        %2405 = vmatpush1.xpose.msra.mxu0 0.0
        %2406 = vmatprep.subr.mxu0 0.0
        %2407 = vmatpush1.xpose.msra.mxu0 %v2376
        %2408 = vmatprep.subr.mxu0 0.0
        %2409 = vmatpush1.xpose.msra.mxu0 %v2374
        %2410 = vmatprep.subr.mxu0 0.0
        %2411 = vmatpush2.xpose.msra.mxu0 0.0
        %2412 = vmatprep.subr.mxu0 0.0
        %2413 = vmatpush2.xpose.msra.mxu0 0.0
        %2414 = vmatprep.subr.mxu0 0.0
        %2415 = vmatpush2.xpose.msra.mxu0 0.0
        %2416 = vmatprep.subr.mxu0 0.0
        %2417 = vmatpush2.xpose.msra.mxu0 0.0
        %2418 = vmatprep.subr.mxu0 0.0
        %2419 = vmatpush2.xpose.msra.mxu0 0.0
        %2420 = vmatprep.subr.mxu0 0.0
        %2421 = vmatpush2.xpose.msra.mxu0 0.0
        %2422 = vmatprep.subr.mxu0 0.0
        %2423 = vmatpush2.xpose.msra.mxu0 0.0
        %2424 = vmatprep.subr.mxu0 0.0
        %2425 = vmatpush2.xpose.msra.mxu0 0.0
        %2426 = vmatprep.subr.mxu0 0.0
        %2427 = vmatpush2.xpose.msra.mxu0 0.0
        %2428 = vmatprep.subr.mxu0 0.0
        %2429 = vmatpush2.xpose.msra.mxu0 0.0
        %2430 = vmatprep.subr.mxu0 0.0
        %2431 = vmatpush2.xpose.msra.mxu0 0.0
        %2432 = vmatprep.subr.mxu0 0.0
        %2433 = vmatpush2.xpose.msra.mxu0 0.0
        %2434 = vmatprep.subr.mxu0 0.0
        %2435 = vmatpush2.xpose.msra.mxu0 0.0
        %2436 = vmatprep.subr.mxu0 0.0
        %2437 = vmatpush2.xpose.msra.mxu0 0.0
        %2438 = vmatprep.subr.mxu0 0.0
        %2439 = vmatpush2.xpose.msra.mxu0 0.0
        %2440 = vmatprep.subr.mxu0 0.0
        %2441 = vmatpush2.xpose.msra.mxu0 0.0
        %2442 = vmatprep.mubr.f32.mxu0 0.0
        %2443 = vmatmul.mubr.f32.gmra.mxu0 %v2370
        %v2444 = vpop.f32.mrf.mxu0
        %v2445 = vadd.f32 0.0, %v2444
        %v2446 = vpop.f32.mrf.mxu0
        %2447 = vmatprep.mubr.f32.mxu0 0.0
        %2448 = vmatmul.mubr.f32.gmra.mxu0 %v2372
        %v2449 = vpop.f32.mrf.mxu0
        %v2450 = vadd.f32 0.0, %v2449
        %v2451 = vpop.f32.mrf.mxu0
        %2452 = vdwg.mxu0
        %2455 = vrot.lane.b32.xlu0 %v713, 112
        %v2456 = vpop.permute.xlu0 %2455
        %2457 = vrot.lane.b32.xlu0 %v718, 112
        %v2458 = vpop.permute.xlu0 %2457
        %v2459 = vsel %vm273, %v713, 0
        %v2461 = vsel %vm273, %v718, 0
        %v2463 = vsel %vm273, %v2456, 0
        %v2465 = vsel %vm273, %v2458, 0
        %2467 = vmatprep.subr.mxu0 0.0
        %2468 = vmatpush1.xpose.msra.mxu0 0.0
        %2469 = vmatprep.subr.mxu0 0.0
        %2470 = vmatpush1.xpose.msra.mxu0 0.0
        %2471 = vmatprep.subr.mxu0 0.0
        %2472 = vmatpush1.xpose.msra.mxu0 0.0
        %2473 = vmatprep.subr.mxu0 0.0
        %2474 = vmatpush1.xpose.msra.mxu0 0.0
        %2475 = vmatprep.subr.mxu0 0.0
        %2476 = vmatpush1.xpose.msra.mxu0 0.0
        %2477 = vmatprep.subr.mxu0 0.0
        %2478 = vmatpush1.xpose.msra.mxu0 0.0
        %2479 = vmatprep.subr.mxu0 0.0
        %2480 = vmatpush1.xpose.msra.mxu0 0.0
        %2481 = vmatprep.subr.mxu0 0.0
        %2482 = vmatpush1.xpose.msra.mxu0 0.0
        %2483 = vmatprep.subr.mxu0 0.0
        %2484 = vmatpush1.xpose.msra.mxu0 0.0
        %2485 = vmatprep.subr.mxu0 0.0
        %2486 = vmatpush1.xpose.msra.mxu0 0.0
        %2487 = vmatprep.subr.mxu0 0.0
        %2488 = vmatpush1.xpose.msra.mxu0 0.0
        %2489 = vmatprep.subr.mxu0 0.0
        %2490 = vmatpush1.xpose.msra.mxu0 0.0
        %2491 = vmatprep.subr.mxu0 0.0
        %2492 = vmatpush1.xpose.msra.mxu0 0.0
        %2493 = vmatprep.subr.mxu0 0.0
        %2494 = vmatpush1.xpose.msra.mxu0 0.0
        %2495 = vmatprep.subr.mxu0 0.0
        %2496 = vmatpush1.xpose.msra.mxu0 %v2465
        %2497 = vmatprep.subr.mxu0 0.0
        %2498 = vmatpush1.xpose.msra.mxu0 %v2463
        %2499 = vmatprep.subr.mxu0 0.0
        %2500 = vmatpush2.xpose.msra.mxu0 0.0
        %2501 = vmatprep.subr.mxu0 0.0
        %2502 = vmatpush2.xpose.msra.mxu0 0.0
        %2503 = vmatprep.subr.mxu0 0.0
        %2504 = vmatpush2.xpose.msra.mxu0 0.0
        %2505 = vmatprep.subr.mxu0 0.0
        %2506 = vmatpush2.xpose.msra.mxu0 0.0
        %2507 = vmatprep.subr.mxu0 0.0
        %2508 = vmatpush2.xpose.msra.mxu0 0.0
        %2509 = vmatprep.subr.mxu0 0.0
        %2510 = vmatpush2.xpose.msra.mxu0 0.0
        %2511 = vmatprep.subr.mxu0 0.0
        %2512 = vmatpush2.xpose.msra.mxu0 0.0
        %2513 = vmatprep.subr.mxu0 0.0
        %2514 = vmatpush2.xpose.msra.mxu0 0.0
        %2515 = vmatprep.subr.mxu0 0.0
        %2516 = vmatpush2.xpose.msra.mxu0 0.0
        %2517 = vmatprep.subr.mxu0 0.0
        %2518 = vmatpush2.xpose.msra.mxu0 0.0
        %2519 = vmatprep.subr.mxu0 0.0
        %2520 = vmatpush2.xpose.msra.mxu0 0.0
        %2521 = vmatprep.subr.mxu0 0.0
        %2522 = vmatpush2.xpose.msra.mxu0 0.0
        %2523 = vmatprep.subr.mxu0 0.0
        %2524 = vmatpush2.xpose.msra.mxu0 0.0
        %2525 = vmatprep.subr.mxu0 0.0
        %2526 = vmatpush2.xpose.msra.mxu0 0.0
        %2527 = vmatprep.subr.mxu0 0.0
        %2528 = vmatpush2.xpose.msra.mxu0 0.0
        %2529 = vmatprep.subr.mxu0 0.0
        %2530 = vmatpush2.xpose.msra.mxu0 0.0
        %2531 = vmatprep.mubr.f32.mxu0 0.0
        %2532 = vmatmul.mubr.f32.gmra.mxu0 %v2459
        %v2533 = vpop.f32.mrf.mxu0
        %v2534 = vadd.f32 0.0, %v2533
        %v2535 = vpop.f32.mrf.mxu0
        %2536 = vmatprep.mubr.f32.mxu0 0.0
        %2537 = vmatmul.mubr.f32.gmra.mxu0 %v2461
        %v2538 = vpop.f32.mrf.mxu0
        %v2539 = vadd.f32 0.0, %v2538
        %v2540 = vpop.f32.mrf.mxu0
        %2541 = vdwg.mxu0
        %2544 = vrot.lane.b32.xlu0 %v723, 112
        %v2545 = vpop.permute.xlu0 %2544
        %2546 = vrot.lane.b32.xlu0 %v728, 112
        %v2547 = vpop.permute.xlu0 %2546
        %v2548 = vsel %vm273, %v723, 0
        %v2550 = vsel %vm273, %v728, 0
        %v2552 = vsel %vm273, %v2545, 0
        %v2554 = vsel %vm273, %v2547, 0
        %2556 = vmatprep.subr.mxu0 0.0
        %2557 = vmatpush1.xpose.msra.mxu0 0.0
        %2558 = vmatprep.subr.mxu0 0.0
        %2559 = vmatpush1.xpose.msra.mxu0 0.0
        %2560 = vmatprep.subr.mxu0 0.0
        %2561 = vmatpush1.xpose.msra.mxu0 0.0
        %2562 = vmatprep.subr.mxu0 0.0
        %2563 = vmatpush1.xpose.msra.mxu0 0.0
        %2564 = vmatprep.subr.mxu0 0.0
        %2565 = vmatpush1.xpose.msra.mxu0 0.0
        %2566 = vmatprep.subr.mxu0 0.0
        %2567 = vmatpush1.xpose.msra.mxu0 0.0
        %2568 = vmatprep.subr.mxu0 0.0
        %2569 = vmatpush1.xpose.msra.mxu0 0.0
        %2570 = vmatprep.subr.mxu0 0.0
        %2571 = vmatpush1.xpose.msra.mxu0 0.0
        %2572 = vmatprep.subr.mxu0 0.0
        %2573 = vmatpush1.xpose.msra.mxu0 0.0
        %2574 = vmatprep.subr.mxu0 0.0
        %2575 = vmatpush1.xpose.msra.mxu0 0.0
        %2576 = vmatprep.subr.mxu0 0.0
        %2577 = vmatpush1.xpose.msra.mxu0 0.0
        %2578 = vmatprep.subr.mxu0 0.0
        %2579 = vmatpush1.xpose.msra.mxu0 0.0
        %2580 = vmatprep.subr.mxu0 0.0
        %2581 = vmatpush1.xpose.msra.mxu0 0.0
        %2582 = vmatprep.subr.mxu0 0.0
        %2583 = vmatpush1.xpose.msra.mxu0 0.0
        %2584 = vmatprep.subr.mxu0 0.0
        %2585 = vmatpush1.xpose.msra.mxu0 %v2554
        %2586 = vmatprep.subr.mxu0 0.0
        %2587 = vmatpush1.xpose.msra.mxu0 %v2552
        %2588 = vmatprep.subr.mxu0 0.0
        %2589 = vmatpush2.xpose.msra.mxu0 0.0
        %2590 = vmatprep.subr.mxu0 0.0
        %2591 = vmatpush2.xpose.msra.mxu0 0.0
        %2592 = vmatprep.subr.mxu0 0.0
        %2593 = vmatpush2.xpose.msra.mxu0 0.0
        %2594 = vmatprep.subr.mxu0 0.0
        %2595 = vmatpush2.xpose.msra.mxu0 0.0
        %2596 = vmatprep.subr.mxu0 0.0
        %2597 = vmatpush2.xpose.msra.mxu0 0.0
        %2598 = vmatprep.subr.mxu0 0.0
        %2599 = vmatpush2.xpose.msra.mxu0 0.0
        %2600 = vmatprep.subr.mxu0 0.0
        %2601 = vmatpush2.xpose.msra.mxu0 0.0
        %2602 = vmatprep.subr.mxu0 0.0
        %2603 = vmatpush2.xpose.msra.mxu0 0.0
        %2604 = vmatprep.subr.mxu0 0.0
        %2605 = vmatpush2.xpose.msra.mxu0 0.0
        %2606 = vmatprep.subr.mxu0 0.0
        %2607 = vmatpush2.xpose.msra.mxu0 0.0
        %2608 = vmatprep.subr.mxu0 0.0
        %2609 = vmatpush2.xpose.msra.mxu0 0.0
        %2610 = vmatprep.subr.mxu0 0.0
        %2611 = vmatpush2.xpose.msra.mxu0 0.0
        %2612 = vmatprep.subr.mxu0 0.0
        %2613 = vmatpush2.xpose.msra.mxu0 0.0
        %2614 = vmatprep.subr.mxu0 0.0
        %2615 = vmatpush2.xpose.msra.mxu0 0.0
        %2616 = vmatprep.subr.mxu0 0.0
        %2617 = vmatpush2.xpose.msra.mxu0 0.0
        %2618 = vmatprep.subr.mxu0 0.0
        %2619 = vmatpush2.xpose.msra.mxu0 0.0
        %2620 = vmatprep.mubr.f32.mxu0 0.0
        %2621 = vmatmul.mubr.f32.gmra.mxu0 %v2548
        %v2622 = vpop.f32.mrf.mxu0
        %v2623 = vadd.f32 0.0, %v2622
        %v2624 = vpop.f32.mrf.mxu0
        %2625 = vmatprep.mubr.f32.mxu0 0.0
        %2626 = vmatmul.mubr.f32.gmra.mxu0 %v2550
        %v2627 = vpop.f32.mrf.mxu0
        %v2628 = vadd.f32 0.0, %v2627
        %v2629 = vpop.f32.mrf.mxu0
        %2630 = vdwg.mxu0
        %2633 = vrot.lane.b32.xlu0 %v733, 112
        %v2634 = vpop.permute.xlu0 %2633
        %2635 = vrot.lane.b32.xlu0 %v738, 112
        %v2636 = vpop.permute.xlu0 %2635
        %v2637 = vsel %vm273, %v733, 0
        %v2639 = vsel %vm273, %v738, 0
        %v2641 = vsel %vm273, %v2634, 0
        %v2643 = vsel %vm273, %v2636, 0
        %2645 = vmatprep.subr.mxu0 0.0
        %2646 = vmatpush1.xpose.msra.mxu0 0.0
        %2647 = vmatprep.subr.mxu0 0.0
        %2648 = vmatpush1.xpose.msra.mxu0 0.0
        %2649 = vmatprep.subr.mxu0 0.0
        %2650 = vmatpush1.xpose.msra.mxu0 0.0
        %2651 = vmatprep.subr.mxu0 0.0
        %2652 = vmatpush1.xpose.msra.mxu0 0.0
        %2653 = vmatprep.subr.mxu0 0.0
        %2654 = vmatpush1.xpose.msra.mxu0 0.0
        %2655 = vmatprep.subr.mxu0 0.0
        %2656 = vmatpush1.xpose.msra.mxu0 0.0
        %2657 = vmatprep.subr.mxu0 0.0
        %2658 = vmatpush1.xpose.msra.mxu0 0.0
        %2659 = vmatprep.subr.mxu0 0.0
        %2660 = vmatpush1.xpose.msra.mxu0 0.0
        %2661 = vmatprep.subr.mxu0 0.0
        %2662 = vmatpush1.xpose.msra.mxu0 0.0
        %2663 = vmatprep.subr.mxu0 0.0
        %2664 = vmatpush1.xpose.msra.mxu0 0.0
        %2665 = vmatprep.subr.mxu0 0.0
        %2666 = vmatpush1.xpose.msra.mxu0 0.0
        %2667 = vmatprep.subr.mxu0 0.0
        %2668 = vmatpush1.xpose.msra.mxu0 0.0
        %2669 = vmatprep.subr.mxu0 0.0
        %2670 = vmatpush1.xpose.msra.mxu0 0.0
        %2671 = vmatprep.subr.mxu0 0.0
        %2672 = vmatpush1.xpose.msra.mxu0 0.0
        %2673 = vmatprep.subr.mxu0 0.0
        %2674 = vmatpush1.xpose.msra.mxu0 %v2643
        %2675 = vmatprep.subr.mxu0 0.0
        %2676 = vmatpush1.xpose.msra.mxu0 %v2641
        %2677 = vmatprep.subr.mxu0 0.0
        %2678 = vmatpush2.xpose.msra.mxu0 0.0
        %2679 = vmatprep.subr.mxu0 0.0
        %2680 = vmatpush2.xpose.msra.mxu0 0.0
        %2681 = vmatprep.subr.mxu0 0.0
        %2682 = vmatpush2.xpose.msra.mxu0 0.0
        %2683 = vmatprep.subr.mxu0 0.0
        %2684 = vmatpush2.xpose.msra.mxu0 0.0
        %2685 = vmatprep.subr.mxu0 0.0
        %2686 = vmatpush2.xpose.msra.mxu0 0.0
        %2687 = vmatprep.subr.mxu0 0.0
        %2688 = vmatpush2.xpose.msra.mxu0 0.0
        %2689 = vmatprep.subr.mxu0 0.0
        %2690 = vmatpush2.xpose.msra.mxu0 0.0
        %2691 = vmatprep.subr.mxu0 0.0
        %2692 = vmatpush2.xpose.msra.mxu0 0.0
        %2693 = vmatprep.subr.mxu0 0.0
        %2694 = vmatpush2.xpose.msra.mxu0 0.0
        %2695 = vmatprep.subr.mxu0 0.0
        %2696 = vmatpush2.xpose.msra.mxu0 0.0
        %2697 = vmatprep.subr.mxu0 0.0
        %2698 = vmatpush2.xpose.msra.mxu0 0.0
        %2699 = vmatprep.subr.mxu0 0.0
        %2700 = vmatpush2.xpose.msra.mxu0 0.0
        %2701 = vmatprep.subr.mxu0 0.0
        %2702 = vmatpush2.xpose.msra.mxu0 0.0
        %2703 = vmatprep.subr.mxu0 0.0
        %2704 = vmatpush2.xpose.msra.mxu0 0.0
        %2705 = vmatprep.subr.mxu0 0.0
        %2706 = vmatpush2.xpose.msra.mxu0 0.0
        %2707 = vmatprep.subr.mxu0 0.0
        %2708 = vmatpush2.xpose.msra.mxu0 0.0
        %2709 = vmatprep.mubr.f32.mxu0 0.0
        %2710 = vmatmul.mubr.f32.gmra.mxu0 %v2637
        %v2711 = vpop.f32.mrf.mxu0
        %v2712 = vadd.f32 0.0, %v2711
        %v2713 = vpop.f32.mrf.mxu0
        %2714 = vmatprep.mubr.f32.mxu0 0.0
        %2715 = vmatmul.mubr.f32.gmra.mxu0 %v2639
        %v2716 = vpop.f32.mrf.mxu0
        %v2717 = vadd.f32 0.0, %v2716
        %v2718 = vpop.f32.mrf.mxu0
        %2719 = vdwg.mxu0
        %2722 = vrot.lane.b32.xlu0 %v743, 112
        %v2723 = vpop.permute.xlu0 %2722
        %2724 = vrot.lane.b32.xlu0 %v748, 112
        %v2725 = vpop.permute.xlu0 %2724
        %v2726 = vsel %vm273, %v743, 0
        %v2728 = vsel %vm273, %v748, 0
        %v2730 = vsel %vm273, %v2723, 0
        %v2732 = vsel %vm273, %v2725, 0
        %2734 = vmatprep.subr.mxu0 0.0
        %2735 = vmatpush1.xpose.msra.mxu0 0.0
        %2736 = vmatprep.subr.mxu0 0.0
        %2737 = vmatpush1.xpose.msra.mxu0 0.0
        %2738 = vmatprep.subr.mxu0 0.0
        %2739 = vmatpush1.xpose.msra.mxu0 0.0
        %2740 = vmatprep.subr.mxu0 0.0
        %2741 = vmatpush1.xpose.msra.mxu0 0.0
        %2742 = vmatprep.subr.mxu0 0.0
        %2743 = vmatpush1.xpose.msra.mxu0 0.0
        %2744 = vmatprep.subr.mxu0 0.0
        %2745 = vmatpush1.xpose.msra.mxu0 0.0
        %2746 = vmatprep.subr.mxu0 0.0
        %2747 = vmatpush1.xpose.msra.mxu0 0.0
        %2748 = vmatprep.subr.mxu0 0.0
        %2749 = vmatpush1.xpose.msra.mxu0 0.0
        %2750 = vmatprep.subr.mxu0 0.0
        %2751 = vmatpush1.xpose.msra.mxu0 0.0
        %2752 = vmatprep.subr.mxu0 0.0
        %2753 = vmatpush1.xpose.msra.mxu0 0.0
        %2754 = vmatprep.subr.mxu0 0.0
        %2755 = vmatpush1.xpose.msra.mxu0 0.0
        %2756 = vmatprep.subr.mxu0 0.0
        %2757 = vmatpush1.xpose.msra.mxu0 0.0
        %2758 = vmatprep.subr.mxu0 0.0
        %2759 = vmatpush1.xpose.msra.mxu0 0.0
        %2760 = vmatprep.subr.mxu0 0.0
        %2761 = vmatpush1.xpose.msra.mxu0 0.0
        %2762 = vmatprep.subr.mxu0 0.0
        %2763 = vmatpush1.xpose.msra.mxu0 %v2732
        %2764 = vmatprep.subr.mxu0 0.0
        %2765 = vmatpush1.xpose.msra.mxu0 %v2730
        %2766 = vmatprep.subr.mxu0 0.0
        %2767 = vmatpush2.xpose.msra.mxu0 0.0
        %2768 = vmatprep.subr.mxu0 0.0
        %2769 = vmatpush2.xpose.msra.mxu0 0.0
        %2770 = vmatprep.subr.mxu0 0.0
        %2771 = vmatpush2.xpose.msra.mxu0 0.0
        %2772 = vmatprep.subr.mxu0 0.0
        %2773 = vmatpush2.xpose.msra.mxu0 0.0
        %2774 = vmatprep.subr.mxu0 0.0
        %2775 = vmatpush2.xpose.msra.mxu0 0.0
        %2776 = vmatprep.subr.mxu0 0.0
        %2777 = vmatpush2.xpose.msra.mxu0 0.0
        %2778 = vmatprep.subr.mxu0 0.0
        %2779 = vmatpush2.xpose.msra.mxu0 0.0
        %2780 = vmatprep.subr.mxu0 0.0
        %2781 = vmatpush2.xpose.msra.mxu0 0.0
        %2782 = vmatprep.subr.mxu0 0.0
        %2783 = vmatpush2.xpose.msra.mxu0 0.0
        %2784 = vmatprep.subr.mxu0 0.0
        %2785 = vmatpush2.xpose.msra.mxu0 0.0
        %2786 = vmatprep.subr.mxu0 0.0
        %2787 = vmatpush2.xpose.msra.mxu0 0.0
        %2788 = vmatprep.subr.mxu0 0.0
        %2789 = vmatpush2.xpose.msra.mxu0 0.0
        %2790 = vmatprep.subr.mxu0 0.0
        %2791 = vmatpush2.xpose.msra.mxu0 0.0
        %2792 = vmatprep.subr.mxu0 0.0
        %2793 = vmatpush2.xpose.msra.mxu0 0.0
        %2794 = vmatprep.subr.mxu0 0.0
        %2795 = vmatpush2.xpose.msra.mxu0 0.0
        %2796 = vmatprep.subr.mxu0 0.0
        %2797 = vmatpush2.xpose.msra.mxu0 0.0
        %2798 = vmatprep.mubr.f32.mxu0 0.0
        %2799 = vmatmul.mubr.f32.gmra.mxu0 %v2726
        %v2800 = vpop.f32.mrf.mxu0
        %v2801 = vadd.f32 0.0, %v2800
        %v2802 = vpop.f32.mrf.mxu0
        %2803 = vmatprep.mubr.f32.mxu0 0.0
        %2804 = vmatmul.mubr.f32.gmra.mxu0 %v2728
        %v2805 = vpop.f32.mrf.mxu0
        %v2806 = vadd.f32 0.0, %v2805
        %v2807 = vpop.f32.mrf.mxu0
        %2808 = vdwg.mxu0
        %2811 = vrot.lane.b32.xlu0 %v753, 112
        %v2812 = vpop.permute.xlu0 %2811
        %2813 = vrot.lane.b32.xlu0 %v758, 112
        %v2814 = vpop.permute.xlu0 %2813
        %v2815 = vsel %vm273, %v753, 0
        %v2817 = vsel %vm273, %v758, 0
        %v2819 = vsel %vm273, %v2812, 0
        %v2821 = vsel %vm273, %v2814, 0
        %2823 = vmatprep.subr.mxu0 0.0
        %2824 = vmatpush1.xpose.msra.mxu0 0.0
        %2825 = vmatprep.subr.mxu0 0.0
        %2826 = vmatpush1.xpose.msra.mxu0 0.0
        %2827 = vmatprep.subr.mxu0 0.0
        %2828 = vmatpush1.xpose.msra.mxu0 0.0
        %2829 = vmatprep.subr.mxu0 0.0
        %2830 = vmatpush1.xpose.msra.mxu0 0.0
        %2831 = vmatprep.subr.mxu0 0.0
        %2832 = vmatpush1.xpose.msra.mxu0 0.0
        %2833 = vmatprep.subr.mxu0 0.0
        %2834 = vmatpush1.xpose.msra.mxu0 0.0
        %2835 = vmatprep.subr.mxu0 0.0
        %2836 = vmatpush1.xpose.msra.mxu0 0.0
        %2837 = vmatprep.subr.mxu0 0.0
        %2838 = vmatpush1.xpose.msra.mxu0 0.0
        %2839 = vmatprep.subr.mxu0 0.0
        %2840 = vmatpush1.xpose.msra.mxu0 0.0
        %2841 = vmatprep.subr.mxu0 0.0
        %2842 = vmatpush1.xpose.msra.mxu0 0.0
        %2843 = vmatprep.subr.mxu0 0.0
        %2844 = vmatpush1.xpose.msra.mxu0 0.0
        %2845 = vmatprep.subr.mxu0 0.0
        %2846 = vmatpush1.xpose.msra.mxu0 0.0
        %2847 = vmatprep.subr.mxu0 0.0
        %2848 = vmatpush1.xpose.msra.mxu0 0.0
        %2849 = vmatprep.subr.mxu0 0.0
        %2850 = vmatpush1.xpose.msra.mxu0 0.0
        %2851 = vmatprep.subr.mxu0 0.0
        %2852 = vmatpush1.xpose.msra.mxu0 %v2821
        %2853 = vmatprep.subr.mxu0 0.0
        %2854 = vmatpush1.xpose.msra.mxu0 %v2819
        %2855 = vmatprep.subr.mxu0 0.0
        %2856 = vmatpush2.xpose.msra.mxu0 0.0
        %2857 = vmatprep.subr.mxu0 0.0
        %2858 = vmatpush2.xpose.msra.mxu0 0.0
        %2859 = vmatprep.subr.mxu0 0.0
        %2860 = vmatpush2.xpose.msra.mxu0 0.0
        %2861 = vmatprep.subr.mxu0 0.0
        %2862 = vmatpush2.xpose.msra.mxu0 0.0
        %2863 = vmatprep.subr.mxu0 0.0
        %2864 = vmatpush2.xpose.msra.mxu0 0.0
        %2865 = vmatprep.subr.mxu0 0.0
        %2866 = vmatpush2.xpose.msra.mxu0 0.0
        %2867 = vmatprep.subr.mxu0 0.0
        %2868 = vmatpush2.xpose.msra.mxu0 0.0
        %2869 = vmatprep.subr.mxu0 0.0
        %2870 = vmatpush2.xpose.msra.mxu0 0.0
        %2871 = vmatprep.subr.mxu0 0.0
        %2872 = vmatpush2.xpose.msra.mxu0 0.0
        %2873 = vmatprep.subr.mxu0 0.0
        %2874 = vmatpush2.xpose.msra.mxu0 0.0
        %2875 = vmatprep.subr.mxu0 0.0
        %2876 = vmatpush2.xpose.msra.mxu0 0.0
        %2877 = vmatprep.subr.mxu0 0.0
        %2878 = vmatpush2.xpose.msra.mxu0 0.0
        %2879 = vmatprep.subr.mxu0 0.0
        %2880 = vmatpush2.xpose.msra.mxu0 0.0
        %2881 = vmatprep.subr.mxu0 0.0
        %2882 = vmatpush2.xpose.msra.mxu0 0.0
        %2883 = vmatprep.subr.mxu0 0.0
        %2884 = vmatpush2.xpose.msra.mxu0 0.0
        %2885 = vmatprep.subr.mxu0 0.0
        %2886 = vmatpush2.xpose.msra.mxu0 0.0
        %2887 = vmatprep.mubr.f32.mxu0 0.0
        %2888 = vmatmul.mubr.f32.gmra.mxu0 %v2815
        %v2889 = vpop.f32.mrf.mxu0
        %v2890 = vadd.f32 0.0, %v2889
        %v2891 = vpop.f32.mrf.mxu0
        %2892 = vmatprep.mubr.f32.mxu0 0.0
        %2893 = vmatmul.mubr.f32.gmra.mxu0 %v2817
        %v2894 = vpop.f32.mrf.mxu0
        %v2895 = vadd.f32 0.0, %v2894
        %v2896 = vpop.f32.mrf.mxu0
        %2897 = vdwg.mxu0
        %2900 = vrot.lane.b32.xlu0 %v763, 112
        %v2901 = vpop.permute.xlu0 %2900
        %2902 = vrot.lane.b32.xlu0 %v768, 112
        %v2903 = vpop.permute.xlu0 %2902
        %v2904 = vsel %vm273, %v763, 0
        %v2906 = vsel %vm273, %v768, 0
        %v2908 = vsel %vm273, %v2901, 0
        %v2910 = vsel %vm273, %v2903, 0
        %2912 = vmatprep.subr.mxu0 0.0
        %2913 = vmatpush1.xpose.msra.mxu0 0.0
        %2914 = vmatprep.subr.mxu0 0.0
        %2915 = vmatpush1.xpose.msra.mxu0 0.0
        %2916 = vmatprep.subr.mxu0 0.0
        %2917 = vmatpush1.xpose.msra.mxu0 0.0
        %2918 = vmatprep.subr.mxu0 0.0
        %2919 = vmatpush1.xpose.msra.mxu0 0.0
        %2920 = vmatprep.subr.mxu0 0.0
        %2921 = vmatpush1.xpose.msra.mxu0 0.0
        %2922 = vmatprep.subr.mxu0 0.0
        %2923 = vmatpush1.xpose.msra.mxu0 0.0
        %2924 = vmatprep.subr.mxu0 0.0
        %2925 = vmatpush1.xpose.msra.mxu0 0.0
        %2926 = vmatprep.subr.mxu0 0.0
        %2927 = vmatpush1.xpose.msra.mxu0 0.0
        %2928 = vmatprep.subr.mxu0 0.0
        %2929 = vmatpush1.xpose.msra.mxu0 0.0
        %2930 = vmatprep.subr.mxu0 0.0
        %2931 = vmatpush1.xpose.msra.mxu0 0.0
        %2932 = vmatprep.subr.mxu0 0.0
        %2933 = vmatpush1.xpose.msra.mxu0 0.0
        %2934 = vmatprep.subr.mxu0 0.0
        %2935 = vmatpush1.xpose.msra.mxu0 0.0
        %2936 = vmatprep.subr.mxu0 0.0
        %2937 = vmatpush1.xpose.msra.mxu0 0.0
        %2938 = vmatprep.subr.mxu0 0.0
        %2939 = vmatpush1.xpose.msra.mxu0 0.0
        %2940 = vmatprep.subr.mxu0 0.0
        %2941 = vmatpush1.xpose.msra.mxu0 %v2910
        %2942 = vmatprep.subr.mxu0 0.0
        %2943 = vmatpush1.xpose.msra.mxu0 %v2908
        %2944 = vmatprep.subr.mxu0 0.0
        %2945 = vmatpush2.xpose.msra.mxu0 0.0
        %2946 = vmatprep.subr.mxu0 0.0
        %2947 = vmatpush2.xpose.msra.mxu0 0.0
        %2948 = vmatprep.subr.mxu0 0.0
        %2949 = vmatpush2.xpose.msra.mxu0 0.0
        %2950 = vmatprep.subr.mxu0 0.0
        %2951 = vmatpush2.xpose.msra.mxu0 0.0
        %2952 = vmatprep.subr.mxu0 0.0
        %2953 = vmatpush2.xpose.msra.mxu0 0.0
        %2954 = vmatprep.subr.mxu0 0.0
        %2955 = vmatpush2.xpose.msra.mxu0 0.0
        %2956 = vmatprep.subr.mxu0 0.0
        %2957 = vmatpush2.xpose.msra.mxu0 0.0
        %2958 = vmatprep.subr.mxu0 0.0
        %2959 = vmatpush2.xpose.msra.mxu0 0.0
        %2960 = vmatprep.subr.mxu0 0.0
        %2961 = vmatpush2.xpose.msra.mxu0 0.0
        %2962 = vmatprep.subr.mxu0 0.0
        %2963 = vmatpush2.xpose.msra.mxu0 0.0
        %2964 = vmatprep.subr.mxu0 0.0
        %2965 = vmatpush2.xpose.msra.mxu0 0.0
        %2966 = vmatprep.subr.mxu0 0.0
        %2967 = vmatpush2.xpose.msra.mxu0 0.0
        %2968 = vmatprep.subr.mxu0 0.0
        %2969 = vmatpush2.xpose.msra.mxu0 0.0
        %2970 = vmatprep.subr.mxu0 0.0
        %2971 = vmatpush2.xpose.msra.mxu0 0.0
        %2972 = vmatprep.subr.mxu0 0.0
        %2973 = vmatpush2.xpose.msra.mxu0 0.0
        %2974 = vmatprep.subr.mxu0 0.0
        %2975 = vmatpush2.xpose.msra.mxu0 0.0
        %2976 = vmatprep.mubr.f32.mxu0 0.0
        %2977 = vmatmul.mubr.f32.gmra.mxu0 %v2904
        %v2978 = vpop.f32.mrf.mxu0
        %v2979 = vadd.f32 0.0, %v2978
        %v2980 = vpop.f32.mrf.mxu0
        %2981 = vmatprep.mubr.f32.mxu0 0.0
        %2982 = vmatmul.mubr.f32.gmra.mxu0 %v2906
        %v2983 = vpop.f32.mrf.mxu0
        %v2984 = vadd.f32 0.0, %v2983
        %v2985 = vpop.f32.mrf.mxu0
        %2986 = vdwg.mxu0
        %2989 = vrot.lane.b32.xlu0 %v773, 112
        %v2990 = vpop.permute.xlu0 %2989
        %2991 = vrot.lane.b32.xlu0 %v778, 112
        %v2992 = vpop.permute.xlu0 %2991
        %v2993 = vsel %vm273, %v773, 0
        %v2995 = vsel %vm273, %v778, 0
        %v2997 = vsel %vm273, %v2990, 0
        %v2999 = vsel %vm273, %v2992, 0
        %3001 = vmatprep.subr.mxu0 0.0
        %3002 = vmatpush1.xpose.msra.mxu0 0.0
        %3003 = vmatprep.subr.mxu0 0.0
        %3004 = vmatpush1.xpose.msra.mxu0 0.0
        %3005 = vmatprep.subr.mxu0 0.0
        %3006 = vmatpush1.xpose.msra.mxu0 0.0
        %3007 = vmatprep.subr.mxu0 0.0
        %3008 = vmatpush1.xpose.msra.mxu0 0.0
        %3009 = vmatprep.subr.mxu0 0.0
        %3010 = vmatpush1.xpose.msra.mxu0 0.0
        %3011 = vmatprep.subr.mxu0 0.0
        %3012 = vmatpush1.xpose.msra.mxu0 0.0
        %3013 = vmatprep.subr.mxu0 0.0
        %3014 = vmatpush1.xpose.msra.mxu0 0.0
        %3015 = vmatprep.subr.mxu0 0.0
        %3016 = vmatpush1.xpose.msra.mxu0 0.0
        %3017 = vmatprep.subr.mxu0 0.0
        %3018 = vmatpush1.xpose.msra.mxu0 0.0
        %3019 = vmatprep.subr.mxu0 0.0
        %3020 = vmatpush1.xpose.msra.mxu0 0.0
        %3021 = vmatprep.subr.mxu0 0.0
        %3022 = vmatpush1.xpose.msra.mxu0 0.0
        %3023 = vmatprep.subr.mxu0 0.0
        %3024 = vmatpush1.xpose.msra.mxu0 0.0
        %3025 = vmatprep.subr.mxu0 0.0
        %3026 = vmatpush1.xpose.msra.mxu0 0.0
        %3027 = vmatprep.subr.mxu0 0.0
        %3028 = vmatpush1.xpose.msra.mxu0 0.0
        %3029 = vmatprep.subr.mxu0 0.0
        %3030 = vmatpush1.xpose.msra.mxu0 %v2999
        %3031 = vmatprep.subr.mxu0 0.0
        %3032 = vmatpush1.xpose.msra.mxu0 %v2997
        %3033 = vmatprep.subr.mxu0 0.0
        %3034 = vmatpush2.xpose.msra.mxu0 0.0
        %3035 = vmatprep.subr.mxu0 0.0
        %3036 = vmatpush2.xpose.msra.mxu0 0.0
        %3037 = vmatprep.subr.mxu0 0.0
        %3038 = vmatpush2.xpose.msra.mxu0 0.0
        %3039 = vmatprep.subr.mxu0 0.0
        %3040 = vmatpush2.xpose.msra.mxu0 0.0
        %3041 = vmatprep.subr.mxu0 0.0
        %3042 = vmatpush2.xpose.msra.mxu0 0.0
        %3043 = vmatprep.subr.mxu0 0.0
        %3044 = vmatpush2.xpose.msra.mxu0 0.0
        %3045 = vmatprep.subr.mxu0 0.0
        %3046 = vmatpush2.xpose.msra.mxu0 0.0
        %3047 = vmatprep.subr.mxu0 0.0
        %3048 = vmatpush2.xpose.msra.mxu0 0.0
        %3049 = vmatprep.subr.mxu0 0.0
        %3050 = vmatpush2.xpose.msra.mxu0 0.0
        %3051 = vmatprep.subr.mxu0 0.0
        %3052 = vmatpush2.xpose.msra.mxu0 0.0
        %3053 = vmatprep.subr.mxu0 0.0
        %3054 = vmatpush2.xpose.msra.mxu0 0.0
        %3055 = vmatprep.subr.mxu0 0.0
        %3056 = vmatpush2.xpose.msra.mxu0 0.0
        %3057 = vmatprep.subr.mxu0 0.0
        %3058 = vmatpush2.xpose.msra.mxu0 0.0
        %3059 = vmatprep.subr.mxu0 0.0
        %3060 = vmatpush2.xpose.msra.mxu0 0.0
        %3061 = vmatprep.subr.mxu0 0.0
        %3062 = vmatpush2.xpose.msra.mxu0 0.0
        %3063 = vmatprep.subr.mxu0 0.0
        %3064 = vmatpush2.xpose.msra.mxu0 0.0
        %3065 = vmatprep.mubr.f32.mxu0 0.0
        %3066 = vmatmul.mubr.f32.gmra.mxu0 %v2993
        %v3067 = vpop.f32.mrf.mxu0
        %v3068 = vadd.f32 0.0, %v3067
        %v3069 = vpop.f32.mrf.mxu0
        %3070 = vmatprep.mubr.f32.mxu0 0.0
        %3071 = vmatmul.mubr.f32.gmra.mxu0 %v2995
        %v3072 = vpop.f32.mrf.mxu0
        %v3073 = vadd.f32 0.0, %v3072
        %v3074 = vpop.f32.mrf.mxu0
        %3075 = vdwg.mxu0
        %3078 = vrot.lane.b32.xlu0 %v783, 112
        %v3079 = vpop.permute.xlu0 %3078
        %3080 = vrot.lane.b32.xlu0 %v788, 112
        %v3081 = vpop.permute.xlu0 %3080
        %v3082 = vsel %vm273, %v783, 0
        %v3084 = vsel %vm273, %v788, 0
        %v3086 = vsel %vm273, %v3079, 0
        %v3088 = vsel %vm273, %v3081, 0
        %3090 = vmatprep.subr.mxu0 0.0
        %3091 = vmatpush1.xpose.msra.mxu0 0.0
        %3092 = vmatprep.subr.mxu0 0.0
        %3093 = vmatpush1.xpose.msra.mxu0 0.0
        %3094 = vmatprep.subr.mxu0 0.0
        %3095 = vmatpush1.xpose.msra.mxu0 0.0
        %3096 = vmatprep.subr.mxu0 0.0
        %3097 = vmatpush1.xpose.msra.mxu0 0.0
        %3098 = vmatprep.subr.mxu0 0.0
        %3099 = vmatpush1.xpose.msra.mxu0 0.0
        %3100 = vmatprep.subr.mxu0 0.0
        %3101 = vmatpush1.xpose.msra.mxu0 0.0
        %3102 = vmatprep.subr.mxu0 0.0
        %3103 = vmatpush1.xpose.msra.mxu0 0.0
        %3104 = vmatprep.subr.mxu0 0.0
        %3105 = vmatpush1.xpose.msra.mxu0 0.0
        %3106 = vmatprep.subr.mxu0 0.0
        %3107 = vmatpush1.xpose.msra.mxu0 0.0
        %3108 = vmatprep.subr.mxu0 0.0
        %3109 = vmatpush1.xpose.msra.mxu0 0.0
        %3110 = vmatprep.subr.mxu0 0.0
        %3111 = vmatpush1.xpose.msra.mxu0 0.0
        %3112 = vmatprep.subr.mxu0 0.0
        %3113 = vmatpush1.xpose.msra.mxu0 0.0
        %3114 = vmatprep.subr.mxu0 0.0
        %3115 = vmatpush1.xpose.msra.mxu0 0.0
        %3116 = vmatprep.subr.mxu0 0.0
        %3117 = vmatpush1.xpose.msra.mxu0 0.0
        %3118 = vmatprep.subr.mxu0 0.0
        %3119 = vmatpush1.xpose.msra.mxu0 %v3088
        %3120 = vmatprep.subr.mxu0 0.0
        %3121 = vmatpush1.xpose.msra.mxu0 %v3086
        %3122 = vmatprep.subr.mxu0 0.0
        %3123 = vmatpush2.xpose.msra.mxu0 0.0
        %3124 = vmatprep.subr.mxu0 0.0
        %3125 = vmatpush2.xpose.msra.mxu0 0.0
        %3126 = vmatprep.subr.mxu0 0.0
        %3127 = vmatpush2.xpose.msra.mxu0 0.0
        %3128 = vmatprep.subr.mxu0 0.0
        %3129 = vmatpush2.xpose.msra.mxu0 0.0
        %3130 = vmatprep.subr.mxu0 0.0
        %3131 = vmatpush2.xpose.msra.mxu0 0.0
        %3132 = vmatprep.subr.mxu0 0.0
        %3133 = vmatpush2.xpose.msra.mxu0 0.0
        %3134 = vmatprep.subr.mxu0 0.0
        %3135 = vmatpush2.xpose.msra.mxu0 0.0
        %3136 = vmatprep.subr.mxu0 0.0
        %3137 = vmatpush2.xpose.msra.mxu0 0.0
        %3138 = vmatprep.subr.mxu0 0.0
        %3139 = vmatpush2.xpose.msra.mxu0 0.0
        %3140 = vmatprep.subr.mxu0 0.0
        %3141 = vmatpush2.xpose.msra.mxu0 0.0
        %3142 = vmatprep.subr.mxu0 0.0
        %3143 = vmatpush2.xpose.msra.mxu0 0.0
        %3144 = vmatprep.subr.mxu0 0.0
        %3145 = vmatpush2.xpose.msra.mxu0 0.0
        %3146 = vmatprep.subr.mxu0 0.0
        %3147 = vmatpush2.xpose.msra.mxu0 0.0
        %3148 = vmatprep.subr.mxu0 0.0
        %3149 = vmatpush2.xpose.msra.mxu0 0.0
        %3150 = vmatprep.subr.mxu0 0.0
        %3151 = vmatpush2.xpose.msra.mxu0 0.0
        %3152 = vmatprep.subr.mxu0 0.0
        %3153 = vmatpush2.xpose.msra.mxu0 0.0
        %3154 = vmatprep.mubr.f32.mxu0 0.0
        %3155 = vmatmul.mubr.f32.gmra.mxu0 %v3082
        %v3156 = vpop.f32.mrf.mxu0
        %v3157 = vadd.f32 0.0, %v3156
        %v3158 = vpop.f32.mrf.mxu0
        %3159 = vmatprep.mubr.f32.mxu0 0.0
        %3160 = vmatmul.mubr.f32.gmra.mxu0 %v3084
        %v3161 = vpop.f32.mrf.mxu0
        %v3162 = vadd.f32 0.0, %v3161
        %v3163 = vpop.f32.mrf.mxu0
        %3164 = vdwg.mxu0
        %3167 = vrot.lane.b32.xlu0 %v793, 112
        %v3168 = vpop.permute.xlu0 %3167
        %3169 = vrot.lane.b32.xlu0 %v798, 112
        %v3170 = vpop.permute.xlu0 %3169
        %v3171 = vsel %vm273, %v793, 0
        %v3173 = vsel %vm273, %v798, 0
        %v3175 = vsel %vm273, %v3168, 0
        %v3177 = vsel %vm273, %v3170, 0
        %3179 = vmatprep.subr.mxu0 0.0
        %3180 = vmatpush1.xpose.msra.mxu0 0.0
        %3181 = vmatprep.subr.mxu0 0.0
        %3182 = vmatpush1.xpose.msra.mxu0 0.0
        %3183 = vmatprep.subr.mxu0 0.0
        %3184 = vmatpush1.xpose.msra.mxu0 0.0
        %3185 = vmatprep.subr.mxu0 0.0
        %3186 = vmatpush1.xpose.msra.mxu0 0.0
        %3187 = vmatprep.subr.mxu0 0.0
        %3188 = vmatpush1.xpose.msra.mxu0 0.0
        %3189 = vmatprep.subr.mxu0 0.0
        %3190 = vmatpush1.xpose.msra.mxu0 0.0
        %3191 = vmatprep.subr.mxu0 0.0
        %3192 = vmatpush1.xpose.msra.mxu0 0.0
        %3193 = vmatprep.subr.mxu0 0.0
        %3194 = vmatpush1.xpose.msra.mxu0 0.0
        %3195 = vmatprep.subr.mxu0 0.0
        %3196 = vmatpush1.xpose.msra.mxu0 0.0
        %3197 = vmatprep.subr.mxu0 0.0
        %3198 = vmatpush1.xpose.msra.mxu0 0.0
        %3199 = vmatprep.subr.mxu0 0.0
        %3200 = vmatpush1.xpose.msra.mxu0 0.0
        %3201 = vmatprep.subr.mxu0 0.0
        %3202 = vmatpush1.xpose.msra.mxu0 0.0
        %3203 = vmatprep.subr.mxu0 0.0
        %3204 = vmatpush1.xpose.msra.mxu0 0.0
        %3205 = vmatprep.subr.mxu0 0.0
        %3206 = vmatpush1.xpose.msra.mxu0 0.0
        %3207 = vmatprep.subr.mxu0 0.0
        %3208 = vmatpush1.xpose.msra.mxu0 %v3177
        %3209 = vmatprep.subr.mxu0 0.0
        %3210 = vmatpush1.xpose.msra.mxu0 %v3175
        %3211 = vmatprep.subr.mxu0 0.0
        %3212 = vmatpush2.xpose.msra.mxu0 0.0
        %3213 = vmatprep.subr.mxu0 0.0
        %3214 = vmatpush2.xpose.msra.mxu0 0.0
        %3215 = vmatprep.subr.mxu0 0.0
        %3216 = vmatpush2.xpose.msra.mxu0 0.0
        %3217 = vmatprep.subr.mxu0 0.0
        %3218 = vmatpush2.xpose.msra.mxu0 0.0
        %3219 = vmatprep.subr.mxu0 0.0
        %3220 = vmatpush2.xpose.msra.mxu0 0.0
        %3221 = vmatprep.subr.mxu0 0.0
        %3222 = vmatpush2.xpose.msra.mxu0 0.0
        %3223 = vmatprep.subr.mxu0 0.0
        %3224 = vmatpush2.xpose.msra.mxu0 0.0
        %3225 = vmatprep.subr.mxu0 0.0
        %3226 = vmatpush2.xpose.msra.mxu0 0.0
        %3227 = vmatprep.subr.mxu0 0.0
        %3228 = vmatpush2.xpose.msra.mxu0 0.0
        %3229 = vmatprep.subr.mxu0 0.0
        %3230 = vmatpush2.xpose.msra.mxu0 0.0
        %3231 = vmatprep.subr.mxu0 0.0
        %3232 = vmatpush2.xpose.msra.mxu0 0.0
        %3233 = vmatprep.subr.mxu0 0.0
        %3234 = vmatpush2.xpose.msra.mxu0 0.0
        %3235 = vmatprep.subr.mxu0 0.0
        %3236 = vmatpush2.xpose.msra.mxu0 0.0
        %3237 = vmatprep.subr.mxu0 0.0
        %3238 = vmatpush2.xpose.msra.mxu0 0.0
        %3239 = vmatprep.subr.mxu0 0.0
        %3240 = vmatpush2.xpose.msra.mxu0 0.0
        %3241 = vmatprep.subr.mxu0 0.0
        %3242 = vmatpush2.xpose.msra.mxu0 0.0
        %3243 = vmatprep.mubr.f32.mxu0 0.0
        %3244 = vmatmul.mubr.f32.gmra.mxu0 %v3171
        %v3245 = vpop.f32.mrf.mxu0
        %v3246 = vadd.f32 0.0, %v3245
        %v3247 = vpop.f32.mrf.mxu0
        %3248 = vmatprep.mubr.f32.mxu0 0.0
        %3249 = vmatmul.mubr.f32.gmra.mxu0 %v3173
        %v3250 = vpop.f32.mrf.mxu0
        %v3251 = vadd.f32 0.0, %v3250
        %v3252 = vpop.f32.mrf.mxu0
        %3253 = vdwg.mxu0
        %3256 = vrot.lane.b32.xlu0 %v803, 112
        %v3257 = vpop.permute.xlu0 %3256
        %3258 = vrot.lane.b32.xlu0 %v808, 112
        %v3259 = vpop.permute.xlu0 %3258
        %v3260 = vsel %vm273, %v803, 0
        %v3262 = vsel %vm273, %v808, 0
        %v3264 = vsel %vm273, %v3257, 0
        %v3266 = vsel %vm273, %v3259, 0
        %3268 = vmatprep.subr.mxu0 0.0
        %3269 = vmatpush1.xpose.msra.mxu0 0.0
        %3270 = vmatprep.subr.mxu0 0.0
        %3271 = vmatpush1.xpose.msra.mxu0 0.0
        %3272 = vmatprep.subr.mxu0 0.0
        %3273 = vmatpush1.xpose.msra.mxu0 0.0
        %3274 = vmatprep.subr.mxu0 0.0
        %3275 = vmatpush1.xpose.msra.mxu0 0.0
        %3276 = vmatprep.subr.mxu0 0.0
        %3277 = vmatpush1.xpose.msra.mxu0 0.0
        %3278 = vmatprep.subr.mxu0 0.0
        %3279 = vmatpush1.xpose.msra.mxu0 0.0
        %3280 = vmatprep.subr.mxu0 0.0
        %3281 = vmatpush1.xpose.msra.mxu0 0.0
        %3282 = vmatprep.subr.mxu0 0.0
        %3283 = vmatpush1.xpose.msra.mxu0 0.0
        %3284 = vmatprep.subr.mxu0 0.0
        %3285 = vmatpush1.xpose.msra.mxu0 0.0
        %3286 = vmatprep.subr.mxu0 0.0
        %3287 = vmatpush1.xpose.msra.mxu0 0.0
        %3288 = vmatprep.subr.mxu0 0.0
        %3289 = vmatpush1.xpose.msra.mxu0 0.0
        %3290 = vmatprep.subr.mxu0 0.0
        %3291 = vmatpush1.xpose.msra.mxu0 0.0
        %3292 = vmatprep.subr.mxu0 0.0
        %3293 = vmatpush1.xpose.msra.mxu0 0.0
        %3294 = vmatprep.subr.mxu0 0.0
        %3295 = vmatpush1.xpose.msra.mxu0 0.0
        %3296 = vmatprep.subr.mxu0 0.0
        %3297 = vmatpush1.xpose.msra.mxu0 %v3266
        %3298 = vmatprep.subr.mxu0 0.0
        %3299 = vmatpush1.xpose.msra.mxu0 %v3264
        %3300 = vmatprep.subr.mxu0 0.0
        %3301 = vmatpush2.xpose.msra.mxu0 0.0
        %3302 = vmatprep.subr.mxu0 0.0
        %3303 = vmatpush2.xpose.msra.mxu0 0.0
        %3304 = vmatprep.subr.mxu0 0.0
        %3305 = vmatpush2.xpose.msra.mxu0 0.0
        %3306 = vmatprep.subr.mxu0 0.0
        %3307 = vmatpush2.xpose.msra.mxu0 0.0
        %3308 = vmatprep.subr.mxu0 0.0
        %3309 = vmatpush2.xpose.msra.mxu0 0.0
        %3310 = vmatprep.subr.mxu0 0.0
        %3311 = vmatpush2.xpose.msra.mxu0 0.0
        %3312 = vmatprep.subr.mxu0 0.0
        %3313 = vmatpush2.xpose.msra.mxu0 0.0
        %3314 = vmatprep.subr.mxu0 0.0
        %3315 = vmatpush2.xpose.msra.mxu0 0.0
        %3316 = vmatprep.subr.mxu0 0.0
        %3317 = vmatpush2.xpose.msra.mxu0 0.0
        %3318 = vmatprep.subr.mxu0 0.0
        %3319 = vmatpush2.xpose.msra.mxu0 0.0
        %3320 = vmatprep.subr.mxu0 0.0
        %3321 = vmatpush2.xpose.msra.mxu0 0.0
        %3322 = vmatprep.subr.mxu0 0.0
        %3323 = vmatpush2.xpose.msra.mxu0 0.0
        %3324 = vmatprep.subr.mxu0 0.0
        %3325 = vmatpush2.xpose.msra.mxu0 0.0
        %3326 = vmatprep.subr.mxu0 0.0
        %3327 = vmatpush2.xpose.msra.mxu0 0.0
        %3328 = vmatprep.subr.mxu0 0.0
        %3329 = vmatpush2.xpose.msra.mxu0 0.0
        %3330 = vmatprep.subr.mxu0 0.0
        %3331 = vmatpush2.xpose.msra.mxu0 0.0
        %3332 = vmatprep.mubr.f32.mxu0 0.0
        %3333 = vmatmul.mubr.f32.gmra.mxu0 %v3260
        %v3334 = vpop.f32.mrf.mxu0
        %v3335 = vadd.f32 0.0, %v3334
        %v3336 = vpop.f32.mrf.mxu0
        %3337 = vmatprep.mubr.f32.mxu0 0.0
        %3338 = vmatmul.mubr.f32.gmra.mxu0 %v3262
        %v3339 = vpop.f32.mrf.mxu0
        %v3340 = vadd.f32 0.0, %v3339
        %v3341 = vpop.f32.mrf.mxu0
        %3342 = vdwg.mxu0
        %3345 = vrot.lane.b32.xlu0 %v813, 112
        %v3346 = vpop.permute.xlu0 %3345
        %3347 = vrot.lane.b32.xlu0 %v818, 112
        %v3348 = vpop.permute.xlu0 %3347
        %v3349 = vsel %vm273, %v813, 0
        %v3351 = vsel %vm273, %v818, 0
        %v3353 = vsel %vm273, %v3346, 0
        %v3355 = vsel %vm273, %v3348, 0
        %3357 = vmatprep.subr.mxu0 0.0
        %3358 = vmatpush1.xpose.msra.mxu0 0.0
        %3359 = vmatprep.subr.mxu0 0.0
        %3360 = vmatpush1.xpose.msra.mxu0 0.0
        %3361 = vmatprep.subr.mxu0 0.0
        %3362 = vmatpush1.xpose.msra.mxu0 0.0
        %3363 = vmatprep.subr.mxu0 0.0
        %3364 = vmatpush1.xpose.msra.mxu0 0.0
        %3365 = vmatprep.subr.mxu0 0.0
        %3366 = vmatpush1.xpose.msra.mxu0 0.0
        %3367 = vmatprep.subr.mxu0 0.0
        %3368 = vmatpush1.xpose.msra.mxu0 0.0
        %3369 = vmatprep.subr.mxu0 0.0
        %3370 = vmatpush1.xpose.msra.mxu0 0.0
        %3371 = vmatprep.subr.mxu0 0.0
        %3372 = vmatpush1.xpose.msra.mxu0 0.0
        %3373 = vmatprep.subr.mxu0 0.0
        %3374 = vmatpush1.xpose.msra.mxu0 0.0
        %3375 = vmatprep.subr.mxu0 0.0
        %3376 = vmatpush1.xpose.msra.mxu0 0.0
        %3377 = vmatprep.subr.mxu0 0.0
        %3378 = vmatpush1.xpose.msra.mxu0 0.0
        %3379 = vmatprep.subr.mxu0 0.0
        %3380 = vmatpush1.xpose.msra.mxu0 0.0
        %3381 = vmatprep.subr.mxu0 0.0
        %3382 = vmatpush1.xpose.msra.mxu0 0.0
        %3383 = vmatprep.subr.mxu0 0.0
        %3384 = vmatpush1.xpose.msra.mxu0 0.0
        %3385 = vmatprep.subr.mxu0 0.0
        %3386 = vmatpush1.xpose.msra.mxu0 %v3355
        %3387 = vmatprep.subr.mxu0 0.0
        %3388 = vmatpush1.xpose.msra.mxu0 %v3353
        %3389 = vmatprep.subr.mxu0 0.0
        %3390 = vmatpush2.xpose.msra.mxu0 0.0
        %3391 = vmatprep.subr.mxu0 0.0
        %3392 = vmatpush2.xpose.msra.mxu0 0.0
        %3393 = vmatprep.subr.mxu0 0.0
        %3394 = vmatpush2.xpose.msra.mxu0 0.0
        %3395 = vmatprep.subr.mxu0 0.0
        %3396 = vmatpush2.xpose.msra.mxu0 0.0
        %3397 = vmatprep.subr.mxu0 0.0
        %3398 = vmatpush2.xpose.msra.mxu0 0.0
        %3399 = vmatprep.subr.mxu0 0.0
        %3400 = vmatpush2.xpose.msra.mxu0 0.0
        %3401 = vmatprep.subr.mxu0 0.0
        %3402 = vmatpush2.xpose.msra.mxu0 0.0
        %3403 = vmatprep.subr.mxu0 0.0
        %3404 = vmatpush2.xpose.msra.mxu0 0.0
        %3405 = vmatprep.subr.mxu0 0.0
        %3406 = vmatpush2.xpose.msra.mxu0 0.0
        %3407 = vmatprep.subr.mxu0 0.0
        %3408 = vmatpush2.xpose.msra.mxu0 0.0
        %3409 = vmatprep.subr.mxu0 0.0
        %3410 = vmatpush2.xpose.msra.mxu0 0.0
        %3411 = vmatprep.subr.mxu0 0.0
        %3412 = vmatpush2.xpose.msra.mxu0 0.0
        %3413 = vmatprep.subr.mxu0 0.0
        %3414 = vmatpush2.xpose.msra.mxu0 0.0
        %3415 = vmatprep.subr.mxu0 0.0
        %3416 = vmatpush2.xpose.msra.mxu0 0.0
        %3417 = vmatprep.subr.mxu0 0.0
        %3418 = vmatpush2.xpose.msra.mxu0 0.0
        %3419 = vmatprep.subr.mxu0 0.0
        %3420 = vmatpush2.xpose.msra.mxu0 0.0
        %3421 = vmatprep.mubr.f32.mxu0 0.0
        %3422 = vmatmul.mubr.f32.gmra.mxu0 %v3349
        %v3423 = vpop.f32.mrf.mxu0
        %v3424 = vadd.f32 0.0, %v3423
        %v3425 = vpop.f32.mrf.mxu0
        %3426 = vmatprep.mubr.f32.mxu0 0.0
        %3427 = vmatmul.mubr.f32.gmra.mxu0 %v3351
        %v3428 = vpop.f32.mrf.mxu0
        %v3429 = vadd.f32 0.0, %v3428
        %v3430 = vpop.f32.mrf.mxu0
        %3431 = vdwg.mxu0
        %3434 = vrot.lane.b32.xlu0 %v823, 112
        %v3435 = vpop.permute.xlu0 %3434
        %3436 = vrot.lane.b32.xlu0 %v828, 112
        %v3437 = vpop.permute.xlu0 %3436
        %v3438 = vsel %vm273, %v823, 0
        %v3440 = vsel %vm273, %v828, 0
        %v3442 = vsel %vm273, %v3435, 0
        %v3444 = vsel %vm273, %v3437, 0
        %3446 = vmatprep.subr.mxu0 0.0
        %3447 = vmatpush1.xpose.msra.mxu0 0.0
        %3448 = vmatprep.subr.mxu0 0.0
        %3449 = vmatpush1.xpose.msra.mxu0 0.0
        %3450 = vmatprep.subr.mxu0 0.0
        %3451 = vmatpush1.xpose.msra.mxu0 0.0
        %3452 = vmatprep.subr.mxu0 0.0
        %3453 = vmatpush1.xpose.msra.mxu0 0.0
        %3454 = vmatprep.subr.mxu0 0.0
        %3455 = vmatpush1.xpose.msra.mxu0 0.0
        %3456 = vmatprep.subr.mxu0 0.0
        %3457 = vmatpush1.xpose.msra.mxu0 0.0
        %3458 = vmatprep.subr.mxu0 0.0
        %3459 = vmatpush1.xpose.msra.mxu0 0.0
        %3460 = vmatprep.subr.mxu0 0.0
        %3461 = vmatpush1.xpose.msra.mxu0 0.0
        %3462 = vmatprep.subr.mxu0 0.0
        %3463 = vmatpush1.xpose.msra.mxu0 0.0
        %3464 = vmatprep.subr.mxu0 0.0
        %3465 = vmatpush1.xpose.msra.mxu0 0.0
        %3466 = vmatprep.subr.mxu0 0.0
        %3467 = vmatpush1.xpose.msra.mxu0 0.0
        %3468 = vmatprep.subr.mxu0 0.0
        %3469 = vmatpush1.xpose.msra.mxu0 0.0
        %3470 = vmatprep.subr.mxu0 0.0
        %3471 = vmatpush1.xpose.msra.mxu0 0.0
        %3472 = vmatprep.subr.mxu0 0.0
        %3473 = vmatpush1.xpose.msra.mxu0 0.0
        %3474 = vmatprep.subr.mxu0 0.0
        %3475 = vmatpush1.xpose.msra.mxu0 %v3444
        %3476 = vmatprep.subr.mxu0 0.0
        %3477 = vmatpush1.xpose.msra.mxu0 %v3442
        %3478 = vmatprep.subr.mxu0 0.0
        %3479 = vmatpush2.xpose.msra.mxu0 0.0
        %3480 = vmatprep.subr.mxu0 0.0
        %3481 = vmatpush2.xpose.msra.mxu0 0.0
        %3482 = vmatprep.subr.mxu0 0.0
        %3483 = vmatpush2.xpose.msra.mxu0 0.0
        %3484 = vmatprep.subr.mxu0 0.0
        %3485 = vmatpush2.xpose.msra.mxu0 0.0
        %3486 = vmatprep.subr.mxu0 0.0
        %3487 = vmatpush2.xpose.msra.mxu0 0.0
        %3488 = vmatprep.subr.mxu0 0.0
        %3489 = vmatpush2.xpose.msra.mxu0 0.0
        %3490 = vmatprep.subr.mxu0 0.0
        %3491 = vmatpush2.xpose.msra.mxu0 0.0
        %3492 = vmatprep.subr.mxu0 0.0
        %3493 = vmatpush2.xpose.msra.mxu0 0.0
        %3494 = vmatprep.subr.mxu0 0.0
        %3495 = vmatpush2.xpose.msra.mxu0 0.0
        %3496 = vmatprep.subr.mxu0 0.0
        %3497 = vmatpush2.xpose.msra.mxu0 0.0
        %3498 = vmatprep.subr.mxu0 0.0
        %3499 = vmatpush2.xpose.msra.mxu0 0.0
        %3500 = vmatprep.subr.mxu0 0.0
        %3501 = vmatpush2.xpose.msra.mxu0 0.0
        %3502 = vmatprep.subr.mxu0 0.0
        %3503 = vmatpush2.xpose.msra.mxu0 0.0
        %3504 = vmatprep.subr.mxu0 0.0
        %3505 = vmatpush2.xpose.msra.mxu0 0.0
        %3506 = vmatprep.subr.mxu0 0.0
        %3507 = vmatpush2.xpose.msra.mxu0 0.0
        %3508 = vmatprep.subr.mxu0 0.0
        %3509 = vmatpush2.xpose.msra.mxu0 0.0
        %3510 = vmatprep.mubr.f32.mxu0 0.0
        %3511 = vmatmul.mubr.f32.gmra.mxu0 %v3438
        %v3512 = vpop.f32.mrf.mxu0
        %v3513 = vadd.f32 0.0, %v3512
        %v3514 = vpop.f32.mrf.mxu0
        %3515 = vmatprep.mubr.f32.mxu0 0.0
        %3516 = vmatmul.mubr.f32.gmra.mxu0 %v3440
        %v3517 = vpop.f32.mrf.mxu0
        %v3518 = vadd.f32 0.0, %v3517
        %v3519 = vpop.f32.mrf.mxu0
        %3520 = vdwg.mxu0
        %3523 = vrot.lane.b32.xlu0 %v833, 112
        %v3524 = vpop.permute.xlu0 %3523
        %3525 = vrot.lane.b32.xlu0 %v838, 112
        %v3526 = vpop.permute.xlu0 %3525
        %v3527 = vsel %vm273, %v833, 0
        %v3529 = vsel %vm273, %v838, 0
        %v3531 = vsel %vm273, %v3524, 0
        %v3533 = vsel %vm273, %v3526, 0
        %3535 = vmatprep.subr.mxu0 0.0
        %3536 = vmatpush1.xpose.msra.mxu0 0.0
        %3537 = vmatprep.subr.mxu0 0.0
        %3538 = vmatpush1.xpose.msra.mxu0 0.0
        %3539 = vmatprep.subr.mxu0 0.0
        %3540 = vmatpush1.xpose.msra.mxu0 0.0
        %3541 = vmatprep.subr.mxu0 0.0
        %3542 = vmatpush1.xpose.msra.mxu0 0.0
        %3543 = vmatprep.subr.mxu0 0.0
        %3544 = vmatpush1.xpose.msra.mxu0 0.0
        %3545 = vmatprep.subr.mxu0 0.0
        %3546 = vmatpush1.xpose.msra.mxu0 0.0
        %3547 = vmatprep.subr.mxu0 0.0
        %3548 = vmatpush1.xpose.msra.mxu0 0.0
        %3549 = vmatprep.subr.mxu0 0.0
        %3550 = vmatpush1.xpose.msra.mxu0 0.0
        %3551 = vmatprep.subr.mxu0 0.0
        %3552 = vmatpush1.xpose.msra.mxu0 0.0
        %3553 = vmatprep.subr.mxu0 0.0
        %3554 = vmatpush1.xpose.msra.mxu0 0.0
        %3555 = vmatprep.subr.mxu0 0.0
        %3556 = vmatpush1.xpose.msra.mxu0 0.0
        %3557 = vmatprep.subr.mxu0 0.0
        %3558 = vmatpush1.xpose.msra.mxu0 0.0
        %3559 = vmatprep.subr.mxu0 0.0
        %3560 = vmatpush1.xpose.msra.mxu0 0.0
        %3561 = vmatprep.subr.mxu0 0.0
        %3562 = vmatpush1.xpose.msra.mxu0 0.0
        %3563 = vmatprep.subr.mxu0 0.0
        %3564 = vmatpush1.xpose.msra.mxu0 %v3533
        %3565 = vmatprep.subr.mxu0 0.0
        %3566 = vmatpush1.xpose.msra.mxu0 %v3531
        %3567 = vmatprep.subr.mxu0 0.0
        %3568 = vmatpush2.xpose.msra.mxu0 0.0
        %3569 = vmatprep.subr.mxu0 0.0
        %3570 = vmatpush2.xpose.msra.mxu0 0.0
        %3571 = vmatprep.subr.mxu0 0.0
        %3572 = vmatpush2.xpose.msra.mxu0 0.0
        %3573 = vmatprep.subr.mxu0 0.0
        %3574 = vmatpush2.xpose.msra.mxu0 0.0
        %3575 = vmatprep.subr.mxu0 0.0
        %3576 = vmatpush2.xpose.msra.mxu0 0.0
        %3577 = vmatprep.subr.mxu0 0.0
        %3578 = vmatpush2.xpose.msra.mxu0 0.0
        %3579 = vmatprep.subr.mxu0 0.0
        %3580 = vmatpush2.xpose.msra.mxu0 0.0
        %3581 = vmatprep.subr.mxu0 0.0
        %3582 = vmatpush2.xpose.msra.mxu0 0.0
        %3583 = vmatprep.subr.mxu0 0.0
        %3584 = vmatpush2.xpose.msra.mxu0 0.0
        %3585 = vmatprep.subr.mxu0 0.0
        %3586 = vmatpush2.xpose.msra.mxu0 0.0
        %3587 = vmatprep.subr.mxu0 0.0
        %3588 = vmatpush2.xpose.msra.mxu0 0.0
        %3589 = vmatprep.subr.mxu0 0.0
        %3590 = vmatpush2.xpose.msra.mxu0 0.0
        %3591 = vmatprep.subr.mxu0 0.0
        %3592 = vmatpush2.xpose.msra.mxu0 0.0
        %3593 = vmatprep.subr.mxu0 0.0
        %3594 = vmatpush2.xpose.msra.mxu0 0.0
        %3595 = vmatprep.subr.mxu0 0.0
        %3596 = vmatpush2.xpose.msra.mxu0 0.0
        %3597 = vmatprep.subr.mxu0 0.0
        %3598 = vmatpush2.xpose.msra.mxu0 0.0
        %3599 = vmatprep.mubr.f32.mxu0 0.0
        %3600 = vmatmul.mubr.f32.gmra.mxu0 %v3527
        %v3601 = vpop.f32.mrf.mxu0
        %v3602 = vadd.f32 0.0, %v3601
        %v3603 = vpop.f32.mrf.mxu0
        %3604 = vmatprep.mubr.f32.mxu0 0.0
        %3605 = vmatmul.mubr.f32.gmra.mxu0 %v3529
        %v3606 = vpop.f32.mrf.mxu0
        %v3607 = vadd.f32 0.0, %v3606
        %v3608 = vpop.f32.mrf.mxu0
        %3609 = vdwg.mxu0
        %3612 = vrot.lane.b32.xlu0 %v843, 112
        %v3613 = vpop.permute.xlu0 %3612
        %3614 = vrot.lane.b32.xlu0 %v848, 112
        %v3615 = vpop.permute.xlu0 %3614
        %v3616 = vsel %vm273, %v843, 0
        %v3618 = vsel %vm273, %v848, 0
        %v3620 = vsel %vm273, %v3613, 0
        %v3622 = vsel %vm273, %v3615, 0
        %3624 = vmatprep.subr.mxu0 0.0
        %3625 = vmatpush1.xpose.msra.mxu0 0.0
        %3626 = vmatprep.subr.mxu0 0.0
        %3627 = vmatpush1.xpose.msra.mxu0 0.0
        %3628 = vmatprep.subr.mxu0 0.0
        %3629 = vmatpush1.xpose.msra.mxu0 0.0
        %3630 = vmatprep.subr.mxu0 0.0
        %3631 = vmatpush1.xpose.msra.mxu0 0.0
        %3632 = vmatprep.subr.mxu0 0.0
        %3633 = vmatpush1.xpose.msra.mxu0 0.0
        %3634 = vmatprep.subr.mxu0 0.0
        %3635 = vmatpush1.xpose.msra.mxu0 0.0
        %3636 = vmatprep.subr.mxu0 0.0
        %3637 = vmatpush1.xpose.msra.mxu0 0.0
        %3638 = vmatprep.subr.mxu0 0.0
        %3639 = vmatpush1.xpose.msra.mxu0 0.0
        %3640 = vmatprep.subr.mxu0 0.0
        %3641 = vmatpush1.xpose.msra.mxu0 0.0
        %3642 = vmatprep.subr.mxu0 0.0
        %3643 = vmatpush1.xpose.msra.mxu0 0.0
        %3644 = vmatprep.subr.mxu0 0.0
        %3645 = vmatpush1.xpose.msra.mxu0 0.0
        %3646 = vmatprep.subr.mxu0 0.0
        %3647 = vmatpush1.xpose.msra.mxu0 0.0
        %3648 = vmatprep.subr.mxu0 0.0
        %3649 = vmatpush1.xpose.msra.mxu0 0.0
        %3650 = vmatprep.subr.mxu0 0.0
        %3651 = vmatpush1.xpose.msra.mxu0 0.0
        %3652 = vmatprep.subr.mxu0 0.0
        %3653 = vmatpush1.xpose.msra.mxu0 %v3622
        %3654 = vmatprep.subr.mxu0 0.0
        %3655 = vmatpush1.xpose.msra.mxu0 %v3620
        %3656 = vmatprep.subr.mxu0 0.0
        %3657 = vmatpush2.xpose.msra.mxu0 0.0
        %3658 = vmatprep.subr.mxu0 0.0
        %3659 = vmatpush2.xpose.msra.mxu0 0.0
        %3660 = vmatprep.subr.mxu0 0.0
        %3661 = vmatpush2.xpose.msra.mxu0 0.0
        %3662 = vmatprep.subr.mxu0 0.0
        %3663 = vmatpush2.xpose.msra.mxu0 0.0
        %3664 = vmatprep.subr.mxu0 0.0
        %3665 = vmatpush2.xpose.msra.mxu0 0.0
        %3666 = vmatprep.subr.mxu0 0.0
        %3667 = vmatpush2.xpose.msra.mxu0 0.0
        %3668 = vmatprep.subr.mxu0 0.0
        %3669 = vmatpush2.xpose.msra.mxu0 0.0
        %3670 = vmatprep.subr.mxu0 0.0
        %3671 = vmatpush2.xpose.msra.mxu0 0.0
        %3672 = vmatprep.subr.mxu0 0.0
        %3673 = vmatpush2.xpose.msra.mxu0 0.0
        %3674 = vmatprep.subr.mxu0 0.0
        %3675 = vmatpush2.xpose.msra.mxu0 0.0
        %3676 = vmatprep.subr.mxu0 0.0
        %3677 = vmatpush2.xpose.msra.mxu0 0.0
        %3678 = vmatprep.subr.mxu0 0.0
        %3679 = vmatpush2.xpose.msra.mxu0 0.0
        %3680 = vmatprep.subr.mxu0 0.0
        %3681 = vmatpush2.xpose.msra.mxu0 0.0
        %3682 = vmatprep.subr.mxu0 0.0
        %3683 = vmatpush2.xpose.msra.mxu0 0.0
        %3684 = vmatprep.subr.mxu0 0.0
        %3685 = vmatpush2.xpose.msra.mxu0 0.0
        %3686 = vmatprep.subr.mxu0 0.0
        %3687 = vmatpush2.xpose.msra.mxu0 0.0
        %3688 = vmatprep.mubr.f32.mxu0 0.0
        %3689 = vmatmul.mubr.f32.gmra.mxu0 %v3616
        %v3690 = vpop.f32.mrf.mxu0
        %v3691 = vadd.f32 0.0, %v3690
        %v3692 = vpop.f32.mrf.mxu0
        %3693 = vmatprep.mubr.f32.mxu0 0.0
        %3694 = vmatmul.mubr.f32.gmra.mxu0 %v3618
        %v3695 = vpop.f32.mrf.mxu0
        %v3696 = vadd.f32 0.0, %v3695
        %v3697 = vpop.f32.mrf.mxu0
        %3698 = vdwg.mxu0
        %v3699 = vld [vmem:[%s2] sm:$0xff]
        %v3700 = vld [vmem:[%s2 + $0x8] sm:$0xff]
        %v3701 = vmul.f32 %v932, %v3699
        %v3702 = vmul.f32 %v937, %v3700
        %v3703 = vmul.f32 %v1021, %v3699
        %v3704 = vmul.f32 %v1026, %v3700
        %v3705 = vmul.f32 %v1110, %v3699
        %v3706 = vmul.f32 %v1115, %v3700
        %v3707 = vmul.f32 %v1199, %v3699
        %v3708 = vmul.f32 %v1204, %v3700
        %v3709 = vmul.f32 %v1288, %v3699
        %v3710 = vmul.f32 %v1293, %v3700
        %v3711 = vmul.f32 %v1377, %v3699
        %v3712 = vmul.f32 %v1382, %v3700
        %v3713 = vmul.f32 %v1466, %v3699
        %v3714 = vmul.f32 %v1471, %v3700
        %v3715 = vmul.f32 %v1555, %v3699
        %v3716 = vmul.f32 %v1560, %v3700
        %v3717 = vmul.f32 %v1644, %v3699
        %v3718 = vmul.f32 %v1649, %v3700
        %v3719 = vmul.f32 %v1733, %v3699
        %v3720 = vmul.f32 %v1738, %v3700
        %v3721 = vmul.f32 %v1822, %v3699
        %v3722 = vmul.f32 %v1827, %v3700
        %v3723 = vmul.f32 %v1911, %v3699
        %v3724 = vmul.f32 %v1916, %v3700
        %v3725 = vmul.f32 %v2000, %v3699
        %v3726 = vmul.f32 %v2005, %v3700
        %v3727 = vmul.f32 %v2089, %v3699
        %v3728 = vmul.f32 %v2094, %v3700
        %v3729 = vmul.f32 %v2178, %v3699
        %v3730 = vmul.f32 %v2183, %v3700
        %v3731 = vmul.f32 %v2267, %v3699
        %v3732 = vmul.f32 %v2272, %v3700
        %v3733 = vmul.f32 %v2356, %v3699
        %v3734 = vmul.f32 %v2361, %v3700
        %v3735 = vmul.f32 %v2445, %v3699
        %v3736 = vmul.f32 %v2450, %v3700
        %v3737 = vmul.f32 %v2534, %v3699
        %v3738 = vmul.f32 %v2539, %v3700
        %v3739 = vmul.f32 %v2623, %v3699
        %v3740 = vmul.f32 %v2628, %v3700
        %v3741 = vmul.f32 %v2712, %v3699
        %v3742 = vmul.f32 %v2717, %v3700
        %v3743 = vmul.f32 %v2801, %v3699
        %v3744 = vmul.f32 %v2806, %v3700
        %v3745 = vmul.f32 %v2890, %v3699
        %v3746 = vmul.f32 %v2895, %v3700
        %v3747 = vmul.f32 %v2979, %v3699
        %v3748 = vmul.f32 %v2984, %v3700
        %v3749 = vmul.f32 %v3068, %v3699
        %v3750 = vmul.f32 %v3073, %v3700
        %v3751 = vmul.f32 %v3157, %v3699
        %v3752 = vmul.f32 %v3162, %v3700
        %v3753 = vmul.f32 %v3246, %v3699
        %v3754 = vmul.f32 %v3251, %v3700
        %v3755 = vmul.f32 %v3335, %v3699
        %v3756 = vmul.f32 %v3340, %v3700
        %v3757 = vmul.f32 %v3424, %v3699
        %v3758 = vmul.f32 %v3429, %v3700
        %v3759 = vmul.f32 %v3513, %v3699
        %v3760 = vmul.f32 %v3518, %v3700
        %v3761 = vmul.f32 %v3602, %v3699
        %v3762 = vmul.f32 %v3607, %v3700
        %v3763 = vmul.f32 %v3691, %v3699
        %v3764 = vmul.f32 %v3696, %v3700
        %v3765 = vsel %vm273, %v3701, -inf
        %3766 = vmax.xlane.f32.xlu0 %v3765
        %v3767 = vpop.xlane.xlu0 %3766
        %v3768 = vsel %vm273, %v3702, -inf
        %3769 = vmax.xlane.f32.xlu0 %v3768
        %v3770 = vpop.xlane.xlu0 %3769
        %v3771 = vsel %vm273, %v3703, -inf
        %3772 = vmax.xlane.f32.xlu0 %v3771
        %v3773 = vpop.xlane.xlu0 %3772
        %v3774 = vsel %vm273, %v3704, -inf
        %3775 = vmax.xlane.f32.xlu0 %v3774
        %v3776 = vpop.xlane.xlu0 %3775
        %v3777 = vsel %vm273, %v3705, -inf
        %3778 = vmax.xlane.f32.xlu0 %v3777
        %v3779 = vpop.xlane.xlu0 %3778
        %v3780 = vsel %vm273, %v3706, -inf
        %3781 = vmax.xlane.f32.xlu0 %v3780
        %v3782 = vpop.xlane.xlu0 %3781
        %v3783 = vsel %vm273, %v3707, -inf
        %3784 = vmax.xlane.f32.xlu0 %v3783
        %v3785 = vpop.xlane.xlu0 %3784
        %v3786 = vsel %vm273, %v3708, -inf
        %3787 = vmax.xlane.f32.xlu0 %v3786
        %v3788 = vpop.xlane.xlu0 %3787
        %v3789 = vsel %vm273, %v3709, -inf
        %3790 = vmax.xlane.f32.xlu0 %v3789
        %v3791 = vpop.xlane.xlu0 %3790
        %v3792 = vsel %vm273, %v3710, -inf
        %3793 = vmax.xlane.f32.xlu0 %v3792
        %v3794 = vpop.xlane.xlu0 %3793
        %v3795 = vsel %vm273, %v3711, -inf
        %3796 = vmax.xlane.f32.xlu0 %v3795
        %v3797 = vpop.xlane.xlu0 %3796
        %v3798 = vsel %vm273, %v3712, -inf
        %3799 = vmax.xlane.f32.xlu0 %v3798
        %v3800 = vpop.xlane.xlu0 %3799
        %v3801 = vsel %vm273, %v3713, -inf
        %3802 = vmax.xlane.f32.xlu0 %v3801
        %v3803 = vpop.xlane.xlu0 %3802
        %v3804 = vsel %vm273, %v3714, -inf
        %3805 = vmax.xlane.f32.xlu0 %v3804
        %v3806 = vpop.xlane.xlu0 %3805
        %v3807 = vsel %vm273, %v3715, -inf
        %3808 = vmax.xlane.f32.xlu0 %v3807
        %v3809 = vpop.xlane.xlu0 %3808
        %v3810 = vsel %vm273, %v3716, -inf
        %3811 = vmax.xlane.f32.xlu0 %v3810
        %v3812 = vpop.xlane.xlu0 %3811
        %v3813 = vsel %vm273, %v3717, -inf
        %3814 = vmax.xlane.f32.xlu0 %v3813
        %v3815 = vpop.xlane.xlu0 %3814
        %v3816 = vsel %vm273, %v3718, -inf
        %3817 = vmax.xlane.f32.xlu0 %v3816
        %v3818 = vpop.xlane.xlu0 %3817
        %v3819 = vsel %vm273, %v3719, -inf
        %3820 = vmax.xlane.f32.xlu0 %v3819
        %v3821 = vpop.xlane.xlu0 %3820
        %v3822 = vsel %vm273, %v3720, -inf
        %3823 = vmax.xlane.f32.xlu0 %v3822
        %v3824 = vpop.xlane.xlu0 %3823
        %v3825 = vsel %vm273, %v3721, -inf
        %3826 = vmax.xlane.f32.xlu0 %v3825
        %v3827 = vpop.xlane.xlu0 %3826
        %v3828 = vsel %vm273, %v3722, -inf
        %3829 = vmax.xlane.f32.xlu0 %v3828
        %v3830 = vpop.xlane.xlu0 %3829
        %v3831 = vsel %vm273, %v3723, -inf
        %3832 = vmax.xlane.f32.xlu0 %v3831
        %v3833 = vpop.xlane.xlu0 %3832
        %v3834 = vsel %vm273, %v3724, -inf
        %3835 = vmax.xlane.f32.xlu0 %v3834
        %v3836 = vpop.xlane.xlu0 %3835
        %v3837 = vsel %vm273, %v3725, -inf
        %3838 = vmax.xlane.f32.xlu0 %v3837
        %v3839 = vpop.xlane.xlu0 %3838
        %v3840 = vsel %vm273, %v3726, -inf
        %3841 = vmax.xlane.f32.xlu0 %v3840
        %v3842 = vpop.xlane.xlu0 %3841
        %v3843 = vsel %vm273, %v3727, -inf
        %3844 = vmax.xlane.f32.xlu0 %v3843
        %v3845 = vpop.xlane.xlu0 %3844
        %v3846 = vsel %vm273, %v3728, -inf
        %3847 = vmax.xlane.f32.xlu0 %v3846
        %v3848 = vpop.xlane.xlu0 %3847
        %v3849 = vsel %vm273, %v3729, -inf
        %3850 = vmax.xlane.f32.xlu0 %v3849
        %v3851 = vpop.xlane.xlu0 %3850
        %v3852 = vsel %vm273, %v3730, -inf
        %3853 = vmax.xlane.f32.xlu0 %v3852
        %v3854 = vpop.xlane.xlu0 %3853
        %v3855 = vsel %vm273, %v3731, -inf
        %3856 = vmax.xlane.f32.xlu0 %v3855
        %v3857 = vpop.xlane.xlu0 %3856
        %v3858 = vsel %vm273, %v3732, -inf
        %3859 = vmax.xlane.f32.xlu0 %v3858
        %v3860 = vpop.xlane.xlu0 %3859
        %v3861 = vsel %vm273, %v3733, -inf
        %3862 = vmax.xlane.f32.xlu0 %v3861
        %v3863 = vpop.xlane.xlu0 %3862
        %v3864 = vsel %vm273, %v3734, -inf
        %3865 = vmax.xlane.f32.xlu0 %v3864
        %v3866 = vpop.xlane.xlu0 %3865
        %v3867 = vsel %vm273, %v3735, -inf
        %3868 = vmax.xlane.f32.xlu0 %v3867
        %v3869 = vpop.xlane.xlu0 %3868
        %v3870 = vsel %vm273, %v3736, -inf
        %3871 = vmax.xlane.f32.xlu0 %v3870
        %v3872 = vpop.xlane.xlu0 %3871
        %v3873 = vsel %vm273, %v3737, -inf
        %3874 = vmax.xlane.f32.xlu0 %v3873
        %v3875 = vpop.xlane.xlu0 %3874
        %v3876 = vsel %vm273, %v3738, -inf
        %3877 = vmax.xlane.f32.xlu0 %v3876
        %v3878 = vpop.xlane.xlu0 %3877
        %v3879 = vsel %vm273, %v3739, -inf
        %3880 = vmax.xlane.f32.xlu0 %v3879
        %v3881 = vpop.xlane.xlu0 %3880
        %v3882 = vsel %vm273, %v3740, -inf
        %3883 = vmax.xlane.f32.xlu0 %v3882
        %v3884 = vpop.xlane.xlu0 %3883
        %v3885 = vsel %vm273, %v3741, -inf
        %3886 = vmax.xlane.f32.xlu0 %v3885
        %v3887 = vpop.xlane.xlu0 %3886
        %v3888 = vsel %vm273, %v3742, -inf
        %3889 = vmax.xlane.f32.xlu0 %v3888
        %v3890 = vpop.xlane.xlu0 %3889
        %v3891 = vsel %vm273, %v3743, -inf
        %3892 = vmax.xlane.f32.xlu0 %v3891
        %v3893 = vpop.xlane.xlu0 %3892
        %v3894 = vsel %vm273, %v3744, -inf
        %3895 = vmax.xlane.f32.xlu0 %v3894
        %v3896 = vpop.xlane.xlu0 %3895
        %v3897 = vsel %vm273, %v3745, -inf
        %3898 = vmax.xlane.f32.xlu0 %v3897
        %v3899 = vpop.xlane.xlu0 %3898
        %v3900 = vsel %vm273, %v3746, -inf
        %3901 = vmax.xlane.f32.xlu0 %v3900
        %v3902 = vpop.xlane.xlu0 %3901
        %v3903 = vsel %vm273, %v3747, -inf
        %3904 = vmax.xlane.f32.xlu0 %v3903
        %v3905 = vpop.xlane.xlu0 %3904
        %v3906 = vsel %vm273, %v3748, -inf
        %3907 = vmax.xlane.f32.xlu0 %v3906
        %v3908 = vpop.xlane.xlu0 %3907
        %v3909 = vsel %vm273, %v3749, -inf
        %3910 = vmax.xlane.f32.xlu0 %v3909
        %v3911 = vpop.xlane.xlu0 %3910
        %v3912 = vsel %vm273, %v3750, -inf
        %3913 = vmax.xlane.f32.xlu0 %v3912
        %v3914 = vpop.xlane.xlu0 %3913
        %v3915 = vsel %vm273, %v3751, -inf
        %3916 = vmax.xlane.f32.xlu0 %v3915
        %v3917 = vpop.xlane.xlu0 %3916
        %v3918 = vsel %vm273, %v3752, -inf
        %3919 = vmax.xlane.f32.xlu0 %v3918
        %v3920 = vpop.xlane.xlu0 %3919
        %v3921 = vsel %vm273, %v3753, -inf
        %3922 = vmax.xlane.f32.xlu0 %v3921
        %v3923 = vpop.xlane.xlu0 %3922
        %v3924 = vsel %vm273, %v3754, -inf
        %3925 = vmax.xlane.f32.xlu0 %v3924
        %v3926 = vpop.xlane.xlu0 %3925
        %v3927 = vsel %vm273, %v3755, -inf
        %3928 = vmax.xlane.f32.xlu0 %v3927
        %v3929 = vpop.xlane.xlu0 %3928
        %v3930 = vsel %vm273, %v3756, -inf
        %3931 = vmax.xlane.f32.xlu0 %v3930
        %v3932 = vpop.xlane.xlu0 %3931
        %v3933 = vsel %vm273, %v3757, -inf
        %3934 = vmax.xlane.f32.xlu0 %v3933
        %v3935 = vpop.xlane.xlu0 %3934
        %v3936 = vsel %vm273, %v3758, -inf
        %3937 = vmax.xlane.f32.xlu0 %v3936
        %v3938 = vpop.xlane.xlu0 %3937
        %v3939 = vsel %vm273, %v3759, -inf
        %3940 = vmax.xlane.f32.xlu0 %v3939
        %v3941 = vpop.xlane.xlu0 %3940
        %v3942 = vsel %vm273, %v3760, -inf
        %3943 = vmax.xlane.f32.xlu0 %v3942
        %v3944 = vpop.xlane.xlu0 %3943
        %v3945 = vsel %vm273, %v3761, -inf
        %3946 = vmax.xlane.f32.xlu0 %v3945
        %v3947 = vpop.xlane.xlu0 %3946
        %v3948 = vsel %vm273, %v3762, -inf
        %3949 = vmax.xlane.f32.xlu0 %v3948
        %v3950 = vpop.xlane.xlu0 %3949
        %v3951 = vsel %vm273, %v3763, -inf
        %3952 = vmax.xlane.f32.xlu0 %v3951
        %v3953 = vpop.xlane.xlu0 %3952
        %v3954 = vsel %vm273, %v3764, -inf
        %3955 = vmax.xlane.f32.xlu0 %v3954
        %v3956 = vpop.xlane.xlu0 %3955
        %v3957 = vsub.f32 %v3701, %v3767
        %v3958 = vsub.f32 %v3702, %v3770
        %v3959 = vsub.f32 %v3703, %v3773
        %v3960 = vsub.f32 %v3704, %v3776
        %v3961 = vsub.f32 %v3705, %v3779
        %v3962 = vsub.f32 %v3706, %v3782
        %v3963 = vsub.f32 %v3707, %v3785
        %v3964 = vsub.f32 %v3708, %v3788
        %v3965 = vsub.f32 %v3709, %v3791
        %v3966 = vsub.f32 %v3710, %v3794
        %v3967 = vsub.f32 %v3711, %v3797
        %v3968 = vsub.f32 %v3712, %v3800
        %v3969 = vsub.f32 %v3713, %v3803
        %v3970 = vsub.f32 %v3714, %v3806
        %v3971 = vsub.f32 %v3715, %v3809
        %v3972 = vsub.f32 %v3716, %v3812
        %v3973 = vsub.f32 %v3717, %v3815
        %v3974 = vsub.f32 %v3718, %v3818
        %v3975 = vsub.f32 %v3719, %v3821
        %v3976 = vsub.f32 %v3720, %v3824
        %v3977 = vsub.f32 %v3721, %v3827
        %v3978 = vsub.f32 %v3722, %v3830
        %v3979 = vsub.f32 %v3723, %v3833
        %v3980 = vsub.f32 %v3724, %v3836
        %v3981 = vsub.f32 %v3725, %v3839
        %v3982 = vsub.f32 %v3726, %v3842
        %v3983 = vsub.f32 %v3727, %v3845
        %v3984 = vsub.f32 %v3728, %v3848
        %v3985 = vsub.f32 %v3729, %v3851
        %v3986 = vsub.f32 %v3730, %v3854
        %v3987 = vsub.f32 %v3731, %v3857
        %v3988 = vsub.f32 %v3732, %v3860
        %v3989 = vsub.f32 %v3733, %v3863
        %v3990 = vsub.f32 %v3734, %v3866
        %v3991 = vsub.f32 %v3735, %v3869
        %v3992 = vsub.f32 %v3736, %v3872
        %v3993 = vsub.f32 %v3737, %v3875
        %v3994 = vsub.f32 %v3738, %v3878
        %v3995 = vsub.f32 %v3739, %v3881
        %v3996 = vsub.f32 %v3740, %v3884
        %v3997 = vsub.f32 %v3741, %v3887
        %v3998 = vsub.f32 %v3742, %v3890
        %v3999 = vsub.f32 %v3743, %v3893
        %v4000 = vsub.f32 %v3744, %v3896
        %v4001 = vsub.f32 %v3745, %v3899
        %v4002 = vsub.f32 %v3746, %v3902
        %v4003 = vsub.f32 %v3747, %v3905
        %v4004 = vsub.f32 %v3748, %v3908
        %v4005 = vsub.f32 %v3749, %v3911
        %v4006 = vsub.f32 %v3750, %v3914
        %v4007 = vsub.f32 %v3751, %v3917
        %v4008 = vsub.f32 %v3752, %v3920
        %v4009 = vsub.f32 %v3753, %v3923
        %v4010 = vsub.f32 %v3754, %v3926
        %v4011 = vsub.f32 %v3755, %v3929
        %v4012 = vsub.f32 %v3756, %v3932
        %v4013 = vsub.f32 %v3757, %v3935
        %v4014 = vsub.f32 %v3758, %v3938
        %v4015 = vsub.f32 %v3759, %v3941
        %v4016 = vsub.f32 %v3760, %v3944
        %v4017 = vsub.f32 %v3761, %v3947
        %v4018 = vsub.f32 %v3762, %v3950
        %v4019 = vsub.f32 %v3763, %v3953
        %v4020 = vsub.f32 %v3764, %v3956
        %v4021 = vmul.f32 %v3957, 1.442695
        %v4022 = vpow.pop %v4021
        %v4023 = vmul.f32 %v3958, 1.442695
        %v4024 = vpow.pop %v4023
        %v4025 = vmul.f32 %v3959, 1.442695
        %v4026 = vpow.pop %v4025
        %v4027 = vmul.f32 %v3960, 1.442695
        %v4028 = vpow.pop %v4027
        %v4029 = vmul.f32 %v3961, 1.442695
        %v4030 = vpow.pop %v4029
        %v4031 = vmul.f32 %v3962, 1.442695
        %v4032 = vpow.pop %v4031
        %v4033 = vmul.f32 %v3963, 1.442695
        %v4034 = vpow.pop %v4033
        %v4035 = vmul.f32 %v3964, 1.442695
        %v4036 = vpow.pop %v4035
        %v4037 = vmul.f32 %v3965, 1.442695
        %v4038 = vpow.pop %v4037
        %v4039 = vmul.f32 %v3966, 1.442695
        %v4040 = vpow.pop %v4039
        %v4041 = vmul.f32 %v3967, 1.442695
        %v4042 = vpow.pop %v4041
        %v4043 = vmul.f32 %v3968, 1.442695
        %v4044 = vpow.pop %v4043
        %v4045 = vmul.f32 %v3969, 1.442695
        %v4046 = vpow.pop %v4045
        %v4047 = vmul.f32 %v3970, 1.442695
        %v4048 = vpow.pop %v4047
        %v4049 = vmul.f32 %v3971, 1.442695
        %v4050 = vpow.pop %v4049
        %v4051 = vmul.f32 %v3972, 1.442695
        %v4052 = vpow.pop %v4051
        %v4053 = vmul.f32 %v3973, 1.442695
        %v4054 = vpow.pop %v4053
        %v4055 = vmul.f32 %v3974, 1.442695
        %v4056 = vpow.pop %v4055
        %v4057 = vmul.f32 %v3975, 1.442695
        %v4058 = vpow.pop %v4057
        %v4059 = vmul.f32 %v3976, 1.442695
        %v4060 = vpow.pop %v4059
        %v4061 = vmul.f32 %v3977, 1.442695
        %v4062 = vpow.pop %v4061
        %v4063 = vmul.f32 %v3978, 1.442695
        %v4064 = vpow.pop %v4063
        %v4065 = vmul.f32 %v3979, 1.442695
        %v4066 = vpow.pop %v4065
        %v4067 = vmul.f32 %v3980, 1.442695
        %v4068 = vpow.pop %v4067
        %v4069 = vmul.f32 %v3981, 1.442695
        %v4070 = vpow.pop %v4069
        %v4071 = vmul.f32 %v3982, 1.442695
        %v4072 = vpow.pop %v4071
        %v4073 = vmul.f32 %v3983, 1.442695
        %v4074 = vpow.pop %v4073
        %v4075 = vmul.f32 %v3984, 1.442695
        %v4076 = vpow.pop %v4075
        %v4077 = vmul.f32 %v3985, 1.442695
        %v4078 = vpow.pop %v4077
        %v4079 = vmul.f32 %v3986, 1.442695
        %v4080 = vpow.pop %v4079
        %v4081 = vmul.f32 %v3987, 1.442695
        %v4082 = vpow.pop %v4081
        %v4083 = vmul.f32 %v3988, 1.442695
        %v4084 = vpow.pop %v4083
        %v4085 = vmul.f32 %v3989, 1.442695
        %v4086 = vpow.pop %v4085
        %v4087 = vmul.f32 %v3990, 1.442695
        %v4088 = vpow.pop %v4087
        %v4089 = vmul.f32 %v3991, 1.442695
        %v4090 = vpow.pop %v4089
        %v4091 = vmul.f32 %v3992, 1.442695
        %v4092 = vpow.pop %v4091
        %v4093 = vmul.f32 %v3993, 1.442695
        %v4094 = vpow.pop %v4093
        %v4095 = vmul.f32 %v3994, 1.442695
        %v4096 = vpow.pop %v4095
        %v4097 = vmul.f32 %v3995, 1.442695
        %v4098 = vpow.pop %v4097
        %v4099 = vmul.f32 %v3996, 1.442695
        %v4100 = vpow.pop %v4099
        %v4101 = vmul.f32 %v3997, 1.442695
        %v4102 = vpow.pop %v4101
        %v4103 = vmul.f32 %v3998, 1.442695
        %v4104 = vpow.pop %v4103
        %v4105 = vmul.f32 %v3999, 1.442695
        %v4106 = vpow.pop %v4105
        %v4107 = vmul.f32 %v4000, 1.442695
        %v4108 = vpow.pop %v4107
        %v4109 = vmul.f32 %v4001, 1.442695
        %v4110 = vpow.pop %v4109
        %v4111 = vmul.f32 %v4002, 1.442695
        %v4112 = vpow.pop %v4111
        %v4113 = vmul.f32 %v4003, 1.442695
        %v4114 = vpow.pop %v4113
        %v4115 = vmul.f32 %v4004, 1.442695
        %v4116 = vpow.pop %v4115
        %v4117 = vmul.f32 %v4005, 1.442695
        %v4118 = vpow.pop %v4117
        %v4119 = vmul.f32 %v4006, 1.442695
        %v4120 = vpow.pop %v4119
        %v4121 = vmul.f32 %v4007, 1.442695
        %v4122 = vpow.pop %v4121
        %v4123 = vmul.f32 %v4008, 1.442695
        %v4124 = vpow.pop %v4123
        %v4125 = vmul.f32 %v4009, 1.442695
        %v4126 = vpow.pop %v4125
        %v4127 = vmul.f32 %v4010, 1.442695
        %v4128 = vpow.pop %v4127
        %v4129 = vmul.f32 %v4011, 1.442695
        %v4130 = vpow.pop %v4129
        %v4131 = vmul.f32 %v4012, 1.442695
        %v4132 = vpow.pop %v4131
        %v4133 = vmul.f32 %v4013, 1.442695
        %v4134 = vpow.pop %v4133
        %v4135 = vmul.f32 %v4014, 1.442695
        %v4136 = vpow.pop %v4135
        %v4137 = vmul.f32 %v4015, 1.442695
        %v4138 = vpow.pop %v4137
        %v4139 = vmul.f32 %v4016, 1.442695
        %v4140 = vpow.pop %v4139
        %v4141 = vmul.f32 %v4017, 1.442695
        %v4142 = vpow.pop %v4141
        %v4143 = vmul.f32 %v4018, 1.442695
        %v4144 = vpow.pop %v4143
        %v4145 = vmul.f32 %v4019, 1.442695
        %v4146 = vpow.pop %v4145
        %v4147 = vmul.f32 %v4020, 1.442695
        %v4148 = vpow.pop %v4147
        %4149 = vrot.lane.b32.xlu0 %v533, 96
        %v4150 = vpop.permute.xlu0 %4149
        %4151 = vrot.lane.b32.xlu0 %v538, 96
        %v4152 = vpop.permute.xlu0 %4151
        %v4156 = vsel %vm273, %v4022, 0
        %v4159 = vsel %vm273, %v4024, 0
        %4161 = vmatprep.subr.mxu0 0.0
        %4162 = vmatpush1.msra.mxu0 0.0
        %4163 = vmatprep.subr.mxu0 0.0
        %4164 = vmatpush1.msra.mxu0 0.0
        %4165 = vmatprep.subr.mxu0 0.0
        %4166 = vmatpush1.msra.mxu0 0.0
        %4167 = vmatprep.subr.mxu0 0.0
        %4168 = vmatpush1.msra.mxu0 0.0
        %4169 = vmatprep.subr.mxu0 0.0
        %4170 = vmatpush1.msra.mxu0 0.0
        %4171 = vmatprep.subr.mxu0 0.0
        %4172 = vmatpush1.msra.mxu0 0.0
        %4173 = vmatprep.subr.mxu0 0.0
        %4174 = vmatpush1.msra.mxu0 0.0
        %4175 = vmatprep.subr.mxu0 0.0
        %4176 = vmatpush1.msra.mxu0 0.0
        %4177 = vmatprep.subr.mxu0 0.0
        %4178 = vmatpush1.msra.mxu0 0.0
        %4179 = vmatprep.subr.mxu0 0.0
        %4180 = vmatpush1.msra.mxu0 0.0
        %4181 = vmatprep.subr.mxu0 0.0
        %4182 = vmatpush1.msra.mxu0 0.0
        %4183 = vmatprep.subr.mxu0 0.0
        %4184 = vmatpush1.msra.mxu0 0.0
        %4185 = vmatprep.subr.mxu0 0.0
        %4186 = vmatpush1.msra.mxu0 0.0
        %4187 = vmatprep.subr.mxu0 0.0
        %4188 = vmatpush1.msra.mxu0 0.0
        %4189 = vmatprep.subr.mxu0 0.0
        %4190 = vmatpush1.msra.mxu0 %v4152
        %4191 = vmatprep.subr.mxu0 0.0
        %4192 = vmatpush1.msra.mxu0 %v4150
        %4193 = vmatprep.subr.mxu0 0.0
        %4194 = vmatpush2.msra.mxu0 0.0
        %4195 = vmatprep.subr.mxu0 0.0
        %4196 = vmatpush2.msra.mxu0 0.0
        %4197 = vmatprep.subr.mxu0 0.0
        %4198 = vmatpush2.msra.mxu0 0.0
        %4199 = vmatprep.subr.mxu0 0.0
        %4200 = vmatpush2.msra.mxu0 0.0
        %4201 = vmatprep.subr.mxu0 0.0
        %4202 = vmatpush2.msra.mxu0 0.0
        %4203 = vmatprep.subr.mxu0 0.0
        %4204 = vmatpush2.msra.mxu0 0.0
        %4205 = vmatprep.subr.mxu0 0.0
        %4206 = vmatpush2.msra.mxu0 0.0
        %4207 = vmatprep.subr.mxu0 0.0
        %4208 = vmatpush2.msra.mxu0 0.0
        %4209 = vmatprep.subr.mxu0 0.0
        %4210 = vmatpush2.msra.mxu0 0.0
        %4211 = vmatprep.subr.mxu0 0.0
        %4212 = vmatpush2.msra.mxu0 0.0
        %4213 = vmatprep.subr.mxu0 0.0
        %4214 = vmatpush2.msra.mxu0 0.0
        %4215 = vmatprep.subr.mxu0 0.0
        %4216 = vmatpush2.msra.mxu0 0.0
        %4217 = vmatprep.subr.mxu0 0.0
        %4218 = vmatpush2.msra.mxu0 0.0
        %4219 = vmatprep.subr.mxu0 0.0
        %4220 = vmatpush2.msra.mxu0 0.0
        %4221 = vmatprep.subr.mxu0 0.0
        %4222 = vmatpush2.msra.mxu0 0.0
        %4223 = vmatprep.subr.mxu0 0.0
        %4224 = vmatpush2.msra.mxu0 0.0
        %4225 = vmatprep.mubr.f32.mxu0 0.0
        %4226 = vmatmul.mubr.f32.gmra.mxu0 %v4156
        %v4227 = vpop.f32.mrf.mxu0
        %v4228 = vadd.f32 0.0, %v4227
        %v4229 = vpop.f32.mrf.mxu0
        %4230 = vmatprep.mubr.f32.mxu0 0.0
        %4231 = vmatmul.mubr.f32.gmra.mxu0 %v4159
        %v4232 = vpop.f32.mrf.mxu0
        %v4233 = vadd.f32 0.0, %v4232
        %v4234 = vpop.f32.mrf.mxu0
        %4235 = vdwg.mxu0
        %4236 = vrot.lane.b32.xlu0 %v543, 96
        %v4237 = vpop.permute.xlu0 %4236
        %4238 = vrot.lane.b32.xlu0 %v548, 96
        %v4239 = vpop.permute.xlu0 %4238
        %v4243 = vsel %vm273, %v4026, 0
        %v4246 = vsel %vm273, %v4028, 0
        %4248 = vmatprep.subr.mxu0 0.0
        %4249 = vmatpush1.msra.mxu0 0.0
        %4250 = vmatprep.subr.mxu0 0.0
        %4251 = vmatpush1.msra.mxu0 0.0
        %4252 = vmatprep.subr.mxu0 0.0
        %4253 = vmatpush1.msra.mxu0 0.0
        %4254 = vmatprep.subr.mxu0 0.0
        %4255 = vmatpush1.msra.mxu0 0.0
        %4256 = vmatprep.subr.mxu0 0.0
        %4257 = vmatpush1.msra.mxu0 0.0
        %4258 = vmatprep.subr.mxu0 0.0
        %4259 = vmatpush1.msra.mxu0 0.0
        %4260 = vmatprep.subr.mxu0 0.0
        %4261 = vmatpush1.msra.mxu0 0.0
        %4262 = vmatprep.subr.mxu0 0.0
        %4263 = vmatpush1.msra.mxu0 0.0
        %4264 = vmatprep.subr.mxu0 0.0
        %4265 = vmatpush1.msra.mxu0 0.0
        %4266 = vmatprep.subr.mxu0 0.0
        %4267 = vmatpush1.msra.mxu0 0.0
        %4268 = vmatprep.subr.mxu0 0.0
        %4269 = vmatpush1.msra.mxu0 0.0
        %4270 = vmatprep.subr.mxu0 0.0
        %4271 = vmatpush1.msra.mxu0 0.0
        %4272 = vmatprep.subr.mxu0 0.0
        %4273 = vmatpush1.msra.mxu0 0.0
        %4274 = vmatprep.subr.mxu0 0.0
        %4275 = vmatpush1.msra.mxu0 0.0
        %4276 = vmatprep.subr.mxu0 0.0
        %4277 = vmatpush1.msra.mxu0 %v4239
        %4278 = vmatprep.subr.mxu0 0.0
        %4279 = vmatpush1.msra.mxu0 %v4237
        %4280 = vmatprep.subr.mxu0 0.0
        %4281 = vmatpush2.msra.mxu0 0.0
        %4282 = vmatprep.subr.mxu0 0.0
        %4283 = vmatpush2.msra.mxu0 0.0
        %4284 = vmatprep.subr.mxu0 0.0
        %4285 = vmatpush2.msra.mxu0 0.0
        %4286 = vmatprep.subr.mxu0 0.0
        %4287 = vmatpush2.msra.mxu0 0.0
        %4288 = vmatprep.subr.mxu0 0.0
        %4289 = vmatpush2.msra.mxu0 0.0
        %4290 = vmatprep.subr.mxu0 0.0
        %4291 = vmatpush2.msra.mxu0 0.0
        %4292 = vmatprep.subr.mxu0 0.0
        %4293 = vmatpush2.msra.mxu0 0.0
        %4294 = vmatprep.subr.mxu0 0.0
        %4295 = vmatpush2.msra.mxu0 0.0
        %4296 = vmatprep.subr.mxu0 0.0
        %4297 = vmatpush2.msra.mxu0 0.0
        %4298 = vmatprep.subr.mxu0 0.0
        %4299 = vmatpush2.msra.mxu0 0.0
        %4300 = vmatprep.subr.mxu0 0.0
        %4301 = vmatpush2.msra.mxu0 0.0
        %4302 = vmatprep.subr.mxu0 0.0
        %4303 = vmatpush2.msra.mxu0 0.0
        %4304 = vmatprep.subr.mxu0 0.0
        %4305 = vmatpush2.msra.mxu0 0.0
        %4306 = vmatprep.subr.mxu0 0.0
        %4307 = vmatpush2.msra.mxu0 0.0
        %4308 = vmatprep.subr.mxu0 0.0
        %4309 = vmatpush2.msra.mxu0 0.0
        %4310 = vmatprep.subr.mxu0 0.0
        %4311 = vmatpush2.msra.mxu0 0.0
        %4312 = vmatprep.mubr.f32.mxu0 0.0
        %4313 = vmatmul.mubr.f32.gmra.mxu0 %v4243
        %v4314 = vpop.f32.mrf.mxu0
        %v4315 = vadd.f32 0.0, %v4314
        %v4316 = vpop.f32.mrf.mxu0
        %4317 = vmatprep.mubr.f32.mxu0 0.0
        %4318 = vmatmul.mubr.f32.gmra.mxu0 %v4246
        %v4319 = vpop.f32.mrf.mxu0
        %v4320 = vadd.f32 0.0, %v4319
        %v4321 = vpop.f32.mrf.mxu0
        %4322 = vdwg.mxu0
        %4323 = vrot.lane.b32.xlu0 %v553, 96
        %v4324 = vpop.permute.xlu0 %4323
        %4325 = vrot.lane.b32.xlu0 %v558, 96
        %v4326 = vpop.permute.xlu0 %4325
        %v4330 = vsel %vm273, %v4030, 0
        %v4333 = vsel %vm273, %v4032, 0
        %4335 = vmatprep.subr.mxu0 0.0
        %4336 = vmatpush1.msra.mxu0 0.0
        %4337 = vmatprep.subr.mxu0 0.0
        %4338 = vmatpush1.msra.mxu0 0.0
        %4339 = vmatprep.subr.mxu0 0.0
        %4340 = vmatpush1.msra.mxu0 0.0
        %4341 = vmatprep.subr.mxu0 0.0
        %4342 = vmatpush1.msra.mxu0 0.0
        %4343 = vmatprep.subr.mxu0 0.0
        %4344 = vmatpush1.msra.mxu0 0.0
        %4345 = vmatprep.subr.mxu0 0.0
        %4346 = vmatpush1.msra.mxu0 0.0
        %4347 = vmatprep.subr.mxu0 0.0
        %4348 = vmatpush1.msra.mxu0 0.0
        %4349 = vmatprep.subr.mxu0 0.0
        %4350 = vmatpush1.msra.mxu0 0.0
        %4351 = vmatprep.subr.mxu0 0.0
        %4352 = vmatpush1.msra.mxu0 0.0
        %4353 = vmatprep.subr.mxu0 0.0
        %4354 = vmatpush1.msra.mxu0 0.0
        %4355 = vmatprep.subr.mxu0 0.0
        %4356 = vmatpush1.msra.mxu0 0.0
        %4357 = vmatprep.subr.mxu0 0.0
        %4358 = vmatpush1.msra.mxu0 0.0
        %4359 = vmatprep.subr.mxu0 0.0
        %4360 = vmatpush1.msra.mxu0 0.0
        %4361 = vmatprep.subr.mxu0 0.0
        %4362 = vmatpush1.msra.mxu0 0.0
        %4363 = vmatprep.subr.mxu0 0.0
        %4364 = vmatpush1.msra.mxu0 %v4326
        %4365 = vmatprep.subr.mxu0 0.0
        %4366 = vmatpush1.msra.mxu0 %v4324
        %4367 = vmatprep.subr.mxu0 0.0
        %4368 = vmatpush2.msra.mxu0 0.0
        %4369 = vmatprep.subr.mxu0 0.0
        %4370 = vmatpush2.msra.mxu0 0.0
        %4371 = vmatprep.subr.mxu0 0.0
        %4372 = vmatpush2.msra.mxu0 0.0
        %4373 = vmatprep.subr.mxu0 0.0
        %4374 = vmatpush2.msra.mxu0 0.0
        %4375 = vmatprep.subr.mxu0 0.0
        %4376 = vmatpush2.msra.mxu0 0.0
        %4377 = vmatprep.subr.mxu0 0.0
        %4378 = vmatpush2.msra.mxu0 0.0
        %4379 = vmatprep.subr.mxu0 0.0
        %4380 = vmatpush2.msra.mxu0 0.0
        %4381 = vmatprep.subr.mxu0 0.0
        %4382 = vmatpush2.msra.mxu0 0.0
        %4383 = vmatprep.subr.mxu0 0.0
        %4384 = vmatpush2.msra.mxu0 0.0
        %4385 = vmatprep.subr.mxu0 0.0
        %4386 = vmatpush2.msra.mxu0 0.0
        %4387 = vmatprep.subr.mxu0 0.0
        %4388 = vmatpush2.msra.mxu0 0.0
        %4389 = vmatprep.subr.mxu0 0.0
        %4390 = vmatpush2.msra.mxu0 0.0
        %4391 = vmatprep.subr.mxu0 0.0
        %4392 = vmatpush2.msra.mxu0 0.0
        %4393 = vmatprep.subr.mxu0 0.0
        %4394 = vmatpush2.msra.mxu0 0.0
        %4395 = vmatprep.subr.mxu0 0.0
        %4396 = vmatpush2.msra.mxu0 0.0
        %4397 = vmatprep.subr.mxu0 0.0
        %4398 = vmatpush2.msra.mxu0 0.0
        %4399 = vmatprep.mubr.f32.mxu0 0.0
        %4400 = vmatmul.mubr.f32.gmra.mxu0 %v4330
        %v4401 = vpop.f32.mrf.mxu0
        %v4402 = vadd.f32 0.0, %v4401
        %v4403 = vpop.f32.mrf.mxu0
        %4404 = vmatprep.mubr.f32.mxu0 0.0
        %4405 = vmatmul.mubr.f32.gmra.mxu0 %v4333
        %v4406 = vpop.f32.mrf.mxu0
        %v4407 = vadd.f32 0.0, %v4406
        %v4408 = vpop.f32.mrf.mxu0
        %4409 = vdwg.mxu0
        %4410 = vrot.lane.b32.xlu0 %v563, 96
        %v4411 = vpop.permute.xlu0 %4410
        %4412 = vrot.lane.b32.xlu0 %v568, 96
        %v4413 = vpop.permute.xlu0 %4412
        %v4417 = vsel %vm273, %v4034, 0
        %v4420 = vsel %vm273, %v4036, 0
        %4422 = vmatprep.subr.mxu0 0.0
        %4423 = vmatpush1.msra.mxu0 0.0
        %4424 = vmatprep.subr.mxu0 0.0
        %4425 = vmatpush1.msra.mxu0 0.0
        %4426 = vmatprep.subr.mxu0 0.0
        %4427 = vmatpush1.msra.mxu0 0.0
        %4428 = vmatprep.subr.mxu0 0.0
        %4429 = vmatpush1.msra.mxu0 0.0
        %4430 = vmatprep.subr.mxu0 0.0
        %4431 = vmatpush1.msra.mxu0 0.0
        %4432 = vmatprep.subr.mxu0 0.0
        %4433 = vmatpush1.msra.mxu0 0.0
        %4434 = vmatprep.subr.mxu0 0.0
        %4435 = vmatpush1.msra.mxu0 0.0
        %4436 = vmatprep.subr.mxu0 0.0
        %4437 = vmatpush1.msra.mxu0 0.0
        %4438 = vmatprep.subr.mxu0 0.0
        %4439 = vmatpush1.msra.mxu0 0.0
        %4440 = vmatprep.subr.mxu0 0.0
        %4441 = vmatpush1.msra.mxu0 0.0
        %4442 = vmatprep.subr.mxu0 0.0
        %4443 = vmatpush1.msra.mxu0 0.0
        %4444 = vmatprep.subr.mxu0 0.0
        %4445 = vmatpush1.msra.mxu0 0.0
        %4446 = vmatprep.subr.mxu0 0.0
        %4447 = vmatpush1.msra.mxu0 0.0
        %4448 = vmatprep.subr.mxu0 0.0
        %4449 = vmatpush1.msra.mxu0 0.0
        %4450 = vmatprep.subr.mxu0 0.0
        %4451 = vmatpush1.msra.mxu0 %v4413
        %4452 = vmatprep.subr.mxu0 0.0
        %4453 = vmatpush1.msra.mxu0 %v4411
        %4454 = vmatprep.subr.mxu0 0.0
        %4455 = vmatpush2.msra.mxu0 0.0
        %4456 = vmatprep.subr.mxu0 0.0
        %4457 = vmatpush2.msra.mxu0 0.0
        %4458 = vmatprep.subr.mxu0 0.0
        %4459 = vmatpush2.msra.mxu0 0.0
        %4460 = vmatprep.subr.mxu0 0.0
        %4461 = vmatpush2.msra.mxu0 0.0
        %4462 = vmatprep.subr.mxu0 0.0
        %4463 = vmatpush2.msra.mxu0 0.0
        %4464 = vmatprep.subr.mxu0 0.0
        %4465 = vmatpush2.msra.mxu0 0.0
        %4466 = vmatprep.subr.mxu0 0.0
        %4467 = vmatpush2.msra.mxu0 0.0
        %4468 = vmatprep.subr.mxu0 0.0
        %4469 = vmatpush2.msra.mxu0 0.0
        %4470 = vmatprep.subr.mxu0 0.0
        %4471 = vmatpush2.msra.mxu0 0.0
        %4472 = vmatprep.subr.mxu0 0.0
        %4473 = vmatpush2.msra.mxu0 0.0
        %4474 = vmatprep.subr.mxu0 0.0
        %4475 = vmatpush2.msra.mxu0 0.0
        %4476 = vmatprep.subr.mxu0 0.0
        %4477 = vmatpush2.msra.mxu0 0.0
        %4478 = vmatprep.subr.mxu0 0.0
        %4479 = vmatpush2.msra.mxu0 0.0
        %4480 = vmatprep.subr.mxu0 0.0
        %4481 = vmatpush2.msra.mxu0 0.0
        %4482 = vmatprep.subr.mxu0 0.0
        %4483 = vmatpush2.msra.mxu0 0.0
        %4484 = vmatprep.subr.mxu0 0.0
        %4485 = vmatpush2.msra.mxu0 0.0
        %4486 = vmatprep.mubr.f32.mxu0 0.0
        %4487 = vmatmul.mubr.f32.gmra.mxu0 %v4417
        %v4488 = vpop.f32.mrf.mxu0
        %v4489 = vadd.f32 0.0, %v4488
        %v4490 = vpop.f32.mrf.mxu0
        %4491 = vmatprep.mubr.f32.mxu0 0.0
        %4492 = vmatmul.mubr.f32.gmra.mxu0 %v4420
        %v4493 = vpop.f32.mrf.mxu0
        %v4494 = vadd.f32 0.0, %v4493
        %v4495 = vpop.f32.mrf.mxu0
        %4496 = vdwg.mxu0
        %4497 = vrot.lane.b32.xlu0 %v573, 96
        %v4498 = vpop.permute.xlu0 %4497
        %4499 = vrot.lane.b32.xlu0 %v578, 96
        %v4500 = vpop.permute.xlu0 %4499
        %v4504 = vsel %vm273, %v4038, 0
        %v4507 = vsel %vm273, %v4040, 0
        %4509 = vmatprep.subr.mxu0 0.0
        %4510 = vmatpush1.msra.mxu0 0.0
        %4511 = vmatprep.subr.mxu0 0.0
        %4512 = vmatpush1.msra.mxu0 0.0
        %4513 = vmatprep.subr.mxu0 0.0
        %4514 = vmatpush1.msra.mxu0 0.0
        %4515 = vmatprep.subr.mxu0 0.0
        %4516 = vmatpush1.msra.mxu0 0.0
        %4517 = vmatprep.subr.mxu0 0.0
        %4518 = vmatpush1.msra.mxu0 0.0
        %4519 = vmatprep.subr.mxu0 0.0
        %4520 = vmatpush1.msra.mxu0 0.0
        %4521 = vmatprep.subr.mxu0 0.0
        %4522 = vmatpush1.msra.mxu0 0.0
        %4523 = vmatprep.subr.mxu0 0.0
        %4524 = vmatpush1.msra.mxu0 0.0
        %4525 = vmatprep.subr.mxu0 0.0
        %4526 = vmatpush1.msra.mxu0 0.0
        %4527 = vmatprep.subr.mxu0 0.0
        %4528 = vmatpush1.msra.mxu0 0.0
        %4529 = vmatprep.subr.mxu0 0.0
        %4530 = vmatpush1.msra.mxu0 0.0
        %4531 = vmatprep.subr.mxu0 0.0
        %4532 = vmatpush1.msra.mxu0 0.0
        %4533 = vmatprep.subr.mxu0 0.0
        %4534 = vmatpush1.msra.mxu0 0.0
        %4535 = vmatprep.subr.mxu0 0.0
        %4536 = vmatpush1.msra.mxu0 0.0
        %4537 = vmatprep.subr.mxu0 0.0
        %4538 = vmatpush1.msra.mxu0 %v4500
        %4539 = vmatprep.subr.mxu0 0.0
        %4540 = vmatpush1.msra.mxu0 %v4498
        %4541 = vmatprep.subr.mxu0 0.0
        %4542 = vmatpush2.msra.mxu0 0.0
        %4543 = vmatprep.subr.mxu0 0.0
        %4544 = vmatpush2.msra.mxu0 0.0
        %4545 = vmatprep.subr.mxu0 0.0
        %4546 = vmatpush2.msra.mxu0 0.0
        %4547 = vmatprep.subr.mxu0 0.0
        %4548 = vmatpush2.msra.mxu0 0.0
        %4549 = vmatprep.subr.mxu0 0.0
        %4550 = vmatpush2.msra.mxu0 0.0
        %4551 = vmatprep.subr.mxu0 0.0
        %4552 = vmatpush2.msra.mxu0 0.0
        %4553 = vmatprep.subr.mxu0 0.0
        %4554 = vmatpush2.msra.mxu0 0.0
        %4555 = vmatprep.subr.mxu0 0.0
        %4556 = vmatpush2.msra.mxu0 0.0
        %4557 = vmatprep.subr.mxu0 0.0
        %4558 = vmatpush2.msra.mxu0 0.0
        %4559 = vmatprep.subr.mxu0 0.0
        %4560 = vmatpush2.msra.mxu0 0.0
        %4561 = vmatprep.subr.mxu0 0.0
        %4562 = vmatpush2.msra.mxu0 0.0
        %4563 = vmatprep.subr.mxu0 0.0
        %4564 = vmatpush2.msra.mxu0 0.0
        %4565 = vmatprep.subr.mxu0 0.0
        %4566 = vmatpush2.msra.mxu0 0.0
        %4567 = vmatprep.subr.mxu0 0.0
        %4568 = vmatpush2.msra.mxu0 0.0
        %4569 = vmatprep.subr.mxu0 0.0
        %4570 = vmatpush2.msra.mxu0 0.0
        %4571 = vmatprep.subr.mxu0 0.0
        %4572 = vmatpush2.msra.mxu0 0.0
        %4573 = vmatprep.mubr.f32.mxu0 0.0
        %4574 = vmatmul.mubr.f32.gmra.mxu0 %v4504
        %v4575 = vpop.f32.mrf.mxu0
        %v4576 = vadd.f32 0.0, %v4575
        %v4577 = vpop.f32.mrf.mxu0
        %4578 = vmatprep.mubr.f32.mxu0 0.0
        %4579 = vmatmul.mubr.f32.gmra.mxu0 %v4507
        %v4580 = vpop.f32.mrf.mxu0
        %v4581 = vadd.f32 0.0, %v4580
        %v4582 = vpop.f32.mrf.mxu0
        %4583 = vdwg.mxu0
        %4584 = vrot.lane.b32.xlu0 %v583, 96
        %v4585 = vpop.permute.xlu0 %4584
        %4586 = vrot.lane.b32.xlu0 %v588, 96
        %v4587 = vpop.permute.xlu0 %4586
        %v4591 = vsel %vm273, %v4042, 0
        %v4594 = vsel %vm273, %v4044, 0
        %4596 = vmatprep.subr.mxu0 0.0
        %4597 = vmatpush1.msra.mxu0 0.0
        %4598 = vmatprep.subr.mxu0 0.0
        %4599 = vmatpush1.msra.mxu0 0.0
        %4600 = vmatprep.subr.mxu0 0.0
        %4601 = vmatpush1.msra.mxu0 0.0
        %4602 = vmatprep.subr.mxu0 0.0
        %4603 = vmatpush1.msra.mxu0 0.0
        %4604 = vmatprep.subr.mxu0 0.0
        %4605 = vmatpush1.msra.mxu0 0.0
        %4606 = vmatprep.subr.mxu0 0.0
        %4607 = vmatpush1.msra.mxu0 0.0
        %4608 = vmatprep.subr.mxu0 0.0
        %4609 = vmatpush1.msra.mxu0 0.0
        %4610 = vmatprep.subr.mxu0 0.0
        %4611 = vmatpush1.msra.mxu0 0.0
        %4612 = vmatprep.subr.mxu0 0.0
        %4613 = vmatpush1.msra.mxu0 0.0
        %4614 = vmatprep.subr.mxu0 0.0
        %4615 = vmatpush1.msra.mxu0 0.0
        %4616 = vmatprep.subr.mxu0 0.0
        %4617 = vmatpush1.msra.mxu0 0.0
        %4618 = vmatprep.subr.mxu0 0.0
        %4619 = vmatpush1.msra.mxu0 0.0
        %4620 = vmatprep.subr.mxu0 0.0
        %4621 = vmatpush1.msra.mxu0 0.0
        %4622 = vmatprep.subr.mxu0 0.0
        %4623 = vmatpush1.msra.mxu0 0.0
        %4624 = vmatprep.subr.mxu0 0.0
        %4625 = vmatpush1.msra.mxu0 %v4587
        %4626 = vmatprep.subr.mxu0 0.0
        %4627 = vmatpush1.msra.mxu0 %v4585
        %4628 = vmatprep.subr.mxu0 0.0
        %4629 = vmatpush2.msra.mxu0 0.0
        %4630 = vmatprep.subr.mxu0 0.0
        %4631 = vmatpush2.msra.mxu0 0.0
        %4632 = vmatprep.subr.mxu0 0.0
        %4633 = vmatpush2.msra.mxu0 0.0
        %4634 = vmatprep.subr.mxu0 0.0
        %4635 = vmatpush2.msra.mxu0 0.0
        %4636 = vmatprep.subr.mxu0 0.0
        %4637 = vmatpush2.msra.mxu0 0.0
        %4638 = vmatprep.subr.mxu0 0.0
        %4639 = vmatpush2.msra.mxu0 0.0
        %4640 = vmatprep.subr.mxu0 0.0
        %4641 = vmatpush2.msra.mxu0 0.0
        %4642 = vmatprep.subr.mxu0 0.0
        %4643 = vmatpush2.msra.mxu0 0.0
        %4644 = vmatprep.subr.mxu0 0.0
        %4645 = vmatpush2.msra.mxu0 0.0
        %4646 = vmatprep.subr.mxu0 0.0
        %4647 = vmatpush2.msra.mxu0 0.0
        %4648 = vmatprep.subr.mxu0 0.0
        %4649 = vmatpush2.msra.mxu0 0.0
        %4650 = vmatprep.subr.mxu0 0.0
        %4651 = vmatpush2.msra.mxu0 0.0
        %4652 = vmatprep.subr.mxu0 0.0
        %4653 = vmatpush2.msra.mxu0 0.0
        %4654 = vmatprep.subr.mxu0 0.0
        %4655 = vmatpush2.msra.mxu0 0.0
        %4656 = vmatprep.subr.mxu0 0.0
        %4657 = vmatpush2.msra.mxu0 0.0
        %4658 = vmatprep.subr.mxu0 0.0
        %4659 = vmatpush2.msra.mxu0 0.0
        %4660 = vmatprep.mubr.f32.mxu0 0.0
        %4661 = vmatmul.mubr.f32.gmra.mxu0 %v4591
        %v4662 = vpop.f32.mrf.mxu0
        %v4663 = vadd.f32 0.0, %v4662
        %v4664 = vpop.f32.mrf.mxu0
        %4665 = vmatprep.mubr.f32.mxu0 0.0
        %4666 = vmatmul.mubr.f32.gmra.mxu0 %v4594
        %v4667 = vpop.f32.mrf.mxu0
        %v4668 = vadd.f32 0.0, %v4667
        %v4669 = vpop.f32.mrf.mxu0
        %4670 = vdwg.mxu0
        %4671 = vrot.lane.b32.xlu0 %v593, 96
        %v4672 = vpop.permute.xlu0 %4671
        %4673 = vrot.lane.b32.xlu0 %v598, 96
        %v4674 = vpop.permute.xlu0 %4673
        %v4678 = vsel %vm273, %v4046, 0
        %v4681 = vsel %vm273, %v4048, 0
        %4683 = vmatprep.subr.mxu0 0.0
        %4684 = vmatpush1.msra.mxu0 0.0
        %4685 = vmatprep.subr.mxu0 0.0
        %4686 = vmatpush1.msra.mxu0 0.0
        %4687 = vmatprep.subr.mxu0 0.0
        %4688 = vmatpush1.msra.mxu0 0.0
        %4689 = vmatprep.subr.mxu0 0.0
        %4690 = vmatpush1.msra.mxu0 0.0
        %4691 = vmatprep.subr.mxu0 0.0
        %4692 = vmatpush1.msra.mxu0 0.0
        %4693 = vmatprep.subr.mxu0 0.0
        %4694 = vmatpush1.msra.mxu0 0.0
        %4695 = vmatprep.subr.mxu0 0.0
        %4696 = vmatpush1.msra.mxu0 0.0
        %4697 = vmatprep.subr.mxu0 0.0
        %4698 = vmatpush1.msra.mxu0 0.0
        %4699 = vmatprep.subr.mxu0 0.0
        %4700 = vmatpush1.msra.mxu0 0.0
        %4701 = vmatprep.subr.mxu0 0.0
        %4702 = vmatpush1.msra.mxu0 0.0
        %4703 = vmatprep.subr.mxu0 0.0
        %4704 = vmatpush1.msra.mxu0 0.0
        %4705 = vmatprep.subr.mxu0 0.0
        %4706 = vmatpush1.msra.mxu0 0.0
        %4707 = vmatprep.subr.mxu0 0.0
        %4708 = vmatpush1.msra.mxu0 0.0
        %4709 = vmatprep.subr.mxu0 0.0
        %4710 = vmatpush1.msra.mxu0 0.0
        %4711 = vmatprep.subr.mxu0 0.0
        %4712 = vmatpush1.msra.mxu0 %v4674
        %4713 = vmatprep.subr.mxu0 0.0
        %4714 = vmatpush1.msra.mxu0 %v4672
        %4715 = vmatprep.subr.mxu0 0.0
        %4716 = vmatpush2.msra.mxu0 0.0
        %4717 = vmatprep.subr.mxu0 0.0
        %4718 = vmatpush2.msra.mxu0 0.0
        %4719 = vmatprep.subr.mxu0 0.0
        %4720 = vmatpush2.msra.mxu0 0.0
        %4721 = vmatprep.subr.mxu0 0.0
        %4722 = vmatpush2.msra.mxu0 0.0
        %4723 = vmatprep.subr.mxu0 0.0
        %4724 = vmatpush2.msra.mxu0 0.0
        %4725 = vmatprep.subr.mxu0 0.0
        %4726 = vmatpush2.msra.mxu0 0.0
        %4727 = vmatprep.subr.mxu0 0.0
        %4728 = vmatpush2.msra.mxu0 0.0
        %4729 = vmatprep.subr.mxu0 0.0
        %4730 = vmatpush2.msra.mxu0 0.0
        %4731 = vmatprep.subr.mxu0 0.0
        %4732 = vmatpush2.msra.mxu0 0.0
        %4733 = vmatprep.subr.mxu0 0.0
        %4734 = vmatpush2.msra.mxu0 0.0
        %4735 = vmatprep.subr.mxu0 0.0
        %4736 = vmatpush2.msra.mxu0 0.0
        %4737 = vmatprep.subr.mxu0 0.0
        %4738 = vmatpush2.msra.mxu0 0.0
        %4739 = vmatprep.subr.mxu0 0.0
        %4740 = vmatpush2.msra.mxu0 0.0
        %4741 = vmatprep.subr.mxu0 0.0
        %4742 = vmatpush2.msra.mxu0 0.0
        %4743 = vmatprep.subr.mxu0 0.0
        %4744 = vmatpush2.msra.mxu0 0.0
        %4745 = vmatprep.subr.mxu0 0.0
        %4746 = vmatpush2.msra.mxu0 0.0
        %4747 = vmatprep.mubr.f32.mxu0 0.0
        %4748 = vmatmul.mubr.f32.gmra.mxu0 %v4678
        %v4749 = vpop.f32.mrf.mxu0
        %v4750 = vadd.f32 0.0, %v4749
        %v4751 = vpop.f32.mrf.mxu0
        %4752 = vmatprep.mubr.f32.mxu0 0.0
        %4753 = vmatmul.mubr.f32.gmra.mxu0 %v4681
        %v4754 = vpop.f32.mrf.mxu0
        %v4755 = vadd.f32 0.0, %v4754
        %v4756 = vpop.f32.mrf.mxu0
        %4757 = vdwg.mxu0
        %4758 = vrot.lane.b32.xlu0 %v603, 96
        %v4759 = vpop.permute.xlu0 %4758
        %4760 = vrot.lane.b32.xlu0 %v608, 96
        %v4761 = vpop.permute.xlu0 %4760
        %v4765 = vsel %vm273, %v4050, 0
        %v4768 = vsel %vm273, %v4052, 0
        %4770 = vmatprep.subr.mxu0 0.0
        %4771 = vmatpush1.msra.mxu0 0.0
        %4772 = vmatprep.subr.mxu0 0.0
        %4773 = vmatpush1.msra.mxu0 0.0
        %4774 = vmatprep.subr.mxu0 0.0
        %4775 = vmatpush1.msra.mxu0 0.0
        %4776 = vmatprep.subr.mxu0 0.0
        %4777 = vmatpush1.msra.mxu0 0.0
        %4778 = vmatprep.subr.mxu0 0.0
        %4779 = vmatpush1.msra.mxu0 0.0
        %4780 = vmatprep.subr.mxu0 0.0
        %4781 = vmatpush1.msra.mxu0 0.0
        %4782 = vmatprep.subr.mxu0 0.0
        %4783 = vmatpush1.msra.mxu0 0.0
        %4784 = vmatprep.subr.mxu0 0.0
        %4785 = vmatpush1.msra.mxu0 0.0
        %4786 = vmatprep.subr.mxu0 0.0
        %4787 = vmatpush1.msra.mxu0 0.0
        %4788 = vmatprep.subr.mxu0 0.0
        %4789 = vmatpush1.msra.mxu0 0.0
        %4790 = vmatprep.subr.mxu0 0.0
        %4791 = vmatpush1.msra.mxu0 0.0
        %4792 = vmatprep.subr.mxu0 0.0
        %4793 = vmatpush1.msra.mxu0 0.0
        %4794 = vmatprep.subr.mxu0 0.0
        %4795 = vmatpush1.msra.mxu0 0.0
        %4796 = vmatprep.subr.mxu0 0.0
        %4797 = vmatpush1.msra.mxu0 0.0
        %4798 = vmatprep.subr.mxu0 0.0
        %4799 = vmatpush1.msra.mxu0 %v4761
        %4800 = vmatprep.subr.mxu0 0.0
        %4801 = vmatpush1.msra.mxu0 %v4759
        %4802 = vmatprep.subr.mxu0 0.0
        %4803 = vmatpush2.msra.mxu0 0.0
        %4804 = vmatprep.subr.mxu0 0.0
        %4805 = vmatpush2.msra.mxu0 0.0
        %4806 = vmatprep.subr.mxu0 0.0
        %4807 = vmatpush2.msra.mxu0 0.0
        %4808 = vmatprep.subr.mxu0 0.0
        %4809 = vmatpush2.msra.mxu0 0.0
        %4810 = vmatprep.subr.mxu0 0.0
        %4811 = vmatpush2.msra.mxu0 0.0
        %4812 = vmatprep.subr.mxu0 0.0
        %4813 = vmatpush2.msra.mxu0 0.0
        %4814 = vmatprep.subr.mxu0 0.0
        %4815 = vmatpush2.msra.mxu0 0.0
        %4816 = vmatprep.subr.mxu0 0.0
        %4817 = vmatpush2.msra.mxu0 0.0
        %4818 = vmatprep.subr.mxu0 0.0
        %4819 = vmatpush2.msra.mxu0 0.0
        %4820 = vmatprep.subr.mxu0 0.0
        %4821 = vmatpush2.msra.mxu0 0.0
        %4822 = vmatprep.subr.mxu0 0.0
        %4823 = vmatpush2.msra.mxu0 0.0
        %4824 = vmatprep.subr.mxu0 0.0
        %4825 = vmatpush2.msra.mxu0 0.0
        %4826 = vmatprep.subr.mxu0 0.0
        %4827 = vmatpush2.msra.mxu0 0.0
        %4828 = vmatprep.subr.mxu0 0.0
        %4829 = vmatpush2.msra.mxu0 0.0
        %4830 = vmatprep.subr.mxu0 0.0
        %4831 = vmatpush2.msra.mxu0 0.0
        %4832 = vmatprep.subr.mxu0 0.0
        %4833 = vmatpush2.msra.mxu0 0.0
        %4834 = vmatprep.mubr.f32.mxu0 0.0
        %4835 = vmatmul.mubr.f32.gmra.mxu0 %v4765
        %v4836 = vpop.f32.mrf.mxu0
        %v4837 = vadd.f32 0.0, %v4836
        %v4838 = vpop.f32.mrf.mxu0
        %4839 = vmatprep.mubr.f32.mxu0 0.0
        %4840 = vmatmul.mubr.f32.gmra.mxu0 %v4768
        %v4841 = vpop.f32.mrf.mxu0
        %v4842 = vadd.f32 0.0, %v4841
        %v4843 = vpop.f32.mrf.mxu0
        %4844 = vdwg.mxu0
        %4845 = vrot.lane.b32.xlu0 %v613, 96
        %v4846 = vpop.permute.xlu0 %4845
        %4847 = vrot.lane.b32.xlu0 %v618, 96
        %v4848 = vpop.permute.xlu0 %4847
        %v4852 = vsel %vm273, %v4054, 0
        %v4855 = vsel %vm273, %v4056, 0
        %4857 = vmatprep.subr.mxu0 0.0
        %4858 = vmatpush1.msra.mxu0 0.0
        %4859 = vmatprep.subr.mxu0 0.0
        %4860 = vmatpush1.msra.mxu0 0.0
        %4861 = vmatprep.subr.mxu0 0.0
        %4862 = vmatpush1.msra.mxu0 0.0
        %4863 = vmatprep.subr.mxu0 0.0
        %4864 = vmatpush1.msra.mxu0 0.0
        %4865 = vmatprep.subr.mxu0 0.0
        %4866 = vmatpush1.msra.mxu0 0.0
        %4867 = vmatprep.subr.mxu0 0.0
        %4868 = vmatpush1.msra.mxu0 0.0
        %4869 = vmatprep.subr.mxu0 0.0
        %4870 = vmatpush1.msra.mxu0 0.0
        %4871 = vmatprep.subr.mxu0 0.0
        %4872 = vmatpush1.msra.mxu0 0.0
        %4873 = vmatprep.subr.mxu0 0.0
        %4874 = vmatpush1.msra.mxu0 0.0
        %4875 = vmatprep.subr.mxu0 0.0
        %4876 = vmatpush1.msra.mxu0 0.0
        %4877 = vmatprep.subr.mxu0 0.0
        %4878 = vmatpush1.msra.mxu0 0.0
        %4879 = vmatprep.subr.mxu0 0.0
        %4880 = vmatpush1.msra.mxu0 0.0
        %4881 = vmatprep.subr.mxu0 0.0
        %4882 = vmatpush1.msra.mxu0 0.0
        %4883 = vmatprep.subr.mxu0 0.0
        %4884 = vmatpush1.msra.mxu0 0.0
        %4885 = vmatprep.subr.mxu0 0.0
        %4886 = vmatpush1.msra.mxu0 %v4848
        %4887 = vmatprep.subr.mxu0 0.0
        %4888 = vmatpush1.msra.mxu0 %v4846
        %4889 = vmatprep.subr.mxu0 0.0
        %4890 = vmatpush2.msra.mxu0 0.0
        %4891 = vmatprep.subr.mxu0 0.0
        %4892 = vmatpush2.msra.mxu0 0.0
        %4893 = vmatprep.subr.mxu0 0.0
        %4894 = vmatpush2.msra.mxu0 0.0
        %4895 = vmatprep.subr.mxu0 0.0
        %4896 = vmatpush2.msra.mxu0 0.0
        %4897 = vmatprep.subr.mxu0 0.0
        %4898 = vmatpush2.msra.mxu0 0.0
        %4899 = vmatprep.subr.mxu0 0.0
        %4900 = vmatpush2.msra.mxu0 0.0
        %4901 = vmatprep.subr.mxu0 0.0
        %4902 = vmatpush2.msra.mxu0 0.0
        %4903 = vmatprep.subr.mxu0 0.0
        %4904 = vmatpush2.msra.mxu0 0.0
        %4905 = vmatprep.subr.mxu0 0.0
        %4906 = vmatpush2.msra.mxu0 0.0
        %4907 = vmatprep.subr.mxu0 0.0
        %4908 = vmatpush2.msra.mxu0 0.0
        %4909 = vmatprep.subr.mxu0 0.0
        %4910 = vmatpush2.msra.mxu0 0.0
        %4911 = vmatprep.subr.mxu0 0.0
        %4912 = vmatpush2.msra.mxu0 0.0
        %4913 = vmatprep.subr.mxu0 0.0
        %4914 = vmatpush2.msra.mxu0 0.0
        %4915 = vmatprep.subr.mxu0 0.0
        %4916 = vmatpush2.msra.mxu0 0.0
        %4917 = vmatprep.subr.mxu0 0.0
        %4918 = vmatpush2.msra.mxu0 0.0
        %4919 = vmatprep.subr.mxu0 0.0
        %4920 = vmatpush2.msra.mxu0 0.0
        %4921 = vmatprep.mubr.f32.mxu0 0.0
        %4922 = vmatmul.mubr.f32.gmra.mxu0 %v4852
        %v4923 = vpop.f32.mrf.mxu0
        %v4924 = vadd.f32 0.0, %v4923
        %v4925 = vpop.f32.mrf.mxu0
        %4926 = vmatprep.mubr.f32.mxu0 0.0
        %4927 = vmatmul.mubr.f32.gmra.mxu0 %v4855
        %v4928 = vpop.f32.mrf.mxu0
        %v4929 = vadd.f32 0.0, %v4928
        %v4930 = vpop.f32.mrf.mxu0
        %4931 = vdwg.mxu0
        %4932 = vrot.lane.b32.xlu0 %v623, 96
        %v4933 = vpop.permute.xlu0 %4932
        %4934 = vrot.lane.b32.xlu0 %v628, 96
        %v4935 = vpop.permute.xlu0 %4934
        %v4939 = vsel %vm273, %v4058, 0
        %v4942 = vsel %vm273, %v4060, 0
        %4944 = vmatprep.subr.mxu0 0.0
        %4945 = vmatpush1.msra.mxu0 0.0
        %4946 = vmatprep.subr.mxu0 0.0
        %4947 = vmatpush1.msra.mxu0 0.0
        %4948 = vmatprep.subr.mxu0 0.0
        %4949 = vmatpush1.msra.mxu0 0.0
        %4950 = vmatprep.subr.mxu0 0.0
        %4951 = vmatpush1.msra.mxu0 0.0
        %4952 = vmatprep.subr.mxu0 0.0
        %4953 = vmatpush1.msra.mxu0 0.0
        %4954 = vmatprep.subr.mxu0 0.0
        %4955 = vmatpush1.msra.mxu0 0.0
        %4956 = vmatprep.subr.mxu0 0.0
        %4957 = vmatpush1.msra.mxu0 0.0
        %4958 = vmatprep.subr.mxu0 0.0
        %4959 = vmatpush1.msra.mxu0 0.0
        %4960 = vmatprep.subr.mxu0 0.0
        %4961 = vmatpush1.msra.mxu0 0.0
        %4962 = vmatprep.subr.mxu0 0.0
        %4963 = vmatpush1.msra.mxu0 0.0
        %4964 = vmatprep.subr.mxu0 0.0
        %4965 = vmatpush1.msra.mxu0 0.0
        %4966 = vmatprep.subr.mxu0 0.0
        %4967 = vmatpush1.msra.mxu0 0.0
        %4968 = vmatprep.subr.mxu0 0.0
        %4969 = vmatpush1.msra.mxu0 0.0
        %4970 = vmatprep.subr.mxu0 0.0
        %4971 = vmatpush1.msra.mxu0 0.0
        %4972 = vmatprep.subr.mxu0 0.0
        %4973 = vmatpush1.msra.mxu0 %v4935
        %4974 = vmatprep.subr.mxu0 0.0
        %4975 = vmatpush1.msra.mxu0 %v4933
        %4976 = vmatprep.subr.mxu0 0.0
        %4977 = vmatpush2.msra.mxu0 0.0
        %4978 = vmatprep.subr.mxu0 0.0
        %4979 = vmatpush2.msra.mxu0 0.0
        %4980 = vmatprep.subr.mxu0 0.0
        %4981 = vmatpush2.msra.mxu0 0.0
        %4982 = vmatprep.subr.mxu0 0.0
        %4983 = vmatpush2.msra.mxu0 0.0
        %4984 = vmatprep.subr.mxu0 0.0
        %4985 = vmatpush2.msra.mxu0 0.0
        %4986 = vmatprep.subr.mxu0 0.0
        %4987 = vmatpush2.msra.mxu0 0.0
        %4988 = vmatprep.subr.mxu0 0.0
        %4989 = vmatpush2.msra.mxu0 0.0
        %4990 = vmatprep.subr.mxu0 0.0
        %4991 = vmatpush2.msra.mxu0 0.0
        %4992 = vmatprep.subr.mxu0 0.0
        %4993 = vmatpush2.msra.mxu0 0.0
        %4994 = vmatprep.subr.mxu0 0.0
        %4995 = vmatpush2.msra.mxu0 0.0
        %4996 = vmatprep.subr.mxu0 0.0
        %4997 = vmatpush2.msra.mxu0 0.0
        %4998 = vmatprep.subr.mxu0 0.0
        %4999 = vmatpush2.msra.mxu0 0.0
        %5000 = vmatprep.subr.mxu0 0.0
        %5001 = vmatpush2.msra.mxu0 0.0
        %5002 = vmatprep.subr.mxu0 0.0
        %5003 = vmatpush2.msra.mxu0 0.0
        %5004 = vmatprep.subr.mxu0 0.0
        %5005 = vmatpush2.msra.mxu0 0.0
        %5006 = vmatprep.subr.mxu0 0.0
        %5007 = vmatpush2.msra.mxu0 0.0
        %5008 = vmatprep.mubr.f32.mxu0 0.0
        %5009 = vmatmul.mubr.f32.gmra.mxu0 %v4939
        %v5010 = vpop.f32.mrf.mxu0
        %v5011 = vadd.f32 0.0, %v5010
        %v5012 = vpop.f32.mrf.mxu0
        %5013 = vmatprep.mubr.f32.mxu0 0.0
        %5014 = vmatmul.mubr.f32.gmra.mxu0 %v4942
        %v5015 = vpop.f32.mrf.mxu0
        %v5016 = vadd.f32 0.0, %v5015
        %v5017 = vpop.f32.mrf.mxu0
        %5018 = vdwg.mxu0
        %5019 = vrot.lane.b32.xlu0 %v633, 96
        %v5020 = vpop.permute.xlu0 %5019
        %5021 = vrot.lane.b32.xlu0 %v638, 96
        %v5022 = vpop.permute.xlu0 %5021
        %v5026 = vsel %vm273, %v4062, 0
        %v5029 = vsel %vm273, %v4064, 0
        %5031 = vmatprep.subr.mxu0 0.0
        %5032 = vmatpush1.msra.mxu0 0.0
        %5033 = vmatprep.subr.mxu0 0.0
        %5034 = vmatpush1.msra.mxu0 0.0
        %5035 = vmatprep.subr.mxu0 0.0
        %5036 = vmatpush1.msra.mxu0 0.0
        %5037 = vmatprep.subr.mxu0 0.0
        %5038 = vmatpush1.msra.mxu0 0.0
        %5039 = vmatprep.subr.mxu0 0.0
        %5040 = vmatpush1.msra.mxu0 0.0
        %5041 = vmatprep.subr.mxu0 0.0
        %5042 = vmatpush1.msra.mxu0 0.0
        %5043 = vmatprep.subr.mxu0 0.0
        %5044 = vmatpush1.msra.mxu0 0.0
        %5045 = vmatprep.subr.mxu0 0.0
        %5046 = vmatpush1.msra.mxu0 0.0
        %5047 = vmatprep.subr.mxu0 0.0
        %5048 = vmatpush1.msra.mxu0 0.0
        %5049 = vmatprep.subr.mxu0 0.0
        %5050 = vmatpush1.msra.mxu0 0.0
        %5051 = vmatprep.subr.mxu0 0.0
        %5052 = vmatpush1.msra.mxu0 0.0
        %5053 = vmatprep.subr.mxu0 0.0
        %5054 = vmatpush1.msra.mxu0 0.0
        %5055 = vmatprep.subr.mxu0 0.0
        %5056 = vmatpush1.msra.mxu0 0.0
        %5057 = vmatprep.subr.mxu0 0.0
        %5058 = vmatpush1.msra.mxu0 0.0
        %5059 = vmatprep.subr.mxu0 0.0
        %5060 = vmatpush1.msra.mxu0 %v5022
        %5061 = vmatprep.subr.mxu0 0.0
        %5062 = vmatpush1.msra.mxu0 %v5020
        %5063 = vmatprep.subr.mxu0 0.0
        %5064 = vmatpush2.msra.mxu0 0.0
        %5065 = vmatprep.subr.mxu0 0.0
        %5066 = vmatpush2.msra.mxu0 0.0
        %5067 = vmatprep.subr.mxu0 0.0
        %5068 = vmatpush2.msra.mxu0 0.0
        %5069 = vmatprep.subr.mxu0 0.0
        %5070 = vmatpush2.msra.mxu0 0.0
        %5071 = vmatprep.subr.mxu0 0.0
        %5072 = vmatpush2.msra.mxu0 0.0
        %5073 = vmatprep.subr.mxu0 0.0
        %5074 = vmatpush2.msra.mxu0 0.0
        %5075 = vmatprep.subr.mxu0 0.0
        %5076 = vmatpush2.msra.mxu0 0.0
        %5077 = vmatprep.subr.mxu0 0.0
        %5078 = vmatpush2.msra.mxu0 0.0
        %5079 = vmatprep.subr.mxu0 0.0
        %5080 = vmatpush2.msra.mxu0 0.0
        %5081 = vmatprep.subr.mxu0 0.0
        %5082 = vmatpush2.msra.mxu0 0.0
        %5083 = vmatprep.subr.mxu0 0.0
        %5084 = vmatpush2.msra.mxu0 0.0
        %5085 = vmatprep.subr.mxu0 0.0
        %5086 = vmatpush2.msra.mxu0 0.0
        %5087 = vmatprep.subr.mxu0 0.0
        %5088 = vmatpush2.msra.mxu0 0.0
        %5089 = vmatprep.subr.mxu0 0.0
        %5090 = vmatpush2.msra.mxu0 0.0
        %5091 = vmatprep.subr.mxu0 0.0
        %5092 = vmatpush2.msra.mxu0 0.0
        %5093 = vmatprep.subr.mxu0 0.0
        %5094 = vmatpush2.msra.mxu0 0.0
        %5095 = vmatprep.mubr.f32.mxu0 0.0
        %5096 = vmatmul.mubr.f32.gmra.mxu0 %v5026
        %v5097 = vpop.f32.mrf.mxu0
        %v5098 = vadd.f32 0.0, %v5097
        %v5099 = vpop.f32.mrf.mxu0
        %5100 = vmatprep.mubr.f32.mxu0 0.0
        %5101 = vmatmul.mubr.f32.gmra.mxu0 %v5029
        %v5102 = vpop.f32.mrf.mxu0
        %v5103 = vadd.f32 0.0, %v5102
        %v5104 = vpop.f32.mrf.mxu0
        %5105 = vdwg.mxu0
        %5106 = vrot.lane.b32.xlu0 %v643, 96
        %v5107 = vpop.permute.xlu0 %5106
        %5108 = vrot.lane.b32.xlu0 %v648, 96
        %v5109 = vpop.permute.xlu0 %5108
        %v5113 = vsel %vm273, %v4066, 0
        %v5116 = vsel %vm273, %v4068, 0
        %5118 = vmatprep.subr.mxu0 0.0
        %5119 = vmatpush1.msra.mxu0 0.0
        %5120 = vmatprep.subr.mxu0 0.0
        %5121 = vmatpush1.msra.mxu0 0.0
        %5122 = vmatprep.subr.mxu0 0.0
        %5123 = vmatpush1.msra.mxu0 0.0
        %5124 = vmatprep.subr.mxu0 0.0
        %5125 = vmatpush1.msra.mxu0 0.0
        %5126 = vmatprep.subr.mxu0 0.0
        %5127 = vmatpush1.msra.mxu0 0.0
        %5128 = vmatprep.subr.mxu0 0.0
        %5129 = vmatpush1.msra.mxu0 0.0
        %5130 = vmatprep.subr.mxu0 0.0
        %5131 = vmatpush1.msra.mxu0 0.0
        %5132 = vmatprep.subr.mxu0 0.0
        %5133 = vmatpush1.msra.mxu0 0.0
        %5134 = vmatprep.subr.mxu0 0.0
        %5135 = vmatpush1.msra.mxu0 0.0
        %5136 = vmatprep.subr.mxu0 0.0
        %5137 = vmatpush1.msra.mxu0 0.0
        %5138 = vmatprep.subr.mxu0 0.0
        %5139 = vmatpush1.msra.mxu0 0.0
        %5140 = vmatprep.subr.mxu0 0.0
        %5141 = vmatpush1.msra.mxu0 0.0
        %5142 = vmatprep.subr.mxu0 0.0
        %5143 = vmatpush1.msra.mxu0 0.0
        %5144 = vmatprep.subr.mxu0 0.0
        %5145 = vmatpush1.msra.mxu0 0.0
        %5146 = vmatprep.subr.mxu0 0.0
        %5147 = vmatpush1.msra.mxu0 %v5109
        %5148 = vmatprep.subr.mxu0 0.0
        %5149 = vmatpush1.msra.mxu0 %v5107
        %5150 = vmatprep.subr.mxu0 0.0
        %5151 = vmatpush2.msra.mxu0 0.0
        %5152 = vmatprep.subr.mxu0 0.0
        %5153 = vmatpush2.msra.mxu0 0.0
        %5154 = vmatprep.subr.mxu0 0.0
        %5155 = vmatpush2.msra.mxu0 0.0
        %5156 = vmatprep.subr.mxu0 0.0
        %5157 = vmatpush2.msra.mxu0 0.0
        %5158 = vmatprep.subr.mxu0 0.0
        %5159 = vmatpush2.msra.mxu0 0.0
        %5160 = vmatprep.subr.mxu0 0.0
        %5161 = vmatpush2.msra.mxu0 0.0
        %5162 = vmatprep.subr.mxu0 0.0
        %5163 = vmatpush2.msra.mxu0 0.0
        %5164 = vmatprep.subr.mxu0 0.0
        %5165 = vmatpush2.msra.mxu0 0.0
        %5166 = vmatprep.subr.mxu0 0.0
        %5167 = vmatpush2.msra.mxu0 0.0
        %5168 = vmatprep.subr.mxu0 0.0
        %5169 = vmatpush2.msra.mxu0 0.0
        %5170 = vmatprep.subr.mxu0 0.0
        %5171 = vmatpush2.msra.mxu0 0.0
        %5172 = vmatprep.subr.mxu0 0.0
        %5173 = vmatpush2.msra.mxu0 0.0
        %5174 = vmatprep.subr.mxu0 0.0
        %5175 = vmatpush2.msra.mxu0 0.0
        %5176 = vmatprep.subr.mxu0 0.0
        %5177 = vmatpush2.msra.mxu0 0.0
        %5178 = vmatprep.subr.mxu0 0.0
        %5179 = vmatpush2.msra.mxu0 0.0
        %5180 = vmatprep.subr.mxu0 0.0
        %5181 = vmatpush2.msra.mxu0 0.0
        %5182 = vmatprep.mubr.f32.mxu0 0.0
        %5183 = vmatmul.mubr.f32.gmra.mxu0 %v5113
        %v5184 = vpop.f32.mrf.mxu0
        %v5185 = vadd.f32 0.0, %v5184
        %v5186 = vpop.f32.mrf.mxu0
        %5187 = vmatprep.mubr.f32.mxu0 0.0
        %5188 = vmatmul.mubr.f32.gmra.mxu0 %v5116
        %v5189 = vpop.f32.mrf.mxu0
        %v5190 = vadd.f32 0.0, %v5189
        %v5191 = vpop.f32.mrf.mxu0
        %5192 = vdwg.mxu0
        %5193 = vrot.lane.b32.xlu0 %v653, 96
        %v5194 = vpop.permute.xlu0 %5193
        %5195 = vrot.lane.b32.xlu0 %v658, 96
        %v5196 = vpop.permute.xlu0 %5195
        %v5200 = vsel %vm273, %v4070, 0
        %v5203 = vsel %vm273, %v4072, 0
        %5205 = vmatprep.subr.mxu0 0.0
        %5206 = vmatpush1.msra.mxu0 0.0
        %5207 = vmatprep.subr.mxu0 0.0
        %5208 = vmatpush1.msra.mxu0 0.0
        %5209 = vmatprep.subr.mxu0 0.0
        %5210 = vmatpush1.msra.mxu0 0.0
        %5211 = vmatprep.subr.mxu0 0.0
        %5212 = vmatpush1.msra.mxu0 0.0
        %5213 = vmatprep.subr.mxu0 0.0
        %5214 = vmatpush1.msra.mxu0 0.0
        %5215 = vmatprep.subr.mxu0 0.0
        %5216 = vmatpush1.msra.mxu0 0.0
        %5217 = vmatprep.subr.mxu0 0.0
        %5218 = vmatpush1.msra.mxu0 0.0
        %5219 = vmatprep.subr.mxu0 0.0
        %5220 = vmatpush1.msra.mxu0 0.0
        %5221 = vmatprep.subr.mxu0 0.0
        %5222 = vmatpush1.msra.mxu0 0.0
        %5223 = vmatprep.subr.mxu0 0.0
        %5224 = vmatpush1.msra.mxu0 0.0
        %5225 = vmatprep.subr.mxu0 0.0
        %5226 = vmatpush1.msra.mxu0 0.0
        %5227 = vmatprep.subr.mxu0 0.0
        %5228 = vmatpush1.msra.mxu0 0.0
        %5229 = vmatprep.subr.mxu0 0.0
        %5230 = vmatpush1.msra.mxu0 0.0
        %5231 = vmatprep.subr.mxu0 0.0
        %5232 = vmatpush1.msra.mxu0 0.0
        %5233 = vmatprep.subr.mxu0 0.0
        %5234 = vmatpush1.msra.mxu0 %v5196
        %5235 = vmatprep.subr.mxu0 0.0
        %5236 = vmatpush1.msra.mxu0 %v5194
        %5237 = vmatprep.subr.mxu0 0.0
        %5238 = vmatpush2.msra.mxu0 0.0
        %5239 = vmatprep.subr.mxu0 0.0
        %5240 = vmatpush2.msra.mxu0 0.0
        %5241 = vmatprep.subr.mxu0 0.0
        %5242 = vmatpush2.msra.mxu0 0.0
        %5243 = vmatprep.subr.mxu0 0.0
        %5244 = vmatpush2.msra.mxu0 0.0
        %5245 = vmatprep.subr.mxu0 0.0
        %5246 = vmatpush2.msra.mxu0 0.0
        %5247 = vmatprep.subr.mxu0 0.0
        %5248 = vmatpush2.msra.mxu0 0.0
        %5249 = vmatprep.subr.mxu0 0.0
        %5250 = vmatpush2.msra.mxu0 0.0
        %5251 = vmatprep.subr.mxu0 0.0
        %5252 = vmatpush2.msra.mxu0 0.0
        %5253 = vmatprep.subr.mxu0 0.0
        %5254 = vmatpush2.msra.mxu0 0.0
        %5255 = vmatprep.subr.mxu0 0.0
        %5256 = vmatpush2.msra.mxu0 0.0
        %5257 = vmatprep.subr.mxu0 0.0
        %5258 = vmatpush2.msra.mxu0 0.0
        %5259 = vmatprep.subr.mxu0 0.0
        %5260 = vmatpush2.msra.mxu0 0.0
        %5261 = vmatprep.subr.mxu0 0.0
        %5262 = vmatpush2.msra.mxu0 0.0
        %5263 = vmatprep.subr.mxu0 0.0
        %5264 = vmatpush2.msra.mxu0 0.0
        %5265 = vmatprep.subr.mxu0 0.0
        %5266 = vmatpush2.msra.mxu0 0.0
        %5267 = vmatprep.subr.mxu0 0.0
        %5268 = vmatpush2.msra.mxu0 0.0
        %5269 = vmatprep.mubr.f32.mxu0 0.0
        %5270 = vmatmul.mubr.f32.gmra.mxu0 %v5200
        %v5271 = vpop.f32.mrf.mxu0
        %v5272 = vadd.f32 0.0, %v5271
        %v5273 = vpop.f32.mrf.mxu0
        %5274 = vmatprep.mubr.f32.mxu0 0.0
        %5275 = vmatmul.mubr.f32.gmra.mxu0 %v5203
        %v5276 = vpop.f32.mrf.mxu0
        %v5277 = vadd.f32 0.0, %v5276
        %v5278 = vpop.f32.mrf.mxu0
        %5279 = vdwg.mxu0
        %5280 = vrot.lane.b32.xlu0 %v663, 96
        %v5281 = vpop.permute.xlu0 %5280
        %5282 = vrot.lane.b32.xlu0 %v668, 96
        %v5283 = vpop.permute.xlu0 %5282
        %v5287 = vsel %vm273, %v4074, 0
        %v5290 = vsel %vm273, %v4076, 0
        %5292 = vmatprep.subr.mxu0 0.0
        %5293 = vmatpush1.msra.mxu0 0.0
        %5294 = vmatprep.subr.mxu0 0.0
        %5295 = vmatpush1.msra.mxu0 0.0
        %5296 = vmatprep.subr.mxu0 0.0
        %5297 = vmatpush1.msra.mxu0 0.0
        %5298 = vmatprep.subr.mxu0 0.0
        %5299 = vmatpush1.msra.mxu0 0.0
        %5300 = vmatprep.subr.mxu0 0.0
        %5301 = vmatpush1.msra.mxu0 0.0
        %5302 = vmatprep.subr.mxu0 0.0
        %5303 = vmatpush1.msra.mxu0 0.0
        %5304 = vmatprep.subr.mxu0 0.0
        %5305 = vmatpush1.msra.mxu0 0.0
        %5306 = vmatprep.subr.mxu0 0.0
        %5307 = vmatpush1.msra.mxu0 0.0
        %5308 = vmatprep.subr.mxu0 0.0
        %5309 = vmatpush1.msra.mxu0 0.0
        %5310 = vmatprep.subr.mxu0 0.0
        %5311 = vmatpush1.msra.mxu0 0.0
        %5312 = vmatprep.subr.mxu0 0.0
        %5313 = vmatpush1.msra.mxu0 0.0
        %5314 = vmatprep.subr.mxu0 0.0
        %5315 = vmatpush1.msra.mxu0 0.0
        %5316 = vmatprep.subr.mxu0 0.0
        %5317 = vmatpush1.msra.mxu0 0.0
        %5318 = vmatprep.subr.mxu0 0.0
        %5319 = vmatpush1.msra.mxu0 0.0
        %5320 = vmatprep.subr.mxu0 0.0
        %5321 = vmatpush1.msra.mxu0 %v5283
        %5322 = vmatprep.subr.mxu0 0.0
        %5323 = vmatpush1.msra.mxu0 %v5281
        %5324 = vmatprep.subr.mxu0 0.0
        %5325 = vmatpush2.msra.mxu0 0.0
        %5326 = vmatprep.subr.mxu0 0.0
        %5327 = vmatpush2.msra.mxu0 0.0
        %5328 = vmatprep.subr.mxu0 0.0
        %5329 = vmatpush2.msra.mxu0 0.0
        %5330 = vmatprep.subr.mxu0 0.0
        %5331 = vmatpush2.msra.mxu0 0.0
        %5332 = vmatprep.subr.mxu0 0.0
        %5333 = vmatpush2.msra.mxu0 0.0
        %5334 = vmatprep.subr.mxu0 0.0
        %5335 = vmatpush2.msra.mxu0 0.0
        %5336 = vmatprep.subr.mxu0 0.0
        %5337 = vmatpush2.msra.mxu0 0.0
        %5338 = vmatprep.subr.mxu0 0.0
        %5339 = vmatpush2.msra.mxu0 0.0
        %5340 = vmatprep.subr.mxu0 0.0
        %5341 = vmatpush2.msra.mxu0 0.0
        %5342 = vmatprep.subr.mxu0 0.0
        %5343 = vmatpush2.msra.mxu0 0.0
        %5344 = vmatprep.subr.mxu0 0.0
        %5345 = vmatpush2.msra.mxu0 0.0
        %5346 = vmatprep.subr.mxu0 0.0
        %5347 = vmatpush2.msra.mxu0 0.0
        %5348 = vmatprep.subr.mxu0 0.0
        %5349 = vmatpush2.msra.mxu0 0.0
        %5350 = vmatprep.subr.mxu0 0.0
        %5351 = vmatpush2.msra.mxu0 0.0
        %5352 = vmatprep.subr.mxu0 0.0
        %5353 = vmatpush2.msra.mxu0 0.0
        %5354 = vmatprep.subr.mxu0 0.0
        %5355 = vmatpush2.msra.mxu0 0.0
        %5356 = vmatprep.mubr.f32.mxu0 0.0
        %5357 = vmatmul.mubr.f32.gmra.mxu0 %v5287
        %v5358 = vpop.f32.mrf.mxu0
        %v5359 = vadd.f32 0.0, %v5358
        %v5360 = vpop.f32.mrf.mxu0
        %5361 = vmatprep.mubr.f32.mxu0 0.0
        %5362 = vmatmul.mubr.f32.gmra.mxu0 %v5290
        %v5363 = vpop.f32.mrf.mxu0
        %v5364 = vadd.f32 0.0, %v5363
        %v5365 = vpop.f32.mrf.mxu0
        %5366 = vdwg.mxu0
        %5367 = vrot.lane.b32.xlu0 %v673, 96
        %v5368 = vpop.permute.xlu0 %5367
        %5369 = vrot.lane.b32.xlu0 %v678, 96
        %v5370 = vpop.permute.xlu0 %5369
        %v5374 = vsel %vm273, %v4078, 0
        %v5377 = vsel %vm273, %v4080, 0
        %5379 = vmatprep.subr.mxu0 0.0
        %5380 = vmatpush1.msra.mxu0 0.0
        %5381 = vmatprep.subr.mxu0 0.0
        %5382 = vmatpush1.msra.mxu0 0.0
        %5383 = vmatprep.subr.mxu0 0.0
        %5384 = vmatpush1.msra.mxu0 0.0
        %5385 = vmatprep.subr.mxu0 0.0
        %5386 = vmatpush1.msra.mxu0 0.0
        %5387 = vmatprep.subr.mxu0 0.0
        %5388 = vmatpush1.msra.mxu0 0.0
        %5389 = vmatprep.subr.mxu0 0.0
        %5390 = vmatpush1.msra.mxu0 0.0
        %5391 = vmatprep.subr.mxu0 0.0
        %5392 = vmatpush1.msra.mxu0 0.0
        %5393 = vmatprep.subr.mxu0 0.0
        %5394 = vmatpush1.msra.mxu0 0.0
        %5395 = vmatprep.subr.mxu0 0.0
        %5396 = vmatpush1.msra.mxu0 0.0
        %5397 = vmatprep.subr.mxu0 0.0
        %5398 = vmatpush1.msra.mxu0 0.0
        %5399 = vmatprep.subr.mxu0 0.0
        %5400 = vmatpush1.msra.mxu0 0.0
        %5401 = vmatprep.subr.mxu0 0.0
        %5402 = vmatpush1.msra.mxu0 0.0
        %5403 = vmatprep.subr.mxu0 0.0
        %5404 = vmatpush1.msra.mxu0 0.0
        %5405 = vmatprep.subr.mxu0 0.0
        %5406 = vmatpush1.msra.mxu0 0.0
        %5407 = vmatprep.subr.mxu0 0.0
        %5408 = vmatpush1.msra.mxu0 %v5370
        %5409 = vmatprep.subr.mxu0 0.0
        %5410 = vmatpush1.msra.mxu0 %v5368
        %5411 = vmatprep.subr.mxu0 0.0
        %5412 = vmatpush2.msra.mxu0 0.0
        %5413 = vmatprep.subr.mxu0 0.0
        %5414 = vmatpush2.msra.mxu0 0.0
        %5415 = vmatprep.subr.mxu0 0.0
        %5416 = vmatpush2.msra.mxu0 0.0
        %5417 = vmatprep.subr.mxu0 0.0
        %5418 = vmatpush2.msra.mxu0 0.0
        %5419 = vmatprep.subr.mxu0 0.0
        %5420 = vmatpush2.msra.mxu0 0.0
        %5421 = vmatprep.subr.mxu0 0.0
        %5422 = vmatpush2.msra.mxu0 0.0
        %5423 = vmatprep.subr.mxu0 0.0
        %5424 = vmatpush2.msra.mxu0 0.0
        %5425 = vmatprep.subr.mxu0 0.0
        %5426 = vmatpush2.msra.mxu0 0.0
        %5427 = vmatprep.subr.mxu0 0.0
        %5428 = vmatpush2.msra.mxu0 0.0
        %5429 = vmatprep.subr.mxu0 0.0
        %5430 = vmatpush2.msra.mxu0 0.0
        %5431 = vmatprep.subr.mxu0 0.0
        %5432 = vmatpush2.msra.mxu0 0.0
        %5433 = vmatprep.subr.mxu0 0.0
        %5434 = vmatpush2.msra.mxu0 0.0
        %5435 = vmatprep.subr.mxu0 0.0
        %5436 = vmatpush2.msra.mxu0 0.0
        %5437 = vmatprep.subr.mxu0 0.0
        %5438 = vmatpush2.msra.mxu0 0.0
        %5439 = vmatprep.subr.mxu0 0.0
        %5440 = vmatpush2.msra.mxu0 0.0
        %5441 = vmatprep.subr.mxu0 0.0
        %5442 = vmatpush2.msra.mxu0 0.0
        %5443 = vmatprep.mubr.f32.mxu0 0.0
        %5444 = vmatmul.mubr.f32.gmra.mxu0 %v5374
        %v5445 = vpop.f32.mrf.mxu0
        %v5446 = vadd.f32 0.0, %v5445
        %v5447 = vpop.f32.mrf.mxu0
        %5448 = vmatprep.mubr.f32.mxu0 0.0
        %5449 = vmatmul.mubr.f32.gmra.mxu0 %v5377
        %v5450 = vpop.f32.mrf.mxu0
        %v5451 = vadd.f32 0.0, %v5450
        %v5452 = vpop.f32.mrf.mxu0
        %5453 = vdwg.mxu0
        %5454 = vrot.lane.b32.xlu0 %v683, 96
        %v5455 = vpop.permute.xlu0 %5454
        %5456 = vrot.lane.b32.xlu0 %v688, 96
        %v5457 = vpop.permute.xlu0 %5456
        %v5461 = vsel %vm273, %v4082, 0
        %v5464 = vsel %vm273, %v4084, 0
        %5466 = vmatprep.subr.mxu0 0.0
        %5467 = vmatpush1.msra.mxu0 0.0
        %5468 = vmatprep.subr.mxu0 0.0
        %5469 = vmatpush1.msra.mxu0 0.0
        %5470 = vmatprep.subr.mxu0 0.0
        %5471 = vmatpush1.msra.mxu0 0.0
        %5472 = vmatprep.subr.mxu0 0.0
        %5473 = vmatpush1.msra.mxu0 0.0
        %5474 = vmatprep.subr.mxu0 0.0
        %5475 = vmatpush1.msra.mxu0 0.0
        %5476 = vmatprep.subr.mxu0 0.0
        %5477 = vmatpush1.msra.mxu0 0.0
        %5478 = vmatprep.subr.mxu0 0.0
        %5479 = vmatpush1.msra.mxu0 0.0
        %5480 = vmatprep.subr.mxu0 0.0
        %5481 = vmatpush1.msra.mxu0 0.0
        %5482 = vmatprep.subr.mxu0 0.0
        %5483 = vmatpush1.msra.mxu0 0.0
        %5484 = vmatprep.subr.mxu0 0.0
        %5485 = vmatpush1.msra.mxu0 0.0
        %5486 = vmatprep.subr.mxu0 0.0
        %5487 = vmatpush1.msra.mxu0 0.0
        %5488 = vmatprep.subr.mxu0 0.0
        %5489 = vmatpush1.msra.mxu0 0.0
        %5490 = vmatprep.subr.mxu0 0.0
        %5491 = vmatpush1.msra.mxu0 0.0
        %5492 = vmatprep.subr.mxu0 0.0
        %5493 = vmatpush1.msra.mxu0 0.0
        %5494 = vmatprep.subr.mxu0 0.0
        %5495 = vmatpush1.msra.mxu0 %v5457
        %5496 = vmatprep.subr.mxu0 0.0
        %5497 = vmatpush1.msra.mxu0 %v5455
        %5498 = vmatprep.subr.mxu0 0.0
        %5499 = vmatpush2.msra.mxu0 0.0
        %5500 = vmatprep.subr.mxu0 0.0
        %5501 = vmatpush2.msra.mxu0 0.0
        %5502 = vmatprep.subr.mxu0 0.0
        %5503 = vmatpush2.msra.mxu0 0.0
        %5504 = vmatprep.subr.mxu0 0.0
        %5505 = vmatpush2.msra.mxu0 0.0
        %5506 = vmatprep.subr.mxu0 0.0
        %5507 = vmatpush2.msra.mxu0 0.0
        %5508 = vmatprep.subr.mxu0 0.0
        %5509 = vmatpush2.msra.mxu0 0.0
        %5510 = vmatprep.subr.mxu0 0.0
        %5511 = vmatpush2.msra.mxu0 0.0
        %5512 = vmatprep.subr.mxu0 0.0
        %5513 = vmatpush2.msra.mxu0 0.0
        %5514 = vmatprep.subr.mxu0 0.0
        %5515 = vmatpush2.msra.mxu0 0.0
        %5516 = vmatprep.subr.mxu0 0.0
        %5517 = vmatpush2.msra.mxu0 0.0
        %5518 = vmatprep.subr.mxu0 0.0
        %5519 = vmatpush2.msra.mxu0 0.0
        %5520 = vmatprep.subr.mxu0 0.0
        %5521 = vmatpush2.msra.mxu0 0.0
        %5522 = vmatprep.subr.mxu0 0.0
        %5523 = vmatpush2.msra.mxu0 0.0
        %5524 = vmatprep.subr.mxu0 0.0
        %5525 = vmatpush2.msra.mxu0 0.0
        %5526 = vmatprep.subr.mxu0 0.0
        %5527 = vmatpush2.msra.mxu0 0.0
        %5528 = vmatprep.subr.mxu0 0.0
        %5529 = vmatpush2.msra.mxu0 0.0
        %5530 = vmatprep.mubr.f32.mxu0 0.0
        %5531 = vmatmul.mubr.f32.gmra.mxu0 %v5461
        %v5532 = vpop.f32.mrf.mxu0
        %v5533 = vadd.f32 0.0, %v5532
        %v5534 = vpop.f32.mrf.mxu0
        %5535 = vmatprep.mubr.f32.mxu0 0.0
        %5536 = vmatmul.mubr.f32.gmra.mxu0 %v5464
        %v5537 = vpop.f32.mrf.mxu0
        %v5538 = vadd.f32 0.0, %v5537
        %v5539 = vpop.f32.mrf.mxu0
        %5540 = vdwg.mxu0
        %5541 = vrot.lane.b32.xlu0 %v693, 96
        %v5542 = vpop.permute.xlu0 %5541
        %5543 = vrot.lane.b32.xlu0 %v698, 96
        %v5544 = vpop.permute.xlu0 %5543
        %v5548 = vsel %vm273, %v4086, 0
        %v5551 = vsel %vm273, %v4088, 0
        %5553 = vmatprep.subr.mxu0 0.0
        %5554 = vmatpush1.msra.mxu0 0.0
        %5555 = vmatprep.subr.mxu0 0.0
        %5556 = vmatpush1.msra.mxu0 0.0
        %5557 = vmatprep.subr.mxu0 0.0
        %5558 = vmatpush1.msra.mxu0 0.0
        %5559 = vmatprep.subr.mxu0 0.0
        %5560 = vmatpush1.msra.mxu0 0.0
        %5561 = vmatprep.subr.mxu0 0.0
        %5562 = vmatpush1.msra.mxu0 0.0
        %5563 = vmatprep.subr.mxu0 0.0
        %5564 = vmatpush1.msra.mxu0 0.0
        %5565 = vmatprep.subr.mxu0 0.0
        %5566 = vmatpush1.msra.mxu0 0.0
        %5567 = vmatprep.subr.mxu0 0.0
        %5568 = vmatpush1.msra.mxu0 0.0
        %5569 = vmatprep.subr.mxu0 0.0
        %5570 = vmatpush1.msra.mxu0 0.0
        %5571 = vmatprep.subr.mxu0 0.0
        %5572 = vmatpush1.msra.mxu0 0.0
        %5573 = vmatprep.subr.mxu0 0.0
        %5574 = vmatpush1.msra.mxu0 0.0
        %5575 = vmatprep.subr.mxu0 0.0
        %5576 = vmatpush1.msra.mxu0 0.0
        %5577 = vmatprep.subr.mxu0 0.0
        %5578 = vmatpush1.msra.mxu0 0.0
        %5579 = vmatprep.subr.mxu0 0.0
        %5580 = vmatpush1.msra.mxu0 0.0
        %5581 = vmatprep.subr.mxu0 0.0
        %5582 = vmatpush1.msra.mxu0 %v5544
        %5583 = vmatprep.subr.mxu0 0.0
        %5584 = vmatpush1.msra.mxu0 %v5542
        %5585 = vmatprep.subr.mxu0 0.0
        %5586 = vmatpush2.msra.mxu0 0.0
        %5587 = vmatprep.subr.mxu0 0.0
        %5588 = vmatpush2.msra.mxu0 0.0
        %5589 = vmatprep.subr.mxu0 0.0
        %5590 = vmatpush2.msra.mxu0 0.0
        %5591 = vmatprep.subr.mxu0 0.0
        %5592 = vmatpush2.msra.mxu0 0.0
        %5593 = vmatprep.subr.mxu0 0.0
        %5594 = vmatpush2.msra.mxu0 0.0
        %5595 = vmatprep.subr.mxu0 0.0
        %5596 = vmatpush2.msra.mxu0 0.0
        %5597 = vmatprep.subr.mxu0 0.0
        %5598 = vmatpush2.msra.mxu0 0.0
        %5599 = vmatprep.subr.mxu0 0.0
        %5600 = vmatpush2.msra.mxu0 0.0
        %5601 = vmatprep.subr.mxu0 0.0
        %5602 = vmatpush2.msra.mxu0 0.0
        %5603 = vmatprep.subr.mxu0 0.0
        %5604 = vmatpush2.msra.mxu0 0.0
        %5605 = vmatprep.subr.mxu0 0.0
        %5606 = vmatpush2.msra.mxu0 0.0
        %5607 = vmatprep.subr.mxu0 0.0
        %5608 = vmatpush2.msra.mxu0 0.0
        %5609 = vmatprep.subr.mxu0 0.0
        %5610 = vmatpush2.msra.mxu0 0.0
        %5611 = vmatprep.subr.mxu0 0.0
        %5612 = vmatpush2.msra.mxu0 0.0
        %5613 = vmatprep.subr.mxu0 0.0
        %5614 = vmatpush2.msra.mxu0 0.0
        %5615 = vmatprep.subr.mxu0 0.0
        %5616 = vmatpush2.msra.mxu0 0.0
        %5617 = vmatprep.mubr.f32.mxu0 0.0
        %5618 = vmatmul.mubr.f32.gmra.mxu0 %v5548
        %v5619 = vpop.f32.mrf.mxu0
        %v5620 = vadd.f32 0.0, %v5619
        %v5621 = vpop.f32.mrf.mxu0
        %5622 = vmatprep.mubr.f32.mxu0 0.0
        %5623 = vmatmul.mubr.f32.gmra.mxu0 %v5551
        %v5624 = vpop.f32.mrf.mxu0
        %v5625 = vadd.f32 0.0, %v5624
        %v5626 = vpop.f32.mrf.mxu0
        %5627 = vdwg.mxu0
        %5628 = vrot.lane.b32.xlu0 %v703, 96
        %v5629 = vpop.permute.xlu0 %5628
        %5630 = vrot.lane.b32.xlu0 %v708, 96
        %v5631 = vpop.permute.xlu0 %5630
        %v5635 = vsel %vm273, %v4090, 0
        %v5638 = vsel %vm273, %v4092, 0
        %5640 = vmatprep.subr.mxu0 0.0
        %5641 = vmatpush1.msra.mxu0 0.0
        %5642 = vmatprep.subr.mxu0 0.0
        %5643 = vmatpush1.msra.mxu0 0.0
        %5644 = vmatprep.subr.mxu0 0.0
        %5645 = vmatpush1.msra.mxu0 0.0
        %5646 = vmatprep.subr.mxu0 0.0
        %5647 = vmatpush1.msra.mxu0 0.0
        %5648 = vmatprep.subr.mxu0 0.0
        %5649 = vmatpush1.msra.mxu0 0.0
        %5650 = vmatprep.subr.mxu0 0.0
        %5651 = vmatpush1.msra.mxu0 0.0
        %5652 = vmatprep.subr.mxu0 0.0
        %5653 = vmatpush1.msra.mxu0 0.0
        %5654 = vmatprep.subr.mxu0 0.0
        %5655 = vmatpush1.msra.mxu0 0.0
        %5656 = vmatprep.subr.mxu0 0.0
        %5657 = vmatpush1.msra.mxu0 0.0
        %5658 = vmatprep.subr.mxu0 0.0
        %5659 = vmatpush1.msra.mxu0 0.0
        %5660 = vmatprep.subr.mxu0 0.0
        %5661 = vmatpush1.msra.mxu0 0.0
        %5662 = vmatprep.subr.mxu0 0.0
        %5663 = vmatpush1.msra.mxu0 0.0
        %5664 = vmatprep.subr.mxu0 0.0
        %5665 = vmatpush1.msra.mxu0 0.0
        %5666 = vmatprep.subr.mxu0 0.0
        %5667 = vmatpush1.msra.mxu0 0.0
        %5668 = vmatprep.subr.mxu0 0.0
        %5669 = vmatpush1.msra.mxu0 %v5631
        %5670 = vmatprep.subr.mxu0 0.0
        %5671 = vmatpush1.msra.mxu0 %v5629
        %5672 = vmatprep.subr.mxu0 0.0
        %5673 = vmatpush2.msra.mxu0 0.0
        %5674 = vmatprep.subr.mxu0 0.0
        %5675 = vmatpush2.msra.mxu0 0.0
        %5676 = vmatprep.subr.mxu0 0.0
        %5677 = vmatpush2.msra.mxu0 0.0
        %5678 = vmatprep.subr.mxu0 0.0
        %5679 = vmatpush2.msra.mxu0 0.0
        %5680 = vmatprep.subr.mxu0 0.0
        %5681 = vmatpush2.msra.mxu0 0.0
        %5682 = vmatprep.subr.mxu0 0.0
        %5683 = vmatpush2.msra.mxu0 0.0
        %5684 = vmatprep.subr.mxu0 0.0
        %5685 = vmatpush2.msra.mxu0 0.0
        %5686 = vmatprep.subr.mxu0 0.0
        %5687 = vmatpush2.msra.mxu0 0.0
        %5688 = vmatprep.subr.mxu0 0.0
        %5689 = vmatpush2.msra.mxu0 0.0
        %5690 = vmatprep.subr.mxu0 0.0
        %5691 = vmatpush2.msra.mxu0 0.0
        %5692 = vmatprep.subr.mxu0 0.0
        %5693 = vmatpush2.msra.mxu0 0.0
        %5694 = vmatprep.subr.mxu0 0.0
        %5695 = vmatpush2.msra.mxu0 0.0
        %5696 = vmatprep.subr.mxu0 0.0
        %5697 = vmatpush2.msra.mxu0 0.0
        %5698 = vmatprep.subr.mxu0 0.0
        %5699 = vmatpush2.msra.mxu0 0.0
        %5700 = vmatprep.subr.mxu0 0.0
        %5701 = vmatpush2.msra.mxu0 0.0
        %5702 = vmatprep.subr.mxu0 0.0
        %5703 = vmatpush2.msra.mxu0 0.0
        %5704 = vmatprep.mubr.f32.mxu0 0.0
        %5705 = vmatmul.mubr.f32.gmra.mxu0 %v5635
        %v5706 = vpop.f32.mrf.mxu0
        %v5707 = vadd.f32 0.0, %v5706
        %v5708 = vpop.f32.mrf.mxu0
        %5709 = vmatprep.mubr.f32.mxu0 0.0
        %5710 = vmatmul.mubr.f32.gmra.mxu0 %v5638
        %v5711 = vpop.f32.mrf.mxu0
        %v5712 = vadd.f32 0.0, %v5711
        %v5713 = vpop.f32.mrf.mxu0
        %5714 = vdwg.mxu0
        %5715 = vrot.lane.b32.xlu0 %v713, 96
        %v5716 = vpop.permute.xlu0 %5715
        %5717 = vrot.lane.b32.xlu0 %v718, 96
        %v5718 = vpop.permute.xlu0 %5717
        %v5722 = vsel %vm273, %v4094, 0
        %v5725 = vsel %vm273, %v4096, 0
        %5727 = vmatprep.subr.mxu0 0.0
        %5728 = vmatpush1.msra.mxu0 0.0
        %5729 = vmatprep.subr.mxu0 0.0
        %5730 = vmatpush1.msra.mxu0 0.0
        %5731 = vmatprep.subr.mxu0 0.0
        %5732 = vmatpush1.msra.mxu0 0.0
        %5733 = vmatprep.subr.mxu0 0.0
        %5734 = vmatpush1.msra.mxu0 0.0
        %5735 = vmatprep.subr.mxu0 0.0
        %5736 = vmatpush1.msra.mxu0 0.0
        %5737 = vmatprep.subr.mxu0 0.0
        %5738 = vmatpush1.msra.mxu0 0.0
        %5739 = vmatprep.subr.mxu0 0.0
        %5740 = vmatpush1.msra.mxu0 0.0
        %5741 = vmatprep.subr.mxu0 0.0
        %5742 = vmatpush1.msra.mxu0 0.0
        %5743 = vmatprep.subr.mxu0 0.0
        %5744 = vmatpush1.msra.mxu0 0.0
        %5745 = vmatprep.subr.mxu0 0.0
        %5746 = vmatpush1.msra.mxu0 0.0
        %5747 = vmatprep.subr.mxu0 0.0
        %5748 = vmatpush1.msra.mxu0 0.0
        %5749 = vmatprep.subr.mxu0 0.0
        %5750 = vmatpush1.msra.mxu0 0.0
        %5751 = vmatprep.subr.mxu0 0.0
        %5752 = vmatpush1.msra.mxu0 0.0
        %5753 = vmatprep.subr.mxu0 0.0
        %5754 = vmatpush1.msra.mxu0 0.0
        %5755 = vmatprep.subr.mxu0 0.0
        %5756 = vmatpush1.msra.mxu0 %v5718
        %5757 = vmatprep.subr.mxu0 0.0
        %5758 = vmatpush1.msra.mxu0 %v5716
        %5759 = vmatprep.subr.mxu0 0.0
        %5760 = vmatpush2.msra.mxu0 0.0
        %5761 = vmatprep.subr.mxu0 0.0
        %5762 = vmatpush2.msra.mxu0 0.0
        %5763 = vmatprep.subr.mxu0 0.0
        %5764 = vmatpush2.msra.mxu0 0.0
        %5765 = vmatprep.subr.mxu0 0.0
        %5766 = vmatpush2.msra.mxu0 0.0
        %5767 = vmatprep.subr.mxu0 0.0
        %5768 = vmatpush2.msra.mxu0 0.0
        %5769 = vmatprep.subr.mxu0 0.0
        %5770 = vmatpush2.msra.mxu0 0.0
        %5771 = vmatprep.subr.mxu0 0.0
        %5772 = vmatpush2.msra.mxu0 0.0
        %5773 = vmatprep.subr.mxu0 0.0
        %5774 = vmatpush2.msra.mxu0 0.0
        %5775 = vmatprep.subr.mxu0 0.0
        %5776 = vmatpush2.msra.mxu0 0.0
        %5777 = vmatprep.subr.mxu0 0.0
        %5778 = vmatpush2.msra.mxu0 0.0
        %5779 = vmatprep.subr.mxu0 0.0
        %5780 = vmatpush2.msra.mxu0 0.0
        %5781 = vmatprep.subr.mxu0 0.0
        %5782 = vmatpush2.msra.mxu0 0.0
        %5783 = vmatprep.subr.mxu0 0.0
        %5784 = vmatpush2.msra.mxu0 0.0
        %5785 = vmatprep.subr.mxu0 0.0
        %5786 = vmatpush2.msra.mxu0 0.0
        %5787 = vmatprep.subr.mxu0 0.0
        %5788 = vmatpush2.msra.mxu0 0.0
        %5789 = vmatprep.subr.mxu0 0.0
        %5790 = vmatpush2.msra.mxu0 0.0
        %5791 = vmatprep.mubr.f32.mxu0 0.0
        %5792 = vmatmul.mubr.f32.gmra.mxu0 %v5722
        %v5793 = vpop.f32.mrf.mxu0
        %v5794 = vadd.f32 0.0, %v5793
        %v5795 = vpop.f32.mrf.mxu0
        %5796 = vmatprep.mubr.f32.mxu0 0.0
        %5797 = vmatmul.mubr.f32.gmra.mxu0 %v5725
        %v5798 = vpop.f32.mrf.mxu0
        %v5799 = vadd.f32 0.0, %v5798
        %v5800 = vpop.f32.mrf.mxu0
        %5801 = vdwg.mxu0
        %5802 = vrot.lane.b32.xlu0 %v723, 96
        %v5803 = vpop.permute.xlu0 %5802
        %5804 = vrot.lane.b32.xlu0 %v728, 96
        %v5805 = vpop.permute.xlu0 %5804
        %v5809 = vsel %vm273, %v4098, 0
        %v5812 = vsel %vm273, %v4100, 0
        %5814 = vmatprep.subr.mxu0 0.0
        %5815 = vmatpush1.msra.mxu0 0.0
        %5816 = vmatprep.subr.mxu0 0.0
        %5817 = vmatpush1.msra.mxu0 0.0
        %5818 = vmatprep.subr.mxu0 0.0
        %5819 = vmatpush1.msra.mxu0 0.0
        %5820 = vmatprep.subr.mxu0 0.0
        %5821 = vmatpush1.msra.mxu0 0.0
        %5822 = vmatprep.subr.mxu0 0.0
        %5823 = vmatpush1.msra.mxu0 0.0
        %5824 = vmatprep.subr.mxu0 0.0
        %5825 = vmatpush1.msra.mxu0 0.0
        %5826 = vmatprep.subr.mxu0 0.0
        %5827 = vmatpush1.msra.mxu0 0.0
        %5828 = vmatprep.subr.mxu0 0.0
        %5829 = vmatpush1.msra.mxu0 0.0
        %5830 = vmatprep.subr.mxu0 0.0
        %5831 = vmatpush1.msra.mxu0 0.0
        %5832 = vmatprep.subr.mxu0 0.0
        %5833 = vmatpush1.msra.mxu0 0.0
        %5834 = vmatprep.subr.mxu0 0.0
        %5835 = vmatpush1.msra.mxu0 0.0
        %5836 = vmatprep.subr.mxu0 0.0
        %5837 = vmatpush1.msra.mxu0 0.0
        %5838 = vmatprep.subr.mxu0 0.0
        %5839 = vmatpush1.msra.mxu0 0.0
        %5840 = vmatprep.subr.mxu0 0.0
        %5841 = vmatpush1.msra.mxu0 0.0
        %5842 = vmatprep.subr.mxu0 0.0
        %5843 = vmatpush1.msra.mxu0 %v5805
        %5844 = vmatprep.subr.mxu0 0.0
        %5845 = vmatpush1.msra.mxu0 %v5803
        %5846 = vmatprep.subr.mxu0 0.0
        %5847 = vmatpush2.msra.mxu0 0.0
        %5848 = vmatprep.subr.mxu0 0.0
        %5849 = vmatpush2.msra.mxu0 0.0
        %5850 = vmatprep.subr.mxu0 0.0
        %5851 = vmatpush2.msra.mxu0 0.0
        %5852 = vmatprep.subr.mxu0 0.0
        %5853 = vmatpush2.msra.mxu0 0.0
        %5854 = vmatprep.subr.mxu0 0.0
        %5855 = vmatpush2.msra.mxu0 0.0
        %5856 = vmatprep.subr.mxu0 0.0
        %5857 = vmatpush2.msra.mxu0 0.0
        %5858 = vmatprep.subr.mxu0 0.0
        %5859 = vmatpush2.msra.mxu0 0.0
        %5860 = vmatprep.subr.mxu0 0.0
        %5861 = vmatpush2.msra.mxu0 0.0
        %5862 = vmatprep.subr.mxu0 0.0
        %5863 = vmatpush2.msra.mxu0 0.0
        %5864 = vmatprep.subr.mxu0 0.0
        %5865 = vmatpush2.msra.mxu0 0.0
        %5866 = vmatprep.subr.mxu0 0.0
        %5867 = vmatpush2.msra.mxu0 0.0
        %5868 = vmatprep.subr.mxu0 0.0
        %5869 = vmatpush2.msra.mxu0 0.0
        %5870 = vmatprep.subr.mxu0 0.0
        %5871 = vmatpush2.msra.mxu0 0.0
        %5872 = vmatprep.subr.mxu0 0.0
        %5873 = vmatpush2.msra.mxu0 0.0
        %5874 = vmatprep.subr.mxu0 0.0
        %5875 = vmatpush2.msra.mxu0 0.0
        %5876 = vmatprep.subr.mxu0 0.0
        %5877 = vmatpush2.msra.mxu0 0.0
        %5878 = vmatprep.mubr.f32.mxu0 0.0
        %5879 = vmatmul.mubr.f32.gmra.mxu0 %v5809
        %v5880 = vpop.f32.mrf.mxu0
        %v5881 = vadd.f32 0.0, %v5880
        %v5882 = vpop.f32.mrf.mxu0
        %5883 = vmatprep.mubr.f32.mxu0 0.0
        %5884 = vmatmul.mubr.f32.gmra.mxu0 %v5812
        %v5885 = vpop.f32.mrf.mxu0
        %v5886 = vadd.f32 0.0, %v5885
        %v5887 = vpop.f32.mrf.mxu0
        %5888 = vdwg.mxu0
        %5889 = vrot.lane.b32.xlu0 %v733, 96
        %v5890 = vpop.permute.xlu0 %5889
        %5891 = vrot.lane.b32.xlu0 %v738, 96
        %v5892 = vpop.permute.xlu0 %5891
        %v5896 = vsel %vm273, %v4102, 0
        %v5899 = vsel %vm273, %v4104, 0
        %5901 = vmatprep.subr.mxu0 0.0
        %5902 = vmatpush1.msra.mxu0 0.0
        %5903 = vmatprep.subr.mxu0 0.0
        %5904 = vmatpush1.msra.mxu0 0.0
        %5905 = vmatprep.subr.mxu0 0.0
        %5906 = vmatpush1.msra.mxu0 0.0
        %5907 = vmatprep.subr.mxu0 0.0
        %5908 = vmatpush1.msra.mxu0 0.0
        %5909 = vmatprep.subr.mxu0 0.0
        %5910 = vmatpush1.msra.mxu0 0.0
        %5911 = vmatprep.subr.mxu0 0.0
        %5912 = vmatpush1.msra.mxu0 0.0
        %5913 = vmatprep.subr.mxu0 0.0
        %5914 = vmatpush1.msra.mxu0 0.0
        %5915 = vmatprep.subr.mxu0 0.0
        %5916 = vmatpush1.msra.mxu0 0.0
        %5917 = vmatprep.subr.mxu0 0.0
        %5918 = vmatpush1.msra.mxu0 0.0
        %5919 = vmatprep.subr.mxu0 0.0
        %5920 = vmatpush1.msra.mxu0 0.0
        %5921 = vmatprep.subr.mxu0 0.0
        %5922 = vmatpush1.msra.mxu0 0.0
        %5923 = vmatprep.subr.mxu0 0.0
        %5924 = vmatpush1.msra.mxu0 0.0
        %5925 = vmatprep.subr.mxu0 0.0
        %5926 = vmatpush1.msra.mxu0 0.0
        %5927 = vmatprep.subr.mxu0 0.0
        %5928 = vmatpush1.msra.mxu0 0.0
        %5929 = vmatprep.subr.mxu0 0.0
        %5930 = vmatpush1.msra.mxu0 %v5892
        %5931 = vmatprep.subr.mxu0 0.0
        %5932 = vmatpush1.msra.mxu0 %v5890
        %5933 = vmatprep.subr.mxu0 0.0
        %5934 = vmatpush2.msra.mxu0 0.0
        %5935 = vmatprep.subr.mxu0 0.0
        %5936 = vmatpush2.msra.mxu0 0.0
        %5937 = vmatprep.subr.mxu0 0.0
        %5938 = vmatpush2.msra.mxu0 0.0
        %5939 = vmatprep.subr.mxu0 0.0
        %5940 = vmatpush2.msra.mxu0 0.0
        %5941 = vmatprep.subr.mxu0 0.0
        %5942 = vmatpush2.msra.mxu0 0.0
        %5943 = vmatprep.subr.mxu0 0.0
        %5944 = vmatpush2.msra.mxu0 0.0
        %5945 = vmatprep.subr.mxu0 0.0
        %5946 = vmatpush2.msra.mxu0 0.0
        %5947 = vmatprep.subr.mxu0 0.0
        %5948 = vmatpush2.msra.mxu0 0.0
        %5949 = vmatprep.subr.mxu0 0.0
        %5950 = vmatpush2.msra.mxu0 0.0
        %5951 = vmatprep.subr.mxu0 0.0
        %5952 = vmatpush2.msra.mxu0 0.0
        %5953 = vmatprep.subr.mxu0 0.0
        %5954 = vmatpush2.msra.mxu0 0.0
        %5955 = vmatprep.subr.mxu0 0.0
        %5956 = vmatpush2.msra.mxu0 0.0
        %5957 = vmatprep.subr.mxu0 0.0
        %5958 = vmatpush2.msra.mxu0 0.0
        %5959 = vmatprep.subr.mxu0 0.0
        %5960 = vmatpush2.msra.mxu0 0.0
        %5961 = vmatprep.subr.mxu0 0.0
        %5962 = vmatpush2.msra.mxu0 0.0
        %5963 = vmatprep.subr.mxu0 0.0
        %5964 = vmatpush2.msra.mxu0 0.0
        %5965 = vmatprep.mubr.f32.mxu0 0.0
        %5966 = vmatmul.mubr.f32.gmra.mxu0 %v5896
        %v5967 = vpop.f32.mrf.mxu0
        %v5968 = vadd.f32 0.0, %v5967
        %v5969 = vpop.f32.mrf.mxu0
        %5970 = vmatprep.mubr.f32.mxu0 0.0
        %5971 = vmatmul.mubr.f32.gmra.mxu0 %v5899
        %v5972 = vpop.f32.mrf.mxu0
        %v5973 = vadd.f32 0.0, %v5972
        %v5974 = vpop.f32.mrf.mxu0
        %5975 = vdwg.mxu0
        %5976 = vrot.lane.b32.xlu0 %v743, 96
        %v5977 = vpop.permute.xlu0 %5976
        %5978 = vrot.lane.b32.xlu0 %v748, 96
        %v5979 = vpop.permute.xlu0 %5978
        %v5983 = vsel %vm273, %v4106, 0
        %v5986 = vsel %vm273, %v4108, 0
        %5988 = vmatprep.subr.mxu0 0.0
        %5989 = vmatpush1.msra.mxu0 0.0
        %5990 = vmatprep.subr.mxu0 0.0
        %5991 = vmatpush1.msra.mxu0 0.0
        %5992 = vmatprep.subr.mxu0 0.0
        %5993 = vmatpush1.msra.mxu0 0.0
        %5994 = vmatprep.subr.mxu0 0.0
        %5995 = vmatpush1.msra.mxu0 0.0
        %5996 = vmatprep.subr.mxu0 0.0
        %5997 = vmatpush1.msra.mxu0 0.0
        %5998 = vmatprep.subr.mxu0 0.0
        %5999 = vmatpush1.msra.mxu0 0.0
        %6000 = vmatprep.subr.mxu0 0.0
        %6001 = vmatpush1.msra.mxu0 0.0
        %6002 = vmatprep.subr.mxu0 0.0
        %6003 = vmatpush1.msra.mxu0 0.0
        %6004 = vmatprep.subr.mxu0 0.0
        %6005 = vmatpush1.msra.mxu0 0.0
        %6006 = vmatprep.subr.mxu0 0.0
        %6007 = vmatpush1.msra.mxu0 0.0
        %6008 = vmatprep.subr.mxu0 0.0
        %6009 = vmatpush1.msra.mxu0 0.0
        %6010 = vmatprep.subr.mxu0 0.0
        %6011 = vmatpush1.msra.mxu0 0.0
        %6012 = vmatprep.subr.mxu0 0.0
        %6013 = vmatpush1.msra.mxu0 0.0
        %6014 = vmatprep.subr.mxu0 0.0
        %6015 = vmatpush1.msra.mxu0 0.0
        %6016 = vmatprep.subr.mxu0 0.0
        %6017 = vmatpush1.msra.mxu0 %v5979
        %6018 = vmatprep.subr.mxu0 0.0
        %6019 = vmatpush1.msra.mxu0 %v5977
        %6020 = vmatprep.subr.mxu0 0.0
        %6021 = vmatpush2.msra.mxu0 0.0
        %6022 = vmatprep.subr.mxu0 0.0
        %6023 = vmatpush2.msra.mxu0 0.0
        %6024 = vmatprep.subr.mxu0 0.0
        %6025 = vmatpush2.msra.mxu0 0.0
        %6026 = vmatprep.subr.mxu0 0.0
        %6027 = vmatpush2.msra.mxu0 0.0
        %6028 = vmatprep.subr.mxu0 0.0
        %6029 = vmatpush2.msra.mxu0 0.0
        %6030 = vmatprep.subr.mxu0 0.0
        %6031 = vmatpush2.msra.mxu0 0.0
        %6032 = vmatprep.subr.mxu0 0.0
        %6033 = vmatpush2.msra.mxu0 0.0
        %6034 = vmatprep.subr.mxu0 0.0
        %6035 = vmatpush2.msra.mxu0 0.0
        %6036 = vmatprep.subr.mxu0 0.0
        %6037 = vmatpush2.msra.mxu0 0.0
        %6038 = vmatprep.subr.mxu0 0.0
        %6039 = vmatpush2.msra.mxu0 0.0
        %6040 = vmatprep.subr.mxu0 0.0
        %6041 = vmatpush2.msra.mxu0 0.0
        %6042 = vmatprep.subr.mxu0 0.0
        %6043 = vmatpush2.msra.mxu0 0.0
        %6044 = vmatprep.subr.mxu0 0.0
        %6045 = vmatpush2.msra.mxu0 0.0
        %6046 = vmatprep.subr.mxu0 0.0
        %6047 = vmatpush2.msra.mxu0 0.0
        %6048 = vmatprep.subr.mxu0 0.0
        %6049 = vmatpush2.msra.mxu0 0.0
        %6050 = vmatprep.subr.mxu0 0.0
        %6051 = vmatpush2.msra.mxu0 0.0
        %6052 = vmatprep.mubr.f32.mxu0 0.0
        %6053 = vmatmul.mubr.f32.gmra.mxu0 %v5983
        %v6054 = vpop.f32.mrf.mxu0
        %v6055 = vadd.f32 0.0, %v6054
        %v6056 = vpop.f32.mrf.mxu0
        %6057 = vmatprep.mubr.f32.mxu0 0.0
        %6058 = vmatmul.mubr.f32.gmra.mxu0 %v5986
        %v6059 = vpop.f32.mrf.mxu0
        %v6060 = vadd.f32 0.0, %v6059
        %v6061 = vpop.f32.mrf.mxu0
        %6062 = vdwg.mxu0
        %6063 = vrot.lane.b32.xlu0 %v753, 96
        %v6064 = vpop.permute.xlu0 %6063
        %6065 = vrot.lane.b32.xlu0 %v758, 96
        %v6066 = vpop.permute.xlu0 %6065
        %v6070 = vsel %vm273, %v4110, 0
        %v6073 = vsel %vm273, %v4112, 0
        %6075 = vmatprep.subr.mxu0 0.0
        %6076 = vmatpush1.msra.mxu0 0.0
        %6077 = vmatprep.subr.mxu0 0.0
        %6078 = vmatpush1.msra.mxu0 0.0
        %6079 = vmatprep.subr.mxu0 0.0
        %6080 = vmatpush1.msra.mxu0 0.0
        %6081 = vmatprep.subr.mxu0 0.0
        %6082 = vmatpush1.msra.mxu0 0.0
        %6083 = vmatprep.subr.mxu0 0.0
        %6084 = vmatpush1.msra.mxu0 0.0
        %6085 = vmatprep.subr.mxu0 0.0
        %6086 = vmatpush1.msra.mxu0 0.0
        %6087 = vmatprep.subr.mxu0 0.0
        %6088 = vmatpush1.msra.mxu0 0.0
        %6089 = vmatprep.subr.mxu0 0.0
        %6090 = vmatpush1.msra.mxu0 0.0
        %6091 = vmatprep.subr.mxu0 0.0
        %6092 = vmatpush1.msra.mxu0 0.0
        %6093 = vmatprep.subr.mxu0 0.0
        %6094 = vmatpush1.msra.mxu0 0.0
        %6095 = vmatprep.subr.mxu0 0.0
        %6096 = vmatpush1.msra.mxu0 0.0
        %6097 = vmatprep.subr.mxu0 0.0
        %6098 = vmatpush1.msra.mxu0 0.0
        %6099 = vmatprep.subr.mxu0 0.0
        %6100 = vmatpush1.msra.mxu0 0.0
        %6101 = vmatprep.subr.mxu0 0.0
        %6102 = vmatpush1.msra.mxu0 0.0
        %6103 = vmatprep.subr.mxu0 0.0
        %6104 = vmatpush1.msra.mxu0 %v6066
        %6105 = vmatprep.subr.mxu0 0.0
        %6106 = vmatpush1.msra.mxu0 %v6064
        %6107 = vmatprep.subr.mxu0 0.0
        %6108 = vmatpush2.msra.mxu0 0.0
        %6109 = vmatprep.subr.mxu0 0.0
        %6110 = vmatpush2.msra.mxu0 0.0
        %6111 = vmatprep.subr.mxu0 0.0
        %6112 = vmatpush2.msra.mxu0 0.0
        %6113 = vmatprep.subr.mxu0 0.0
        %6114 = vmatpush2.msra.mxu0 0.0
        %6115 = vmatprep.subr.mxu0 0.0
        %6116 = vmatpush2.msra.mxu0 0.0
        %6117 = vmatprep.subr.mxu0 0.0
        %6118 = vmatpush2.msra.mxu0 0.0
        %6119 = vmatprep.subr.mxu0 0.0
        %6120 = vmatpush2.msra.mxu0 0.0
        %6121 = vmatprep.subr.mxu0 0.0
        %6122 = vmatpush2.msra.mxu0 0.0
        %6123 = vmatprep.subr.mxu0 0.0
        %6124 = vmatpush2.msra.mxu0 0.0
        %6125 = vmatprep.subr.mxu0 0.0
        %6126 = vmatpush2.msra.mxu0 0.0
        %6127 = vmatprep.subr.mxu0 0.0
        %6128 = vmatpush2.msra.mxu0 0.0
        %6129 = vmatprep.subr.mxu0 0.0
        %6130 = vmatpush2.msra.mxu0 0.0
        %6131 = vmatprep.subr.mxu0 0.0
        %6132 = vmatpush2.msra.mxu0 0.0
        %6133 = vmatprep.subr.mxu0 0.0
        %6134 = vmatpush2.msra.mxu0 0.0
        %6135 = vmatprep.subr.mxu0 0.0
        %6136 = vmatpush2.msra.mxu0 0.0
        %6137 = vmatprep.subr.mxu0 0.0
        %6138 = vmatpush2.msra.mxu0 0.0
        %6139 = vmatprep.mubr.f32.mxu0 0.0
        %6140 = vmatmul.mubr.f32.gmra.mxu0 %v6070
        %v6141 = vpop.f32.mrf.mxu0
        %v6142 = vadd.f32 0.0, %v6141
        %v6143 = vpop.f32.mrf.mxu0
        %6144 = vmatprep.mubr.f32.mxu0 0.0
        %6145 = vmatmul.mubr.f32.gmra.mxu0 %v6073
        %v6146 = vpop.f32.mrf.mxu0
        %v6147 = vadd.f32 0.0, %v6146
        %v6148 = vpop.f32.mrf.mxu0
        %6149 = vdwg.mxu0
        %6150 = vrot.lane.b32.xlu0 %v763, 96
        %v6151 = vpop.permute.xlu0 %6150
        %6152 = vrot.lane.b32.xlu0 %v768, 96
        %v6153 = vpop.permute.xlu0 %6152
        %v6157 = vsel %vm273, %v4114, 0
        %v6160 = vsel %vm273, %v4116, 0
        %6162 = vmatprep.subr.mxu0 0.0
        %6163 = vmatpush1.msra.mxu0 0.0
        %6164 = vmatprep.subr.mxu0 0.0
        %6165 = vmatpush1.msra.mxu0 0.0
        %6166 = vmatprep.subr.mxu0 0.0
        %6167 = vmatpush1.msra.mxu0 0.0
        %6168 = vmatprep.subr.mxu0 0.0
        %6169 = vmatpush1.msra.mxu0 0.0
        %6170 = vmatprep.subr.mxu0 0.0
        %6171 = vmatpush1.msra.mxu0 0.0
        %6172 = vmatprep.subr.mxu0 0.0
        %6173 = vmatpush1.msra.mxu0 0.0
        %6174 = vmatprep.subr.mxu0 0.0
        %6175 = vmatpush1.msra.mxu0 0.0
        %6176 = vmatprep.subr.mxu0 0.0
        %6177 = vmatpush1.msra.mxu0 0.0
        %6178 = vmatprep.subr.mxu0 0.0
        %6179 = vmatpush1.msra.mxu0 0.0
        %6180 = vmatprep.subr.mxu0 0.0
        %6181 = vmatpush1.msra.mxu0 0.0
        %6182 = vmatprep.subr.mxu0 0.0
        %6183 = vmatpush1.msra.mxu0 0.0
        %6184 = vmatprep.subr.mxu0 0.0
        %6185 = vmatpush1.msra.mxu0 0.0
        %6186 = vmatprep.subr.mxu0 0.0
        %6187 = vmatpush1.msra.mxu0 0.0
        %6188 = vmatprep.subr.mxu0 0.0
        %6189 = vmatpush1.msra.mxu0 0.0
        %6190 = vmatprep.subr.mxu0 0.0
        %6191 = vmatpush1.msra.mxu0 %v6153
        %6192 = vmatprep.subr.mxu0 0.0
        %6193 = vmatpush1.msra.mxu0 %v6151
        %6194 = vmatprep.subr.mxu0 0.0
        %6195 = vmatpush2.msra.mxu0 0.0
        %6196 = vmatprep.subr.mxu0 0.0
        %6197 = vmatpush2.msra.mxu0 0.0
        %6198 = vmatprep.subr.mxu0 0.0
        %6199 = vmatpush2.msra.mxu0 0.0
        %6200 = vmatprep.subr.mxu0 0.0
        %6201 = vmatpush2.msra.mxu0 0.0
        %6202 = vmatprep.subr.mxu0 0.0
        %6203 = vmatpush2.msra.mxu0 0.0
        %6204 = vmatprep.subr.mxu0 0.0
        %6205 = vmatpush2.msra.mxu0 0.0
        %6206 = vmatprep.subr.mxu0 0.0
        %6207 = vmatpush2.msra.mxu0 0.0
        %6208 = vmatprep.subr.mxu0 0.0
        %6209 = vmatpush2.msra.mxu0 0.0
        %6210 = vmatprep.subr.mxu0 0.0
        %6211 = vmatpush2.msra.mxu0 0.0
        %6212 = vmatprep.subr.mxu0 0.0
        %6213 = vmatpush2.msra.mxu0 0.0
        %6214 = vmatprep.subr.mxu0 0.0
        %6215 = vmatpush2.msra.mxu0 0.0
        %6216 = vmatprep.subr.mxu0 0.0
        %6217 = vmatpush2.msra.mxu0 0.0
        %6218 = vmatprep.subr.mxu0 0.0
        %6219 = vmatpush2.msra.mxu0 0.0
        %6220 = vmatprep.subr.mxu0 0.0
        %6221 = vmatpush2.msra.mxu0 0.0
        %6222 = vmatprep.subr.mxu0 0.0
        %6223 = vmatpush2.msra.mxu0 0.0
        %6224 = vmatprep.subr.mxu0 0.0
        %6225 = vmatpush2.msra.mxu0 0.0
        %6226 = vmatprep.mubr.f32.mxu0 0.0
        %6227 = vmatmul.mubr.f32.gmra.mxu0 %v6157
        %v6228 = vpop.f32.mrf.mxu0
        %v6229 = vadd.f32 0.0, %v6228
        %v6230 = vpop.f32.mrf.mxu0
        %6231 = vmatprep.mubr.f32.mxu0 0.0
        %6232 = vmatmul.mubr.f32.gmra.mxu0 %v6160
        %v6233 = vpop.f32.mrf.mxu0
        %v6234 = vadd.f32 0.0, %v6233
        %v6235 = vpop.f32.mrf.mxu0
        %6236 = vdwg.mxu0
        %6237 = vrot.lane.b32.xlu0 %v773, 96
        %v6238 = vpop.permute.xlu0 %6237
        %6239 = vrot.lane.b32.xlu0 %v778, 96
        %v6240 = vpop.permute.xlu0 %6239
        %v6244 = vsel %vm273, %v4118, 0
        %v6247 = vsel %vm273, %v4120, 0
        %6249 = vmatprep.subr.mxu0 0.0
        %6250 = vmatpush1.msra.mxu0 0.0
        %6251 = vmatprep.subr.mxu0 0.0
        %6252 = vmatpush1.msra.mxu0 0.0
        %6253 = vmatprep.subr.mxu0 0.0
        %6254 = vmatpush1.msra.mxu0 0.0
        %6255 = vmatprep.subr.mxu0 0.0
        %6256 = vmatpush1.msra.mxu0 0.0
        %6257 = vmatprep.subr.mxu0 0.0
        %6258 = vmatpush1.msra.mxu0 0.0
        %6259 = vmatprep.subr.mxu0 0.0
        %6260 = vmatpush1.msra.mxu0 0.0
        %6261 = vmatprep.subr.mxu0 0.0
        %6262 = vmatpush1.msra.mxu0 0.0
        %6263 = vmatprep.subr.mxu0 0.0
        %6264 = vmatpush1.msra.mxu0 0.0
        %6265 = vmatprep.subr.mxu0 0.0
        %6266 = vmatpush1.msra.mxu0 0.0
        %6267 = vmatprep.subr.mxu0 0.0
        %6268 = vmatpush1.msra.mxu0 0.0
        %6269 = vmatprep.subr.mxu0 0.0
        %6270 = vmatpush1.msra.mxu0 0.0
        %6271 = vmatprep.subr.mxu0 0.0
        %6272 = vmatpush1.msra.mxu0 0.0
        %6273 = vmatprep.subr.mxu0 0.0
        %6274 = vmatpush1.msra.mxu0 0.0
        %6275 = vmatprep.subr.mxu0 0.0
        %6276 = vmatpush1.msra.mxu0 0.0
        %6277 = vmatprep.subr.mxu0 0.0
        %6278 = vmatpush1.msra.mxu0 %v6240
        %6279 = vmatprep.subr.mxu0 0.0
        %6280 = vmatpush1.msra.mxu0 %v6238
        %6281 = vmatprep.subr.mxu0 0.0
        %6282 = vmatpush2.msra.mxu0 0.0
        %6283 = vmatprep.subr.mxu0 0.0
        %6284 = vmatpush2.msra.mxu0 0.0
        %6285 = vmatprep.subr.mxu0 0.0
        %6286 = vmatpush2.msra.mxu0 0.0
        %6287 = vmatprep.subr.mxu0 0.0
        %6288 = vmatpush2.msra.mxu0 0.0
        %6289 = vmatprep.subr.mxu0 0.0
        %6290 = vmatpush2.msra.mxu0 0.0
        %6291 = vmatprep.subr.mxu0 0.0
        %6292 = vmatpush2.msra.mxu0 0.0
        %6293 = vmatprep.subr.mxu0 0.0
        %6294 = vmatpush2.msra.mxu0 0.0
        %6295 = vmatprep.subr.mxu0 0.0
        %6296 = vmatpush2.msra.mxu0 0.0
        %6297 = vmatprep.subr.mxu0 0.0
        %6298 = vmatpush2.msra.mxu0 0.0
        %6299 = vmatprep.subr.mxu0 0.0
        %6300 = vmatpush2.msra.mxu0 0.0
        %6301 = vmatprep.subr.mxu0 0.0
        %6302 = vmatpush2.msra.mxu0 0.0
        %6303 = vmatprep.subr.mxu0 0.0
        %6304 = vmatpush2.msra.mxu0 0.0
        %6305 = vmatprep.subr.mxu0 0.0
        %6306 = vmatpush2.msra.mxu0 0.0
        %6307 = vmatprep.subr.mxu0 0.0
        %6308 = vmatpush2.msra.mxu0 0.0
        %6309 = vmatprep.subr.mxu0 0.0
        %6310 = vmatpush2.msra.mxu0 0.0
        %6311 = vmatprep.subr.mxu0 0.0
        %6312 = vmatpush2.msra.mxu0 0.0
        %6313 = vmatprep.mubr.f32.mxu0 0.0
        %6314 = vmatmul.mubr.f32.gmra.mxu0 %v6244
        %v6315 = vpop.f32.mrf.mxu0
        %v6316 = vadd.f32 0.0, %v6315
        %v6317 = vpop.f32.mrf.mxu0
        %6318 = vmatprep.mubr.f32.mxu0 0.0
        %6319 = vmatmul.mubr.f32.gmra.mxu0 %v6247
        %v6320 = vpop.f32.mrf.mxu0
        %v6321 = vadd.f32 0.0, %v6320
        %v6322 = vpop.f32.mrf.mxu0
        %6323 = vdwg.mxu0
        %6324 = vrot.lane.b32.xlu0 %v783, 96
        %v6325 = vpop.permute.xlu0 %6324
        %6326 = vrot.lane.b32.xlu0 %v788, 96
        %v6327 = vpop.permute.xlu0 %6326
        %v6331 = vsel %vm273, %v4122, 0
        %v6334 = vsel %vm273, %v4124, 0
        %6336 = vmatprep.subr.mxu0 0.0
        %6337 = vmatpush1.msra.mxu0 0.0
        %6338 = vmatprep.subr.mxu0 0.0
        %6339 = vmatpush1.msra.mxu0 0.0
        %6340 = vmatprep.subr.mxu0 0.0
        %6341 = vmatpush1.msra.mxu0 0.0
        %6342 = vmatprep.subr.mxu0 0.0
        %6343 = vmatpush1.msra.mxu0 0.0
        %6344 = vmatprep.subr.mxu0 0.0
        %6345 = vmatpush1.msra.mxu0 0.0
        %6346 = vmatprep.subr.mxu0 0.0
        %6347 = vmatpush1.msra.mxu0 0.0
        %6348 = vmatprep.subr.mxu0 0.0
        %6349 = vmatpush1.msra.mxu0 0.0
        %6350 = vmatprep.subr.mxu0 0.0
        %6351 = vmatpush1.msra.mxu0 0.0
        %6352 = vmatprep.subr.mxu0 0.0
        %6353 = vmatpush1.msra.mxu0 0.0
        %6354 = vmatprep.subr.mxu0 0.0
        %6355 = vmatpush1.msra.mxu0 0.0
        %6356 = vmatprep.subr.mxu0 0.0
        %6357 = vmatpush1.msra.mxu0 0.0
        %6358 = vmatprep.subr.mxu0 0.0
        %6359 = vmatpush1.msra.mxu0 0.0
        %6360 = vmatprep.subr.mxu0 0.0
        %6361 = vmatpush1.msra.mxu0 0.0
        %6362 = vmatprep.subr.mxu0 0.0
        %6363 = vmatpush1.msra.mxu0 0.0
        %6364 = vmatprep.subr.mxu0 0.0
        %6365 = vmatpush1.msra.mxu0 %v6327
        %6366 = vmatprep.subr.mxu0 0.0
        %6367 = vmatpush1.msra.mxu0 %v6325
        %6368 = vmatprep.subr.mxu0 0.0
        %6369 = vmatpush2.msra.mxu0 0.0
        %6370 = vmatprep.subr.mxu0 0.0
        %6371 = vmatpush2.msra.mxu0 0.0
        %6372 = vmatprep.subr.mxu0 0.0
        %6373 = vmatpush2.msra.mxu0 0.0
        %6374 = vmatprep.subr.mxu0 0.0
        %6375 = vmatpush2.msra.mxu0 0.0
        %6376 = vmatprep.subr.mxu0 0.0
        %6377 = vmatpush2.msra.mxu0 0.0
        %6378 = vmatprep.subr.mxu0 0.0
        %6379 = vmatpush2.msra.mxu0 0.0
        %6380 = vmatprep.subr.mxu0 0.0
        %6381 = vmatpush2.msra.mxu0 0.0
        %6382 = vmatprep.subr.mxu0 0.0
        %6383 = vmatpush2.msra.mxu0 0.0
        %6384 = vmatprep.subr.mxu0 0.0
        %6385 = vmatpush2.msra.mxu0 0.0
        %6386 = vmatprep.subr.mxu0 0.0
        %6387 = vmatpush2.msra.mxu0 0.0
        %6388 = vmatprep.subr.mxu0 0.0
        %6389 = vmatpush2.msra.mxu0 0.0
        %6390 = vmatprep.subr.mxu0 0.0
        %6391 = vmatpush2.msra.mxu0 0.0
        %6392 = vmatprep.subr.mxu0 0.0
        %6393 = vmatpush2.msra.mxu0 0.0
        %6394 = vmatprep.subr.mxu0 0.0
        %6395 = vmatpush2.msra.mxu0 0.0
        %6396 = vmatprep.subr.mxu0 0.0
        %6397 = vmatpush2.msra.mxu0 0.0
        %6398 = vmatprep.subr.mxu0 0.0
        %6399 = vmatpush2.msra.mxu0 0.0
        %6400 = vmatprep.mubr.f32.mxu0 0.0
        %6401 = vmatmul.mubr.f32.gmra.mxu0 %v6331
        %v6402 = vpop.f32.mrf.mxu0
        %v6403 = vadd.f32 0.0, %v6402
        %v6404 = vpop.f32.mrf.mxu0
        %6405 = vmatprep.mubr.f32.mxu0 0.0
        %6406 = vmatmul.mubr.f32.gmra.mxu0 %v6334
        %v6407 = vpop.f32.mrf.mxu0
        %v6408 = vadd.f32 0.0, %v6407
        %v6409 = vpop.f32.mrf.mxu0
        %6410 = vdwg.mxu0
        %6411 = vrot.lane.b32.xlu0 %v793, 96
        %v6412 = vpop.permute.xlu0 %6411
        %6413 = vrot.lane.b32.xlu0 %v798, 96
        %v6414 = vpop.permute.xlu0 %6413
        %v6418 = vsel %vm273, %v4126, 0
        %v6421 = vsel %vm273, %v4128, 0
        %6423 = vmatprep.subr.mxu0 0.0
        %6424 = vmatpush1.msra.mxu0 0.0
        %6425 = vmatprep.subr.mxu0 0.0
        %6426 = vmatpush1.msra.mxu0 0.0
        %6427 = vmatprep.subr.mxu0 0.0
        %6428 = vmatpush1.msra.mxu0 0.0
        %6429 = vmatprep.subr.mxu0 0.0
        %6430 = vmatpush1.msra.mxu0 0.0
        %6431 = vmatprep.subr.mxu0 0.0
        %6432 = vmatpush1.msra.mxu0 0.0
        %6433 = vmatprep.subr.mxu0 0.0
        %6434 = vmatpush1.msra.mxu0 0.0
        %6435 = vmatprep.subr.mxu0 0.0
        %6436 = vmatpush1.msra.mxu0 0.0
        %6437 = vmatprep.subr.mxu0 0.0
        %6438 = vmatpush1.msra.mxu0 0.0
        %6439 = vmatprep.subr.mxu0 0.0
        %6440 = vmatpush1.msra.mxu0 0.0
        %6441 = vmatprep.subr.mxu0 0.0
        %6442 = vmatpush1.msra.mxu0 0.0
        %6443 = vmatprep.subr.mxu0 0.0
        %6444 = vmatpush1.msra.mxu0 0.0
        %6445 = vmatprep.subr.mxu0 0.0
        %6446 = vmatpush1.msra.mxu0 0.0
        %6447 = vmatprep.subr.mxu0 0.0
        %6448 = vmatpush1.msra.mxu0 0.0
        %6449 = vmatprep.subr.mxu0 0.0
        %6450 = vmatpush1.msra.mxu0 0.0
        %6451 = vmatprep.subr.mxu0 0.0
        %6452 = vmatpush1.msra.mxu0 %v6414
        %6453 = vmatprep.subr.mxu0 0.0
        %6454 = vmatpush1.msra.mxu0 %v6412
        %6455 = vmatprep.subr.mxu0 0.0
        %6456 = vmatpush2.msra.mxu0 0.0
        %6457 = vmatprep.subr.mxu0 0.0
        %6458 = vmatpush2.msra.mxu0 0.0
        %6459 = vmatprep.subr.mxu0 0.0
        %6460 = vmatpush2.msra.mxu0 0.0
        %6461 = vmatprep.subr.mxu0 0.0
        %6462 = vmatpush2.msra.mxu0 0.0
        %6463 = vmatprep.subr.mxu0 0.0
        %6464 = vmatpush2.msra.mxu0 0.0
        %6465 = vmatprep.subr.mxu0 0.0
        %6466 = vmatpush2.msra.mxu0 0.0
        %6467 = vmatprep.subr.mxu0 0.0
        %6468 = vmatpush2.msra.mxu0 0.0
        %6469 = vmatprep.subr.mxu0 0.0
        %6470 = vmatpush2.msra.mxu0 0.0
        %6471 = vmatprep.subr.mxu0 0.0
        %6472 = vmatpush2.msra.mxu0 0.0
        %6473 = vmatprep.subr.mxu0 0.0
        %6474 = vmatpush2.msra.mxu0 0.0
        %6475 = vmatprep.subr.mxu0 0.0
        %6476 = vmatpush2.msra.mxu0 0.0
        %6477 = vmatprep.subr.mxu0 0.0
        %6478 = vmatpush2.msra.mxu0 0.0
        %6479 = vmatprep.subr.mxu0 0.0
        %6480 = vmatpush2.msra.mxu0 0.0
        %6481 = vmatprep.subr.mxu0 0.0
        %6482 = vmatpush2.msra.mxu0 0.0
        %6483 = vmatprep.subr.mxu0 0.0
        %6484 = vmatpush2.msra.mxu0 0.0
        %6485 = vmatprep.subr.mxu0 0.0
        %6486 = vmatpush2.msra.mxu0 0.0
        %6487 = vmatprep.mubr.f32.mxu0 0.0
        %6488 = vmatmul.mubr.f32.gmra.mxu0 %v6418
        %v6489 = vpop.f32.mrf.mxu0
        %v6490 = vadd.f32 0.0, %v6489
        %v6491 = vpop.f32.mrf.mxu0
        %6492 = vmatprep.mubr.f32.mxu0 0.0
        %6493 = vmatmul.mubr.f32.gmra.mxu0 %v6421
        %v6494 = vpop.f32.mrf.mxu0
        %v6495 = vadd.f32 0.0, %v6494
        %v6496 = vpop.f32.mrf.mxu0
        %6497 = vdwg.mxu0
        %6498 = vrot.lane.b32.xlu0 %v803, 96
        %v6499 = vpop.permute.xlu0 %6498
        %6500 = vrot.lane.b32.xlu0 %v808, 96
        %v6501 = vpop.permute.xlu0 %6500
        %v6505 = vsel %vm273, %v4130, 0
        %v6508 = vsel %vm273, %v4132, 0
        %6510 = vmatprep.subr.mxu0 0.0
        %6511 = vmatpush1.msra.mxu0 0.0
        %6512 = vmatprep.subr.mxu0 0.0
        %6513 = vmatpush1.msra.mxu0 0.0
        %6514 = vmatprep.subr.mxu0 0.0
        %6515 = vmatpush1.msra.mxu0 0.0
        %6516 = vmatprep.subr.mxu0 0.0
        %6517 = vmatpush1.msra.mxu0 0.0
        %6518 = vmatprep.subr.mxu0 0.0
        %6519 = vmatpush1.msra.mxu0 0.0
        %6520 = vmatprep.subr.mxu0 0.0
        %6521 = vmatpush1.msra.mxu0 0.0
        %6522 = vmatprep.subr.mxu0 0.0
        %6523 = vmatpush1.msra.mxu0 0.0
        %6524 = vmatprep.subr.mxu0 0.0
        %6525 = vmatpush1.msra.mxu0 0.0
        %6526 = vmatprep.subr.mxu0 0.0
        %6527 = vmatpush1.msra.mxu0 0.0
        %6528 = vmatprep.subr.mxu0 0.0
        %6529 = vmatpush1.msra.mxu0 0.0
        %6530 = vmatprep.subr.mxu0 0.0
        %6531 = vmatpush1.msra.mxu0 0.0
        %6532 = vmatprep.subr.mxu0 0.0
        %6533 = vmatpush1.msra.mxu0 0.0
        %6534 = vmatprep.subr.mxu0 0.0
        %6535 = vmatpush1.msra.mxu0 0.0
        %6536 = vmatprep.subr.mxu0 0.0
        %6537 = vmatpush1.msra.mxu0 0.0
        %6538 = vmatprep.subr.mxu0 0.0
        %6539 = vmatpush1.msra.mxu0 %v6501
        %6540 = vmatprep.subr.mxu0 0.0
        %6541 = vmatpush1.msra.mxu0 %v6499
        %6542 = vmatprep.subr.mxu0 0.0
        %6543 = vmatpush2.msra.mxu0 0.0
        %6544 = vmatprep.subr.mxu0 0.0
        %6545 = vmatpush2.msra.mxu0 0.0
        %6546 = vmatprep.subr.mxu0 0.0
        %6547 = vmatpush2.msra.mxu0 0.0
        %6548 = vmatprep.subr.mxu0 0.0
        %6549 = vmatpush2.msra.mxu0 0.0
        %6550 = vmatprep.subr.mxu0 0.0
        %6551 = vmatpush2.msra.mxu0 0.0
        %6552 = vmatprep.subr.mxu0 0.0
        %6553 = vmatpush2.msra.mxu0 0.0
        %6554 = vmatprep.subr.mxu0 0.0
        %6555 = vmatpush2.msra.mxu0 0.0
        %6556 = vmatprep.subr.mxu0 0.0
        %6557 = vmatpush2.msra.mxu0 0.0
        %6558 = vmatprep.subr.mxu0 0.0
        %6559 = vmatpush2.msra.mxu0 0.0
        %6560 = vmatprep.subr.mxu0 0.0
        %6561 = vmatpush2.msra.mxu0 0.0
        %6562 = vmatprep.subr.mxu0 0.0
        %6563 = vmatpush2.msra.mxu0 0.0
        %6564 = vmatprep.subr.mxu0 0.0
        %6565 = vmatpush2.msra.mxu0 0.0
        %6566 = vmatprep.subr.mxu0 0.0
        %6567 = vmatpush2.msra.mxu0 0.0
        %6568 = vmatprep.subr.mxu0 0.0
        %6569 = vmatpush2.msra.mxu0 0.0
        %6570 = vmatprep.subr.mxu0 0.0
        %6571 = vmatpush2.msra.mxu0 0.0
        %6572 = vmatprep.subr.mxu0 0.0
        %6573 = vmatpush2.msra.mxu0 0.0
        %6574 = vmatprep.mubr.f32.mxu0 0.0
        %6575 = vmatmul.mubr.f32.gmra.mxu0 %v6505
        %v6576 = vpop.f32.mrf.mxu0
        %v6577 = vadd.f32 0.0, %v6576
        %v6578 = vpop.f32.mrf.mxu0
        %6579 = vmatprep.mubr.f32.mxu0 0.0
        %6580 = vmatmul.mubr.f32.gmra.mxu0 %v6508
        %v6581 = vpop.f32.mrf.mxu0
        %v6582 = vadd.f32 0.0, %v6581
        %v6583 = vpop.f32.mrf.mxu0
        %6584 = vdwg.mxu0
        %6585 = vrot.lane.b32.xlu0 %v813, 96
        %v6586 = vpop.permute.xlu0 %6585
        %6587 = vrot.lane.b32.xlu0 %v818, 96
        %v6588 = vpop.permute.xlu0 %6587
        %v6592 = vsel %vm273, %v4134, 0
        %v6595 = vsel %vm273, %v4136, 0
        %6597 = vmatprep.subr.mxu0 0.0
        %6598 = vmatpush1.msra.mxu0 0.0
        %6599 = vmatprep.subr.mxu0 0.0
        %6600 = vmatpush1.msra.mxu0 0.0
        %6601 = vmatprep.subr.mxu0 0.0
        %6602 = vmatpush1.msra.mxu0 0.0
        %6603 = vmatprep.subr.mxu0 0.0
        %6604 = vmatpush1.msra.mxu0 0.0
        %6605 = vmatprep.subr.mxu0 0.0
        %6606 = vmatpush1.msra.mxu0 0.0
        %6607 = vmatprep.subr.mxu0 0.0
        %6608 = vmatpush1.msra.mxu0 0.0
        %6609 = vmatprep.subr.mxu0 0.0
        %6610 = vmatpush1.msra.mxu0 0.0
        %6611 = vmatprep.subr.mxu0 0.0
        %6612 = vmatpush1.msra.mxu0 0.0
        %6613 = vmatprep.subr.mxu0 0.0
        %6614 = vmatpush1.msra.mxu0 0.0
        %6615 = vmatprep.subr.mxu0 0.0
        %6616 = vmatpush1.msra.mxu0 0.0
        %6617 = vmatprep.subr.mxu0 0.0
        %6618 = vmatpush1.msra.mxu0 0.0
        %6619 = vmatprep.subr.mxu0 0.0
        %6620 = vmatpush1.msra.mxu0 0.0
        %6621 = vmatprep.subr.mxu0 0.0
        %6622 = vmatpush1.msra.mxu0 0.0
        %6623 = vmatprep.subr.mxu0 0.0
        %6624 = vmatpush1.msra.mxu0 0.0
        %6625 = vmatprep.subr.mxu0 0.0
        %6626 = vmatpush1.msra.mxu0 %v6588
        %6627 = vmatprep.subr.mxu0 0.0
        %6628 = vmatpush1.msra.mxu0 %v6586
        %6629 = vmatprep.subr.mxu0 0.0
        %6630 = vmatpush2.msra.mxu0 0.0
        %6631 = vmatprep.subr.mxu0 0.0
        %6632 = vmatpush2.msra.mxu0 0.0
        %6633 = vmatprep.subr.mxu0 0.0
        %6634 = vmatpush2.msra.mxu0 0.0
        %6635 = vmatprep.subr.mxu0 0.0
        %6636 = vmatpush2.msra.mxu0 0.0
        %6637 = vmatprep.subr.mxu0 0.0
        %6638 = vmatpush2.msra.mxu0 0.0
        %6639 = vmatprep.subr.mxu0 0.0
        %6640 = vmatpush2.msra.mxu0 0.0
        %6641 = vmatprep.subr.mxu0 0.0
        %6642 = vmatpush2.msra.mxu0 0.0
        %6643 = vmatprep.subr.mxu0 0.0
        %6644 = vmatpush2.msra.mxu0 0.0
        %6645 = vmatprep.subr.mxu0 0.0
        %6646 = vmatpush2.msra.mxu0 0.0
        %6647 = vmatprep.subr.mxu0 0.0
        %6648 = vmatpush2.msra.mxu0 0.0
        %6649 = vmatprep.subr.mxu0 0.0
        %6650 = vmatpush2.msra.mxu0 0.0
        %6651 = vmatprep.subr.mxu0 0.0
        %6652 = vmatpush2.msra.mxu0 0.0
        %6653 = vmatprep.subr.mxu0 0.0
        %6654 = vmatpush2.msra.mxu0 0.0
        %6655 = vmatprep.subr.mxu0 0.0
        %6656 = vmatpush2.msra.mxu0 0.0
        %6657 = vmatprep.subr.mxu0 0.0
        %6658 = vmatpush2.msra.mxu0 0.0
        %6659 = vmatprep.subr.mxu0 0.0
        %6660 = vmatpush2.msra.mxu0 0.0
        %6661 = vmatprep.mubr.f32.mxu0 0.0
        %6662 = vmatmul.mubr.f32.gmra.mxu0 %v6592
        %v6663 = vpop.f32.mrf.mxu0
        %v6664 = vadd.f32 0.0, %v6663
        %v6665 = vpop.f32.mrf.mxu0
        %6666 = vmatprep.mubr.f32.mxu0 0.0
        %6667 = vmatmul.mubr.f32.gmra.mxu0 %v6595
        %v6668 = vpop.f32.mrf.mxu0
        %v6669 = vadd.f32 0.0, %v6668
        %v6670 = vpop.f32.mrf.mxu0
        %6671 = vdwg.mxu0
        %6672 = vrot.lane.b32.xlu0 %v823, 96
        %v6673 = vpop.permute.xlu0 %6672
        %6674 = vrot.lane.b32.xlu0 %v828, 96
        %v6675 = vpop.permute.xlu0 %6674
        %v6679 = vsel %vm273, %v4138, 0
        %v6682 = vsel %vm273, %v4140, 0
        %6684 = vmatprep.subr.mxu0 0.0
        %6685 = vmatpush1.msra.mxu0 0.0
        %6686 = vmatprep.subr.mxu0 0.0
        %6687 = vmatpush1.msra.mxu0 0.0
        %6688 = vmatprep.subr.mxu0 0.0
        %6689 = vmatpush1.msra.mxu0 0.0
        %6690 = vmatprep.subr.mxu0 0.0
        %6691 = vmatpush1.msra.mxu0 0.0
        %6692 = vmatprep.subr.mxu0 0.0
        %6693 = vmatpush1.msra.mxu0 0.0
        %6694 = vmatprep.subr.mxu0 0.0
        %6695 = vmatpush1.msra.mxu0 0.0
        %6696 = vmatprep.subr.mxu0 0.0
        %6697 = vmatpush1.msra.mxu0 0.0
        %6698 = vmatprep.subr.mxu0 0.0
        %6699 = vmatpush1.msra.mxu0 0.0
        %6700 = vmatprep.subr.mxu0 0.0
        %6701 = vmatpush1.msra.mxu0 0.0
        %6702 = vmatprep.subr.mxu0 0.0
        %6703 = vmatpush1.msra.mxu0 0.0
        %6704 = vmatprep.subr.mxu0 0.0
        %6705 = vmatpush1.msra.mxu0 0.0
        %6706 = vmatprep.subr.mxu0 0.0
        %6707 = vmatpush1.msra.mxu0 0.0
        %6708 = vmatprep.subr.mxu0 0.0
        %6709 = vmatpush1.msra.mxu0 0.0
        %6710 = vmatprep.subr.mxu0 0.0
        %6711 = vmatpush1.msra.mxu0 0.0
        %6712 = vmatprep.subr.mxu0 0.0
        %6713 = vmatpush1.msra.mxu0 %v6675
        %6714 = vmatprep.subr.mxu0 0.0
        %6715 = vmatpush1.msra.mxu0 %v6673
        %6716 = vmatprep.subr.mxu0 0.0
        %6717 = vmatpush2.msra.mxu0 0.0
        %6718 = vmatprep.subr.mxu0 0.0
        %6719 = vmatpush2.msra.mxu0 0.0
        %6720 = vmatprep.subr.mxu0 0.0
        %6721 = vmatpush2.msra.mxu0 0.0
        %6722 = vmatprep.subr.mxu0 0.0
        %6723 = vmatpush2.msra.mxu0 0.0
        %6724 = vmatprep.subr.mxu0 0.0
        %6725 = vmatpush2.msra.mxu0 0.0
        %6726 = vmatprep.subr.mxu0 0.0
        %6727 = vmatpush2.msra.mxu0 0.0
        %6728 = vmatprep.subr.mxu0 0.0
        %6729 = vmatpush2.msra.mxu0 0.0
        %6730 = vmatprep.subr.mxu0 0.0
        %6731 = vmatpush2.msra.mxu0 0.0
        %6732 = vmatprep.subr.mxu0 0.0
        %6733 = vmatpush2.msra.mxu0 0.0
        %6734 = vmatprep.subr.mxu0 0.0
        %6735 = vmatpush2.msra.mxu0 0.0
        %6736 = vmatprep.subr.mxu0 0.0
        %6737 = vmatpush2.msra.mxu0 0.0
        %6738 = vmatprep.subr.mxu0 0.0
        %6739 = vmatpush2.msra.mxu0 0.0
        %6740 = vmatprep.subr.mxu0 0.0
        %6741 = vmatpush2.msra.mxu0 0.0
        %6742 = vmatprep.subr.mxu0 0.0
        %6743 = vmatpush2.msra.mxu0 0.0
        %6744 = vmatprep.subr.mxu0 0.0
        %6745 = vmatpush2.msra.mxu0 0.0
        %6746 = vmatprep.subr.mxu0 0.0
        %6747 = vmatpush2.msra.mxu0 0.0
        %6748 = vmatprep.mubr.f32.mxu0 0.0
        %6749 = vmatmul.mubr.f32.gmra.mxu0 %v6679
        %v6750 = vpop.f32.mrf.mxu0
        %v6751 = vadd.f32 0.0, %v6750
        %v6752 = vpop.f32.mrf.mxu0
        %6753 = vmatprep.mubr.f32.mxu0 0.0
        %6754 = vmatmul.mubr.f32.gmra.mxu0 %v6682
        %v6755 = vpop.f32.mrf.mxu0
        %v6756 = vadd.f32 0.0, %v6755
        %v6757 = vpop.f32.mrf.mxu0
        %6758 = vdwg.mxu0
        %6759 = vrot.lane.b32.xlu0 %v833, 96
        %v6760 = vpop.permute.xlu0 %6759
        %6761 = vrot.lane.b32.xlu0 %v838, 96
        %v6762 = vpop.permute.xlu0 %6761
        %v6766 = vsel %vm273, %v4142, 0
        %v6769 = vsel %vm273, %v4144, 0
        %6771 = vmatprep.subr.mxu0 0.0
        %6772 = vmatpush1.msra.mxu0 0.0
        %6773 = vmatprep.subr.mxu0 0.0
        %6774 = vmatpush1.msra.mxu0 0.0
        %6775 = vmatprep.subr.mxu0 0.0
        %6776 = vmatpush1.msra.mxu0 0.0
        %6777 = vmatprep.subr.mxu0 0.0
        %6778 = vmatpush1.msra.mxu0 0.0
        %6779 = vmatprep.subr.mxu0 0.0
        %6780 = vmatpush1.msra.mxu0 0.0
        %6781 = vmatprep.subr.mxu0 0.0
        %6782 = vmatpush1.msra.mxu0 0.0
        %6783 = vmatprep.subr.mxu0 0.0
        %6784 = vmatpush1.msra.mxu0 0.0
        %6785 = vmatprep.subr.mxu0 0.0
        %6786 = vmatpush1.msra.mxu0 0.0
        %6787 = vmatprep.subr.mxu0 0.0
        %6788 = vmatpush1.msra.mxu0 0.0
        %6789 = vmatprep.subr.mxu0 0.0
        %6790 = vmatpush1.msra.mxu0 0.0
        %6791 = vmatprep.subr.mxu0 0.0
        %6792 = vmatpush1.msra.mxu0 0.0
        %6793 = vmatprep.subr.mxu0 0.0
        %6794 = vmatpush1.msra.mxu0 0.0
        %6795 = vmatprep.subr.mxu0 0.0
        %6796 = vmatpush1.msra.mxu0 0.0
        %6797 = vmatprep.subr.mxu0 0.0
        %6798 = vmatpush1.msra.mxu0 0.0
        %6799 = vmatprep.subr.mxu0 0.0
        %6800 = vmatpush1.msra.mxu0 %v6762
        %6801 = vmatprep.subr.mxu0 0.0
        %6802 = vmatpush1.msra.mxu0 %v6760
        %6803 = vmatprep.subr.mxu0 0.0
        %6804 = vmatpush2.msra.mxu0 0.0
        %6805 = vmatprep.subr.mxu0 0.0
        %6806 = vmatpush2.msra.mxu0 0.0
        %6807 = vmatprep.subr.mxu0 0.0
        %6808 = vmatpush2.msra.mxu0 0.0
        %6809 = vmatprep.subr.mxu0 0.0
        %6810 = vmatpush2.msra.mxu0 0.0
        %6811 = vmatprep.subr.mxu0 0.0
        %6812 = vmatpush2.msra.mxu0 0.0
        %6813 = vmatprep.subr.mxu0 0.0
        %6814 = vmatpush2.msra.mxu0 0.0
        %6815 = vmatprep.subr.mxu0 0.0
        %6816 = vmatpush2.msra.mxu0 0.0
        %6817 = vmatprep.subr.mxu0 0.0
        %6818 = vmatpush2.msra.mxu0 0.0
        %6819 = vmatprep.subr.mxu0 0.0
        %6820 = vmatpush2.msra.mxu0 0.0
        %6821 = vmatprep.subr.mxu0 0.0
        %6822 = vmatpush2.msra.mxu0 0.0
        %6823 = vmatprep.subr.mxu0 0.0
        %6824 = vmatpush2.msra.mxu0 0.0
        %6825 = vmatprep.subr.mxu0 0.0
        %6826 = vmatpush2.msra.mxu0 0.0
        %6827 = vmatprep.subr.mxu0 0.0
        %6828 = vmatpush2.msra.mxu0 0.0
        %6829 = vmatprep.subr.mxu0 0.0
        %6830 = vmatpush2.msra.mxu0 0.0
        %6831 = vmatprep.subr.mxu0 0.0
        %6832 = vmatpush2.msra.mxu0 0.0
        %6833 = vmatprep.subr.mxu0 0.0
        %6834 = vmatpush2.msra.mxu0 0.0
        %6835 = vmatprep.mubr.f32.mxu0 0.0
        %6836 = vmatmul.mubr.f32.gmra.mxu0 %v6766
        %v6837 = vpop.f32.mrf.mxu0
        %v6838 = vadd.f32 0.0, %v6837
        %v6839 = vpop.f32.mrf.mxu0
        %6840 = vmatprep.mubr.f32.mxu0 0.0
        %6841 = vmatmul.mubr.f32.gmra.mxu0 %v6769
        %v6842 = vpop.f32.mrf.mxu0
        %v6843 = vadd.f32 0.0, %v6842
        %v6844 = vpop.f32.mrf.mxu0
        %6845 = vdwg.mxu0
        %6846 = vrot.lane.b32.xlu0 %v843, 96
        %v6847 = vpop.permute.xlu0 %6846
        %6848 = vrot.lane.b32.xlu0 %v848, 96
        %v6849 = vpop.permute.xlu0 %6848
        %v6853 = vsel %vm273, %v4146, 0
        %v6856 = vsel %vm273, %v4148, 0
        %6858 = vmatprep.subr.mxu0 0.0
        %6859 = vmatpush1.msra.mxu0 0.0
        %6860 = vmatprep.subr.mxu0 0.0
        %6861 = vmatpush1.msra.mxu0 0.0
        %6862 = vmatprep.subr.mxu0 0.0
        %6863 = vmatpush1.msra.mxu0 0.0
        %6864 = vmatprep.subr.mxu0 0.0
        %6865 = vmatpush1.msra.mxu0 0.0
        %6866 = vmatprep.subr.mxu0 0.0
        %6867 = vmatpush1.msra.mxu0 0.0
        %6868 = vmatprep.subr.mxu0 0.0
        %6869 = vmatpush1.msra.mxu0 0.0
        %6870 = vmatprep.subr.mxu0 0.0
        %6871 = vmatpush1.msra.mxu0 0.0
        %6872 = vmatprep.subr.mxu0 0.0
        %6873 = vmatpush1.msra.mxu0 0.0
        %6874 = vmatprep.subr.mxu0 0.0
        %6875 = vmatpush1.msra.mxu0 0.0
        %6876 = vmatprep.subr.mxu0 0.0
        %6877 = vmatpush1.msra.mxu0 0.0
        %6878 = vmatprep.subr.mxu0 0.0
        %6879 = vmatpush1.msra.mxu0 0.0
        %6880 = vmatprep.subr.mxu0 0.0
        %6881 = vmatpush1.msra.mxu0 0.0
        %6882 = vmatprep.subr.mxu0 0.0
        %6883 = vmatpush1.msra.mxu0 0.0
        %6884 = vmatprep.subr.mxu0 0.0
        %6885 = vmatpush1.msra.mxu0 0.0
        %6886 = vmatprep.subr.mxu0 0.0
        %6887 = vmatpush1.msra.mxu0 %v6849
        %6888 = vmatprep.subr.mxu0 0.0
        %6889 = vmatpush1.msra.mxu0 %v6847
        %6890 = vmatprep.subr.mxu0 0.0
        %6891 = vmatpush2.msra.mxu0 0.0
        %6892 = vmatprep.subr.mxu0 0.0
        %6893 = vmatpush2.msra.mxu0 0.0
        %6894 = vmatprep.subr.mxu0 0.0
        %6895 = vmatpush2.msra.mxu0 0.0
        %6896 = vmatprep.subr.mxu0 0.0
        %6897 = vmatpush2.msra.mxu0 0.0
        %6898 = vmatprep.subr.mxu0 0.0
        %6899 = vmatpush2.msra.mxu0 0.0
        %6900 = vmatprep.subr.mxu0 0.0
        %6901 = vmatpush2.msra.mxu0 0.0
        %6902 = vmatprep.subr.mxu0 0.0
        %6903 = vmatpush2.msra.mxu0 0.0
        %6904 = vmatprep.subr.mxu0 0.0
        %6905 = vmatpush2.msra.mxu0 0.0
        %6906 = vmatprep.subr.mxu0 0.0
        %6907 = vmatpush2.msra.mxu0 0.0
        %6908 = vmatprep.subr.mxu0 0.0
        %6909 = vmatpush2.msra.mxu0 0.0
        %6910 = vmatprep.subr.mxu0 0.0
        %6911 = vmatpush2.msra.mxu0 0.0
        %6912 = vmatprep.subr.mxu0 0.0
        %6913 = vmatpush2.msra.mxu0 0.0
        %6914 = vmatprep.subr.mxu0 0.0
        %6915 = vmatpush2.msra.mxu0 0.0
        %6916 = vmatprep.subr.mxu0 0.0
        %6917 = vmatpush2.msra.mxu0 0.0
        %6918 = vmatprep.subr.mxu0 0.0
        %6919 = vmatpush2.msra.mxu0 0.0
        %6920 = vmatprep.subr.mxu0 0.0
        %6921 = vmatpush2.msra.mxu0 0.0
        %6922 = vmatprep.mubr.f32.mxu0 0.0
        %6923 = vmatmul.mubr.f32.gmra.mxu0 %v6853
        %v6924 = vpop.f32.mrf.mxu0
        %v6925 = vadd.f32 0.0, %v6924
        %v6926 = vpop.f32.mrf.mxu0
        %6927 = vmatprep.mubr.f32.mxu0 0.0
        %6928 = vmatmul.mubr.f32.gmra.mxu0 %v6856
        %v6929 = vpop.f32.mrf.mxu0
        %v6930 = vadd.f32 0.0, %v6929
        %v6931 = vpop.f32.mrf.mxu0
        %6932 = vdwg.mxu0
        %v6933 = vrcp.pop %v4228
        %v6934 = vrcp.pop %v4233
        %v6935 = vrcp.pop %v4315
        %v6936 = vrcp.pop %v4320
        %v6937 = vrcp.pop %v4402
        %v6938 = vrcp.pop %v4407
        %v6939 = vrcp.pop %v4489
        %v6940 = vrcp.pop %v4494
        %v6941 = vrcp.pop %v4576
        %v6942 = vrcp.pop %v4581
        %v6943 = vrcp.pop %v4663
        %v6944 = vrcp.pop %v4668
        %v6945 = vrcp.pop %v4750
        %v6946 = vrcp.pop %v4755
        %v6947 = vrcp.pop %v4837
        %v6948 = vrcp.pop %v4842
        %v6949 = vrcp.pop %v4924
        %v6950 = vrcp.pop %v4929
        %v6951 = vrcp.pop %v5011
        %v6952 = vrcp.pop %v5016
        %v6953 = vrcp.pop %v5098
        %v6954 = vrcp.pop %v5103
        %v6955 = vrcp.pop %v5185
        %v6956 = vrcp.pop %v5190
        %v6957 = vrcp.pop %v5272
        %v6958 = vrcp.pop %v5277
        %v6959 = vrcp.pop %v5359
        %v6960 = vrcp.pop %v5364
        %v6961 = vrcp.pop %v5446
        %v6962 = vrcp.pop %v5451
        %v6963 = vrcp.pop %v5533
        %v6964 = vrcp.pop %v5538
        %v6965 = vrcp.pop %v5620
        %v6966 = vrcp.pop %v5625
        %v6967 = vrcp.pop %v5707
        %v6968 = vrcp.pop %v5712
        %v6969 = vrcp.pop %v5794
        %v6970 = vrcp.pop %v5799
        %v6971 = vrcp.pop %v5881
        %v6972 = vrcp.pop %v5886
        %v6973 = vrcp.pop %v5968
        %v6974 = vrcp.pop %v5973
        %v6975 = vrcp.pop %v6055
        %v6976 = vrcp.pop %v6060
        %v6977 = vrcp.pop %v6142
        %v6978 = vrcp.pop %v6147
        %v6979 = vrcp.pop %v6229
        %v6980 = vrcp.pop %v6234
        %v6981 = vrcp.pop %v6316
        %v6982 = vrcp.pop %v6321
        %v6983 = vrcp.pop %v6403
        %v6984 = vrcp.pop %v6408
        %v6985 = vrcp.pop %v6490
        %v6986 = vrcp.pop %v6495
        %v6987 = vrcp.pop %v6577
        %v6988 = vrcp.pop %v6582
        %v6989 = vrcp.pop %v6664
        %v6990 = vrcp.pop %v6669
        %v6991 = vrcp.pop %v6751
        %v6992 = vrcp.pop %v6756
        %v6993 = vrcp.pop %v6838
        %v6994 = vrcp.pop %v6843
        %v6995 = vrcp.pop %v6925
        %v6996 = vrcp.pop %v6930
        %7061 = vrot.lane.b32.xlu0 %v6933, 127
        %v7062 = vpop.permute.xlu0 %7061
        %7063 = vrot.lane.b32.xlu0 %v6934, 127
        %v7064 = vpop.permute.xlu0 %7063
        %7065 = vrot.lane.b32.xlu0 %v6935, 127
        %v7066 = vpop.permute.xlu0 %7065
        %7067 = vrot.lane.b32.xlu0 %v6936, 127
        %v7068 = vpop.permute.xlu0 %7067
        %7069 = vrot.lane.b32.xlu0 %v6937, 127
        %v7070 = vpop.permute.xlu0 %7069
        %7071 = vrot.lane.b32.xlu0 %v6938, 127
        %v7072 = vpop.permute.xlu0 %7071
        %7073 = vrot.lane.b32.xlu0 %v6939, 127
        %v7074 = vpop.permute.xlu0 %7073
        %7075 = vrot.lane.b32.xlu0 %v6940, 127
        %v7076 = vpop.permute.xlu0 %7075
        %7077 = vrot.lane.b32.xlu0 %v6941, 127
        %v7078 = vpop.permute.xlu0 %7077
        %7079 = vrot.lane.b32.xlu0 %v6942, 127
        %v7080 = vpop.permute.xlu0 %7079
        %7081 = vrot.lane.b32.xlu0 %v6943, 127
        %v7082 = vpop.permute.xlu0 %7081
        %7083 = vrot.lane.b32.xlu0 %v6944, 127
        %v7084 = vpop.permute.xlu0 %7083
        %7085 = vrot.lane.b32.xlu0 %v6945, 127
        %v7086 = vpop.permute.xlu0 %7085
        %7087 = vrot.lane.b32.xlu0 %v6946, 127
        %v7088 = vpop.permute.xlu0 %7087
        %7089 = vrot.lane.b32.xlu0 %v6947, 127
        %v7090 = vpop.permute.xlu0 %7089
        %7091 = vrot.lane.b32.xlu0 %v6948, 127
        %v7092 = vpop.permute.xlu0 %7091
        %7093 = vrot.lane.b32.xlu0 %v6949, 127
        %v7094 = vpop.permute.xlu0 %7093
        %7095 = vrot.lane.b32.xlu0 %v6950, 127
        %v7096 = vpop.permute.xlu0 %7095
        %7097 = vrot.lane.b32.xlu0 %v6951, 127
        %v7098 = vpop.permute.xlu0 %7097
        %7099 = vrot.lane.b32.xlu0 %v6952, 127
        %v7100 = vpop.permute.xlu0 %7099
        %7101 = vrot.lane.b32.xlu0 %v6953, 127
        %v7102 = vpop.permute.xlu0 %7101
        %7103 = vrot.lane.b32.xlu0 %v6954, 127
        %v7104 = vpop.permute.xlu0 %7103
        %7105 = vrot.lane.b32.xlu0 %v6955, 127
        %v7106 = vpop.permute.xlu0 %7105
        %7107 = vrot.lane.b32.xlu0 %v6956, 127
        %v7108 = vpop.permute.xlu0 %7107
        %7109 = vrot.lane.b32.xlu0 %v6957, 127
        %v7110 = vpop.permute.xlu0 %7109
        %7111 = vrot.lane.b32.xlu0 %v6958, 127
        %v7112 = vpop.permute.xlu0 %7111
        %7113 = vrot.lane.b32.xlu0 %v6959, 127
        %v7114 = vpop.permute.xlu0 %7113
        %7115 = vrot.lane.b32.xlu0 %v6960, 127
        %v7116 = vpop.permute.xlu0 %7115
        %7117 = vrot.lane.b32.xlu0 %v6961, 127
        %v7118 = vpop.permute.xlu0 %7117
        %7119 = vrot.lane.b32.xlu0 %v6962, 127
        %v7120 = vpop.permute.xlu0 %7119
        %7121 = vrot.lane.b32.xlu0 %v6963, 127
        %v7122 = vpop.permute.xlu0 %7121
        %7123 = vrot.lane.b32.xlu0 %v6964, 127
        %v7124 = vpop.permute.xlu0 %7123
        %7125 = vrot.lane.b32.xlu0 %v6965, 127
        %v7126 = vpop.permute.xlu0 %7125
        %7127 = vrot.lane.b32.xlu0 %v6966, 127
        %v7128 = vpop.permute.xlu0 %7127
        %7129 = vrot.lane.b32.xlu0 %v6967, 127
        %v7130 = vpop.permute.xlu0 %7129
        %7131 = vrot.lane.b32.xlu0 %v6968, 127
        %v7132 = vpop.permute.xlu0 %7131
        %7133 = vrot.lane.b32.xlu0 %v6969, 127
        %v7134 = vpop.permute.xlu0 %7133
        %7135 = vrot.lane.b32.xlu0 %v6970, 127
        %v7136 = vpop.permute.xlu0 %7135
        %7137 = vrot.lane.b32.xlu0 %v6971, 127
        %v7138 = vpop.permute.xlu0 %7137
        %7139 = vrot.lane.b32.xlu0 %v6972, 127
        %v7140 = vpop.permute.xlu0 %7139
        %7141 = vrot.lane.b32.xlu0 %v6973, 127
        %v7142 = vpop.permute.xlu0 %7141
        %7143 = vrot.lane.b32.xlu0 %v6974, 127
        %v7144 = vpop.permute.xlu0 %7143
        %7145 = vrot.lane.b32.xlu0 %v6975, 127
        %v7146 = vpop.permute.xlu0 %7145
        %7147 = vrot.lane.b32.xlu0 %v6976, 127
        %v7148 = vpop.permute.xlu0 %7147
        %7149 = vrot.lane.b32.xlu0 %v6977, 127
        %v7150 = vpop.permute.xlu0 %7149
        %7151 = vrot.lane.b32.xlu0 %v6978, 127
        %v7152 = vpop.permute.xlu0 %7151
        %7153 = vrot.lane.b32.xlu0 %v6979, 127
        %v7154 = vpop.permute.xlu0 %7153
        %7155 = vrot.lane.b32.xlu0 %v6980, 127
        %v7156 = vpop.permute.xlu0 %7155
        %7157 = vrot.lane.b32.xlu0 %v6981, 127
        %v7158 = vpop.permute.xlu0 %7157
        %7159 = vrot.lane.b32.xlu0 %v6982, 127
        %v7160 = vpop.permute.xlu0 %7159
        %7161 = vrot.lane.b32.xlu0 %v6983, 127
        %v7162 = vpop.permute.xlu0 %7161
        %7163 = vrot.lane.b32.xlu0 %v6984, 127
        %v7164 = vpop.permute.xlu0 %7163
        %7165 = vrot.lane.b32.xlu0 %v6985, 127
        %v7166 = vpop.permute.xlu0 %7165
        %7167 = vrot.lane.b32.xlu0 %v6986, 127
        %v7168 = vpop.permute.xlu0 %7167
        %7169 = vrot.lane.b32.xlu0 %v6987, 127
        %v7170 = vpop.permute.xlu0 %7169
        %7171 = vrot.lane.b32.xlu0 %v6988, 127
        %v7172 = vpop.permute.xlu0 %7171
        %7173 = vrot.lane.b32.xlu0 %v6989, 127
        %v7174 = vpop.permute.xlu0 %7173
        %7175 = vrot.lane.b32.xlu0 %v6990, 127
        %v7176 = vpop.permute.xlu0 %7175
        %7177 = vrot.lane.b32.xlu0 %v6991, 127
        %v7178 = vpop.permute.xlu0 %7177
        %7179 = vrot.lane.b32.xlu0 %v6992, 127
        %v7180 = vpop.permute.xlu0 %7179
        %7181 = vrot.lane.b32.xlu0 %v6993, 127
        %v7182 = vpop.permute.xlu0 %7181
        %7183 = vrot.lane.b32.xlu0 %v6994, 127
        %v7184 = vpop.permute.xlu0 %7183
        %7185 = vrot.lane.b32.xlu0 %v6995, 127
        %v7186 = vpop.permute.xlu0 %7185
        %7187 = vrot.lane.b32.xlu0 %v6996, 127
        %v7188 = vpop.permute.xlu0 %7187
        %v7253 = vmul.f32 %v4228, %v7062
        %v7254 = vmul.f32 %v4233, %v7064
        %v7255 = vmul.f32 %v4315, %v7066
        %v7256 = vmul.f32 %v4320, %v7068
        %v7257 = vmul.f32 %v4402, %v7070
        %v7258 = vmul.f32 %v4407, %v7072
        %v7259 = vmul.f32 %v4489, %v7074
        %v7260 = vmul.f32 %v4494, %v7076
        %v7261 = vmul.f32 %v4576, %v7078
        %v7262 = vmul.f32 %v4581, %v7080
        %v7263 = vmul.f32 %v4663, %v7082
        %v7264 = vmul.f32 %v4668, %v7084
        %v7265 = vmul.f32 %v4750, %v7086
        %v7266 = vmul.f32 %v4755, %v7088
        %v7267 = vmul.f32 %v4837, %v7090
        %v7268 = vmul.f32 %v4842, %v7092
        %v7269 = vmul.f32 %v4924, %v7094
        %v7270 = vmul.f32 %v4929, %v7096
        %v7271 = vmul.f32 %v5011, %v7098
        %v7272 = vmul.f32 %v5016, %v7100
        %v7273 = vmul.f32 %v5098, %v7102
        %v7274 = vmul.f32 %v5103, %v7104
        %v7275 = vmul.f32 %v5185, %v7106
        %v7276 = vmul.f32 %v5190, %v7108
        %v7277 = vmul.f32 %v5272, %v7110
        %v7278 = vmul.f32 %v5277, %v7112
        %v7279 = vmul.f32 %v5359, %v7114
        %v7280 = vmul.f32 %v5364, %v7116
        %v7281 = vmul.f32 %v5446, %v7118
        %v7282 = vmul.f32 %v5451, %v7120
        %v7283 = vmul.f32 %v5533, %v7122
        %v7284 = vmul.f32 %v5538, %v7124
        %v7285 = vmul.f32 %v5620, %v7126
        %v7286 = vmul.f32 %v5625, %v7128
        %v7287 = vmul.f32 %v5707, %v7130
        %v7288 = vmul.f32 %v5712, %v7132
        %v7289 = vmul.f32 %v5794, %v7134
        %v7290 = vmul.f32 %v5799, %v7136
        %v7291 = vmul.f32 %v5881, %v7138
        %v7292 = vmul.f32 %v5886, %v7140
        %v7293 = vmul.f32 %v5968, %v7142
        %v7294 = vmul.f32 %v5973, %v7144
        %v7295 = vmul.f32 %v6055, %v7146
        %v7296 = vmul.f32 %v6060, %v7148
        %v7297 = vmul.f32 %v6142, %v7150
        %v7298 = vmul.f32 %v6147, %v7152
        %v7299 = vmul.f32 %v6229, %v7154
        %v7300 = vmul.f32 %v6234, %v7156
        %v7301 = vmul.f32 %v6316, %v7158
        %v7302 = vmul.f32 %v6321, %v7160
        %v7303 = vmul.f32 %v6403, %v7162
        %v7304 = vmul.f32 %v6408, %v7164
        %v7305 = vmul.f32 %v6490, %v7166
        %v7306 = vmul.f32 %v6495, %v7168
        %v7307 = vmul.f32 %v6577, %v7170
        %v7308 = vmul.f32 %v6582, %v7172
        %v7309 = vmul.f32 %v6664, %v7174
        %v7310 = vmul.f32 %v6669, %v7176
        %v7311 = vmul.f32 %v6751, %v7178
        %v7312 = vmul.f32 %v6756, %v7180
        %v7313 = vmul.f32 %v6838, %v7182
        %v7314 = vmul.f32 %v6843, %v7184
        %v7315 = vmul.f32 %v6925, %v7186
        %v7316 = vmul.f32 %v6930, %v7188
        %v7317 = vld [vmem:[%s3] sm:$0xff]
        %v7318 = vld [vmem:[%s3 + $0x8] sm:$0xff]
        %7383 = vset.pattern.permute.xlu0 0
        %7384 = vperm.xlu0 %7383, %v7253
        %v7385 = vpop.permute.xlu0 %7384
        %7386 = vset.pattern.permute.xlu0 0
        %7387 = vperm.xlu0 %7386, %v7254
        %v7388 = vpop.permute.xlu0 %7387
        %7389 = vset.pattern.permute.xlu0 0
        %7390 = vperm.xlu0 %7389, %v7255
        %v7391 = vpop.permute.xlu0 %7390
        %7392 = vset.pattern.permute.xlu0 0
        %7393 = vperm.xlu0 %7392, %v7256
        %v7394 = vpop.permute.xlu0 %7393
        %7395 = vset.pattern.permute.xlu0 0
        %7396 = vperm.xlu0 %7395, %v7257
        %v7397 = vpop.permute.xlu0 %7396
        %7398 = vset.pattern.permute.xlu0 0
        %7399 = vperm.xlu0 %7398, %v7258
        %v7400 = vpop.permute.xlu0 %7399
        %7401 = vset.pattern.permute.xlu0 0
        %7402 = vperm.xlu0 %7401, %v7259
        %v7403 = vpop.permute.xlu0 %7402
        %7404 = vset.pattern.permute.xlu0 0
        %7405 = vperm.xlu0 %7404, %v7260
        %v7406 = vpop.permute.xlu0 %7405
        %7407 = vset.pattern.permute.xlu0 0
        %7408 = vperm.xlu0 %7407, %v7261
        %v7409 = vpop.permute.xlu0 %7408
        %7410 = vset.pattern.permute.xlu0 0
        %7411 = vperm.xlu0 %7410, %v7262
        %v7412 = vpop.permute.xlu0 %7411
        %7413 = vset.pattern.permute.xlu0 0
        %7414 = vperm.xlu0 %7413, %v7263
        %v7415 = vpop.permute.xlu0 %7414
        %7416 = vset.pattern.permute.xlu0 0
        %7417 = vperm.xlu0 %7416, %v7264
        %v7418 = vpop.permute.xlu0 %7417
        %7419 = vset.pattern.permute.xlu0 0
        %7420 = vperm.xlu0 %7419, %v7265
        %v7421 = vpop.permute.xlu0 %7420
        %7422 = vset.pattern.permute.xlu0 0
        %7423 = vperm.xlu0 %7422, %v7266
        %v7424 = vpop.permute.xlu0 %7423
        %7425 = vset.pattern.permute.xlu0 0
        %7426 = vperm.xlu0 %7425, %v7267
        %v7427 = vpop.permute.xlu0 %7426
        %7428 = vset.pattern.permute.xlu0 0
        %7429 = vperm.xlu0 %7428, %v7268
        %v7430 = vpop.permute.xlu0 %7429
        %7431 = vset.pattern.permute.xlu0 0
        %7432 = vperm.xlu0 %7431, %v7269
        %v7433 = vpop.permute.xlu0 %7432
        %7434 = vset.pattern.permute.xlu0 0
        %7435 = vperm.xlu0 %7434, %v7270
        %v7436 = vpop.permute.xlu0 %7435
        %7437 = vset.pattern.permute.xlu0 0
        %7438 = vperm.xlu0 %7437, %v7271
        %v7439 = vpop.permute.xlu0 %7438
        %7440 = vset.pattern.permute.xlu0 0
        %7441 = vperm.xlu0 %7440, %v7272
        %v7442 = vpop.permute.xlu0 %7441
        %7443 = vset.pattern.permute.xlu0 0
        %7444 = vperm.xlu0 %7443, %v7273
        %v7445 = vpop.permute.xlu0 %7444
        %7446 = vset.pattern.permute.xlu0 0
        %7447 = vperm.xlu0 %7446, %v7274
        %v7448 = vpop.permute.xlu0 %7447
        %7449 = vset.pattern.permute.xlu0 0
        %7450 = vperm.xlu0 %7449, %v7275
        %v7451 = vpop.permute.xlu0 %7450
        %7452 = vset.pattern.permute.xlu0 0
        %7453 = vperm.xlu0 %7452, %v7276
        %v7454 = vpop.permute.xlu0 %7453
        %7455 = vset.pattern.permute.xlu0 0
        %7456 = vperm.xlu0 %7455, %v7277
        %v7457 = vpop.permute.xlu0 %7456
        %7458 = vset.pattern.permute.xlu0 0
        %7459 = vperm.xlu0 %7458, %v7278
        %v7460 = vpop.permute.xlu0 %7459
        %7461 = vset.pattern.permute.xlu0 0
        %7462 = vperm.xlu0 %7461, %v7279
        %v7463 = vpop.permute.xlu0 %7462
        %7464 = vset.pattern.permute.xlu0 0
        %7465 = vperm.xlu0 %7464, %v7280
        %v7466 = vpop.permute.xlu0 %7465
        %7467 = vset.pattern.permute.xlu0 0
        %7468 = vperm.xlu0 %7467, %v7281
        %v7469 = vpop.permute.xlu0 %7468
        %7470 = vset.pattern.permute.xlu0 0
        %7471 = vperm.xlu0 %7470, %v7282
        %v7472 = vpop.permute.xlu0 %7471
        %7473 = vset.pattern.permute.xlu0 0
        %7474 = vperm.xlu0 %7473, %v7283
        %v7475 = vpop.permute.xlu0 %7474
        %7476 = vset.pattern.permute.xlu0 0
        %7477 = vperm.xlu0 %7476, %v7284
        %v7478 = vpop.permute.xlu0 %7477
        %7479 = vset.pattern.permute.xlu0 0
        %7480 = vperm.xlu0 %7479, %v7285
        %v7481 = vpop.permute.xlu0 %7480
        %7482 = vset.pattern.permute.xlu0 0
        %7483 = vperm.xlu0 %7482, %v7286
        %v7484 = vpop.permute.xlu0 %7483
        %7485 = vset.pattern.permute.xlu0 0
        %7486 = vperm.xlu0 %7485, %v7287
        %v7487 = vpop.permute.xlu0 %7486
        %7488 = vset.pattern.permute.xlu0 0
        %7489 = vperm.xlu0 %7488, %v7288
        %v7490 = vpop.permute.xlu0 %7489
        %7491 = vset.pattern.permute.xlu0 0
        %7492 = vperm.xlu0 %7491, %v7289
        %v7493 = vpop.permute.xlu0 %7492
        %7494 = vset.pattern.permute.xlu0 0
        %7495 = vperm.xlu0 %7494, %v7290
        %v7496 = vpop.permute.xlu0 %7495
        %7497 = vset.pattern.permute.xlu0 0
        %7498 = vperm.xlu0 %7497, %v7291
        %v7499 = vpop.permute.xlu0 %7498
        %7500 = vset.pattern.permute.xlu0 0
        %7501 = vperm.xlu0 %7500, %v7292
        %v7502 = vpop.permute.xlu0 %7501
        %7503 = vset.pattern.permute.xlu0 0
        %7504 = vperm.xlu0 %7503, %v7293
        %v7505 = vpop.permute.xlu0 %7504
        %7506 = vset.pattern.permute.xlu0 0
        %7507 = vperm.xlu0 %7506, %v7294
        %v7508 = vpop.permute.xlu0 %7507
        %7509 = vset.pattern.permute.xlu0 0
        %7510 = vperm.xlu0 %7509, %v7295
        %v7511 = vpop.permute.xlu0 %7510
        %7512 = vset.pattern.permute.xlu0 0
        %7513 = vperm.xlu0 %7512, %v7296
        %v7514 = vpop.permute.xlu0 %7513
        %7515 = vset.pattern.permute.xlu0 0
        %7516 = vperm.xlu0 %7515, %v7297
        %v7517 = vpop.permute.xlu0 %7516
        %7518 = vset.pattern.permute.xlu0 0
        %7519 = vperm.xlu0 %7518, %v7298
        %v7520 = vpop.permute.xlu0 %7519
        %7521 = vset.pattern.permute.xlu0 0
        %7522 = vperm.xlu0 %7521, %v7299
        %v7523 = vpop.permute.xlu0 %7522
        %7524 = vset.pattern.permute.xlu0 0
        %7525 = vperm.xlu0 %7524, %v7300
        %v7526 = vpop.permute.xlu0 %7525
        %7527 = vset.pattern.permute.xlu0 0
        %7528 = vperm.xlu0 %7527, %v7301
        %v7529 = vpop.permute.xlu0 %7528
        %7530 = vset.pattern.permute.xlu0 0
        %7531 = vperm.xlu0 %7530, %v7302
        %v7532 = vpop.permute.xlu0 %7531
        %7533 = vset.pattern.permute.xlu0 0
        %7534 = vperm.xlu0 %7533, %v7303
        %v7535 = vpop.permute.xlu0 %7534
        %7536 = vset.pattern.permute.xlu0 0
        %7537 = vperm.xlu0 %7536, %v7304
        %v7538 = vpop.permute.xlu0 %7537
        %7539 = vset.pattern.permute.xlu0 0
        %7540 = vperm.xlu0 %7539, %v7305
        %v7541 = vpop.permute.xlu0 %7540
        %7542 = vset.pattern.permute.xlu0 0
        %7543 = vperm.xlu0 %7542, %v7306
        %v7544 = vpop.permute.xlu0 %7543
        %7545 = vset.pattern.permute.xlu0 0
        %7546 = vperm.xlu0 %7545, %v7307
        %v7547 = vpop.permute.xlu0 %7546
        %7548 = vset.pattern.permute.xlu0 0
        %7549 = vperm.xlu0 %7548, %v7308
        %v7550 = vpop.permute.xlu0 %7549
        %7551 = vset.pattern.permute.xlu0 0
        %7552 = vperm.xlu0 %7551, %v7309
        %v7553 = vpop.permute.xlu0 %7552
        %7554 = vset.pattern.permute.xlu0 0
        %7555 = vperm.xlu0 %7554, %v7310
        %v7556 = vpop.permute.xlu0 %7555
        %7557 = vset.pattern.permute.xlu0 0
        %7558 = vperm.xlu0 %7557, %v7311
        %v7559 = vpop.permute.xlu0 %7558
        %7560 = vset.pattern.permute.xlu0 0
        %7561 = vperm.xlu0 %7560, %v7312
        %v7562 = vpop.permute.xlu0 %7561
        %7563 = vset.pattern.permute.xlu0 0
        %7564 = vperm.xlu0 %7563, %v7313
        %v7565 = vpop.permute.xlu0 %7564
        %7566 = vset.pattern.permute.xlu0 0
        %7567 = vperm.xlu0 %7566, %v7314
        %v7568 = vpop.permute.xlu0 %7567
        %7569 = vset.pattern.permute.xlu0 0
        %7570 = vperm.xlu0 %7569, %v7315
        %v7571 = vpop.permute.xlu0 %7570
        %7572 = vset.pattern.permute.xlu0 0
        %7573 = vperm.xlu0 %7572, %v7316
        %v7574 = vpop.permute.xlu0 %7573
        %v7575 = vlaneseq
        %v7576 = vand.u32 %v7575, 127
        %v7577 = vlaneseq
        %v7578 = vshrl.u32 %v7577, 7
        %v7579 = vsub.s32 %v7576, %v7578
        %v7580 = vrot.slane %v7385, %v7579
        %v7581 = vadd.s32 %v7576, 4294967288
        %v7582 = vlaneseq
        %v7583 = vshrl.u32 %v7582, 7
        %v7584 = vsub.s32 %v7581, %v7583
        %v7585 = vrot.slane %v7388, %v7584
        %vm7586 = vcmask 130112
        %v7587 = vsel %vm7586, %v7585, %v7580
        %v7588 = vlaneseq
        %v7589 = vshrl.u32 %v7588, 7
        %v7590 = vsub.s32 %v7576, %v7589
        %v7591 = vrot.slane %v7391, %v7590
        %v7592 = vlaneseq
        %v7593 = vshrl.u32 %v7592, 7
        %v7594 = vsub.s32 %v7581, %v7593
        %v7595 = vrot.slane %v7394, %v7594
        %v7596 = vsel %vm7586, %v7595, %v7591
        %v7597 = vlaneseq
        %v7598 = vshrl.u32 %v7597, 7
        %v7599 = vsub.s32 %v7576, %v7598
        %v7600 = vrot.slane %v7397, %v7599
        %v7601 = vlaneseq
        %v7602 = vshrl.u32 %v7601, 7
        %v7603 = vsub.s32 %v7581, %v7602
        %v7604 = vrot.slane %v7400, %v7603
        %v7605 = vsel %vm7586, %v7604, %v7600
        %v7606 = vlaneseq
        %v7607 = vshrl.u32 %v7606, 7
        %v7608 = vsub.s32 %v7576, %v7607
        %v7609 = vrot.slane %v7403, %v7608
        %v7610 = vlaneseq
        %v7611 = vshrl.u32 %v7610, 7
        %v7612 = vsub.s32 %v7581, %v7611
        %v7613 = vrot.slane %v7406, %v7612
        %v7614 = vsel %vm7586, %v7613, %v7609
        %v7615 = vlaneseq
        %v7616 = vshrl.u32 %v7615, 7
        %v7617 = vsub.s32 %v7576, %v7616
        %v7618 = vrot.slane %v7409, %v7617
        %v7619 = vlaneseq
        %v7620 = vshrl.u32 %v7619, 7
        %v7621 = vsub.s32 %v7581, %v7620
        %v7622 = vrot.slane %v7412, %v7621
        %v7623 = vsel %vm7586, %v7622, %v7618
        %v7624 = vlaneseq
        %v7625 = vshrl.u32 %v7624, 7
        %v7626 = vsub.s32 %v7576, %v7625
        %v7627 = vrot.slane %v7415, %v7626
        %v7628 = vlaneseq
        %v7629 = vshrl.u32 %v7628, 7
        %v7630 = vsub.s32 %v7581, %v7629
        %v7631 = vrot.slane %v7418, %v7630
        %v7632 = vsel %vm7586, %v7631, %v7627
        %v7633 = vlaneseq
        %v7634 = vshrl.u32 %v7633, 7
        %v7635 = vsub.s32 %v7576, %v7634
        %v7636 = vrot.slane %v7421, %v7635
        %v7637 = vlaneseq
        %v7638 = vshrl.u32 %v7637, 7
        %v7639 = vsub.s32 %v7581, %v7638
        %v7640 = vrot.slane %v7424, %v7639
        %v7641 = vsel %vm7586, %v7640, %v7636
        %v7642 = vlaneseq
        %v7643 = vshrl.u32 %v7642, 7
        %v7644 = vsub.s32 %v7576, %v7643
        %v7645 = vrot.slane %v7427, %v7644
        %v7646 = vlaneseq
        %v7647 = vshrl.u32 %v7646, 7
        %v7648 = vsub.s32 %v7581, %v7647
        %v7649 = vrot.slane %v7430, %v7648
        %v7650 = vsel %vm7586, %v7649, %v7645
        %v7651 = vlaneseq
        %v7652 = vshrl.u32 %v7651, 7
        %v7653 = vsub.s32 %v7576, %v7652
        %v7654 = vrot.slane %v7433, %v7653
        %v7655 = vlaneseq
        %v7656 = vshrl.u32 %v7655, 7
        %v7657 = vsub.s32 %v7581, %v7656
        %v7658 = vrot.slane %v7436, %v7657
        %v7659 = vsel %vm7586, %v7658, %v7654
        %v7660 = vlaneseq
        %v7661 = vshrl.u32 %v7660, 7
        %v7662 = vsub.s32 %v7576, %v7661
        %v7663 = vrot.slane %v7439, %v7662
        %v7664 = vlaneseq
        %v7665 = vshrl.u32 %v7664, 7
        %v7666 = vsub.s32 %v7581, %v7665
        %v7667 = vrot.slane %v7442, %v7666
        %v7668 = vsel %vm7586, %v7667, %v7663
        %v7669 = vlaneseq
        %v7670 = vshrl.u32 %v7669, 7
        %v7671 = vsub.s32 %v7576, %v7670
        %v7672 = vrot.slane %v7445, %v7671
        %v7673 = vlaneseq
        %v7674 = vshrl.u32 %v7673, 7
        %v7675 = vsub.s32 %v7581, %v7674
        %v7676 = vrot.slane %v7448, %v7675
        %v7677 = vsel %vm7586, %v7676, %v7672
        %v7678 = vlaneseq
        %v7679 = vshrl.u32 %v7678, 7
        %v7680 = vsub.s32 %v7576, %v7679
        %v7681 = vrot.slane %v7451, %v7680
        %v7682 = vlaneseq
        %v7683 = vshrl.u32 %v7682, 7
        %v7684 = vsub.s32 %v7581, %v7683
        %v7685 = vrot.slane %v7454, %v7684
        %v7686 = vsel %vm7586, %v7685, %v7681
        %v7687 = vlaneseq
        %v7688 = vshrl.u32 %v7687, 7
        %v7689 = vsub.s32 %v7576, %v7688
        %v7690 = vrot.slane %v7457, %v7689
        %v7691 = vlaneseq
        %v7692 = vshrl.u32 %v7691, 7
        %v7693 = vsub.s32 %v7581, %v7692
        %v7694 = vrot.slane %v7460, %v7693
        %v7695 = vsel %vm7586, %v7694, %v7690
        %v7696 = vlaneseq
        %v7697 = vshrl.u32 %v7696, 7
        %v7698 = vsub.s32 %v7576, %v7697
        %v7699 = vrot.slane %v7463, %v7698
        %v7700 = vlaneseq
        %v7701 = vshrl.u32 %v7700, 7
        %v7702 = vsub.s32 %v7581, %v7701
        %v7703 = vrot.slane %v7466, %v7702
        %v7704 = vsel %vm7586, %v7703, %v7699
        %v7705 = vlaneseq
        %v7706 = vshrl.u32 %v7705, 7
        %v7707 = vsub.s32 %v7576, %v7706
        %v7708 = vrot.slane %v7469, %v7707
        %v7709 = vlaneseq
        %v7710 = vshrl.u32 %v7709, 7
        %v7711 = vsub.s32 %v7581, %v7710
        %v7712 = vrot.slane %v7472, %v7711
        %v7713 = vsel %vm7586, %v7712, %v7708
        %v7714 = vlaneseq
        %v7715 = vshrl.u32 %v7714, 7
        %v7716 = vsub.s32 %v7576, %v7715
        %v7717 = vrot.slane %v7475, %v7716
        %v7718 = vlaneseq
        %v7719 = vshrl.u32 %v7718, 7
        %v7720 = vsub.s32 %v7581, %v7719
        %v7721 = vrot.slane %v7478, %v7720
        %v7722 = vsel %vm7586, %v7721, %v7717
        %v7723 = vlaneseq
        %v7724 = vshrl.u32 %v7723, 7
        %v7725 = vsub.s32 %v7576, %v7724
        %v7726 = vrot.slane %v7481, %v7725
        %v7727 = vlaneseq
        %v7728 = vshrl.u32 %v7727, 7
        %v7729 = vsub.s32 %v7581, %v7728
        %v7730 = vrot.slane %v7484, %v7729
        %v7731 = vsel %vm7586, %v7730, %v7726
        %v7732 = vlaneseq
        %v7733 = vshrl.u32 %v7732, 7
        %v7734 = vsub.s32 %v7576, %v7733
        %v7735 = vrot.slane %v7487, %v7734
        %v7736 = vlaneseq
        %v7737 = vshrl.u32 %v7736, 7
        %v7738 = vsub.s32 %v7581, %v7737
        %v7739 = vrot.slane %v7490, %v7738
        %v7740 = vsel %vm7586, %v7739, %v7735
        %v7741 = vlaneseq
        %v7742 = vshrl.u32 %v7741, 7
        %v7743 = vsub.s32 %v7576, %v7742
        %v7744 = vrot.slane %v7493, %v7743
        %v7745 = vlaneseq
        %v7746 = vshrl.u32 %v7745, 7
        %v7747 = vsub.s32 %v7581, %v7746
        %v7748 = vrot.slane %v7496, %v7747
        %v7749 = vsel %vm7586, %v7748, %v7744
        %v7750 = vlaneseq
        %v7751 = vshrl.u32 %v7750, 7
        %v7752 = vsub.s32 %v7576, %v7751
        %v7753 = vrot.slane %v7499, %v7752
        %v7754 = vlaneseq
        %v7755 = vshrl.u32 %v7754, 7
        %v7756 = vsub.s32 %v7581, %v7755
        %v7757 = vrot.slane %v7502, %v7756
        %v7758 = vsel %vm7586, %v7757, %v7753
        %v7759 = vlaneseq
        %v7760 = vshrl.u32 %v7759, 7
        %v7761 = vsub.s32 %v7576, %v7760
        %v7762 = vrot.slane %v7505, %v7761
        %v7763 = vlaneseq
        %v7764 = vshrl.u32 %v7763, 7
        %v7765 = vsub.s32 %v7581, %v7764
        %v7766 = vrot.slane %v7508, %v7765
        %v7767 = vsel %vm7586, %v7766, %v7762
        %v7768 = vlaneseq
        %v7769 = vshrl.u32 %v7768, 7
        %v7770 = vsub.s32 %v7576, %v7769
        %v7771 = vrot.slane %v7511, %v7770
        %v7772 = vlaneseq
        %v7773 = vshrl.u32 %v7772, 7
        %v7774 = vsub.s32 %v7581, %v7773
        %v7775 = vrot.slane %v7514, %v7774
        %v7776 = vsel %vm7586, %v7775, %v7771
        %v7777 = vlaneseq
        %v7778 = vshrl.u32 %v7777, 7
        %v7779 = vsub.s32 %v7576, %v7778
        %v7780 = vrot.slane %v7517, %v7779
        %v7781 = vlaneseq
        %v7782 = vshrl.u32 %v7781, 7
        %v7783 = vsub.s32 %v7581, %v7782
        %v7784 = vrot.slane %v7520, %v7783
        %v7785 = vsel %vm7586, %v7784, %v7780
        %v7786 = vlaneseq
        %v7787 = vshrl.u32 %v7786, 7
        %v7788 = vsub.s32 %v7576, %v7787
        %v7789 = vrot.slane %v7523, %v7788
        %v7790 = vlaneseq
        %v7791 = vshrl.u32 %v7790, 7
        %v7792 = vsub.s32 %v7581, %v7791
        %v7793 = vrot.slane %v7526, %v7792
        %v7794 = vsel %vm7586, %v7793, %v7789
        %v7795 = vlaneseq
        %v7796 = vshrl.u32 %v7795, 7
        %v7797 = vsub.s32 %v7576, %v7796
        %v7798 = vrot.slane %v7529, %v7797
        %v7799 = vlaneseq
        %v7800 = vshrl.u32 %v7799, 7
        %v7801 = vsub.s32 %v7581, %v7800
        %v7802 = vrot.slane %v7532, %v7801
        %v7803 = vsel %vm7586, %v7802, %v7798
        %v7804 = vlaneseq
        %v7805 = vshrl.u32 %v7804, 7
        %v7806 = vsub.s32 %v7576, %v7805
        %v7807 = vrot.slane %v7535, %v7806
        %v7808 = vlaneseq
        %v7809 = vshrl.u32 %v7808, 7
        %v7810 = vsub.s32 %v7581, %v7809
        %v7811 = vrot.slane %v7538, %v7810
        %v7812 = vsel %vm7586, %v7811, %v7807
        %v7813 = vlaneseq
        %v7814 = vshrl.u32 %v7813, 7
        %v7815 = vsub.s32 %v7576, %v7814
        %v7816 = vrot.slane %v7541, %v7815
        %v7817 = vlaneseq
        %v7818 = vshrl.u32 %v7817, 7
        %v7819 = vsub.s32 %v7581, %v7818
        %v7820 = vrot.slane %v7544, %v7819
        %v7821 = vsel %vm7586, %v7820, %v7816
        %v7822 = vlaneseq
        %v7823 = vshrl.u32 %v7822, 7
        %v7824 = vsub.s32 %v7576, %v7823
        %v7825 = vrot.slane %v7547, %v7824
        %v7826 = vlaneseq
        %v7827 = vshrl.u32 %v7826, 7
        %v7828 = vsub.s32 %v7581, %v7827
        %v7829 = vrot.slane %v7550, %v7828
        %v7830 = vsel %vm7586, %v7829, %v7825
        %v7831 = vlaneseq
        %v7832 = vshrl.u32 %v7831, 7
        %v7833 = vsub.s32 %v7576, %v7832
        %v7834 = vrot.slane %v7553, %v7833
        %v7835 = vlaneseq
        %v7836 = vshrl.u32 %v7835, 7
        %v7837 = vsub.s32 %v7581, %v7836
        %v7838 = vrot.slane %v7556, %v7837
        %v7839 = vsel %vm7586, %v7838, %v7834
        %v7840 = vlaneseq
        %v7841 = vshrl.u32 %v7840, 7
        %v7842 = vsub.s32 %v7576, %v7841
        %v7843 = vrot.slane %v7559, %v7842
        %v7844 = vlaneseq
        %v7845 = vshrl.u32 %v7844, 7
        %v7846 = vsub.s32 %v7581, %v7845
        %v7847 = vrot.slane %v7562, %v7846
        %v7848 = vsel %vm7586, %v7847, %v7843
        %v7849 = vlaneseq
        %v7850 = vshrl.u32 %v7849, 7
        %v7851 = vsub.s32 %v7576, %v7850
        %v7852 = vrot.slane %v7565, %v7851
        %v7853 = vlaneseq
        %v7854 = vshrl.u32 %v7853, 7
        %v7855 = vsub.s32 %v7581, %v7854
        %v7856 = vrot.slane %v7568, %v7855
        %v7857 = vsel %vm7586, %v7856, %v7852
        %v7858 = vlaneseq
        %v7859 = vshrl.u32 %v7858, 7
        %v7860 = vsub.s32 %v7576, %v7859
        %v7861 = vrot.slane %v7571, %v7860
        %v7862 = vlaneseq
        %v7863 = vshrl.u32 %v7862, 7
        %v7864 = vsub.s32 %v7581, %v7863
        %v7865 = vrot.slane %v7574, %v7864
        %v7866 = vsel %vm7586, %v7865, %v7861
        %vm7867 = vcmask 1041409
        %v7868 = vsel %vm7867, %v7596, %v7587
        %vm7869 = vcmask 1042434
        %v7870 = vsel %vm7869, %v7605, %v7868
        %vm7871 = vcmask 1043459
        %v7872 = vsel %vm7871, %v7614, %v7870
        %vm7873 = vcmask 1044484
        %v7874 = vsel %vm7873, %v7623, %v7872
        %vm7875 = vcmask 1045509
        %v7876 = vsel %vm7875, %v7632, %v7874
        %vm7877 = vcmask 1046534
        %v7878 = vsel %vm7877, %v7641, %v7876
        %vm7879 = vcmask 1047559
        %v7880 = vsel %vm7879, %v7650, %v7878
        %v7881 = vsel %vm7867, %v7668, %v7659
        %v7882 = vsel %vm7869, %v7677, %v7881
        %v7883 = vsel %vm7871, %v7686, %v7882
        %v7884 = vsel %vm7873, %v7695, %v7883
        %v7885 = vsel %vm7875, %v7704, %v7884
        %v7886 = vsel %vm7877, %v7713, %v7885
        %v7887 = vsel %vm7879, %v7722, %v7886
        %v7888 = vsel %vm7867, %v7740, %v7731
        %v7889 = vsel %vm7869, %v7749, %v7888
        %v7890 = vsel %vm7871, %v7758, %v7889
        %v7891 = vsel %vm7873, %v7767, %v7890
        %v7892 = vsel %vm7875, %v7776, %v7891
        %v7893 = vsel %vm7877, %v7785, %v7892
        %v7894 = vsel %vm7879, %v7794, %v7893
        %v7895 = vsel %vm7867, %v7812, %v7803
        %v7896 = vsel %vm7869, %v7821, %v7895
        %v7897 = vsel %vm7871, %v7830, %v7896
        %v7898 = vsel %vm7873, %v7839, %v7897
        %v7899 = vsel %vm7875, %v7848, %v7898
        %v7900 = vsel %vm7877, %v7857, %v7899
        %v7901 = vsel %vm7879, %v7866, %v7900
        %v7902 = vsel %vm273, %v7880, 0
        %v7904 = vsel %vm273, %v7887, 0
        %v7906 = vsel %vm273, %v7894, 0
        %v7908 = vsel %vm273, %v7901, 0
        %7910 = vmatprep.subr.mxu0 0.0
        %7911 = vmatpush1.msra.mxu0 0.0
        %7912 = vmatprep.subr.mxu0 0.0
        %7913 = vmatpush1.msra.mxu0 0.0
        %7914 = vmatprep.subr.mxu0 0.0
        %7915 = vmatpush1.msra.mxu0 0.0
        %7916 = vmatprep.subr.mxu0 0.0
        %7917 = vmatpush1.msra.mxu0 0.0
        %7918 = vmatprep.subr.mxu0 0.0
        %7919 = vmatpush1.msra.mxu0 0.0
        %7920 = vmatprep.subr.mxu0 0.0
        %7921 = vmatpush1.msra.mxu0 0.0
        %7922 = vmatprep.subr.mxu0 0.0
        %7923 = vmatpush1.msra.mxu0 0.0
        %7924 = vmatprep.subr.mxu0 0.0
        %7925 = vmatpush1.msra.mxu0 0.0
        %7926 = vmatprep.subr.mxu0 0.0
        %7927 = vmatpush1.msra.mxu0 0.0
        %7928 = vmatprep.subr.mxu0 0.0
        %7929 = vmatpush1.msra.mxu0 0.0
        %7930 = vmatprep.subr.mxu0 0.0
        %7931 = vmatpush1.msra.mxu0 0.0
        %7932 = vmatprep.subr.mxu0 0.0
        %7933 = vmatpush1.msra.mxu0 0.0
        %7934 = vmatprep.subr.mxu0 0.0
        %7935 = vmatpush1.msra.mxu0 0.0
        %7936 = vmatprep.subr.mxu0 0.0
        %7937 = vmatpush1.msra.mxu0 0.0
        %7938 = vmatprep.subr.mxu0 0.0
        %7939 = vmatpush1.msra.mxu0 %v7318
        %7940 = vmatprep.subr.mxu0 0.0
        %7941 = vmatpush1.msra.mxu0 %v7317
        %7942 = vmatprep.subr.mxu0 0.0
        %7943 = vmatpush2.msra.mxu0 0.0
        %7944 = vmatprep.subr.mxu0 0.0
        %7945 = vmatpush2.msra.mxu0 0.0
        %7946 = vmatprep.subr.mxu0 0.0
        %7947 = vmatpush2.msra.mxu0 0.0
        %7948 = vmatprep.subr.mxu0 0.0
        %7949 = vmatpush2.msra.mxu0 0.0
        %7950 = vmatprep.subr.mxu0 0.0
        %7951 = vmatpush2.msra.mxu0 0.0
        %7952 = vmatprep.subr.mxu0 0.0
        %7953 = vmatpush2.msra.mxu0 0.0
        %7954 = vmatprep.subr.mxu0 0.0
        %7955 = vmatpush2.msra.mxu0 0.0
        %7956 = vmatprep.subr.mxu0 0.0
        %7957 = vmatpush2.msra.mxu0 0.0
        %7958 = vmatprep.subr.mxu0 0.0
        %7959 = vmatpush2.msra.mxu0 0.0
        %7960 = vmatprep.subr.mxu0 0.0
        %7961 = vmatpush2.msra.mxu0 0.0
        %7962 = vmatprep.subr.mxu0 0.0
        %7963 = vmatpush2.msra.mxu0 0.0
        %7964 = vmatprep.subr.mxu0 0.0
        %7965 = vmatpush2.msra.mxu0 0.0
        %7966 = vmatprep.subr.mxu0 0.0
        %7967 = vmatpush2.msra.mxu0 0.0
        %7968 = vmatprep.subr.mxu0 0.0
        %7969 = vmatpush2.msra.mxu0 0.0
        %7970 = vmatprep.subr.mxu0 0.0
        %7971 = vmatpush2.msra.mxu0 0.0
        %7972 = vmatprep.subr.mxu0 0.0
        %7973 = vmatpush2.msra.mxu0 0.0
        %7974 = vmatprep.mubr.f32.mxu0 0.0
        %7975 = vmatmul.mubr.f32.gmra.mxu0 %v7902
        %v7976 = vpop.f32.mrf.mxu0
        %v7977 = vadd.f32 0.0, %v7976
        %v7978 = vpop.f32.mrf.mxu0
        %7979 = vmatprep.mubr.f32.mxu0 0.0
        %7980 = vmatmul.mubr.f32.gmra.mxu0 %v7904
        %v7981 = vpop.f32.mrf.mxu0
        %v7982 = vadd.f32 0.0, %v7981
        %v7983 = vpop.f32.mrf.mxu0
        %7984 = vmatprep.mubr.f32.mxu0 0.0
        %7985 = vmatmul.mubr.f32.gmra.mxu0 %v7906
        %v7986 = vpop.f32.mrf.mxu0
        %v7987 = vadd.f32 0.0, %v7986
        %v7988 = vpop.f32.mrf.mxu0
        %7989 = vmatprep.mubr.f32.mxu0 0.0
        %7990 = vmatmul.mubr.f32.gmra.mxu0 %v7908
        %v7991 = vpop.f32.mrf.mxu0
        %v7992 = vadd.f32 0.0, %v7991
        %v7993 = vpop.f32.mrf.mxu0
        %7994 = vdwg.mxu0
        %7995 = vst [vmem:[%s193] sm:$0xff] %v7977
        %7996 = vst [vmem:[%s193 + $0x8] sm:$0xff] %v7982
        %7997 = vst [vmem:[%s193 + $0x10] sm:$0xff] %v7987
        %7998 = vst [vmem:[%s193 + $0x18] sm:$0xff] %v7992
        %s7999 = sand.u32 %s115, 1
        %s8000 = scalar_lea.sflag [#allocation3], %s7999
        %s8001 = sand.u32 %s115, 1
        %s8002 = smul.addr %s8001, 32
        %s8003 = scalar_lea.vmem [#allocation2], %s8002
        // Predicated region
        $region37: #{tpu_custom_call.1} parent=35 // pred_check
          %p8004 = pneg %p125
        $region38: #{tpu_custom_call.1} parent=35 // pred_check_branch
          %8006 = sbr.rel (%p8004) target = $region40
        $region39: #{tpu_custom_call.1} parent=35 // pred_region
          %s8007 = smul.u32 4, %s18
          %s8009 = ssub.s32 512, 512
          %8010 = vsyncadd %s8000, %s8009
          %s8011 = smul.addr %s8007, 128
          %s8012 = scalar_lea.hbm %s4, %s8011
          %s8013 = sshll.u32 %s8003, 4
          %s8014 = int_to_ptr.vmem [resolvable:$true] %s8013
          %8019 = dma.vmem_to_hbm [thread:$0]  %s8014, 512, %s8012, %s8000, 128, 128, 8
        $region40: #{tpu_custom_call.1} parent=35 // pred_fallthru
          _
      $region36: #{tpu_custom_call.1} parent=5 // pred_fallthru
        _
      %p8020 = scmp.le.s32.totalorder 2, %s13
      // Predicated region
      $region41: #{tpu_custom_call.1} parent=5 // pred_check
        %p8021 = pneg %p8020
      $region42: #{tpu_custom_call.1} parent=5 // pred_check_branch
        %8023 = sbr.rel (%p8021) target = $region44
      $region43: #{tpu_custom_call.1} parent=5 // pred_region
        %s8024 = ssub.s32 %s13, 2
        // Predicated region
        $region45: #{tpu_custom_call.1} parent=43 // pred_check
          %p8025 = pneg %p131
        $region46: #{tpu_custom_call.1} parent=43 // pred_check_branch
          %8027 = sbr.rel (%p8025) target = $region48
        $region47: #{tpu_custom_call.1} parent=43 // pred_region
          %s8028 = sand.u32 %s116, 1
          %s8029 = scalar_lea.sflag [#allocation3], %s8028
          %s8030 = sand.u32 %s116, 1
          %s8031 = smul.addr %s8030, 32
          %s8032 = scalar_lea.vmem [#allocation2], %s8031
          %8033 = dma.done %s8029, 512
        $region48: #{tpu_custom_call.1} parent=43 // pred_fallthru
          _
      $region44: #{tpu_custom_call.1} parent=5 // pred_fallthru
        _
    $region6: #{tpu_custom_call.1} parent=1 // loop_footer
      %s17 = sadd.s32 1, %s13
    $region7: #{tpu_custom_call.1} parent=1 // loop_footer_branch
      %12 = sbr.rel target = $region3
    $region8: #{tpu_custom_call.1} parent=1 // loop_exit
      _
    %8034 = vsyncpa [#allocation3], 1
    %s8035 = scalar_lea.sflag [#allocation3], 1
    %8036 = vsyncpa %s8035, 1

</llo_original>
